<compile_context>
chip_gen: v7x
topology: tpu7x:2x2x1
jax: 0.10.0
libtpu: 0.0.40
codegen_flags: <defaults>
</compile_context>

<pallas_src>
import functools

import jax
import jax.numpy as jnp
from jax import lax
from jax.experimental import pallas as pl
from jax.experimental.pallas import tpu as pltpu

MLP_HIDDEN = 100            # logical internal MLP width (PyTorch default)
HP = 128                    # lane-padded internal MLP width (exact: zero-pad)
LN_EPS = 1e-5
TM_CAP = 256                # row-tile cap for the MLP kernel
TE_CAP = 256                # edge-tile cap for the scatter kernel
VMEM_LIMIT = 32 * 1024 * 1024   # explicit scoped-VMEM budget (safe on v5e..v7x)


def _round_up(x, m):
    return ((x + m - 1) // m) * m


def _row_tiling(m, cap):
    """Adaptive row tile: whole (8-aligned) array if small, else `cap`."""
    m8 = _round_up(m, 8)
    if m8 <= cap:
        return m8, m8
    return cap, _round_up(m, cap)


# ----------------------------------------------------------------------------
# Pallas kernels
# ----------------------------------------------------------------------------
def _make_mlp_kernel(n_segs, use_ln, has_res):
    def kernel(*refs):
        xs = refs[:n_segs]
        pos = n_segs
        w1s = refs[pos:pos + n_segs]; pos += n_segs
        b1, w2, b2, w3, b3, w4, b4 = refs[pos:pos + 7]; pos += 7
        if use_ln:
            gamma, beta = refs[pos:pos + 2]; pos += 2
        if has_res:
            res = refs[pos]; pos += 1
        o_ref = refs[pos]

        # fused "concat" : sum of per-segment matmuls on the MXU (bf16 in, f32 acc)
        acc = None
        for xr, wr in zip(xs, w1s):
            d = jnp.dot(xr[...].astype(jnp.bfloat16), wr[...],
                        preferred_element_type=jnp.float32)
            acc = d if acc is None else acc + d
        h = jnp.maximum(acc + b1[...], 0.0)
        h = jnp.maximum(jnp.dot(h.astype(jnp.bfloat16), w2[...],
                                preferred_element_type=jnp.float32) + b2[...], 0.0)
        h = jnp.maximum(jnp.dot(h.astype(jnp.bfloat16), w3[...],
                                preferred_element_type=jnp.float32) + b3[...], 0.0)
        y = jnp.dot(h.astype(jnp.bfloat16), w4[...],
                    preferred_element_type=jnp.float32) + b4[...]
        if use_ln:
            n = y.shape[-1]
            s = jnp.sum(y, axis=-1, keepdims=True)
            sq = jnp.sum(y * y, axis=-1, keepdims=True)
            mean = s * (1.0 / n)
            var = jnp.maximum(sq * (1.0 / n) - mean * mean, 0.0)   # one-pass stats
            y = (y - mean) * lax.rsqrt(var + LN_EPS) * gamma[...] + beta[...]
        if has_res:
            y = y + res[...]                                        # fused residual
        o_ref[...] = y
    return kernel


def mlp_apply(p, inputs, use_ln, residual=None):
    """Fused 4-layer MLP (+optional LayerNorm, +optional residual add).

    `inputs` is a list of [M, d_i] arrays; their (virtual) concatenation is the
    MLP input.  The concat never materialises: the first Linear is split into
    per-segment matmuls inside the kernel.
    """
    inputs = [a.astype(jnp.float32) for a in inputs]
    M = inputs[0].shape[0]
    dims = [a.shape[1] for a in inputs]
    n_out = p["w4"].shape[1]

    TM, Mp = _row_tiling(M, TM_CAP)
    pad = Mp - M

    def pad_rows(a):
        return a if pad == 0 else jnp.pad(a, ((0, pad), (0, 0)))

    xs = [pad_rows(a) for a in inputs]

    # split the (already hidden-padded, bf16) first-layer weight per segment
    offs = [0]
    for d in dims:
        offs.append(offs[-1] + d)
    w1_segs = [p["w1"][offs[i]:offs[i + 1]] for i in range(len(dims))]

    args, in_specs = [], []
    for a, d in zip(xs, dims):
        args.append(a)
        in_specs.append(pl.BlockSpec((TM, d), lambda i: (i, 0)))
    for w in w1_segs:
        args.append(w)
        in_specs.append(pl.BlockSpec(w.shape, lambda i: (0, 0)))
    for name in ("b1", "w2", "b2", "w3", "b3", "w4", "b4"):
        a = p[name]
        args.append(a)
        in_specs.append(pl.BlockSpec(a.shape, lambda i: (0, 0)))
    if use_ln:
        for name in ("gamma", "beta"):
            a = p[name]
            args.append(a)
            in_specs.append(pl.BlockSpec(a.shape, lambda i: (0, 0)))
    has_res = residual is not None
    if has_res:
        args.append(pad_rows(residual.astype(jnp.float32)))
        in_specs.append(pl.BlockSpec((TM, n_out), lambda i: (i, 0)))

    out = pl.pallas_call(
        _make_mlp_kernel(len(xs), use_ln, has_res),
        out_shape=jax.ShapeDtypeStruct((Mp, n_out), jnp.float32),
        grid=(Mp // TM,),
        in_specs=in_specs,
        out_specs=pl.BlockSpec((TM, n_out), lambda i: (i, 0)),
        compiler_params=pltpu.CompilerParams(
            dimension_semantics=("parallel",),
            vmem_limit_bytes=VMEM_LIMIT),
    )(*args)
    return out[:M] if pad else out


def _scatter_sum_kernel(idx_ref, msg_ref, out_ref):
    # accumulate over the edge grid axis; output block resident across it
    @pl.when(pl.program_id(0) == 0)
    def _():
        out_ref[...] = jnp.zeros_like(out_ref)
    idx = idx_ref[...]                                   # (1, TE) int32
    n_out = out_ref.shape[0]
    iota = lax.broadcasted_iota(jnp.int32, (n_out, idx.shape[1]), 0)
    onehot = (iota == idx).astype(jnp.float32)           # exact 0/1
    out_ref[...] += jnp.dot(onehot, msg_ref[...], preferred_element_type=jnp.float32)


def scatter_sum(msg, index, dim_size):
    """scatter_sum(msg, index, dim=0, dim_size=dim_size) via a tiled one-hot matmul.

    Out-of-range / padded indices (== dim_size) never match the iota and are dropped.
    """
    E, H = msg.shape
    TE, Ep = _row_tiling(E, TE_CAP)
    pad = Ep - E
    msg_p = msg.astype(jnp.float32)
    idx_p = index.astype(jnp.int32)
    if pad:
        msg_p = jnp.pad(msg_p, ((0, pad), (0, 0)))
        idx_p = jnp.pad(idx_p, (0, pad), constant_values=dim_size)
    idx2 = idx_p.reshape(1, Ep)
    # TODO(synk): also tile the dim_size (output-row) axis for very large graphs.
    return pl.pallas_call(
        _scatter_sum_kernel,
        out_shape=jax.ShapeDtypeStruct((dim_size, H), jnp.float32),
        grid=(Ep // TE,),
        in_specs=[
            pl.BlockSpec((1, TE), lambda k: (0, k)),
            pl.BlockSpec((TE, H), lambda k: (k, 0)),
        ],
        out_specs=pl.BlockSpec((dim_size, H), lambda k: (0, 0)),
        compiler_params=pltpu.CompilerParams(
            dimension_semantics=("arbitrary",),
            vmem_limit_bytes=VMEM_LIMIT),
    )(idx2, msg_p)


# ----------------------------------------------------------------------------
# Parameter init (deterministic, synthetic).  Internal hidden is created at the
# logical width (100) and zero-padded to HP=128 -> numerically identical to the
# hidden=100 PyTorch MLP, but lane-dense on TPU.  Weights stored bf16, biases /
# LN affine params stored f32.
# ----------------------------------------------------------------------------
def init_linear(key, n_in, n_out):
    k1, k2 = jax.random.split(key)
    bound = float(n_in) ** -0.5
    w = jax.random.uniform(k1, (n_in, n_out), jnp.float32, -bound, bound)
    b = jax.random.uniform(k2, (n_out,), jnp.float32, -bound, bound)
    return w, b


def init_mlp(key, n_in, n_out, hidden=MLP_HIDDEN, layer_norm=False):
    keys = jax.random.split(key, 4)
    w1, b1 = init_linear(keys[0], n_in, hidden)
    w2, b2 = init_linear(keys[1], hidden, hidden)
    w3, b3 = init_linear(keys[2], hidden, hidden)
    w4, b4 = init_linear(keys[3], hidden, n_out)
    ph = HP - hidden
    p = {
        "w1": jnp.pad(w1, ((0, 0), (0, ph))).astype(jnp.bfloat16),
        "b1": jnp.pad(b1, (0, ph)).reshape(1, -1),
        "w2": jnp.pad(w2, ((0, ph), (0, ph))).astype(jnp.bfloat16),
        "b2": jnp.pad(b2, (0, ph)).reshape(1, -1),
        "w3": jnp.pad(w3, ((0, ph), (0, ph))).astype(jnp.bfloat16),
        "b3": jnp.pad(b3, (0, ph)).reshape(1, -1),
        "w4": jnp.pad(w4, ((0, ph), (0, 0))).astype(jnp.bfloat16),
        "b4": b4.reshape(1, -1),
    }
    if layer_norm:
        p["gamma"] = jnp.ones((1, n_out), jnp.float32)
        p["beta"] = jnp.zeros((1, n_out), jnp.float32)
    return p


def init_gnn(key, hidden, n_in=1, n_edge=3, n_out=1, blocks=5):
    keys = jax.random.split(key, 3 + 4 * blocks)
    params = {
        "node_enc": init_mlp(keys[0], n_in, hidden, layer_norm=True),
        "edge_enc": init_mlp(keys[1], n_edge, hidden, layer_norm=True),
        "decoder": init_mlp(keys[2], hidden, n_out, layer_norm=False),
        "blocks": [],
    }
    for b in range(blocks):
        k = keys[3 + 4 * b: 3 + 4 * (b + 1)]
        params["blocks"].append({
            "edge":   init_mlp(k[0], hidden * 4, hidden, layer_norm=True),
            "node1":  init_mlp(k[1], hidden * 2, hidden, layer_norm=True),
            "node2":  init_mlp(k[2], hidden * 3, hidden, layer_norm=True),
            "global": init_mlp(k[3], hidden * 2, hidden, layer_norm=True),
        })
    return params


# ----------------------------------------------------------------------------
# GNN forward (MetaLayer semantics from torch_geometric)
# ----------------------------------------------------------------------------
def gnn_forward(params, node_feat, edge_index, batch, num_graphs, hidden,
                decode_on="node"):
    # node_feat: [N, 4]  (cols 0:3 = positions, col 3 = scalar node feature)
    x = mlp_apply(params["node_enc"], [node_feat[:, 3:4]], use_ln=True)
    pos = node_feat[:, :3]
    row, col = edge_index[0], edge_index[1]
    e = mlp_apply(params["edge_enc"], [pos[row] - pos[col]], use_ln=True)
    u = jnp.zeros((num_graphs, hidden), jnp.float32)

    N = x.shape[0]
    for blk in params["blocks"]:
        # --- EdgeModel:  e = e + MLP(cat[x[row], x[col], e, u[batch[row]]]) ---
        src, dest = x[row], x[col]
        edge_batch = batch[row]
        e = mlp_apply(blk["edge"], [src, dest, e, u[edge_batch]],
                      use_ln=True, residual=e)
        # --- NodeModel ---
        m = mlp_apply(blk["node1"], [src, e], use_ln=True)
        agg = scatter_sum(m, col, N)
        x = mlp_apply(blk["node2"], [x, agg, u[batch]], use_ln=True, residual=x)
        # --- GlobalModel ---
        gagg = scatter_sum(x, batch, num_graphs)
        u = mlp_apply(blk["global"], [u, gagg], use_ln=True, residual=u)

    if decode_on == "node":
        return mlp_apply(params["decoder"], [x], use_ln=False)
    else:  # decode_on == "global"
        return mlp_apply(params["decoder"], [u], use_ln=False)


# ----------------------------------------------------------------------------
if __name__ == "__main__":
    HIDDEN = 128                      # lane-aligned GNN width
    N_NODES, N_EDGES, N_GRAPHS = 16, 32, 2

    key = jax.random.PRNGKey(0)
    kp, kx, ke = jax.random.split(key, 3)

    params = init_gnn(kp, HIDDEN, n_in=1, n_edge=3, n_out=1, blocks=5)

    node_feat = jax.random.normal(kx, (N_NODES, 4), jnp.float32)   # graph.x
    # edges stay within each graph (first 8 nodes = graph 0, last 8 = graph 1)
    e0 = jax.random.randint(ke, (2, N_EDGES // 2), 0, N_NODES // 2)
    e1 = jax.random.randint(jax.random.fold_in(ke, 1), (2, N_EDGES // 2),
                            N_NODES // 2, N_NODES)
    edge_index = jnp.concatenate([e0, e1], axis=1).astype(jnp.int32)
    batch = jnp.concatenate([
        jnp.zeros((N_NODES // 2,), jnp.int32),
        jnp.ones((N_NODES // 2,), jnp.int32),
    ])

    fwd = jax.jit(functools.partial(gnn_forward, num_graphs=N_GRAPHS,
                                    hidden=HIDDEN, decode_on="node"))
    out = fwd(params, node_feat, edge_index, batch)
    out = jax.block_until_ready(out)
    assert out.shape == (N_NODES, 1) and out.dtype == jnp.float32
    assert bool(jnp.all(jnp.isfinite(out)))
    print("KERNEL_OK")
</pallas_src>

<mosaic_0001>
module attributes {stable_mosaic.version = 11 : i64} {
  func.func @kernel(%arg0: i32, %arg1: memref<32x3xf32, #tpu.memory_space<vmem>>, %arg2: memref<3x128xbf16, #tpu.memory_space<vmem>>, %arg3: memref<1x128xf32, #tpu.memory_space<vmem>>, %arg4: memref<128x128xbf16, #tpu.memory_space<vmem>>, %arg5: memref<1x128xf32, #tpu.memory_space<vmem>>, %arg6: memref<128x128xbf16, #tpu.memory_space<vmem>>, %arg7: memref<1x128xf32, #tpu.memory_space<vmem>>, %arg8: memref<128x128xbf16, #tpu.memory_space<vmem>>, %arg9: memref<1x128xf32, #tpu.memory_space<vmem>>, %arg10: memref<1x128xf32, #tpu.memory_space<vmem>>, %arg11: memref<1x128xf32, #tpu.memory_space<vmem>>, %arg12: memref<32x128xf32, #tpu.memory_space<vmem>>) attributes {dimension_semantics = [#tpu.dimension_semantics<parallel>], iteration_bounds = array<i64: 1>, scalar_prefetch = 0 : i64, scratch_operands = 0 : i64, tpu.core_type = #tpu.core_type<tc>, window_params = [{transform_indices = @transform_0, window_bounds = array<i64: 32, 3>}, {pipeline_mode = #tpu.pipeline_mode<synchronous>, transform_indices = @transform_1, window_bounds = array<i64: 3, 128>}, {pipeline_mode = #tpu.pipeline_mode<synchronous>, transform_indices = @transform_2, window_bounds = array<i64: 1, 128>}, {pipeline_mode = #tpu.pipeline_mode<synchronous>, transform_indices = @transform_3, window_bounds = array<i64: 128, 128>}, {pipeline_mode = #tpu.pipeline_mode<synchronous>, transform_indices = @transform_4, window_bounds = array<i64: 1, 128>}, {pipeline_mode = #tpu.pipeline_mode<synchronous>, transform_indices = @transform_5, window_bounds = array<i64: 128, 128>}, {pipeline_mode = #tpu.pipeline_mode<synchronous>, transform_indices = @transform_6, window_bounds = array<i64: 1, 128>}, {pipeline_mode = #tpu.pipeline_mode<synchronous>, transform_indices = @transform_7, window_bounds = array<i64: 128, 128>}, {pipeline_mode = #tpu.pipeline_mode<synchronous>, transform_indices = @transform_8, window_bounds = array<i64: 1, 128>}, {pipeline_mode = #tpu.pipeline_mode<synchronous>, transform_indices = @transform_9, window_bounds = array<i64: 1, 128>}, {pipeline_mode = #tpu.pipeline_mode<synchronous>, transform_indices = @transform_10, window_bounds = array<i64: 1, 128>}, {transform_indices = @transform_11, window_bounds = array<i64: 32, 128>}]} {
    %c0 = arith.constant 0 : index
    %c0_0 = arith.constant 0 : index
    %0 = vector.load %arg1[%c0, %c0_0] : memref<32x3xf32, #tpu.memory_space<vmem>>, vector<32x3xf32>
    %1 = arith.truncf %0 : vector<32x3xf32> to vector<32x3xbf16>
    %c0_1 = arith.constant 0 : index
    %c0_2 = arith.constant 0 : index
    %2 = vector.load %arg2[%c0_1, %c0_2] : memref<3x128xbf16, #tpu.memory_space<vmem>>, vector<3x128xbf16>
    %cst = arith.constant dense<0.000000e+00> : vector<32x128xf32>
    %3 = tpu.matmul %1, %2, %cst {dimension_numbers = #tpu.dot_dimension_numbers<[1], [0], [0], [1], [0, 0, 1, 1], [], []>} : vector<32x3xbf16>, vector<3x128xbf16>, vector<32x128xf32> -> vector<32x128xf32>
    %c0_3 = arith.constant 0 : index
    %c0_4 = arith.constant 0 : index
    %4 = vector.load %arg3[%c0_3, %c0_4] : memref<1x128xf32, #tpu.memory_space<vmem>>, vector<1x128xf32>
    %5 = vector.broadcast %4 : vector<1x128xf32> to vector<32x128xf32>
    %6 = arith.addf %3, %5 : vector<32x128xf32>
    %cst_5 = arith.constant 0.000000e+00 : f32
    %7 = vector.broadcast %cst_5 : f32 to vector<32x128xf32>
    %8 = arith.maximumf %6, %7 : vector<32x128xf32>
    %9 = arith.truncf %8 : vector<32x128xf32> to vector<32x128xbf16>
    %c0_6 = arith.constant 0 : index
    %c0_7 = arith.constant 0 : index
    %10 = vector.load %arg4[%c0_6, %c0_7] : memref<128x128xbf16, #tpu.memory_space<vmem>>, vector<128x128xbf16>
    %cst_8 = arith.constant dense<0.000000e+00> : vector<32x128xf32>
    %11 = tpu.matmul %9, %10, %cst_8 {dimension_numbers = #tpu.dot_dimension_numbers<[1], [0], [0], [1], [0, 0, 1, 1], [], []>} : vector<32x128xbf16>, vector<128x128xbf16>, vector<32x128xf32> -> vector<32x128xf32>
    %c0_9 = arith.constant 0 : index
    %c0_10 = arith.constant 0 : index
    %12 = vector.load %arg5[%c0_9, %c0_10] : memref<1x128xf32, #tpu.memory_space<vmem>>, vector<1x128xf32>
    %13 = vector.broadcast %12 : vector<1x128xf32> to vector<32x128xf32>
    %14 = arith.addf %11, %13 : vector<32x128xf32>
    %cst_11 = arith.constant 0.000000e+00 : f32
    %15 = vector.broadcast %cst_11 : f32 to vector<32x128xf32>
    %16 = arith.maximumf %14, %15 : vector<32x128xf32>
    %17 = arith.truncf %16 : vector<32x128xf32> to vector<32x128xbf16>
    %c0_12 = arith.constant 0 : index
    %c0_13 = arith.constant 0 : index
    %18 = vector.load %arg6[%c0_12, %c0_13] : memref<128x128xbf16, #tpu.memory_space<vmem>>, vector<128x128xbf16>
    %cst_14 = arith.constant dense<0.000000e+00> : vector<32x128xf32>
    %19 = tpu.matmul %17, %18, %cst_14 {dimension_numbers = #tpu.dot_dimension_numbers<[1], [0], [0], [1], [0, 0, 1, 1], [], []>} : vector<32x128xbf16>, vector<128x128xbf16>, vector<32x128xf32> -> vector<32x128xf32>
    %c0_15 = arith.constant 0 : index
    %c0_16 = arith.constant 0 : index
    %20 = vector.load %arg7[%c0_15, %c0_16] : memref<1x128xf32, #tpu.memory_space<vmem>>, vector<1x128xf32>
    %21 = vector.broadcast %20 : vector<1x128xf32> to vector<32x128xf32>
    %22 = arith.addf %19, %21 : vector<32x128xf32>
    %cst_17 = arith.constant 0.000000e+00 : f32
    %23 = vector.broadcast %cst_17 : f32 to vector<32x128xf32>
    %24 = arith.maximumf %22, %23 : vector<32x128xf32>
    %25 = arith.truncf %24 : vector<32x128xf32> to vector<32x128xbf16>
    %c0_18 = arith.constant 0 : index
    %c0_19 = arith.constant 0 : index
    %26 = vector.load %arg8[%c0_18, %c0_19] : memref<128x128xbf16, #tpu.memory_space<vmem>>, vector<128x128xbf16>
    %cst_20 = arith.constant dense<0.000000e+00> : vector<32x128xf32>
    %27 = tpu.matmul %25, %26, %cst_20 {dimension_numbers = #tpu.dot_dimension_numbers<[1], [0], [0], [1], [0, 0, 1, 1], [], []>} : vector<32x128xbf16>, vector<128x128xbf16>, vector<32x128xf32> -> vector<32x128xf32>
    %c0_21 = arith.constant 0 : index
    %c0_22 = arith.constant 0 : index
    %28 = vector.load %arg9[%c0_21, %c0_22] : memref<1x128xf32, #tpu.memory_space<vmem>>, vector<1x128xf32>
    %29 = vector.broadcast %28 : vector<1x128xf32> to vector<32x128xf32>
    %30 = arith.addf %27, %29 : vector<32x128xf32>
    %cst_23 = arith.constant dense<0.000000e+00> : vector<32xf32>
    %31 = vector.multi_reduction <add>, %30, %cst_23 [1] : vector<32x128xf32> to vector<32xf32>
    %32 = vector.shape_cast %31 : vector<32xf32> to vector<32x1xf32>
    %33 = arith.mulf %30, %30 : vector<32x128xf32>
    %cst_24 = arith.constant dense<0.000000e+00> : vector<32xf32>
    %34 = vector.multi_reduction <add>, %33, %cst_24 [1] : vector<32x128xf32> to vector<32xf32>
    %35 = vector.shape_cast %34 : vector<32xf32> to vector<32x1xf32>
    %cst_25 = arith.constant 7.812500e-03 : f32
    %36 = vector.broadcast %cst_25 : f32 to vector<32x1xf32>
    %37 = arith.mulf %32, %36 : vector<32x1xf32>
    %cst_26 = arith.constant 7.812500e-03 : f32
    %38 = vector.broadcast %cst_26 : f32 to vector<32x1xf32>
    %39 = arith.mulf %35, %38 : vector<32x1xf32>
    %40 = arith.mulf %37, %37 : vector<32x1xf32>
    %41 = arith.subf %39, %40 : vector<32x1xf32>
    %cst_27 = arith.constant 0.000000e+00 : f32
    %42 = vector.broadcast %cst_27 : f32 to vector<32x1xf32>
    %43 = arith.maximumf %41, %42 : vector<32x1xf32>
    %44 = vector.broadcast %37 : vector<32x1xf32> to vector<32x128xf32>
    %45 = arith.subf %30, %44 : vector<32x128xf32>
    %cst_28 = arith.constant 9.99999974E-6 : f32
    %46 = vector.broadcast %cst_28 : f32 to vector<32x1xf32>
    %47 = arith.addf %43, %46 : vector<32x1xf32>
    %48 = math.rsqrt %47 : vector<32x1xf32>
    %49 = vector.broadcast %48 : vector<32x1xf32> to vector<32x128xf32>
    %50 = arith.mulf %45, %49 : vector<32x128xf32>
    %c0_29 = arith.constant 0 : index
    %c0_30 = arith.constant 0 : index
    %51 = vector.load %arg10[%c0_29, %c0_30] : memref<1x128xf32, #tpu.memory_space<vmem>>, vector<1x128xf32>
    %52 = vector.broadcast %51 : vector<1x128xf32> to vector<32x128xf32>
    %53 = arith.mulf %50, %52 : vector<32x128xf32>
    %c0_31 = arith.constant 0 : index
    %c0_32 = arith.constant 0 : index
    %54 = vector.load %arg11[%c0_31, %c0_32] : memref<1x128xf32, #tpu.memory_space<vmem>>, vector<1x128xf32>
    %55 = vector.broadcast %54 : vector<1x128xf32> to vector<32x128xf32>
    %56 = arith.addf %53, %55 : vector<32x128xf32>
    %c0_33 = arith.constant 0 : index
    %c0_34 = arith.constant 0 : index
    %57 = vector.load %arg12[%c0_33, %c0_34] : memref<32x128xf32, #tpu.memory_space<vmem>>, vector<32x128xf32>
    tpu.vector_store %arg12[%c0_33, %c0_34], %56 {strides = array<i32>} : memref<32x128xf32, #tpu.memory_space<vmem>>, vector<32x128xf32>,
    return
  }
  func.func @transform_0(%arg0: i32) -> (i32, i32) {
    %c0_i32 = arith.constant 0 : i32
    %c0_i32_0 = arith.constant 0 : i32
    return %arg0, %c0_i32 : i32, i32
  }
  func.func @transform_1(%arg0: i32) -> (i32, i32) {
    %c0_i32 = arith.constant 0 : i32
    %c0_i32_0 = arith.constant 0 : i32
    %c0_i32_1 = arith.constant 0 : i32
    return %c0_i32, %c0_i32_0 : i32, i32
  }
  func.func @transform_2(%arg0: i32) -> (i32, i32) {
    %c0_i32 = arith.constant 0 : i32
    %c0_i32_0 = arith.constant 0 : i32
    %c0_i32_1 = arith.constant 0 : i32
    return %c0_i32, %c0_i32_0 : i32, i32
  }
  func.func @transform_3(%arg0: i32) -> (i32, i32) {
    %c0_i32 = arith.constant 0 : i32
    %c0_i32_0 = arith.constant 0 : i32
    %c0_i32_1 = arith.constant 0 : i32
    return %c0_i32, %c0_i32_0 : i32, i32
  }
  func.func @transform_4(%arg0: i32) -> (i32, i32) {
    %c0_i32 = arith.constant 0 : i32
    %c0_i32_0 = arith.constant 0 : i32
    %c0_i32_1 = arith.constant 0 : i32
    return %c0_i32, %c0_i32_0 : i32, i32
  }
  func.func @transform_5(%arg0: i32) -> (i32, i32) {
    %c0_i32 = arith.constant 0 : i32
    %c0_i32_0 = arith.constant 0 : i32
    %c0_i32_1 = arith.constant 0 : i32
    return %c0_i32, %c0_i32_0 : i32, i32
  }
  func.func @transform_6(%arg0: i32) -> (i32, i32) {
    %c0_i32 = arith.constant 0 : i32
    %c0_i32_0 = arith.constant 0 : i32
    %c0_i32_1 = arith.constant 0 : i32
    return %c0_i32, %c0_i32_0 : i32, i32
  }
  func.func @transform_7(%arg0: i32) -> (i32, i32) {
    %c0_i32 = arith.constant 0 : i32
    %c0_i32_0 = arith.constant 0 : i32
    %c0_i32_1 = arith.constant 0 : i32
    return %c0_i32, %c0_i32_0 : i32, i32
  }
  func.func @transform_8(%arg0: i32) -> (i32, i32) {
    %c0_i32 = arith.constant 0 : i32
    %c0_i32_0 = arith.constant 0 : i32
    %c0_i32_1 = arith.constant 0 : i32
    return %c0_i32, %c0_i32_0 : i32, i32
  }
  func.func @transform_9(%arg0: i32) -> (i32, i32) {
    %c0_i32 = arith.constant 0 : i32
    %c0_i32_0 = arith.constant 0 : i32
    %c0_i32_1 = arith.constant 0 : i32
    return %c0_i32, %c0_i32_0 : i32, i32
  }
  func.func @transform_10(%arg0: i32) -> (i32, i32) {
    %c0_i32 = arith.constant 0 : i32
    %c0_i32_0 = arith.constant 0 : i32
    %c0_i32_1 = arith.constant 0 : i32
    return %c0_i32, %c0_i32_0 : i32, i32
  }
  func.func @transform_11(%arg0: i32) -> (i32, i32) {
    %c0_i32 = arith.constant 0 : i32
    %c0_i32_0 = arith.constant 0 : i32
    return %arg0, %c0_i32 : i32, i32
  }
}

module attributes {stable_mosaic.version = 11 : i64} {
  func.func @kernel(%arg0: i32, %arg1: memref<16x1xf32, #tpu.memory_space<vmem>>, %arg2: memref<1x128xbf16, #tpu.memory_space<vmem>>, %arg3: memref<1x128xf32, #tpu.memory_space<vmem>>, %arg4: memref<128x128xbf16, #tpu.memory_space<vmem>>, %arg5: memref<1x128xf32, #tpu.memory_space<vmem>>, %arg6: memref<128x128xbf16, #tpu.memory_space<vmem>>, %arg7: memref<1x128xf32, #tpu.memory_space<vmem>>, %arg8: memref<128x128xbf16, #tpu.memory_space<vmem>>, %arg9: memref<1x128xf32, #tpu.memory_space<vmem>>, %arg10: memref<1x128xf32, #tpu.memory_space<vmem>>, %arg11: memref<1x128xf32, #tpu.memory_space<vmem>>, %arg12: memref<16x128xf32, #tpu.memory_space<vmem>>) attributes {dimension_semantics = [#tpu.dimension_semantics<parallel>], iteration_bounds = array<i64: 1>, scalar_prefetch = 0 : i64, scratch_operands = 0 : i64, tpu.core_type = #tpu.core_type<tc>, window_params = [{transform_indices = @transform_0, window_bounds = array<i64: 16, 1>}, {pipeline_mode = #tpu.pipeline_mode<synchronous>, transform_indices = @transform_1, window_bounds = array<i64: 1, 128>}, {pipeline_mode = #tpu.pipeline_mode<synchronous>, transform_indices = @transform_2, window_bounds = array<i64: 1, 128>}, {pipeline_mode = #tpu.pipeline_mode<synchronous>, transform_indices = @transform_3, window_bounds = array<i64: 128, 128>}, {pipeline_mode = #tpu.pipeline_mode<synchronous>, transform_indices = @transform_4, window_bounds = array<i64: 1, 128>}, {pipeline_mode = #tpu.pipeline_mode<synchronous>, transform_indices = @transform_5, window_bounds = array<i64: 128, 128>}, {pipeline_mode = #tpu.pipeline_mode<synchronous>, transform_indices = @transform_6, window_bounds = array<i64: 1, 128>}, {pipeline_mode = #tpu.pipeline_mode<synchronous>, transform_indices = @transform_7, window_bounds = array<i64: 128, 128>}, {pipeline_mode = #tpu.pipeline_mode<synchronous>, transform_indices = @transform_8, window_bounds = array<i64: 1, 128>}, {pipeline_mode = #tpu.pipeline_mode<synchronous>, transform_indices = @transform_9, window_bounds = array<i64: 1, 128>}, {pipeline_mode = #tpu.pipeline_mode<synchronous>, transform_indices = @transform_10, window_bounds = array<i64: 1, 128>}, {transform_indices = @transform_11, window_bounds = array<i64: 16, 128>}]} {
    %c0 = arith.constant 0 : index
    %c0_0 = arith.constant 0 : index
    %0 = vector.load %arg1[%c0, %c0_0] : memref<16x1xf32, #tpu.memory_space<vmem>>, vector<16x1xf32>
    %1 = arith.truncf %0 : vector<16x1xf32> to vector<16x1xbf16>
    %c0_1 = arith.constant 0 : index
    %c0_2 = arith.constant 0 : index
    %2 = vector.load %arg2[%c0_1, %c0_2] : memref<1x128xbf16, #tpu.memory_space<vmem>>, vector<1x128xbf16>
    %cst = arith.constant dense<0.000000e+00> : vector<16x128xf32>
    %3 = tpu.matmul %1, %2, %cst {dimension_numbers = #tpu.dot_dimension_numbers<[1], [0], [0], [1], [0, 0, 1, 1], [], []>} : vector<16x1xbf16>, vector<1x128xbf16>, vector<16x128xf32> -> vector<16x128xf32>
    %c0_3 = arith.constant 0 : index
    %c0_4 = arith.constant 0 : index
    %4 = vector.load %arg3[%c0_3, %c0_4] : memref<1x128xf32, #tpu.memory_space<vmem>>, vector<1x128xf32>
    %5 = vector.broadcast %4 : vector<1x128xf32> to vector<16x128xf32>
    %6 = arith.addf %3, %5 : vector<16x128xf32>
    %cst_5 = arith.constant 0.000000e+00 : f32
    %7 = vector.broadcast %cst_5 : f32 to vector<16x128xf32>
    %8 = arith.maximumf %6, %7 : vector<16x128xf32>
    %9 = arith.truncf %8 : vector<16x128xf32> to vector<16x128xbf16>
    %c0_6 = arith.constant 0 : index
    %c0_7 = arith.constant 0 : index
    %10 = vector.load %arg4[%c0_6, %c0_7] : memref<128x128xbf16, #tpu.memory_space<vmem>>, vector<128x128xbf16>
    %cst_8 = arith.constant dense<0.000000e+00> : vector<16x128xf32>
    %11 = tpu.matmul %9, %10, %cst_8 {dimension_numbers = #tpu.dot_dimension_numbers<[1], [0], [0], [1], [0, 0, 1, 1], [], []>} : vector<16x128xbf16>, vector<128x128xbf16>, vector<16x128xf32> -> vector<16x128xf32>
    %c0_9 = arith.constant 0 : index
    %c0_10 = arith.constant 0 : index
    %12 = vector.load %arg5[%c0_9, %c0_10] : memref<1x128xf32, #tpu.memory_space<vmem>>, vector<1x128xf32>
    %13 = vector.broadcast %12 : vector<1x128xf32> to vector<16x128xf32>
    %14 = arith.addf %11, %13 : vector<16x128xf32>
    %cst_11 = arith.constant 0.000000e+00 : f32
    %15 = vector.broadcast %cst_11 : f32 to vector<16x128xf32>
    %16 = arith.maximumf %14, %15 : vector<16x128xf32>
    %17 = arith.truncf %16 : vector<16x128xf32> to vector<16x128xbf16>
    %c0_12 = arith.constant 0 : index
    %c0_13 = arith.constant 0 : index
    %18 = vector.load %arg6[%c0_12, %c0_13] : memref<128x128xbf16, #tpu.memory_space<vmem>>, vector<128x128xbf16>
    %cst_14 = arith.constant dense<0.000000e+00> : vector<16x128xf32>
    %19 = tpu.matmul %17, %18, %cst_14 {dimension_numbers = #tpu.dot_dimension_numbers<[1], [0], [0], [1], [0, 0, 1, 1], [], []>} : vector<16x128xbf16>, vector<128x128xbf16>, vector<16x128xf32> -> vector<16x128xf32>
    %c0_15 = arith.constant 0 : index
    %c0_16 = arith.constant 0 : index
    %20 = vector.load %arg7[%c0_15, %c0_16] : memref<1x128xf32, #tpu.memory_space<vmem>>, vector<1x128xf32>
    %21 = vector.broadcast %20 : vector<1x128xf32> to vector<16x128xf32>
    %22 = arith.addf %19, %21 : vector<16x128xf32>
    %cst_17 = arith.constant 0.000000e+00 : f32
    %23 = vector.broadcast %cst_17 : f32 to vector<16x128xf32>
    %24 = arith.maximumf %22, %23 : vector<16x128xf32>
    %25 = arith.truncf %24 : vector<16x128xf32> to vector<16x128xbf16>
    %c0_18 = arith.constant 0 : index
    %c0_19 = arith.constant 0 : index
    %26 = vector.load %arg8[%c0_18, %c0_19] : memref<128x128xbf16, #tpu.memory_space<vmem>>, vector<128x128xbf16>
    %cst_20 = arith.constant dense<0.000000e+00> : vector<16x128xf32>
    %27 = tpu.matmul %25, %26, %cst_20 {dimension_numbers = #tpu.dot_dimension_numbers<[1], [0], [0], [1], [0, 0, 1, 1], [], []>} : vector<16x128xbf16>, vector<128x128xbf16>, vector<16x128xf32> -> vector<16x128xf32>
    %c0_21 = arith.constant 0 : index
    %c0_22 = arith.constant 0 : index
    %28 = vector.load %arg9[%c0_21, %c0_22] : memref<1x128xf32, #tpu.memory_space<vmem>>, vector<1x128xf32>
    %29 = vector.broadcast %28 : vector<1x128xf32> to vector<16x128xf32>
    %30 = arith.addf %27, %29 : vector<16x128xf32>
    %cst_23 = arith.constant dense<0.000000e+00> : vector<16xf32>
    %31 = vector.multi_reduction <add>, %30, %cst_23 [1] : vector<16x128xf32> to vector<16xf32>
    %32 = vector.shape_cast %31 : vector<16xf32> to vector<16x1xf32>
    %33 = arith.mulf %30, %30 : vector<16x128xf32>
    %cst_24 = arith.constant dense<0.000000e+00> : vector<16xf32>
    %34 = vector.multi_reduction <add>, %33, %cst_24 [1] : vector<16x128xf32> to vector<16xf32>
    %35 = vector.shape_cast %34 : vector<16xf32> to vector<16x1xf32>
    %cst_25 = arith.constant 7.812500e-03 : f32
    %36 = vector.broadcast %cst_25 : f32 to vector<16x1xf32>
    %37 = arith.mulf %32, %36 : vector<16x1xf32>
    %cst_26 = arith.constant 7.812500e-03 : f32
    %38 = vector.broadcast %cst_26 : f32 to vector<16x1xf32>
    %39 = arith.mulf %35, %38 : vector<16x1xf32>
    %40 = arith.mulf %37, %37 : vector<16x1xf32>
    %41 = arith.subf %39, %40 : vector<16x1xf32>
    %cst_27 = arith.constant 0.000000e+00 : f32
    %42 = vector.broadcast %cst_27 : f32 to vector<16x1xf32>
    %43 = arith.maximumf %41, %42 : vector<16x1xf32>
    %44 = vector.broadcast %37 : vector<16x1xf32> to vector<16x128xf32>
    %45 = arith.subf %30, %44 : vector<16x128xf32>
    %cst_28 = arith.constant 9.99999974E-6 : f32
    %46 = vector.broadcast %cst_28 : f32 to vector<16x1xf32>
    %47 = arith.addf %43, %46 : vector<16x1xf32>
    %48 = math.rsqrt %47 : vector<16x1xf32>
    %49 = vector.broadcast %48 : vector<16x1xf32> to vector<16x128xf32>
    %50 = arith.mulf %45, %49 : vector<16x128xf32>
    %c0_29 = arith.constant 0 : index
    %c0_30 = arith.constant 0 : index
    %51 = vector.load %arg10[%c0_29, %c0_30] : memref<1x128xf32, #tpu.memory_space<vmem>>, vector<1x128xf32>
    %52 = vector.broadcast %51 : vector<1x128xf32> to vector<16x128xf32>
    %53 = arith.mulf %50, %52 : vector<16x128xf32>
    %c0_31 = arith.constant 0 : index
    %c0_32 = arith.constant 0 : index
    %54 = vector.load %arg11[%c0_31, %c0_32] : memref<1x128xf32, #tpu.memory_space<vmem>>, vector<1x128xf32>
    %55 = vector.broadcast %54 : vector<1x128xf32> to vector<16x128xf32>
    %56 = arith.addf %53, %55 : vector<16x128xf32>
    %c0_33 = arith.constant 0 : index
    %c0_34 = arith.constant 0 : index
    %57 = vector.load %arg12[%c0_33, %c0_34] : memref<16x128xf32, #tpu.memory_space<vmem>>, vector<16x128xf32>
    tpu.vector_store %arg12[%c0_33, %c0_34], %56 {strides = array<i32>} : memref<16x128xf32, #tpu.memory_space<vmem>>, vector<16x128xf32>,
    return
  }
  func.func @transform_0(%arg0: i32) -> (i32, i32) {
    %c0_i32 = arith.constant 0 : i32
    %c0_i32_0 = arith.constant 0 : i32
    return %arg0, %c0_i32 : i32, i32
  }
  func.func @transform_1(%arg0: i32) -> (i32, i32) {
    %c0_i32 = arith.constant 0 : i32
    %c0_i32_0 = arith.constant 0 : i32
    %c0_i32_1 = arith.constant 0 : i32
    return %c0_i32, %c0_i32_0 : i32, i32
  }
  func.func @transform_2(%arg0: i32) -> (i32, i32) {
    %c0_i32 = arith.constant 0 : i32
    %c0_i32_0 = arith.constant 0 : i32
    %c0_i32_1 = arith.constant 0 : i32
    return %c0_i32, %c0_i32_0 : i32, i32
  }
  func.func @transform_3(%arg0: i32) -> (i32, i32) {
    %c0_i32 = arith.constant 0 : i32
    %c0_i32_0 = arith.constant 0 : i32
    %c0_i32_1 = arith.constant 0 : i32
    return %c0_i32, %c0_i32_0 : i32, i32
  }
  func.func @transform_4(%arg0: i32) -> (i32, i32) {
    %c0_i32 = arith.constant 0 : i32
    %c0_i32_0 = arith.constant 0 : i32
    %c0_i32_1 = arith.constant 0 : i32
    return %c0_i32, %c0_i32_0 : i32, i32
  }
  func.func @transform_5(%arg0: i32) -> (i32, i32) {
    %c0_i32 = arith.constant 0 : i32
    %c0_i32_0 = arith.constant 0 : i32
    %c0_i32_1 = arith.constant 0 : i32
    return %c0_i32, %c0_i32_0 : i32, i32
  }
  func.func @transform_6(%arg0: i32) -> (i32, i32) {
    %c0_i32 = arith.constant 0 : i32
    %c0_i32_0 = arith.constant 0 : i32
    %c0_i32_1 = arith.constant 0 : i32
    return %c0_i32, %c0_i32_0 : i32, i32
  }
  func.func @transform_7(%arg0: i32) -> (i32, i32) {
    %c0_i32 = arith.constant 0 : i32
    %c0_i32_0 = arith.constant 0 : i32
    %c0_i32_1 = arith.constant 0 : i32
    return %c0_i32, %c0_i32_0 : i32, i32
  }
  func.func @transform_8(%arg0: i32) -> (i32, i32) {
    %c0_i32 = arith.constant 0 : i32
    %c0_i32_0 = arith.constant 0 : i32
    %c0_i32_1 = arith.constant 0 : i32
    return %c0_i32, %c0_i32_0 : i32, i32
  }
  func.func @transform_9(%arg0: i32) -> (i32, i32) {
    %c0_i32 = arith.constant 0 : i32
    %c0_i32_0 = arith.constant 0 : i32
    %c0_i32_1 = arith.constant 0 : i32
    return %c0_i32, %c0_i32_0 : i32, i32
  }
  func.func @transform_10(%arg0: i32) -> (i32, i32) {
    %c0_i32 = arith.constant 0 : i32
    %c0_i32_0 = arith.constant 0 : i32
    %c0_i32_1 = arith.constant 0 : i32
    return %c0_i32, %c0_i32_0 : i32, i32
  }
  func.func @transform_11(%arg0: i32) -> (i32, i32) {
    %c0_i32 = arith.constant 0 : i32
    %c0_i32_0 = arith.constant 0 : i32
    return %arg0, %c0_i32 : i32, i32
  }
}

module attributes {stable_mosaic.version = 11 : i64} {
  func.func @kernel(%arg0: i32, %arg1: memref<32x128xf32, #tpu.memory_space<vmem>>, %arg2: memref<32x128xf32, #tpu.memory_space<vmem>>, %arg3: memref<32x128xf32, #tpu.memory_space<vmem>>, %arg4: memref<32x128xf32, #tpu.memory_space<vmem>>, %arg5: memref<128x128xbf16, #tpu.memory_space<vmem>>, %arg6: memref<128x128xbf16, #tpu.memory_space<vmem>>, %arg7: memref<128x128xbf16, #tpu.memory_space<vmem>>, %arg8: memref<128x128xbf16, #tpu.memory_space<vmem>>, %arg9: memref<1x128xf32, #tpu.memory_space<vmem>>, %arg10: memref<128x128xbf16, #tpu.memory_space<vmem>>, %arg11: memref<1x128xf32, #tpu.memory_space<vmem>>, %arg12: memref<128x128xbf16, #tpu.memory_space<vmem>>, %arg13: memref<1x128xf32, #tpu.memory_space<vmem>>, %arg14: memref<128x128xbf16, #tpu.memory_space<vmem>>, %arg15: memref<1x128xf32, #tpu.memory_space<vmem>>, %arg16: memref<1x128xf32, #tpu.memory_space<vmem>>, %arg17: memref<1x128xf32, #tpu.memory_space<vmem>>, %arg18: memref<32x128xf32, #tpu.memory_space<vmem>>, %arg19: memref<32x128xf32, #tpu.memory_space<vmem>>) attributes {dimension_semantics = [#tpu.dimension_semantics<parallel>], iteration_bounds = array<i64: 1>, scalar_prefetch = 0 : i64, scratch_operands = 0 : i64, tpu.core_type = #tpu.core_type<tc>, window_params = [{transform_indices = @transform_0, window_bounds = array<i64: 32, 128>}, {transform_indices = @transform_1, window_bounds = array<i64: 32, 128>}, {transform_indices = @transform_2, window_bounds = array<i64: 32, 128>}, {transform_indices = @transform_3, window_bounds = array<i64: 32, 128>}, {pipeline_mode = #tpu.pipeline_mode<synchronous>, transform_indices = @transform_4, window_bounds = array<i64: 128, 128>}, {pipeline_mode = #tpu.pipeline_mode<synchronous>, transform_indices = @transform_5, window_bounds = array<i64: 128, 128>}, {pipeline_mode = #tpu.pipeline_mode<synchronous>, transform_indices = @transform_6, window_bounds = array<i64: 128, 128>}, {pipeline_mode = #tpu.pipeline_mode<synchronous>, transform_indices = @transform_7, window_bounds = array<i64: 128, 128>}, {pipeline_mode = #tpu.pipeline_mode<synchronous>, transform_indices = @transform_8, window_bounds = array<i64: 1, 128>}, {pipeline_mode = #tpu.pipeline_mode<synchronous>, transform_indices = @transform_9, window_bounds = array<i64: 128, 128>}, {pipeline_mode = #tpu.pipeline_mode<synchronous>, transform_indices = @transform_10, window_bounds = array<i64: 1, 128>}, {pipeline_mode = #tpu.pipeline_mode<synchronous>, transform_indices = @transform_11, window_bounds = array<i64: 128, 128>}, {pipeline_mode = #tpu.pipeline_mode<synchronous>, transform_indices = @transform_12, window_bounds = array<i64: 1, 128>}, {pipeline_mode = #tpu.pipeline_mode<synchronous>, transform_indices = @transform_13, window_bounds = array<i64: 128, 128>}, {pipeline_mode = #tpu.pipeline_mode<synchronous>, transform_indices = @transform_14, window_bounds = array<i64: 1, 128>}, {pipeline_mode = #tpu.pipeline_mode<synchronous>, transform_indices = @transform_15, window_bounds = array<i64: 1, 128>}, {pipeline_mode = #tpu.pipeline_mode<synchronous>, transform_indices = @transform_16, window_bounds = array<i64: 1, 128>}, {transform_indices = @transform_17, window_bounds = array<i64: 32, 128>}, {transform_indices = @transform_18, window_bounds = array<i64: 32, 128>}]} {
    %c0 = arith.constant 0 : index
    %c0_0 = arith.constant 0 : index
    %0 = vector.load %arg1[%c0, %c0_0] : memref<32x128xf32, #tpu.memory_space<vmem>>, vector<32x128xf32>
    %1 = arith.truncf %0 : vector<32x128xf32> to vector<32x128xbf16>
    %c0_1 = arith.constant 0 : index
    %c0_2 = arith.constant 0 : index
    %2 = vector.load %arg5[%c0_1, %c0_2] : memref<128x128xbf16, #tpu.memory_space<vmem>>, vector<128x128xbf16>
    %cst = arith.constant dense<0.000000e+00> : vector<32x128xf32>
    %3 = tpu.matmul %1, %2, %cst {dimension_numbers = #tpu.dot_dimension_numbers<[1], [0], [0], [1], [0, 0, 1, 1], [], []>} : vector<32x128xbf16>, vector<128x128xbf16>, vector<32x128xf32> -> vector<32x128xf32>
    %c0_3 = arith.constant 0 : index
    %c0_4 = arith.constant 0 : index
    %4 = vector.load %arg2[%c0_3, %c0_4] : memref<32x128xf32, #tpu.memory_space<vmem>>, vector<32x128xf32>
    %5 = arith.truncf %4 : vector<32x128xf32> to vector<32x128xbf16>
    %c0_5 = arith.constant 0 : index
    %c0_6 = arith.constant 0 : index
    %6 = vector.load %arg6[%c0_5, %c0_6] : memref<128x128xbf16, #tpu.memory_space<vmem>>, vector<128x128xbf16>
    %cst_7 = arith.constant dense<0.000000e+00> : vector<32x128xf32>
    %7 = tpu.matmul %5, %6, %cst_7 {dimension_numbers = #tpu.dot_dimension_numbers<[1], [0], [0], [1], [0, 0, 1, 1], [], []>} : vector<32x128xbf16>, vector<128x128xbf16>, vector<32x128xf32> -> vector<32x128xf32>
    %8 = arith.addf %3, %7 : vector<32x128xf32>
    %c0_8 = arith.constant 0 : index
    %c0_9 = arith.constant 0 : index
    %9 = vector.load %arg3[%c0_8, %c0_9] : memref<32x128xf32, #tpu.memory_space<vmem>>, vector<32x128xf32>
    %10 = arith.truncf %9 : vector<32x128xf32> to vector<32x128xbf16>
    %c0_10 = arith.constant 0 : index
    %c0_11 = arith.constant 0 : index
    %11 = vector.load %arg7[%c0_10, %c0_11] : memref<128x128xbf16, #tpu.memory_space<vmem>>, vector<128x128xbf16>
    %cst_12 = arith.constant dense<0.000000e+00> : vector<32x128xf32>
    %12 = tpu.matmul %10, %11, %cst_12 {dimension_numbers = #tpu.dot_dimension_numbers<[1], [0], [0], [1], [0, 0, 1, 1], [], []>} : vector<32x128xbf16>, vector<128x128xbf16>, vector<32x128xf32> -> vector<32x128xf32>
    %13 = arith.addf %8, %12 : vector<32x128xf32>
    %c0_13 = arith.constant 0 : index
    %c0_14 = arith.constant 0 : index
    %14 = vector.load %arg4[%c0_13, %c0_14] : memref<32x128xf32, #tpu.memory_space<vmem>>, vector<32x128xf32>
    %15 = arith.truncf %14 : vector<32x128xf32> to vector<32x128xbf16>
    %c0_15 = arith.constant 0 : index
    %c0_16 = arith.constant 0 : index
    %16 = vector.load %arg8[%c0_15, %c0_16] : memref<128x128xbf16, #tpu.memory_space<vmem>>, vector<128x128xbf16>
    %cst_17 = arith.constant dense<0.000000e+00> : vector<32x128xf32>
    %17 = tpu.matmul %15, %16, %cst_17 {dimension_numbers = #tpu.dot_dimension_numbers<[1], [0], [0], [1], [0, 0, 1, 1], [], []>} : vector<32x128xbf16>, vector<128x128xbf16>, vector<32x128xf32> -> vector<32x128xf32>
    %18 = arith.addf %13, %17 : vector<32x128xf32>
    %c0_18 = arith.constant 0 : index
    %c0_19 = arith.constant 0 : index
    %19 = vector.load %arg9[%c0_18, %c0_19] : memref<1x128xf32, #tpu.memory_space<vmem>>, vector<1x128xf32>
    %20 = vector.broadcast %19 : vector<1x128xf32> to vector<32x128xf32>
    %21 = arith.addf %18, %20 : vector<32x128xf32>
    %cst_20 = arith.constant 0.000000e+00 : f32
    %22 = vector.broadcast %cst_20 : f32 to vector<32x128xf32>
    %23 = arith.maximumf %21, %22 : vector<32x128xf32>
    %24 = arith.truncf %23 : vector<32x128xf32> to vector<32x128xbf16>
    %c0_21 = arith.constant 0 : index
    %c0_22 = arith.constant 0 : index
    %25 = vector.load %arg10[%c0_21, %c0_22] : memref<128x128xbf16, #tpu.memory_space<vmem>>, vector<128x128xbf16>
    %cst_23 = arith.constant dense<0.000000e+00> : vector<32x128xf32>
    %26 = tpu.matmul %24, %25, %cst_23 {dimension_numbers = #tpu.dot_dimension_numbers<[1], [0], [0], [1], [0, 0, 1, 1], [], []>} : vector<32x128xbf16>, vector<128x128xbf16>, vector<32x128xf32> -> vector<32x128xf32>
    %c0_24 = arith.constant 0 : index
    %c0_25 = arith.constant 0 : index
    %27 = vector.load %arg11[%c0_24, %c0_25] : memref<1x128xf32, #tpu.memory_space<vmem>>, vector<1x128xf32>
    %28 = vector.broadcast %27 : vector<1x128xf32> to vector<32x128xf32>
    %29 = arith.addf %26, %28 : vector<32x128xf32>
    %cst_26 = arith.constant 0.000000e+00 : f32
    %30 = vector.broadcast %cst_26 : f32 to vector<32x128xf32>
    %31 = arith.maximumf %29, %30 : vector<32x128xf32>
    %32 = arith.truncf %31 : vector<32x128xf32> to vector<32x128xbf16>
    %c0_27 = arith.constant 0 : index
    %c0_28 = arith.constant 0 : index
    %33 = vector.load %arg12[%c0_27, %c0_28] : memref<128x128xbf16, #tpu.memory_space<vmem>>, vector<128x128xbf16>
    %cst_29 = arith.constant dense<0.000000e+00> : vector<32x128xf32>
    %34 = tpu.matmul %32, %33, %cst_29 {dimension_numbers = #tpu.dot_dimension_numbers<[1], [0], [0], [1], [0, 0, 1, 1], [], []>} : vector<32x128xbf16>, vector<128x128xbf16>, vector<32x128xf32> -> vector<32x128xf32>
    %c0_30 = arith.constant 0 : index
    %c0_31 = arith.constant 0 : index
    %35 = vector.load %arg13[%c0_30, %c0_31] : memref<1x128xf32, #tpu.memory_space<vmem>>, vector<1x128xf32>
    %36 = vector.broadcast %35 : vector<1x128xf32> to vector<32x128xf32>
    %37 = arith.addf %34, %36 : vector<32x128xf32>
    %cst_32 = arith.constant 0.000000e+00 : f32
    %38 = vector.broadcast %cst_32 : f32 to vector<32x128xf32>
    %39 = arith.maximumf %37, %38 : vector<32x128xf32>
    %40 = arith.truncf %39 : vector<32x128xf32> to vector<32x128xbf16>
    %c0_33 = arith.constant 0 : index
    %c0_34 = arith.constant 0 : index
    %41 = vector.load %arg14[%c0_33, %c0_34] : memref<128x128xbf16, #tpu.memory_space<vmem>>, vector<128x128xbf16>
    %cst_35 = arith.constant dense<0.000000e+00> : vector<32x128xf32>
    %42 = tpu.matmul %40, %41, %cst_35 {dimension_numbers = #tpu.dot_dimension_numbers<[1], [0], [0], [1], [0, 0, 1, 1], [], []>} : vector<32x128xbf16>, vector<128x128xbf16>, vector<32x128xf32> -> vector<32x128xf32>
    %c0_36 = arith.constant 0 : index
    %c0_37 = arith.constant 0 : index
    %43 = vector.load %arg15[%c0_36, %c0_37] : memref<1x128xf32, #tpu.memory_space<vmem>>, vector<1x128xf32>
    %44 = vector.broadcast %43 : vector<1x128xf32> to vector<32x128xf32>
    %45 = arith.addf %42, %44 : vector<32x128xf32>
    %cst_38 = arith.constant dense<0.000000e+00> : vector<32xf32>
    %46 = vector.multi_reduction <add>, %45, %cst_38 [1] : vector<32x128xf32> to vector<32xf32>
    %47 = vector.shape_cast %46 : vector<32xf32> to vector<32x1xf32>
    %48 = arith.mulf %45, %45 : vector<32x128xf32>
    %cst_39 = arith.constant dense<0.000000e+00> : vector<32xf32>
    %49 = vector.multi_reduction <add>, %48, %cst_39 [1] : vector<32x128xf32> to vector<32xf32>
    %50 = vector.shape_cast %49 : vector<32xf32> to vector<32x1xf32>
    %cst_40 = arith.constant 7.812500e-03 : f32
    %51 = vector.broadcast %cst_40 : f32 to vector<32x1xf32>
    %52 = arith.mulf %47, %51 : vector<32x1xf32>
    %cst_41 = arith.constant 7.812500e-03 : f32
    %53 = vector.broadcast %cst_41 : f32 to vector<32x1xf32>
    %54 = arith.mulf %50, %53 : vector<32x1xf32>
    %55 = arith.mulf %52, %52 : vector<32x1xf32>
    %56 = arith.subf %54, %55 : vector<32x1xf32>
    %cst_42 = arith.constant 0.000000e+00 : f32
    %57 = vector.broadcast %cst_42 : f32 to vector<32x1xf32>
    %58 = arith.maximumf %56, %57 : vector<32x1xf32>
    %59 = vector.broadcast %52 : vector<32x1xf32> to vector<32x128xf32>
    %60 = arith.subf %45, %59 : vector<32x128xf32>
    %cst_43 = arith.constant 9.99999974E-6 : f32
    %61 = vector.broadcast %cst_43 : f32 to vector<32x1xf32>
    %62 = arith.addf %58, %61 : vector<32x1xf32>
    %63 = math.rsqrt %62 : vector<32x1xf32>
    %64 = vector.broadcast %63 : vector<32x1xf32> to vector<32x128xf32>
    %65 = arith.mulf %60, %64 : vector<32x128xf32>
    %c0_44 = arith.constant 0 : index
    %c0_45 = arith.constant 0 : index
    %66 = vector.load %arg16[%c0_44, %c0_45] : memref<1x128xf32, #tpu.memory_space<vmem>>, vector<1x128xf32>
    %67 = vector.broadcast %66 : vector<1x128xf32> to vector<32x128xf32>
    %68 = arith.mulf %65, %67 : vector<32x128xf32>
    %c0_46 = arith.constant 0 : index
    %c0_47 = arith.constant 0 : index
    %69 = vector.load %arg17[%c0_46, %c0_47] : memref<1x128xf32, #tpu.memory_space<vmem>>, vector<1x128xf32>
    %70 = vector.broadcast %69 : vector<1x128xf32> to vector<32x128xf32>
    %71 = arith.addf %68, %70 : vector<32x128xf32>
    %c0_48 = arith.constant 0 : index
    %c0_49 = arith.constant 0 : index
    %72 = vector.load %arg18[%c0_48, %c0_49] : memref<32x128xf32, #tpu.memory_space<vmem>>, vector<32x128xf32>
    %73 = arith.addf %71, %72 : vector<32x128xf32>
    %c0_50 = arith.constant 0 : index
    %c0_51 = arith.constant 0 : index
    %74 = vector.load %arg19[%c0_50, %c0_51] : memref<32x128xf32, #tpu.memory_space<vmem>>, vector<32x128xf32>
    tpu.vector_store %arg19[%c0_50, %c0_51], %73 {strides = array<i32>} : memref<32x128xf32, #tpu.memory_space<vmem>>, vector<32x128xf32>,
    return
  }
  func.func @transform_0(%arg0: i32) -> (i32, i32) {
    %c0_i32 = arith.constant 0 : i32
    %c0_i32_0 = arith.constant 0 : i32
    return %arg0, %c0_i32 : i32, i32
  }
  func.func @transform_1(%arg0: i32) -> (i32, i32) {
    %c0_i32 = arith.constant 0 : i32
    %c0_i32_0 = arith.constant 0 : i32
    return %arg0, %c0_i32 : i32, i32
  }
  func.func @transform_2(%arg0: i32) -> (i32, i32) {
    %c0_i32 = arith.constant 0 : i32
    %c0_i32_0 = arith.constant 0 : i32
    return %arg0, %c0_i32 : i32, i32
  }
  func.func @transform_3(%arg0: i32) -> (i32, i32) {
    %c0_i32 = arith.constant 0 : i32
    %c0_i32_0 = arith.constant 0 : i32
    return %arg0, %c0_i32 : i32, i32
  }
  func.func @transform_4(%arg0: i32) -> (i32, i32) {
    %c0_i32 = arith.constant 0 : i32
    %c0_i32_0 = arith.constant 0 : i32
    %c0_i32_1 = arith.constant 0 : i32
    return %c0_i32, %c0_i32_0 : i32, i32
  }
  func.func @transform_5(%arg0: i32) -> (i32, i32) {
    %c0_i32 = arith.constant 0 : i32
    %c0_i32_0 = arith.constant 0 : i32
    %c0_i32_1 = arith.constant 0 : i32
    return %c0_i32, %c0_i32_0 : i32, i32
  }
  func.func @transform_6(%arg0: i32) -> (i32, i32) {
    %c0_i32 = arith.constant 0 : i32
    %c0_i32_0 = arith.constant 0 : i32
    %c0_i32_1 = arith.constant 0 : i32
    return %c0_i32, %c0_i32_0 : i32, i32
  }
  func.func @transform_7(%arg0: i32) -> (i32, i32) {
    %c0_i32 = arith.constant 0 : i32
    %c0_i32_0 = arith.constant 0 : i32
    %c0_i32_1 = arith.constant 0 : i32
    return %c0_i32, %c0_i32_0 : i32, i32
  }
  func.func @transform_8(%arg0: i32) -> (i32, i32) {
    %c0_i32 = arith.constant 0 : i32
    %c0_i32_0 = arith.constant 0 : i32
    %c0_i32_1 = arith.constant 0 : i32
    return %c0_i32, %c0_i32_0 : i32, i32
  }
  func.func @transform_9(%arg0: i32) -> (i32, i32) {
    %c0_i32 = arith.constant 0 : i32
    %c0_i32_0 = arith.constant 0 : i32
    %c0_i32_1 = arith.constant 0 : i32
    return %c0_i32, %c0_i32_0 : i32, i32
  }
  func.func @transform_10(%arg0: i32) -> (i32, i32) {
    %c0_i32 = arith.constant 0 : i32
    %c0_i32_0 = arith.constant 0 : i32
    %c0_i32_1 = arith.constant 0 : i32
    return %c0_i32, %c0_i32_0 : i32, i32
  }
  func.func @transform_11(%arg0: i32) -> (i32, i32) {
    %c0_i32 = arith.constant 0 : i32
    %c0_i32_0 = arith.constant 0 : i32
    %c0_i32_1 = arith.constant 0 : i32
    return %c0_i32, %c0_i32_0 : i32, i32
  }
  func.func @transform_12(%arg0: i32) -> (i32, i32) {
    %c0_i32 = arith.constant 0 : i32
    %c0_i32_0 = arith.constant 0 : i32
    %c0_i32_1 = arith.constant 0 : i32
    return %c0_i32, %c0_i32_0 : i32, i32
  }
  func.func @transform_13(%arg0: i32) -> (i32, i32) {
    %c0_i32 = arith.constant 0 : i32
    %c0_i32_0 = arith.constant 0 : i32
    %c0_i32_1 = arith.constant 0 : i32
    return %c0_i32, %c0_i32_0 : i32, i32
  }
  func.func @transform_14(%arg0: i32) -> (i32, i32) {
    %c0_i32 = arith.constant 0 : i32
    %c0_i32_0 = arith.constant 0 : i32
    %c0_i32_1 = arith.constant 0 : i32
    return %c0_i32, %c0_i32_0 : i32, i32
  }
  func.func @transform_15(%arg0: i32) -> (i32, i32) {
    %c0_i32 = arith.constant 0 : i32
    %c0_i32_0 = arith.constant 0 : i32
    %c0_i32_1 = arith.constant 0 : i32
    return %c0_i32, %c0_i32_0 : i32, i32
  }
  func.func @transform_16(%arg0: i32) -> (i32, i32) {
    %c0_i32 = arith.constant 0 : i32
    %c0_i32_0 = arith.constant 0 : i32
    %c0_i32_1 = arith.constant 0 : i32
    return %c0_i32, %c0_i32_0 : i32, i32
  }
  func.func @transform_17(%arg0: i32) -> (i32, i32) {
    %c0_i32 = arith.constant 0 : i32
    %c0_i32_0 = arith.constant 0 : i32
    return %arg0, %c0_i32 : i32, i32
  }
  func.func @transform_18(%arg0: i32) -> (i32, i32) {
    %c0_i32 = arith.constant 0 : i32
    %c0_i32_0 = arith.constant 0 : i32
    return %arg0, %c0_i32 : i32, i32
  }
}

module attributes {stable_mosaic.version = 11 : i64} {
  func.func @kernel(%arg0: i32, %arg1: memref<32x128xf32, #tpu.memory_space<vmem>>, %arg2: memref<32x128xf32, #tpu.memory_space<vmem>>, %arg3: memref<128x128xbf16, #tpu.memory_space<vmem>>, %arg4: memref<128x128xbf16, #tpu.memory_space<vmem>>, %arg5: memref<1x128xf32, #tpu.memory_space<vmem>>, %arg6: memref<128x128xbf16, #tpu.memory_space<vmem>>, %arg7: memref<1x128xf32, #tpu.memory_space<vmem>>, %arg8: memref<128x128xbf16, #tpu.memory_space<vmem>>, %arg9: memref<1x128xf32, #tpu.memory_space<vmem>>, %arg10: memref<128x128xbf16, #tpu.memory_space<vmem>>, %arg11: memref<1x128xf32, #tpu.memory_space<vmem>>, %arg12: memref<1x128xf32, #tpu.memory_space<vmem>>, %arg13: memref<1x128xf32, #tpu.memory_space<vmem>>, %arg14: memref<32x128xf32, #tpu.memory_space<vmem>>) attributes {dimension_semantics = [#tpu.dimension_semantics<parallel>], iteration_bounds = array<i64: 1>, scalar_prefetch = 0 : i64, scratch_operands = 0 : i64, tpu.core_type = #tpu.core_type<tc>, window_params = [{transform_indices = @transform_0, window_bounds = array<i64: 32, 128>}, {transform_indices = @transform_1, window_bounds = array<i64: 32, 128>}, {pipeline_mode = #tpu.pipeline_mode<synchronous>, transform_indices = @transform_2, window_bounds = array<i64: 128, 128>}, {pipeline_mode = #tpu.pipeline_mode<synchronous>, transform_indices = @transform_3, window_bounds = array<i64: 128, 128>}, {pipeline_mode = #tpu.pipeline_mode<synchronous>, transform_indices = @transform_4, window_bounds = array<i64: 1, 128>}, {pipeline_mode = #tpu.pipeline_mode<synchronous>, transform_indices = @transform_5, window_bounds = array<i64: 128, 128>}, {pipeline_mode = #tpu.pipeline_mode<synchronous>, transform_indices = @transform_6, window_bounds = array<i64: 1, 128>}, {pipeline_mode = #tpu.pipeline_mode<synchronous>, transform_indices = @transform_7, window_bounds = array<i64: 128, 128>}, {pipeline_mode = #tpu.pipeline_mode<synchronous>, transform_indices = @transform_8, window_bounds = array<i64: 1, 128>}, {pipeline_mode = #tpu.pipeline_mode<synchronous>, transform_indices = @transform_9, window_bounds = array<i64: 128, 128>}, {pipeline_mode = #tpu.pipeline_mode<synchronous>, transform_indices = @transform_10, window_bounds = array<i64: 1, 128>}, {pipeline_mode = #tpu.pipeline_mode<synchronous>, transform_indices = @transform_11, window_bounds = array<i64: 1, 128>}, {pipeline_mode = #tpu.pipeline_mode<synchronous>, transform_indices = @transform_12, window_bounds = array<i64: 1, 128>}, {transform_indices = @transform_13, window_bounds = array<i64: 32, 128>}]} {
    %c0 = arith.constant 0 : index
    %c0_0 = arith.constant 0 : index
    %0 = vector.load %arg1[%c0, %c0_0] : memref<32x128xf32, #tpu.memory_space<vmem>>, vector<32x128xf32>
    %1 = arith.truncf %0 : vector<32x128xf32> to vector<32x128xbf16>
    %c0_1 = arith.constant 0 : index
    %c0_2 = arith.constant 0 : index
    %2 = vector.load %arg3[%c0_1, %c0_2] : memref<128x128xbf16, #tpu.memory_space<vmem>>, vector<128x128xbf16>
    %cst = arith.constant dense<0.000000e+00> : vector<32x128xf32>
    %3 = tpu.matmul %1, %2, %cst {dimension_numbers = #tpu.dot_dimension_numbers<[1], [0], [0], [1], [0, 0, 1, 1], [], []>} : vector<32x128xbf16>, vector<128x128xbf16>, vector<32x128xf32> -> vector<32x128xf32>
    %c0_3 = arith.constant 0 : index
    %c0_4 = arith.constant 0 : index
    %4 = vector.load %arg2[%c0_3, %c0_4] : memref<32x128xf32, #tpu.memory_space<vmem>>, vector<32x128xf32>
    %5 = arith.truncf %4 : vector<32x128xf32> to vector<32x128xbf16>
    %c0_5 = arith.constant 0 : index
    %c0_6 = arith.constant 0 : index
    %6 = vector.load %arg4[%c0_5, %c0_6] : memref<128x128xbf16, #tpu.memory_space<vmem>>, vector<128x128xbf16>
    %cst_7 = arith.constant dense<0.000000e+00> : vector<32x128xf32>
    %7 = tpu.matmul %5, %6, %cst_7 {dimension_numbers = #tpu.dot_dimension_numbers<[1], [0], [0], [1], [0, 0, 1, 1], [], []>} : vector<32x128xbf16>, vector<128x128xbf16>, vector<32x128xf32> -> vector<32x128xf32>
    %8 = arith.addf %3, %7 : vector<32x128xf32>
    %c0_8 = arith.constant 0 : index
    %c0_9 = arith.constant 0 : index
    %9 = vector.load %arg5[%c0_8, %c0_9] : memref<1x128xf32, #tpu.memory_space<vmem>>, vector<1x128xf32>
    %10 = vector.broadcast %9 : vector<1x128xf32> to vector<32x128xf32>
    %11 = arith.addf %8, %10 : vector<32x128xf32>
    %cst_10 = arith.constant 0.000000e+00 : f32
    %12 = vector.broadcast %cst_10 : f32 to vector<32x128xf32>
    %13 = arith.maximumf %11, %12 : vector<32x128xf32>
    %14 = arith.truncf %13 : vector<32x128xf32> to vector<32x128xbf16>
    %c0_11 = arith.constant 0 : index
    %c0_12 = arith.constant 0 : index
    %15 = vector.load %arg6[%c0_11, %c0_12] : memref<128x128xbf16, #tpu.memory_space<vmem>>, vector<128x128xbf16>
    %cst_13 = arith.constant dense<0.000000e+00> : vector<32x128xf32>
    %16 = tpu.matmul %14, %15, %cst_13 {dimension_numbers = #tpu.dot_dimension_numbers<[1], [0], [0], [1], [0, 0, 1, 1], [], []>} : vector<32x128xbf16>, vector<128x128xbf16>, vector<32x128xf32> -> vector<32x128xf32>
    %c0_14 = arith.constant 0 : index
    %c0_15 = arith.constant 0 : index
    %17 = vector.load %arg7[%c0_14, %c0_15] : memref<1x128xf32, #tpu.memory_space<vmem>>, vector<1x128xf32>
    %18 = vector.broadcast %17 : vector<1x128xf32> to vector<32x128xf32>
    %19 = arith.addf %16, %18 : vector<32x128xf32>
    %cst_16 = arith.constant 0.000000e+00 : f32
    %20 = vector.broadcast %cst_16 : f32 to vector<32x128xf32>
    %21 = arith.maximumf %19, %20 : vector<32x128xf32>
    %22 = arith.truncf %21 : vector<32x128xf32> to vector<32x128xbf16>
    %c0_17 = arith.constant 0 : index
    %c0_18 = arith.constant 0 : index
    %23 = vector.load %arg8[%c0_17, %c0_18] : memref<128x128xbf16, #tpu.memory_space<vmem>>, vector<128x128xbf16>
    %cst_19 = arith.constant dense<0.000000e+00> : vector<32x128xf32>
    %24 = tpu.matmul %22, %23, %cst_19 {dimension_numbers = #tpu.dot_dimension_numbers<[1], [0], [0], [1], [0, 0, 1, 1], [], []>} : vector<32x128xbf16>, vector<128x128xbf16>, vector<32x128xf32> -> vector<32x128xf32>
    %c0_20 = arith.constant 0 : index
    %c0_21 = arith.constant 0 : index
    %25 = vector.load %arg9[%c0_20, %c0_21] : memref<1x128xf32, #tpu.memory_space<vmem>>, vector<1x128xf32>
    %26 = vector.broadcast %25 : vector<1x128xf32> to vector<32x128xf32>
    %27 = arith.addf %24, %26 : vector<32x128xf32>
    %cst_22 = arith.constant 0.000000e+00 : f32
    %28 = vector.broadcast %cst_22 : f32 to vector<32x128xf32>
    %29 = arith.maximumf %27, %28 : vector<32x128xf32>
    %30 = arith.truncf %29 : vector<32x128xf32> to vector<32x128xbf16>
    %c0_23 = arith.constant 0 : index
    %c0_24 = arith.constant 0 : index
    %31 = vector.load %arg10[%c0_23, %c0_24] : memref<128x128xbf16, #tpu.memory_space<vmem>>, vector<128x128xbf16>
    %cst_25 = arith.constant dense<0.000000e+00> : vector<32x128xf32>
    %32 = tpu.matmul %30, %31, %cst_25 {dimension_numbers = #tpu.dot_dimension_numbers<[1], [0], [0], [1], [0, 0, 1, 1], [], []>} : vector<32x128xbf16>, vector<128x128xbf16>, vector<32x128xf32> -> vector<32x128xf32>
    %c0_26 = arith.constant 0 : index
    %c0_27 = arith.constant 0 : index
    %33 = vector.load %arg11[%c0_26, %c0_27] : memref<1x128xf32, #tpu.memory_space<vmem>>, vector<1x128xf32>
    %34 = vector.broadcast %33 : vector<1x128xf32> to vector<32x128xf32>
    %35 = arith.addf %32, %34 : vector<32x128xf32>
    %cst_28 = arith.constant dense<0.000000e+00> : vector<32xf32>
    %36 = vector.multi_reduction <add>, %35, %cst_28 [1] : vector<32x128xf32> to vector<32xf32>
    %37 = vector.shape_cast %36 : vector<32xf32> to vector<32x1xf32>
    %38 = arith.mulf %35, %35 : vector<32x128xf32>
    %cst_29 = arith.constant dense<0.000000e+00> : vector<32xf32>
    %39 = vector.multi_reduction <add>, %38, %cst_29 [1] : vector<32x128xf32> to vector<32xf32>
    %40 = vector.shape_cast %39 : vector<32xf32> to vector<32x1xf32>
    %cst_30 = arith.constant 7.812500e-03 : f32
    %41 = vector.broadcast %cst_30 : f32 to vector<32x1xf32>
    %42 = arith.mulf %37, %41 : vector<32x1xf32>
    %cst_31 = arith.constant 7.812500e-03 : f32
    %43 = vector.broadcast %cst_31 : f32 to vector<32x1xf32>
    %44 = arith.mulf %40, %43 : vector<32x1xf32>
    %45 = arith.mulf %42, %42 : vector<32x1xf32>
    %46 = arith.subf %44, %45 : vector<32x1xf32>
    %cst_32 = arith.constant 0.000000e+00 : f32
    %47 = vector.broadcast %cst_32 : f32 to vector<32x1xf32>
    %48 = arith.maximumf %46, %47 : vector<32x1xf32>
    %49 = vector.broadcast %42 : vector<32x1xf32> to vector<32x128xf32>
    %50 = arith.subf %35, %49 : vector<32x128xf32>
    %cst_33 = arith.constant 9.99999974E-6 : f32
    %51 = vector.broadcast %cst_33 : f32 to vector<32x1xf32>
    %52 = arith.addf %48, %51 : vector<32x1xf32>
    %53 = math.rsqrt %52 : vector<32x1xf32>
    %54 = vector.broadcast %53 : vector<32x1xf32> to vector<32x128xf32>
    %55 = arith.mulf %50, %54 : vector<32x128xf32>
    %c0_34 = arith.constant 0 : index
    %c0_35 = arith.constant 0 : index
    %56 = vector.load %arg12[%c0_34, %c0_35] : memref<1x128xf32, #tpu.memory_space<vmem>>, vector<1x128xf32>
    %57 = vector.broadcast %56 : vector<1x128xf32> to vector<32x128xf32>
    %58 = arith.mulf %55, %57 : vector<32x128xf32>
    %c0_36 = arith.constant 0 : index
    %c0_37 = arith.constant 0 : index
    %59 = vector.load %arg13[%c0_36, %c0_37] : memref<1x128xf32, #tpu.memory_space<vmem>>, vector<1x128xf32>
    %60 = vector.broadcast %59 : vector<1x128xf32> to vector<32x128xf32>
    %61 = arith.addf %58, %60 : vector<32x128xf32>
    %c0_38 = arith.constant 0 : index
    %c0_39 = arith.constant 0 : index
    %62 = vector.load %arg14[%c0_38, %c0_39] : memref<32x128xf32, #tpu.memory_space<vmem>>, vector<32x128xf32>
    tpu.vector_store %arg14[%c0_38, %c0_39], %61 {strides = array<i32>} : memref<32x128xf32, #tpu.memory_space<vmem>>, vector<32x128xf32>,
    return
  }
  func.func @transform_0(%arg0: i32) -> (i32, i32) {
    %c0_i32 = arith.constant 0 : i32
    %c0_i32_0 = arith.constant 0 : i32
    return %arg0, %c0_i32 : i32, i32
  }
  func.func @transform_1(%arg0: i32) -> (i32, i32) {
    %c0_i32 = arith.constant 0 : i32
    %c0_i32_0 = arith.constant 0 : i32
    return %arg0, %c0_i32 : i32, i32
  }
  func.func @transform_2(%arg0: i32) -> (i32, i32) {
    %c0_i32 = arith.constant 0 : i32
    %c0_i32_0 = arith.constant 0 : i32
    %c0_i32_1 = arith.constant 0 : i32
    return %c0_i32, %c0_i32_0 : i32, i32
  }
  func.func @transform_3(%arg0: i32) -> (i32, i32) {
    %c0_i32 = arith.constant 0 : i32
    %c0_i32_0 = arith.constant 0 : i32
    %c0_i32_1 = arith.constant 0 : i32
    return %c0_i32, %c0_i32_0 : i32, i32
  }
  func.func @transform_4(%arg0: i32) -> (i32, i32) {
    %c0_i32 = arith.constant 0 : i32
    %c0_i32_0 = arith.constant 0 : i32
    %c0_i32_1 = arith.constant 0 : i32
    return %c0_i32, %c0_i32_0 : i32, i32
  }
  func.func @transform_5(%arg0: i32) -> (i32, i32) {
    %c0_i32 = arith.constant 0 : i32
    %c0_i32_0 = arith.constant 0 : i32
    %c0_i32_1 = arith.constant 0 : i32
    return %c0_i32, %c0_i32_0 : i32, i32
  }
  func.func @transform_6(%arg0: i32) -> (i32, i32) {
    %c0_i32 = arith.constant 0 : i32
    %c0_i32_0 = arith.constant 0 : i32
    %c0_i32_1 = arith.constant 0 : i32
    return %c0_i32, %c0_i32_0 : i32, i32
  }
  func.func @transform_7(%arg0: i32) -> (i32, i32) {
    %c0_i32 = arith.constant 0 : i32
    %c0_i32_0 = arith.constant 0 : i32
    %c0_i32_1 = arith.constant 0 : i32
    return %c0_i32, %c0_i32_0 : i32, i32
  }
  func.func @transform_8(%arg0: i32) -> (i32, i32) {
    %c0_i32 = arith.constant 0 : i32
    %c0_i32_0 = arith.constant 0 : i32
    %c0_i32_1 = arith.constant 0 : i32
    return %c0_i32, %c0_i32_0 : i32, i32
  }
  func.func @transform_9(%arg0: i32) -> (i32, i32) {
    %c0_i32 = arith.constant 0 : i32
    %c0_i32_0 = arith.constant 0 : i32
    %c0_i32_1 = arith.constant 0 : i32
    return %c0_i32, %c0_i32_0 : i32, i32
  }
  func.func @transform_10(%arg0: i32) -> (i32, i32) {
    %c0_i32 = arith.constant 0 : i32
    %c0_i32_0 = arith.constant 0 : i32
    %c0_i32_1 = arith.constant 0 : i32
    return %c0_i32, %c0_i32_0 : i32, i32
  }
  func.func @transform_11(%arg0: i32) -> (i32, i32) {
    %c0_i32 = arith.constant 0 : i32
    %c0_i32_0 = arith.constant 0 : i32
    %c0_i32_1 = arith.constant 0 : i32
    return %c0_i32, %c0_i32_0 : i32, i32
  }
  func.func @transform_12(%arg0: i32) -> (i32, i32) {
    %c0_i32 = arith.constant 0 : i32
    %c0_i32_0 = arith.constant 0 : i32
    %c0_i32_1 = arith.constant 0 : i32
    return %c0_i32, %c0_i32_0 : i32, i32
  }
  func.func @transform_13(%arg0: i32) -> (i32, i32) {
    %c0_i32 = arith.constant 0 : i32
    %c0_i32_0 = arith.constant 0 : i32
    return %arg0, %c0_i32 : i32, i32
  }
}

module attributes {stable_mosaic.version = 11 : i64} {
  func.func @_scatter_sum_kernel(%arg0: i32, %arg1: memref<1x32xi32, #tpu.memory_space<vmem>>, %arg2: memref<32x128xf32, #tpu.memory_space<vmem>>, %arg3: memref<16x128xf32, #tpu.memory_space<vmem>>) attributes {dimension_semantics = [#tpu.dimension_semantics<arbitrary>], iteration_bounds = array<i64: 1>, scalar_prefetch = 0 : i64, scratch_operands = 0 : i64, tpu.core_type = #tpu.core_type<tc>, window_params = [{transform_indices = @transform_0, window_bounds = array<i64: 1, 32>}, {transform_indices = @transform_1, window_bounds = array<i64: 32, 128>}, {pipeline_mode = #tpu.pipeline_mode<synchronous>, transform_indices = @transform_2, window_bounds = array<i64: 16, 128>}]} {
    %c0_i32 = arith.constant 0 : i32
    %0 = arith.cmpi eq, %arg0, %c0_i32 : i32
    %1 = arith.extui %0 : i1 to i32
    %c0_i32_0 = arith.constant 0 : i32
    %2 = arith.cmpi ne, %1, %c0_i32_0 : i32
    scf.if %2 {
      %cst_8 = arith.constant 0.000000e+00 : f32
      %14 = vector.broadcast %cst_8 : f32 to vector<16x128xf32>
      %c0_9 = arith.constant 0 : index
      %c0_10 = arith.constant 0 : index
      %15 = vector.load %arg3[%c0_9, %c0_10] : memref<16x128xf32, #tpu.memory_space<vmem>>, vector<16x128xf32>
      tpu.vector_store %arg3[%c0_9, %c0_10], %14 {strides = array<i32>} : memref<16x128xf32, #tpu.memory_space<vmem>>, vector<16x128xf32>,
    } else {
    }
    %c0 = arith.constant 0 : index
    %c0_1 = arith.constant 0 : index
    %3 = vector.load %arg1[%c0, %c0_1] : memref<1x32xi32, #tpu.memory_space<vmem>>, vector<1x32xi32>
    %4 = tpu.iota {dimensions = array<i32: 0>} : vector<16x32xi32>
    %5 = vector.broadcast %3 : vector<1x32xi32> to vector<16x32xi32>
    %6 = arith.cmpi eq, %4, %5 : vector<16x32xi32>
    %7 = arith.extui %6 : vector<16x32xi1> to vector<16x32xi32>
    %8 = arith.sitofp %7 : vector<16x32xi32> to vector<16x32xf32>
    %c0_2 = arith.constant 0 : index
    %c0_3 = arith.constant 0 : index
    %9 = vector.load %arg3[%c0_2, %c0_3] : memref<16x128xf32, #tpu.memory_space<vmem>>, vector<16x128xf32>
    %c0_4 = arith.constant 0 : index
    %c0_5 = arith.constant 0 : index
    %10 = vector.load %arg2[%c0_4, %c0_5] : memref<32x128xf32, #tpu.memory_space<vmem>>, vector<32x128xf32>
    %cst = arith.constant dense<0.000000e+00> : vector<16x128xf32>
    %11 = tpu.matmul %8, %10, %cst {dimension_numbers = #tpu.dot_dimension_numbers<[1], [0], [0], [1], [0, 0, 1, 1], [], []>} : vector<16x32xf32>, vector<32x128xf32>, vector<16x128xf32> -> vector<16x128xf32>
    %12 = arith.addf %9, %11 : vector<16x128xf32>
    %c0_6 = arith.constant 0 : index
    %c0_7 = arith.constant 0 : index
    %13 = vector.load %arg3[%c0_6, %c0_7] : memref<16x128xf32, #tpu.memory_space<vmem>>, vector<16x128xf32>
    tpu.vector_store %arg3[%c0_6, %c0_7], %12 {strides = array<i32>} : memref<16x128xf32, #tpu.memory_space<vmem>>, vector<16x128xf32>,
    return
  }
  func.func @transform_0(%arg0: i32) -> (i32, i32) {
    %c0_i32 = arith.constant 0 : i32
    %c0_i32_0 = arith.constant 0 : i32
    return %c0_i32, %arg0 : i32, i32
  }
  func.func @transform_1(%arg0: i32) -> (i32, i32) {
    %c0_i32 = arith.constant 0 : i32
    %c0_i32_0 = arith.constant 0 : i32
    return %arg0, %c0_i32 : i32, i32
  }
  func.func @transform_2(%arg0: i32) -> (i32, i32) {
    %c0_i32 = arith.constant 0 : i32
    %c0_i32_0 = arith.constant 0 : i32
    %c0_i32_1 = arith.constant 0 : i32
    return %c0_i32, %c0_i32_0 : i32, i32
  }
}

module attributes {stable_mosaic.version = 11 : i64} {
  func.func @kernel(%arg0: i32, %arg1: memref<8x128xf32, #tpu.memory_space<vmem>>, %arg2: memref<8x128xf32, #tpu.memory_space<vmem>>, %arg3: memref<128x128xbf16, #tpu.memory_space<vmem>>, %arg4: memref<128x128xbf16, #tpu.memory_space<vmem>>, %arg5: memref<1x128xf32, #tpu.memory_space<vmem>>, %arg6: memref<128x128xbf16, #tpu.memory_space<vmem>>, %arg7: memref<1x128xf32, #tpu.memory_space<vmem>>, %arg8: memref<128x128xbf16, #tpu.memory_space<vmem>>, %arg9: memref<1x128xf32, #tpu.memory_space<vmem>>, %arg10: memref<128x128xbf16, #tpu.memory_space<vmem>>, %arg11: memref<1x128xf32, #tpu.memory_space<vmem>>, %arg12: memref<1x128xf32, #tpu.memory_space<vmem>>, %arg13: memref<1x128xf32, #tpu.memory_space<vmem>>, %arg14: memref<8x128xf32, #tpu.memory_space<vmem>>, %arg15: memref<8x128xf32, #tpu.memory_space<vmem>>) attributes {dimension_semantics = [#tpu.dimension_semantics<parallel>], iteration_bounds = array<i64: 1>, scalar_prefetch = 0 : i64, scratch_operands = 0 : i64, tpu.core_type = #tpu.core_type<tc>, window_params = [{transform_indices = @transform_0, window_bounds = array<i64: 8, 128>}, {transform_indices = @transform_1, window_bounds = array<i64: 8, 128>}, {pipeline_mode = #tpu.pipeline_mode<synchronous>, transform_indices = @transform_2, window_bounds = array<i64: 128, 128>}, {pipeline_mode = #tpu.pipeline_mode<synchronous>, transform_indices = @transform_3, window_bounds = array<i64: 128, 128>}, {pipeline_mode = #tpu.pipeline_mode<synchronous>, transform_indices = @transform_4, window_bounds = array<i64: 1, 128>}, {pipeline_mode = #tpu.pipeline_mode<synchronous>, transform_indices = @transform_5, window_bounds = array<i64: 128, 128>}, {pipeline_mode = #tpu.pipeline_mode<synchronous>, transform_indices = @transform_6, window_bounds = array<i64: 1, 128>}, {pipeline_mode = #tpu.pipeline_mode<synchronous>, transform_indices = @transform_7, window_bounds = array<i64: 128, 128>}, {pipeline_mode = #tpu.pipeline_mode<synchronous>, transform_indices = @transform_8, window_bounds = array<i64: 1, 128>}, {pipeline_mode = #tpu.pipeline_mode<synchronous>, transform_indices = @transform_9, window_bounds = array<i64: 128, 128>}, {pipeline_mode = #tpu.pipeline_mode<synchronous>, transform_indices = @transform_10, window_bounds = array<i64: 1, 128>}, {pipeline_mode = #tpu.pipeline_mode<synchronous>, transform_indices = @transform_11, window_bounds = array<i64: 1, 128>}, {pipeline_mode = #tpu.pipeline_mode<synchronous>, transform_indices = @transform_12, window_bounds = array<i64: 1, 128>}, {transform_indices = @transform_13, window_bounds = array<i64: 8, 128>}, {transform_indices = @transform_14, window_bounds = array<i64: 8, 128>}]} {
    %c0 = arith.constant 0 : index
    %c0_0 = arith.constant 0 : index
    %0 = vector.load %arg1[%c0, %c0_0] : memref<8x128xf32, #tpu.memory_space<vmem>>, vector<8x128xf32>
    %1 = arith.truncf %0 : vector<8x128xf32> to vector<8x128xbf16>
    %c0_1 = arith.constant 0 : index
    %c0_2 = arith.constant 0 : index
    %2 = vector.load %arg3[%c0_1, %c0_2] : memref<128x128xbf16, #tpu.memory_space<vmem>>, vector<128x128xbf16>
    %cst = arith.constant dense<0.000000e+00> : vector<8x128xf32>
    %3 = tpu.matmul %1, %2, %cst {dimension_numbers = #tpu.dot_dimension_numbers<[1], [0], [0], [1], [0, 0, 1, 1], [], []>} : vector<8x128xbf16>, vector<128x128xbf16>, vector<8x128xf32> -> vector<8x128xf32>
    %c0_3 = arith.constant 0 : index
    %c0_4 = arith.constant 0 : index
    %4 = vector.load %arg2[%c0_3, %c0_4] : memref<8x128xf32, #tpu.memory_space<vmem>>, vector<8x128xf32>
    %5 = arith.truncf %4 : vector<8x128xf32> to vector<8x128xbf16>
    %c0_5 = arith.constant 0 : index
    %c0_6 = arith.constant 0 : index
    %6 = vector.load %arg4[%c0_5, %c0_6] : memref<128x128xbf16, #tpu.memory_space<vmem>>, vector<128x128xbf16>
    %cst_7 = arith.constant dense<0.000000e+00> : vector<8x128xf32>
    %7 = tpu.matmul %5, %6, %cst_7 {dimension_numbers = #tpu.dot_dimension_numbers<[1], [0], [0], [1], [0, 0, 1, 1], [], []>} : vector<8x128xbf16>, vector<128x128xbf16>, vector<8x128xf32> -> vector<8x128xf32>
    %8 = arith.addf %3, %7 : vector<8x128xf32>
    %c0_8 = arith.constant 0 : index
    %c0_9 = arith.constant 0 : index
    %9 = vector.load %arg5[%c0_8, %c0_9] : memref<1x128xf32, #tpu.memory_space<vmem>>, vector<1x128xf32>
    %10 = vector.broadcast %9 : vector<1x128xf32> to vector<8x128xf32>
    %11 = arith.addf %8, %10 : vector<8x128xf32>
    %cst_10 = arith.constant 0.000000e+00 : f32
    %12 = vector.broadcast %cst_10 : f32 to vector<8x128xf32>
    %13 = arith.maximumf %11, %12 : vector<8x128xf32>
    %14 = arith.truncf %13 : vector<8x128xf32> to vector<8x128xbf16>
    %c0_11 = arith.constant 0 : index
    %c0_12 = arith.constant 0 : index
    %15 = vector.load %arg6[%c0_11, %c0_12] : memref<128x128xbf16, #tpu.memory_space<vmem>>, vector<128x128xbf16>
    %cst_13 = arith.constant dense<0.000000e+00> : vector<8x128xf32>
    %16 = tpu.matmul %14, %15, %cst_13 {dimension_numbers = #tpu.dot_dimension_numbers<[1], [0], [0], [1], [0, 0, 1, 1], [], []>} : vector<8x128xbf16>, vector<128x128xbf16>, vector<8x128xf32> -> vector<8x128xf32>
    %c0_14 = arith.constant 0 : index
    %c0_15 = arith.constant 0 : index
    %17 = vector.load %arg7[%c0_14, %c0_15] : memref<1x128xf32, #tpu.memory_space<vmem>>, vector<1x128xf32>
    %18 = vector.broadcast %17 : vector<1x128xf32> to vector<8x128xf32>
    %19 = arith.addf %16, %18 : vector<8x128xf32>
    %cst_16 = arith.constant 0.000000e+00 : f32
    %20 = vector.broadcast %cst_16 : f32 to vector<8x128xf32>
    %21 = arith.maximumf %19, %20 : vector<8x128xf32>
    %22 = arith.truncf %21 : vector<8x128xf32> to vector<8x128xbf16>
    %c0_17 = arith.constant 0 : index
    %c0_18 = arith.constant 0 : index
    %23 = vector.load %arg8[%c0_17, %c0_18] : memref<128x128xbf16, #tpu.memory_space<vmem>>, vector<128x128xbf16>
    %cst_19 = arith.constant dense<0.000000e+00> : vector<8x128xf32>
    %24 = tpu.matmul %22, %23, %cst_19 {dimension_numbers = #tpu.dot_dimension_numbers<[1], [0], [0], [1], [0, 0, 1, 1], [], []>} : vector<8x128xbf16>, vector<128x128xbf16>, vector<8x128xf32> -> vector<8x128xf32>
    %c0_20 = arith.constant 0 : index
    %c0_21 = arith.constant 0 : index
    %25 = vector.load %arg9[%c0_20, %c0_21] : memref<1x128xf32, #tpu.memory_space<vmem>>, vector<1x128xf32>
    %26 = vector.broadcast %25 : vector<1x128xf32> to vector<8x128xf32>
    %27 = arith.addf %24, %26 : vector<8x128xf32>
    %cst_22 = arith.constant 0.000000e+00 : f32
    %28 = vector.broadcast %cst_22 : f32 to vector<8x128xf32>
    %29 = arith.maximumf %27, %28 : vector<8x128xf32>
    %30 = arith.truncf %29 : vector<8x128xf32> to vector<8x128xbf16>
    %c0_23 = arith.constant 0 : index
    %c0_24 = arith.constant 0 : index
    %31 = vector.load %arg10[%c0_23, %c0_24] : memref<128x128xbf16, #tpu.memory_space<vmem>>, vector<128x128xbf16>
    %cst_25 = arith.constant dense<0.000000e+00> : vector<8x128xf32>
    %32 = tpu.matmul %30, %31, %cst_25 {dimension_numbers = #tpu.dot_dimension_numbers<[1], [0], [0], [1], [0, 0, 1, 1], [], []>} : vector<8x128xbf16>, vector<128x128xbf16>, vector<8x128xf32> -> vector<8x128xf32>
    %c0_26 = arith.constant 0 : index
    %c0_27 = arith.constant 0 : index
    %33 = vector.load %arg11[%c0_26, %c0_27] : memref<1x128xf32, #tpu.memory_space<vmem>>, vector<1x128xf32>
    %34 = vector.broadcast %33 : vector<1x128xf32> to vector<8x128xf32>
    %35 = arith.addf %32, %34 : vector<8x128xf32>
    %cst_28 = arith.constant dense<0.000000e+00> : vector<8xf32>
    %36 = vector.multi_reduction <add>, %35, %cst_28 [1] : vector<8x128xf32> to vector<8xf32>
    %37 = vector.shape_cast %36 : vector<8xf32> to vector<8x1xf32>
    %38 = arith.mulf %35, %35 : vector<8x128xf32>
    %cst_29 = arith.constant dense<0.000000e+00> : vector<8xf32>
    %39 = vector.multi_reduction <add>, %38, %cst_29 [1] : vector<8x128xf32> to vector<8xf32>
    %40 = vector.shape_cast %39 : vector<8xf32> to vector<8x1xf32>
    %cst_30 = arith.constant 7.812500e-03 : f32
    %41 = vector.broadcast %cst_30 : f32 to vector<8x1xf32>
    %42 = arith.mulf %37, %41 : vector<8x1xf32>
    %cst_31 = arith.constant 7.812500e-03 : f32
    %43 = vector.broadcast %cst_31 : f32 to vector<8x1xf32>
    %44 = arith.mulf %40, %43 : vector<8x1xf32>
    %45 = arith.mulf %42, %42 : vector<8x1xf32>
    %46 = arith.subf %44, %45 : vector<8x1xf32>
    %cst_32 = arith.constant 0.000000e+00 : f32
    %47 = vector.broadcast %cst_32 : f32 to vector<8x1xf32>
    %48 = arith.maximumf %46, %47 : vector<8x1xf32>
    %49 = vector.broadcast %42 : vector<8x1xf32> to vector<8x128xf32>
    %50 = arith.subf %35, %49 : vector<8x128xf32>
    %cst_33 = arith.constant 9.99999974E-6 : f32
    %51 = vector.broadcast %cst_33 : f32 to vector<8x1xf32>
    %52 = arith.addf %48, %51 : vector<8x1xf32>
    %53 = math.rsqrt %52 : vector<8x1xf32>
    %54 = vector.broadcast %53 : vector<8x1xf32> to vector<8x128xf32>
    %55 = arith.mulf %50, %54 : vector<8x128xf32>
    %c0_34 = arith.constant 0 : index
    %c0_35 = arith.constant 0 : index
    %56 = vector.load %arg12[%c0_34, %c0_35] : memref<1x128xf32, #tpu.memory_space<vmem>>, vector<1x128xf32>
    %57 = vector.broadcast %56 : vector<1x128xf32> to vector<8x128xf32>
    %58 = arith.mulf %55, %57 : vector<8x128xf32>
    %c0_36 = arith.constant 0 : index
    %c0_37 = arith.constant 0 : index
    %59 = vector.load %arg13[%c0_36, %c0_37] : memref<1x128xf32, #tpu.memory_space<vmem>>, vector<1x128xf32>
    %60 = vector.broadcast %59 : vector<1x128xf32> to vector<8x128xf32>
    %61 = arith.addf %58, %60 : vector<8x128xf32>
    %c0_38 = arith.constant 0 : index
    %c0_39 = arith.constant 0 : index
    %62 = vector.load %arg14[%c0_38, %c0_39] : memref<8x128xf32, #tpu.memory_space<vmem>>, vector<8x128xf32>
    %63 = arith.addf %61, %62 : vector<8x128xf32>
    %c0_40 = arith.constant 0 : index
    %c0_41 = arith.constant 0 : index
    %64 = vector.load %arg15[%c0_40, %c0_41] : memref<8x128xf32, #tpu.memory_space<vmem>>, vector<8x128xf32>
    tpu.vector_store %arg15[%c0_40, %c0_41], %63 {strides = array<i32>} : memref<8x128xf32, #tpu.memory_space<vmem>>, vector<8x128xf32>,
    return
  }
  func.func @transform_0(%arg0: i32) -> (i32, i32) {
    %c0_i32 = arith.constant 0 : i32
    %c0_i32_0 = arith.constant 0 : i32
    return %arg0, %c0_i32 : i32, i32
  }
  func.func @transform_1(%arg0: i32) -> (i32, i32) {
    %c0_i32 = arith.constant 0 : i32
    %c0_i32_0 = arith.constant 0 : i32
    return %arg0, %c0_i32 : i32, i32
  }
  func.func @transform_2(%arg0: i32) -> (i32, i32) {
    %c0_i32 = arith.constant 0 : i32
    %c0_i32_0 = arith.constant 0 : i32
    %c0_i32_1 = arith.constant 0 : i32
    return %c0_i32, %c0_i32_0 : i32, i32
  }
  func.func @transform_3(%arg0: i32) -> (i32, i32) {
    %c0_i32 = arith.constant 0 : i32
    %c0_i32_0 = arith.constant 0 : i32
    %c0_i32_1 = arith.constant 0 : i32
    return %c0_i32, %c0_i32_0 : i32, i32
  }
  func.func @transform_4(%arg0: i32) -> (i32, i32) {
    %c0_i32 = arith.constant 0 : i32
    %c0_i32_0 = arith.constant 0 : i32
    %c0_i32_1 = arith.constant 0 : i32
    return %c0_i32, %c0_i32_0 : i32, i32
  }
  func.func @transform_5(%arg0: i32) -> (i32, i32) {
    %c0_i32 = arith.constant 0 : i32
    %c0_i32_0 = arith.constant 0 : i32
    %c0_i32_1 = arith.constant 0 : i32
    return %c0_i32, %c0_i32_0 : i32, i32
  }
  func.func @transform_6(%arg0: i32) -> (i32, i32) {
    %c0_i32 = arith.constant 0 : i32
    %c0_i32_0 = arith.constant 0 : i32
    %c0_i32_1 = arith.constant 0 : i32
    return %c0_i32, %c0_i32_0 : i32, i32
  }
  func.func @transform_7(%arg0: i32) -> (i32, i32) {
    %c0_i32 = arith.constant 0 : i32
    %c0_i32_0 = arith.constant 0 : i32
    %c0_i32_1 = arith.constant 0 : i32
    return %c0_i32, %c0_i32_0 : i32, i32
  }
  func.func @transform_8(%arg0: i32) -> (i32, i32) {
    %c0_i32 = arith.constant 0 : i32
    %c0_i32_0 = arith.constant 0 : i32
    %c0_i32_1 = arith.constant 0 : i32
    return %c0_i32, %c0_i32_0 : i32, i32
  }
  func.func @transform_9(%arg0: i32) -> (i32, i32) {
    %c0_i32 = arith.constant 0 : i32
    %c0_i32_0 = arith.constant 0 : i32
    %c0_i32_1 = arith.constant 0 : i32
    return %c0_i32, %c0_i32_0 : i32, i32
  }
  func.func @transform_10(%arg0: i32) -> (i32, i32) {
    %c0_i32 = arith.constant 0 : i32
    %c0_i32_0 = arith.constant 0 : i32
    %c0_i32_1 = arith.constant 0 : i32
    return %c0_i32, %c0_i32_0 : i32, i32
  }
  func.func @transform_11(%arg0: i32) -> (i32, i32) {
    %c0_i32 = arith.constant 0 : i32
    %c0_i32_0 = arith.constant 0 : i32
    %c0_i32_1 = arith.constant 0 : i32
    return %c0_i32, %c0_i32_0 : i32, i32
  }
  func.func @transform_12(%arg0: i32) -> (i32, i32) {
    %c0_i32 = arith.constant 0 : i32
    %c0_i32_0 = arith.constant 0 : i32
    %c0_i32_1 = arith.constant 0 : i32
    return %c0_i32, %c0_i32_0 : i32, i32
  }
  func.func @transform_13(%arg0: i32) -> (i32, i32) {
    %c0_i32 = arith.constant 0 : i32
    %c0_i32_0 = arith.constant 0 : i32
    return %arg0, %c0_i32 : i32, i32
  }
  func.func @transform_14(%arg0: i32) -> (i32, i32) {
    %c0_i32 = arith.constant 0 : i32
    %c0_i32_0 = arith.constant 0 : i32
    return %arg0, %c0_i32 : i32, i32
  }
}

module attributes {stable_mosaic.version = 11 : i64} {
  func.func @_scatter_sum_kernel(%arg0: i32, %arg1: memref<1x16xi32, #tpu.memory_space<vmem>>, %arg2: memref<16x128xf32, #tpu.memory_space<vmem>>, %arg3: memref<2x128xf32, #tpu.memory_space<vmem>>) attributes {dimension_semantics = [#tpu.dimension_semantics<arbitrary>], iteration_bounds = array<i64: 1>, scalar_prefetch = 0 : i64, scratch_operands = 0 : i64, tpu.core_type = #tpu.core_type<tc>, window_params = [{transform_indices = @transform_0, window_bounds = array<i64: 1, 16>}, {transform_indices = @transform_1, window_bounds = array<i64: 16, 128>}, {pipeline_mode = #tpu.pipeline_mode<synchronous>, transform_indices = @transform_2, window_bounds = array<i64: 2, 128>}]} {
    %c0_i32 = arith.constant 0 : i32
    %0 = arith.cmpi eq, %arg0, %c0_i32 : i32
    %1 = arith.extui %0 : i1 to i32
    %c0_i32_0 = arith.constant 0 : i32
    %2 = arith.cmpi ne, %1, %c0_i32_0 : i32
    scf.if %2 {
      %cst_8 = arith.constant 0.000000e+00 : f32
      %14 = vector.broadcast %cst_8 : f32 to vector<2x128xf32>
      %c0_9 = arith.constant 0 : index
      %c0_10 = arith.constant 0 : index
      %15 = vector.load %arg3[%c0_9, %c0_10] : memref<2x128xf32, #tpu.memory_space<vmem>>, vector<2x128xf32>
      tpu.vector_store %arg3[%c0_9, %c0_10], %14 {strides = array<i32>} : memref<2x128xf32, #tpu.memory_space<vmem>>, vector<2x128xf32>,
    } else {
    }
    %c0 = arith.constant 0 : index
    %c0_1 = arith.constant 0 : index
    %3 = vector.load %arg1[%c0, %c0_1] : memref<1x16xi32, #tpu.memory_space<vmem>>, vector<1x16xi32>
    %4 = tpu.iota {dimensions = array<i32: 0>} : vector<2x16xi32>
    %5 = vector.broadcast %3 : vector<1x16xi32> to vector<2x16xi32>
    %6 = arith.cmpi eq, %4, %5 : vector<2x16xi32>
    %7 = arith.extui %6 : vector<2x16xi1> to vector<2x16xi32>
    %8 = arith.sitofp %7 : vector<2x16xi32> to vector<2x16xf32>
    %c0_2 = arith.constant 0 : index
    %c0_3 = arith.constant 0 : index
    %9 = vector.load %arg3[%c0_2, %c0_3] : memref<2x128xf32, #tpu.memory_space<vmem>>, vector<2x128xf32>
    %c0_4 = arith.constant 0 : index
    %c0_5 = arith.constant 0 : index
    %10 = vector.load %arg2[%c0_4, %c0_5] : memref<16x128xf32, #tpu.memory_space<vmem>>, vector<16x128xf32>
    %cst = arith.constant dense<0.000000e+00> : vector<2x128xf32>
    %11 = tpu.matmul %8, %10, %cst {dimension_numbers = #tpu.dot_dimension_numbers<[1], [0], [0], [1], [0, 0, 1, 1], [], []>} : vector<2x16xf32>, vector<16x128xf32>, vector<2x128xf32> -> vector<2x128xf32>
    %12 = arith.addf %9, %11 : vector<2x128xf32>
    %c0_6 = arith.constant 0 : index
    %c0_7 = arith.constant 0 : index
    %13 = vector.load %arg3[%c0_6, %c0_7] : memref<2x128xf32, #tpu.memory_space<vmem>>, vector<2x128xf32>
    tpu.vector_store %arg3[%c0_6, %c0_7], %12 {strides = array<i32>} : memref<2x128xf32, #tpu.memory_space<vmem>>, vector<2x128xf32>,
    return
  }
  func.func @transform_0(%arg0: i32) -> (i32, i32) {
    %c0_i32 = arith.constant 0 : i32
    %c0_i32_0 = arith.constant 0 : i32
    return %c0_i32, %arg0 : i32, i32
  }
  func.func @transform_1(%arg0: i32) -> (i32, i32) {
    %c0_i32 = arith.constant 0 : i32
    %c0_i32_0 = arith.constant 0 : i32
    return %arg0, %c0_i32 : i32, i32
  }
  func.func @transform_2(%arg0: i32) -> (i32, i32) {
    %c0_i32 = arith.constant 0 : i32
    %c0_i32_0 = arith.constant 0 : i32
    %c0_i32_1 = arith.constant 0 : i32
    return %c0_i32, %c0_i32_0 : i32, i32
  }
}

module attributes {stable_mosaic.version = 11 : i64} {
  func.func @kernel(%arg0: i32, %arg1: memref<16x128xf32, #tpu.memory_space<vmem>>, %arg2: memref<16x128xf32, #tpu.memory_space<vmem>>, %arg3: memref<16x128xf32, #tpu.memory_space<vmem>>, %arg4: memref<128x128xbf16, #tpu.memory_space<vmem>>, %arg5: memref<128x128xbf16, #tpu.memory_space<vmem>>, %arg6: memref<128x128xbf16, #tpu.memory_space<vmem>>, %arg7: memref<1x128xf32, #tpu.memory_space<vmem>>, %arg8: memref<128x128xbf16, #tpu.memory_space<vmem>>, %arg9: memref<1x128xf32, #tpu.memory_space<vmem>>, %arg10: memref<128x128xbf16, #tpu.memory_space<vmem>>, %arg11: memref<1x128xf32, #tpu.memory_space<vmem>>, %arg12: memref<128x128xbf16, #tpu.memory_space<vmem>>, %arg13: memref<1x128xf32, #tpu.memory_space<vmem>>, %arg14: memref<1x128xf32, #tpu.memory_space<vmem>>, %arg15: memref<1x128xf32, #tpu.memory_space<vmem>>, %arg16: memref<16x128xf32, #tpu.memory_space<vmem>>, %arg17: memref<16x128xf32, #tpu.memory_space<vmem>>) attributes {dimension_semantics = [#tpu.dimension_semantics<parallel>], iteration_bounds = array<i64: 1>, scalar_prefetch = 0 : i64, scratch_operands = 0 : i64, tpu.core_type = #tpu.core_type<tc>, window_params = [{transform_indices = @transform_0, window_bounds = array<i64: 16, 128>}, {transform_indices = @transform_1, window_bounds = array<i64: 16, 128>}, {transform_indices = @transform_2, window_bounds = array<i64: 16, 128>}, {pipeline_mode = #tpu.pipeline_mode<synchronous>, transform_indices = @transform_3, window_bounds = array<i64: 128, 128>}, {pipeline_mode = #tpu.pipeline_mode<synchronous>, transform_indices = @transform_4, window_bounds = array<i64: 128, 128>}, {pipeline_mode = #tpu.pipeline_mode<synchronous>, transform_indices = @transform_5, window_bounds = array<i64: 128, 128>}, {pipeline_mode = #tpu.pipeline_mode<synchronous>, transform_indices = @transform_6, window_bounds = array<i64: 1, 128>}, {pipeline_mode = #tpu.pipeline_mode<synchronous>, transform_indices = @transform_7, window_bounds = array<i64: 128, 128>}, {pipeline_mode = #tpu.pipeline_mode<synchronous>, transform_indices = @transform_8, window_bounds = array<i64: 1, 128>}, {pipeline_mode = #tpu.pipeline_mode<synchronous>, transform_indices = @transform_9, window_bounds = array<i64: 128, 128>}, {pipeline_mode = #tpu.pipeline_mode<synchronous>, transform_indices = @transform_10, window_bounds = array<i64: 1, 128>}, {pipeline_mode = #tpu.pipeline_mode<synchronous>, transform_indices = @transform_11, window_bounds = array<i64: 128, 128>}, {pipeline_mode = #tpu.pipeline_mode<synchronous>, transform_indices = @transform_12, window_bounds = array<i64: 1, 128>}, {pipeline_mode = #tpu.pipeline_mode<synchronous>, transform_indices = @transform_13, window_bounds = array<i64: 1, 128>}, {pipeline_mode = #tpu.pipeline_mode<synchronous>, transform_indices = @transform_14, window_bounds = array<i64: 1, 128>}, {transform_indices = @transform_15, window_bounds = array<i64: 16, 128>}, {transform_indices = @transform_16, window_bounds = array<i64: 16, 128>}]} {
    %c0 = arith.constant 0 : index
    %c0_0 = arith.constant 0 : index
    %0 = vector.load %arg1[%c0, %c0_0] : memref<16x128xf32, #tpu.memory_space<vmem>>, vector<16x128xf32>
    %1 = arith.truncf %0 : vector<16x128xf32> to vector<16x128xbf16>
    %c0_1 = arith.constant 0 : index
    %c0_2 = arith.constant 0 : index
    %2 = vector.load %arg4[%c0_1, %c0_2] : memref<128x128xbf16, #tpu.memory_space<vmem>>, vector<128x128xbf16>
    %cst = arith.constant dense<0.000000e+00> : vector<16x128xf32>
    %3 = tpu.matmul %1, %2, %cst {dimension_numbers = #tpu.dot_dimension_numbers<[1], [0], [0], [1], [0, 0, 1, 1], [], []>} : vector<16x128xbf16>, vector<128x128xbf16>, vector<16x128xf32> -> vector<16x128xf32>
    %c0_3 = arith.constant 0 : index
    %c0_4 = arith.constant 0 : index
    %4 = vector.load %arg2[%c0_3, %c0_4] : memref<16x128xf32, #tpu.memory_space<vmem>>, vector<16x128xf32>
    %5 = arith.truncf %4 : vector<16x128xf32> to vector<16x128xbf16>
    %c0_5 = arith.constant 0 : index
    %c0_6 = arith.constant 0 : index
    %6 = vector.load %arg5[%c0_5, %c0_6] : memref<128x128xbf16, #tpu.memory_space<vmem>>, vector<128x128xbf16>
    %cst_7 = arith.constant dense<0.000000e+00> : vector<16x128xf32>
    %7 = tpu.matmul %5, %6, %cst_7 {dimension_numbers = #tpu.dot_dimension_numbers<[1], [0], [0], [1], [0, 0, 1, 1], [], []>} : vector<16x128xbf16>, vector<128x128xbf16>, vector<16x128xf32> -> vector<16x128xf32>
    %8 = arith.addf %3, %7 : vector<16x128xf32>
    %c0_8 = arith.constant 0 : index
    %c0_9 = arith.constant 0 : index
    %9 = vector.load %arg3[%c0_8, %c0_9] : memref<16x128xf32, #tpu.memory_space<vmem>>, vector<16x128xf32>
    %10 = arith.truncf %9 : vector<16x128xf32> to vector<16x128xbf16>
    %c0_10 = arith.constant 0 : index
    %c0_11 = arith.constant 0 : index
    %11 = vector.load %arg6[%c0_10, %c0_11] : memref<128x128xbf16, #tpu.memory_space<vmem>>, vector<128x128xbf16>
    %cst_12 = arith.constant dense<0.000000e+00> : vector<16x128xf32>
    %12 = tpu.matmul %10, %11, %cst_12 {dimension_numbers = #tpu.dot_dimension_numbers<[1], [0], [0], [1], [0, 0, 1, 1], [], []>} : vector<16x128xbf16>, vector<128x128xbf16>, vector<16x128xf32> -> vector<16x128xf32>
    %13 = arith.addf %8, %12 : vector<16x128xf32>
    %c0_13 = arith.constant 0 : index
    %c0_14 = arith.constant 0 : index
    %14 = vector.load %arg7[%c0_13, %c0_14] : memref<1x128xf32, #tpu.memory_space<vmem>>, vector<1x128xf32>
    %15 = vector.broadcast %14 : vector<1x128xf32> to vector<16x128xf32>
    %16 = arith.addf %13, %15 : vector<16x128xf32>
    %cst_15 = arith.constant 0.000000e+00 : f32
    %17 = vector.broadcast %cst_15 : f32 to vector<16x128xf32>
    %18 = arith.maximumf %16, %17 : vector<16x128xf32>
    %19 = arith.truncf %18 : vector<16x128xf32> to vector<16x128xbf16>
    %c0_16 = arith.constant 0 : index
    %c0_17 = arith.constant 0 : index
    %20 = vector.load %arg8[%c0_16, %c0_17] : memref<128x128xbf16, #tpu.memory_space<vmem>>, vector<128x128xbf16>
    %cst_18 = arith.constant dense<0.000000e+00> : vector<16x128xf32>
    %21 = tpu.matmul %19, %20, %cst_18 {dimension_numbers = #tpu.dot_dimension_numbers<[1], [0], [0], [1], [0, 0, 1, 1], [], []>} : vector<16x128xbf16>, vector<128x128xbf16>, vector<16x128xf32> -> vector<16x128xf32>
    %c0_19 = arith.constant 0 : index
    %c0_20 = arith.constant 0 : index
    %22 = vector.load %arg9[%c0_19, %c0_20] : memref<1x128xf32, #tpu.memory_space<vmem>>, vector<1x128xf32>
    %23 = vector.broadcast %22 : vector<1x128xf32> to vector<16x128xf32>
    %24 = arith.addf %21, %23 : vector<16x128xf32>
    %cst_21 = arith.constant 0.000000e+00 : f32
    %25 = vector.broadcast %cst_21 : f32 to vector<16x128xf32>
    %26 = arith.maximumf %24, %25 : vector<16x128xf32>
    %27 = arith.truncf %26 : vector<16x128xf32> to vector<16x128xbf16>
    %c0_22 = arith.constant 0 : index
    %c0_23 = arith.constant 0 : index
    %28 = vector.load %arg10[%c0_22, %c0_23] : memref<128x128xbf16, #tpu.memory_space<vmem>>, vector<128x128xbf16>
    %cst_24 = arith.constant dense<0.000000e+00> : vector<16x128xf32>
    %29 = tpu.matmul %27, %28, %cst_24 {dimension_numbers = #tpu.dot_dimension_numbers<[1], [0], [0], [1], [0, 0, 1, 1], [], []>} : vector<16x128xbf16>, vector<128x128xbf16>, vector<16x128xf32> -> vector<16x128xf32>
    %c0_25 = arith.constant 0 : index
    %c0_26 = arith.constant 0 : index
    %30 = vector.load %arg11[%c0_25, %c0_26] : memref<1x128xf32, #tpu.memory_space<vmem>>, vector<1x128xf32>
    %31 = vector.broadcast %30 : vector<1x128xf32> to vector<16x128xf32>
    %32 = arith.addf %29, %31 : vector<16x128xf32>
    %cst_27 = arith.constant 0.000000e+00 : f32
    %33 = vector.broadcast %cst_27 : f32 to vector<16x128xf32>
    %34 = arith.maximumf %32, %33 : vector<16x128xf32>
    %35 = arith.truncf %34 : vector<16x128xf32> to vector<16x128xbf16>
    %c0_28 = arith.constant 0 : index
    %c0_29 = arith.constant 0 : index
    %36 = vector.load %arg12[%c0_28, %c0_29] : memref<128x128xbf16, #tpu.memory_space<vmem>>, vector<128x128xbf16>
    %cst_30 = arith.constant dense<0.000000e+00> : vector<16x128xf32>
    %37 = tpu.matmul %35, %36, %cst_30 {dimension_numbers = #tpu.dot_dimension_numbers<[1], [0], [0], [1], [0, 0, 1, 1], [], []>} : vector<16x128xbf16>, vector<128x128xbf16>, vector<16x128xf32> -> vector<16x128xf32>
    %c0_31 = arith.constant 0 : index
    %c0_32 = arith.constant 0 : index
    %38 = vector.load %arg13[%c0_31, %c0_32] : memref<1x128xf32, #tpu.memory_space<vmem>>, vector<1x128xf32>
    %39 = vector.broadcast %38 : vector<1x128xf32> to vector<16x128xf32>
    %40 = arith.addf %37, %39 : vector<16x128xf32>
    %cst_33 = arith.constant dense<0.000000e+00> : vector<16xf32>
    %41 = vector.multi_reduction <add>, %40, %cst_33 [1] : vector<16x128xf32> to vector<16xf32>
    %42 = vector.shape_cast %41 : vector<16xf32> to vector<16x1xf32>
    %43 = arith.mulf %40, %40 : vector<16x128xf32>
    %cst_34 = arith.constant dense<0.000000e+00> : vector<16xf32>
    %44 = vector.multi_reduction <add>, %43, %cst_34 [1] : vector<16x128xf32> to vector<16xf32>
    %45 = vector.shape_cast %44 : vector<16xf32> to vector<16x1xf32>
    %cst_35 = arith.constant 7.812500e-03 : f32
    %46 = vector.broadcast %cst_35 : f32 to vector<16x1xf32>
    %47 = arith.mulf %42, %46 : vector<16x1xf32>
    %cst_36 = arith.constant 7.812500e-03 : f32
    %48 = vector.broadcast %cst_36 : f32 to vector<16x1xf32>
    %49 = arith.mulf %45, %48 : vector<16x1xf32>
    %50 = arith.mulf %47, %47 : vector<16x1xf32>
    %51 = arith.subf %49, %50 : vector<16x1xf32>
    %cst_37 = arith.constant 0.000000e+00 : f32
    %52 = vector.broadcast %cst_37 : f32 to vector<16x1xf32>
    %53 = arith.maximumf %51, %52 : vector<16x1xf32>
    %54 = vector.broadcast %47 : vector<16x1xf32> to vector<16x128xf32>
    %55 = arith.subf %40, %54 : vector<16x128xf32>
    %cst_38 = arith.constant 9.99999974E-6 : f32
    %56 = vector.broadcast %cst_38 : f32 to vector<16x1xf32>
    %57 = arith.addf %53, %56 : vector<16x1xf32>
    %58 = math.rsqrt %57 : vector<16x1xf32>
    %59 = vector.broadcast %58 : vector<16x1xf32> to vector<16x128xf32>
    %60 = arith.mulf %55, %59 : vector<16x128xf32>
    %c0_39 = arith.constant 0 : index
    %c0_40 = arith.constant 0 : index
    %61 = vector.load %arg14[%c0_39, %c0_40] : memref<1x128xf32, #tpu.memory_space<vmem>>, vector<1x128xf32>
    %62 = vector.broadcast %61 : vector<1x128xf32> to vector<16x128xf32>
    %63 = arith.mulf %60, %62 : vector<16x128xf32>
    %c0_41 = arith.constant 0 : index
    %c0_42 = arith.constant 0 : index
    %64 = vector.load %arg15[%c0_41, %c0_42] : memref<1x128xf32, #tpu.memory_space<vmem>>, vector<1x128xf32>
    %65 = vector.broadcast %64 : vector<1x128xf32> to vector<16x128xf32>
    %66 = arith.addf %63, %65 : vector<16x128xf32>
    %c0_43 = arith.constant 0 : index
    %c0_44 = arith.constant 0 : index
    %67 = vector.load %arg16[%c0_43, %c0_44] : memref<16x128xf32, #tpu.memory_space<vmem>>, vector<16x128xf32>
    %68 = arith.addf %66, %67 : vector<16x128xf32>
    %c0_45 = arith.constant 0 : index
    %c0_46 = arith.constant 0 : index
    %69 = vector.load %arg17[%c0_45, %c0_46] : memref<16x128xf32, #tpu.memory_space<vmem>>, vector<16x128xf32>
    tpu.vector_store %arg17[%c0_45, %c0_46], %68 {strides = array<i32>} : memref<16x128xf32, #tpu.memory_space<vmem>>, vector<16x128xf32>,
    return
  }
  func.func @transform_0(%arg0: i32) -> (i32, i32) {
    %c0_i32 = arith.constant 0 : i32
    %c0_i32_0 = arith.constant 0 : i32
    return %arg0, %c0_i32 : i32, i32
  }
  func.func @transform_1(%arg0: i32) -> (i32, i32) {
    %c0_i32 = arith.constant 0 : i32
    %c0_i32_0 = arith.constant 0 : i32
    return %arg0, %c0_i32 : i32, i32
  }
  func.func @transform_2(%arg0: i32) -> (i32, i32) {
    %c0_i32 = arith.constant 0 : i32
    %c0_i32_0 = arith.constant 0 : i32
    return %arg0, %c0_i32 : i32, i32
  }
  func.func @transform_3(%arg0: i32) -> (i32, i32) {
    %c0_i32 = arith.constant 0 : i32
    %c0_i32_0 = arith.constant 0 : i32
    %c0_i32_1 = arith.constant 0 : i32
    return %c0_i32, %c0_i32_0 : i32, i32
  }
  func.func @transform_4(%arg0: i32) -> (i32, i32) {
    %c0_i32 = arith.constant 0 : i32
    %c0_i32_0 = arith.constant 0 : i32
    %c0_i32_1 = arith.constant 0 : i32
    return %c0_i32, %c0_i32_0 : i32, i32
  }
  func.func @transform_5(%arg0: i32) -> (i32, i32) {
    %c0_i32 = arith.constant 0 : i32
    %c0_i32_0 = arith.constant 0 : i32
    %c0_i32_1 = arith.constant 0 : i32
    return %c0_i32, %c0_i32_0 : i32, i32
  }
  func.func @transform_6(%arg0: i32) -> (i32, i32) {
    %c0_i32 = arith.constant 0 : i32
    %c0_i32_0 = arith.constant 0 : i32
    %c0_i32_1 = arith.constant 0 : i32
    return %c0_i32, %c0_i32_0 : i32, i32
  }
  func.func @transform_7(%arg0: i32) -> (i32, i32) {
    %c0_i32 = arith.constant 0 : i32
    %c0_i32_0 = arith.constant 0 : i32
    %c0_i32_1 = arith.constant 0 : i32
    return %c0_i32, %c0_i32_0 : i32, i32
  }
  func.func @transform_8(%arg0: i32) -> (i32, i32) {
    %c0_i32 = arith.constant 0 : i32
    %c0_i32_0 = arith.constant 0 : i32
    %c0_i32_1 = arith.constant 0 : i32
    return %c0_i32, %c0_i32_0 : i32, i32
  }
  func.func @transform_9(%arg0: i32) -> (i32, i32) {
    %c0_i32 = arith.constant 0 : i32
    %c0_i32_0 = arith.constant 0 : i32
    %c0_i32_1 = arith.constant 0 : i32
    return %c0_i32, %c0_i32_0 : i32, i32
  }
  func.func @transform_10(%arg0: i32) -> (i32, i32) {
    %c0_i32 = arith.constant 0 : i32
    %c0_i32_0 = arith.constant 0 : i32
    %c0_i32_1 = arith.constant 0 : i32
    return %c0_i32, %c0_i32_0 : i32, i32
  }
  func.func @transform_11(%arg0: i32) -> (i32, i32) {
    %c0_i32 = arith.constant 0 : i32
    %c0_i32_0 = arith.constant 0 : i32
    %c0_i32_1 = arith.constant 0 : i32
    return %c0_i32, %c0_i32_0 : i32, i32
  }
  func.func @transform_12(%arg0: i32) -> (i32, i32) {
    %c0_i32 = arith.constant 0 : i32
    %c0_i32_0 = arith.constant 0 : i32
    %c0_i32_1 = arith.constant 0 : i32
    return %c0_i32, %c0_i32_0 : i32, i32
  }
  func.func @transform_13(%arg0: i32) -> (i32, i32) {
    %c0_i32 = arith.constant 0 : i32
    %c0_i32_0 = arith.constant 0 : i32
    %c0_i32_1 = arith.constant 0 : i32
    return %c0_i32, %c0_i32_0 : i32, i32
  }
  func.func @transform_14(%arg0: i32) -> (i32, i32) {
    %c0_i32 = arith.constant 0 : i32
    %c0_i32_0 = arith.constant 0 : i32
    %c0_i32_1 = arith.constant 0 : i32
    return %c0_i32, %c0_i32_0 : i32, i32
  }
  func.func @transform_15(%arg0: i32) -> (i32, i32) {
    %c0_i32 = arith.constant 0 : i32
    %c0_i32_0 = arith.constant 0 : i32
    return %arg0, %c0_i32 : i32, i32
  }
  func.func @transform_16(%arg0: i32) -> (i32, i32) {
    %c0_i32 = arith.constant 0 : i32
    %c0_i32_0 = arith.constant 0 : i32
    return %arg0, %c0_i32 : i32, i32
  }
}

module attributes {stable_mosaic.version = 11 : i64} {
  func.func @kernel(%arg0: i32, %arg1: memref<16x128xf32, #tpu.memory_space<vmem>>, %arg2: memref<128x128xbf16, #tpu.memory_space<vmem>>, %arg3: memref<1x128xf32, #tpu.memory_space<vmem>>, %arg4: memref<128x128xbf16, #tpu.memory_space<vmem>>, %arg5: memref<1x128xf32, #tpu.memory_space<vmem>>, %arg6: memref<128x128xbf16, #tpu.memory_space<vmem>>, %arg7: memref<1x128xf32, #tpu.memory_space<vmem>>, %arg8: memref<128x1xbf16, #tpu.memory_space<vmem>>, %arg9: memref<1x1xf32, #tpu.memory_space<vmem>>, %arg10: memref<16x1xf32, #tpu.memory_space<vmem>>) attributes {dimension_semantics = [#tpu.dimension_semantics<parallel>], iteration_bounds = array<i64: 1>, scalar_prefetch = 0 : i64, scratch_operands = 0 : i64, tpu.core_type = #tpu.core_type<tc>, window_params = [{transform_indices = @transform_0, window_bounds = array<i64: 16, 128>}, {pipeline_mode = #tpu.pipeline_mode<synchronous>, transform_indices = @transform_1, window_bounds = array<i64: 128, 128>}, {pipeline_mode = #tpu.pipeline_mode<synchronous>, transform_indices = @transform_2, window_bounds = array<i64: 1, 128>}, {pipeline_mode = #tpu.pipeline_mode<synchronous>, transform_indices = @transform_3, window_bounds = array<i64: 128, 128>}, {pipeline_mode = #tpu.pipeline_mode<synchronous>, transform_indices = @transform_4, window_bounds = array<i64: 1, 128>}, {pipeline_mode = #tpu.pipeline_mode<synchronous>, transform_indices = @transform_5, window_bounds = array<i64: 128, 128>}, {pipeline_mode = #tpu.pipeline_mode<synchronous>, transform_indices = @transform_6, window_bounds = array<i64: 1, 128>}, {pipeline_mode = #tpu.pipeline_mode<synchronous>, transform_indices = @transform_7, window_bounds = array<i64: 128, 1>}, {pipeline_mode = #tpu.pipeline_mode<synchronous>, transform_indices = @transform_8, window_bounds = array<i64: 1, 1>}, {transform_indices = @transform_9, window_bounds = array<i64: 16, 1>}]} {
    %c0 = arith.constant 0 : index
    %c0_0 = arith.constant 0 : index
    %0 = vector.load %arg1[%c0, %c0_0] : memref<16x128xf32, #tpu.memory_space<vmem>>, vector<16x128xf32>
    %1 = arith.truncf %0 : vector<16x128xf32> to vector<16x128xbf16>
    %c0_1 = arith.constant 0 : index
    %c0_2 = arith.constant 0 : index
    %2 = vector.load %arg2[%c0_1, %c0_2] : memref<128x128xbf16, #tpu.memory_space<vmem>>, vector<128x128xbf16>
    %cst = arith.constant dense<0.000000e+00> : vector<16x128xf32>
    %3 = tpu.matmul %1, %2, %cst {dimension_numbers = #tpu.dot_dimension_numbers<[1], [0], [0], [1], [0, 0, 1, 1], [], []>} : vector<16x128xbf16>, vector<128x128xbf16>, vector<16x128xf32> -> vector<16x128xf32>
    %c0_3 = arith.constant 0 : index
    %c0_4 = arith.constant 0 : index
    %4 = vector.load %arg3[%c0_3, %c0_4] : memref<1x128xf32, #tpu.memory_space<vmem>>, vector<1x128xf32>
    %5 = vector.broadcast %4 : vector<1x128xf32> to vector<16x128xf32>
    %6 = arith.addf %3, %5 : vector<16x128xf32>
    %cst_5 = arith.constant 0.000000e+00 : f32
    %7 = vector.broadcast %cst_5 : f32 to vector<16x128xf32>
    %8 = arith.maximumf %6, %7 : vector<16x128xf32>
    %9 = arith.truncf %8 : vector<16x128xf32> to vector<16x128xbf16>
    %c0_6 = arith.constant 0 : index
    %c0_7 = arith.constant 0 : index
    %10 = vector.load %arg4[%c0_6, %c0_7] : memref<128x128xbf16, #tpu.memory_space<vmem>>, vector<128x128xbf16>
    %cst_8 = arith.constant dense<0.000000e+00> : vector<16x128xf32>
    %11 = tpu.matmul %9, %10, %cst_8 {dimension_numbers = #tpu.dot_dimension_numbers<[1], [0], [0], [1], [0, 0, 1, 1], [], []>} : vector<16x128xbf16>, vector<128x128xbf16>, vector<16x128xf32> -> vector<16x128xf32>
    %c0_9 = arith.constant 0 : index
    %c0_10 = arith.constant 0 : index
    %12 = vector.load %arg5[%c0_9, %c0_10] : memref<1x128xf32, #tpu.memory_space<vmem>>, vector<1x128xf32>
    %13 = vector.broadcast %12 : vector<1x128xf32> to vector<16x128xf32>
    %14 = arith.addf %11, %13 : vector<16x128xf32>
    %cst_11 = arith.constant 0.000000e+00 : f32
    %15 = vector.broadcast %cst_11 : f32 to vector<16x128xf32>
    %16 = arith.maximumf %14, %15 : vector<16x128xf32>
    %17 = arith.truncf %16 : vector<16x128xf32> to vector<16x128xbf16>
    %c0_12 = arith.constant 0 : index
    %c0_13 = arith.constant 0 : index
    %18 = vector.load %arg6[%c0_12, %c0_13] : memref<128x128xbf16, #tpu.memory_space<vmem>>, vector<128x128xbf16>
    %cst_14 = arith.constant dense<0.000000e+00> : vector<16x128xf32>
    %19 = tpu.matmul %17, %18, %cst_14 {dimension_numbers = #tpu.dot_dimension_numbers<[1], [0], [0], [1], [0, 0, 1, 1], [], []>} : vector<16x128xbf16>, vector<128x128xbf16>, vector<16x128xf32> -> vector<16x128xf32>
    %c0_15 = arith.constant 0 : index
    %c0_16 = arith.constant 0 : index
    %20 = vector.load %arg7[%c0_15, %c0_16] : memref<1x128xf32, #tpu.memory_space<vmem>>, vector<1x128xf32>
    %21 = vector.broadcast %20 : vector<1x128xf32> to vector<16x128xf32>
    %22 = arith.addf %19, %21 : vector<16x128xf32>
    %cst_17 = arith.constant 0.000000e+00 : f32
    %23 = vector.broadcast %cst_17 : f32 to vector<16x128xf32>
    %24 = arith.maximumf %22, %23 : vector<16x128xf32>
    %25 = arith.truncf %24 : vector<16x128xf32> to vector<16x128xbf16>
    %c0_18 = arith.constant 0 : index
    %c0_19 = arith.constant 0 : index
    %26 = vector.load %arg8[%c0_18, %c0_19] : memref<128x1xbf16, #tpu.memory_space<vmem>>, vector<128x1xbf16>
    %cst_20 = arith.constant dense<0.000000e+00> : vector<16x1xf32>
    %27 = tpu.matmul %25, %26, %cst_20 {dimension_numbers = #tpu.dot_dimension_numbers<[1], [0], [0], [1], [0, 0, 1, 1], [], []>} : vector<16x128xbf16>, vector<128x1xbf16>, vector<16x1xf32> -> vector<16x1xf32>
    %c0_21 = arith.constant 0 : index
    %c0_22 = arith.constant 0 : index
    %28 = vector.load %arg9[%c0_21, %c0_22] : memref<1x1xf32, #tpu.memory_space<vmem>>, vector<1x1xf32>
    %29 = vector.broadcast %28 : vector<1x1xf32> to vector<16x1xf32>
    %30 = arith.addf %27, %29 : vector<16x1xf32>
    %c0_23 = arith.constant 0 : index
    %c0_24 = arith.constant 0 : index
    %31 = vector.load %arg10[%c0_23, %c0_24] : memref<16x1xf32, #tpu.memory_space<vmem>>, vector<16x1xf32>
    tpu.vector_store %arg10[%c0_23, %c0_24], %30 {strides = array<i32>} : memref<16x1xf32, #tpu.memory_space<vmem>>, vector<16x1xf32>,
    return
  }
  func.func @transform_0(%arg0: i32) -> (i32, i32) {
    %c0_i32 = arith.constant 0 : i32
    %c0_i32_0 = arith.constant 0 : i32
    return %arg0, %c0_i32 : i32, i32
  }
  func.func @transform_1(%arg0: i32) -> (i32, i32) {
    %c0_i32 = arith.constant 0 : i32
    %c0_i32_0 = arith.constant 0 : i32
    %c0_i32_1 = arith.constant 0 : i32
    return %c0_i32, %c0_i32_0 : i32, i32
  }
  func.func @transform_2(%arg0: i32) -> (i32, i32) {
    %c0_i32 = arith.constant 0 : i32
    %c0_i32_0 = arith.constant 0 : i32
    %c0_i32_1 = arith.constant 0 : i32
    return %c0_i32, %c0_i32_0 : i32, i32
  }
  func.func @transform_3(%arg0: i32) -> (i32, i32) {
    %c0_i32 = arith.constant 0 : i32
    %c0_i32_0 = arith.constant 0 : i32
    %c0_i32_1 = arith.constant 0 : i32
    return %c0_i32, %c0_i32_0 : i32, i32
  }
  func.func @transform_4(%arg0: i32) -> (i32, i32) {
    %c0_i32 = arith.constant 0 : i32
    %c0_i32_0 = arith.constant 0 : i32
    %c0_i32_1 = arith.constant 0 : i32
    return %c0_i32, %c0_i32_0 : i32, i32
  }
  func.func @transform_5(%arg0: i32) -> (i32, i32) {
    %c0_i32 = arith.constant 0 : i32
    %c0_i32_0 = arith.constant 0 : i32
    %c0_i32_1 = arith.constant 0 : i32
    return %c0_i32, %c0_i32_0 : i32, i32
  }
  func.func @transform_6(%arg0: i32) -> (i32, i32) {
    %c0_i32 = arith.constant 0 : i32
    %c0_i32_0 = arith.constant 0 : i32
    %c0_i32_1 = arith.constant 0 : i32
    return %c0_i32, %c0_i32_0 : i32, i32
  }
  func.func @transform_7(%arg0: i32) -> (i32, i32) {
    %c0_i32 = arith.constant 0 : i32
    %c0_i32_0 = arith.constant 0 : i32
    %c0_i32_1 = arith.constant 0 : i32
    return %c0_i32, %c0_i32_0 : i32, i32
  }
  func.func @transform_8(%arg0: i32) -> (i32, i32) {
    %c0_i32 = arith.constant 0 : i32
    %c0_i32_0 = arith.constant 0 : i32
    %c0_i32_1 = arith.constant 0 : i32
    return %c0_i32, %c0_i32_0 : i32, i32
  }
  func.func @transform_9(%arg0: i32) -> (i32, i32) {
    %c0_i32 = arith.constant 0 : i32
    %c0_i32_0 = arith.constant 0 : i32
    return %arg0, %c0_i32 : i32, i32
  }
}

</mosaic_0001>

<llo_original>
// kernel: sub.1
$region0: #{sub.1}
  #allocation0 [shape = 's32[1]{0}', space=sflag, size = 0x4, scoped, tag = 'scoped memory for sub.1']
  %s0 = inlined_call_operand.vmem [shape: f32[32,3], index: 0, kind: input, shape index: {}]
  %s1 = inlined_call_operand.vmem [shape: f32[32,3], index: 1, kind: input, shape index: {}]
  %s2 = inlined_call_operand.vmem [shape: f32[32,3], index: 2, kind: output, shape index: {}]
  %v3 = vld [vmem:[%s0] sm:$0xff]
  %v4 = vld [vmem:[%s1] sm:$0xff]
  %5 = xla_tuple %v3, %v4
  %6 = xla_tuple %5
  %v7 = vsub.f32 %v3, %v4
  %8 = xla_tuple %v7
  %9 = vst [vmem:[%s2] sm:$0xff] %v7
  %s10 = scalar_lea.vmem %s0, 8
  %v11 = vld [vmem:[%s10] sm:$0xff]
  %s12 = scalar_lea.vmem %s1, 8
  %v13 = vld [vmem:[%s12] sm:$0xff]
  %14 = xla_tuple %v11, %v13
  %15 = xla_tuple %14
  %v16 = vsub.f32 %v11, %v13
  %17 = xla_tuple %v16
  %s18 = scalar_lea.vmem %s2, 8
  %19 = vst [vmem:[%s18] sm:$0xff] %v16
  %s20 = scalar_lea.vmem %s0, 16
  %v21 = vld [vmem:[%s20] sm:$0xff]
  %s22 = scalar_lea.vmem %s1, 16
  %v23 = vld [vmem:[%s22] sm:$0xff]
  %24 = xla_tuple %v21, %v23
  %25 = xla_tuple %24
  %v26 = vsub.f32 %v21, %v23
  %27 = xla_tuple %v26
  %s28 = scalar_lea.vmem %s2, 16
  %29 = vst [vmem:[%s28] sm:$0xff] %v26
  %s30 = scalar_lea.vmem %s0, 24
  %v31 = vld [vmem:[%s30] sm:$0xff]
  %s32 = scalar_lea.vmem %s1, 24
  %v33 = vld [vmem:[%s32] sm:$0xff]
  %34 = xla_tuple %v31, %v33
  %35 = xla_tuple %34
  %v36 = vsub.f32 %v31, %v33
  %37 = xla_tuple %v36
  %s38 = scalar_lea.vmem %s2, 24
  %39 = vst [vmem:[%s38] sm:$0xff] %v36

// kernel: gnn_forward.32
$region0: #{gnn_forward.32}
  #allocation0 [shape = 'u32[]', space=smem, size = 0x4, offset = 0x4, fixed_abs, tag = 'smem constant byte address 0x4 - core index']
  #allocation1 [shape = 'u32[144,128]{1,0:T(1,128)}', space=vmem, size = 0x12000, scoped, tag = 'internal scratch']
  %s0 = inlined_call_operand.vmem [shape: f32[32,3], index: 0, kind: input, shape index: {}]
  %s1 = inlined_call_operand.vmem [shape: bf16[3,128], index: 1, kind: input, shape index: {}]
  %s2 = inlined_call_operand.vmem [shape: f32[1,128], index: 2, kind: input, shape index: {}]
  %s3 = inlined_call_operand.vmem [shape: bf16[128,128], index: 3, kind: input, shape index: {}]
  %s4 = inlined_call_operand.vmem [shape: f32[1,128], index: 4, kind: input, shape index: {}]
  %s5 = inlined_call_operand.vmem [shape: bf16[128,128], index: 5, kind: input, shape index: {}]
  %s6 = inlined_call_operand.vmem [shape: f32[1,128], index: 6, kind: input, shape index: {}]
  %s7 = inlined_call_operand.vmem [shape: bf16[128,128], index: 7, kind: input, shape index: {}]
  %s8 = inlined_call_operand.vmem [shape: f32[1,128], index: 8, kind: input, shape index: {}]
  %s9 = inlined_call_operand.vmem [shape: f32[1,128], index: 9, kind: input, shape index: {}]
  %s10 = inlined_call_operand.vmem [shape: f32[1,128], index: 10, kind: input, shape index: {}]
  %s11 = inlined_call_operand.vmem [shape: f32[32,128], index: 11, kind: output, shape index: {}]
  %s12 = sld [smem:[#allocation0]]
  $region54: #{gnn_forward.32} parent=0
    _
  %s14 = ssub.s32 1, %s12
  %s15 = scalar_select 0, %s14, %s12
  // Predicated region
  $region2: #{gnn_forward.32} parent=0 // pred_check
    _
  $region3: #{gnn_forward.32} parent=0 // pred_check_branch
    %17 = sbr.rel (0) target = $region5
  $region4: #{gnn_forward.32} parent=0 // pred_region
    _
  $region5: #{gnn_forward.32} parent=0 // pred_fallthru
    _
  // Predicated region
  $region6: #{gnn_forward.32} parent=0 // pred_check
    _
  $region7: #{gnn_forward.32} parent=0 // pred_check_branch
    %19 = sbr.rel (0) target = $region9
  $region8: #{gnn_forward.32} parent=0 // pred_region
    _
  $region9: #{gnn_forward.32} parent=0 // pred_fallthru
    _
  // Predicated region
  $region10: #{gnn_forward.32} parent=0 // pred_check
    _
  $region11: #{gnn_forward.32} parent=0 // pred_check_branch
    %21 = sbr.rel (0) target = $region13
  $region12: #{gnn_forward.32} parent=0 // pred_region
    _
  $region13: #{gnn_forward.32} parent=0 // pred_fallthru
    _
  // Predicated region
  $region14: #{gnn_forward.32} parent=0 // pred_check
    _
  $region15: #{gnn_forward.32} parent=0 // pred_check_branch
    %23 = sbr.rel (0) target = $region17
  $region16: #{gnn_forward.32} parent=0 // pred_region
    _
  $region17: #{gnn_forward.32} parent=0 // pred_fallthru
    _
  // Predicated region
  $region18: #{gnn_forward.32} parent=0 // pred_check
    _
  $region19: #{gnn_forward.32} parent=0 // pred_check_branch
    %25 = sbr.rel (0) target = $region21
  $region20: #{gnn_forward.32} parent=0 // pred_region
    _
  $region21: #{gnn_forward.32} parent=0 // pred_fallthru
    _
  // Predicated region
  $region22: #{gnn_forward.32} parent=0 // pred_check
    _
  $region23: #{gnn_forward.32} parent=0 // pred_check_branch
    %27 = sbr.rel (0) target = $region25
  $region24: #{gnn_forward.32} parent=0 // pred_region
    _
  $region25: #{gnn_forward.32} parent=0 // pred_fallthru
    _
  // Predicated region
  $region26: #{gnn_forward.32} parent=0 // pred_check
    _
  $region27: #{gnn_forward.32} parent=0 // pred_check_branch
    %29 = sbr.rel (0) target = $region29
  $region28: #{gnn_forward.32} parent=0 // pred_region
    _
  $region29: #{gnn_forward.32} parent=0 // pred_fallthru
    _
  // Predicated region
  $region30: #{gnn_forward.32} parent=0 // pred_check
    _
  $region31: #{gnn_forward.32} parent=0 // pred_check_branch
    %31 = sbr.rel (0) target = $region33
  $region32: #{gnn_forward.32} parent=0 // pred_region
    _
  $region33: #{gnn_forward.32} parent=0 // pred_fallthru
    _
  // Predicated region
  $region34: #{gnn_forward.32} parent=0 // pred_check
    _
  $region35: #{gnn_forward.32} parent=0 // pred_check_branch
    %33 = sbr.rel (0) target = $region37
  $region36: #{gnn_forward.32} parent=0 // pred_region
    _
  $region37: #{gnn_forward.32} parent=0 // pred_fallthru
    _
  // Predicated region
  $region38: #{gnn_forward.32} parent=0 // pred_check
    _
  $region39: #{gnn_forward.32} parent=0 // pred_check_branch
    %35 = sbr.rel (0) target = $region41
  $region40: #{gnn_forward.32} parent=0 // pred_region
    _
  $region41: #{gnn_forward.32} parent=0 // pred_fallthru
    _
  // Predicated region
  $region42: #{gnn_forward.32} parent=0 // pred_check
    _
  $region43: #{gnn_forward.32} parent=0 // pred_check_branch
    %37 = sbr.rel (0) target = $region45
  $region44: #{gnn_forward.32} parent=0 // pred_region
    _
  $region45: #{gnn_forward.32} parent=0 // pred_fallthru
    _
  %v39 = vld [vmem:[%s0] sm:$0xff]
  %v40 = vld [vmem:[%s0 + $0x8] sm:$0xff]
  %v41 = vld [vmem:[%s0 + $0x10] sm:$0xff]
  %v42 = vld [vmem:[%s0 + $0x18] sm:$0xff]
  %v43 = vpack.c.bf16 %v40, %v39
  %v44 = vpack.c.bf16 %v42, %v41
  %v45 = vld [vmem:[%s1] sm:$0x3]
  %v46 = vld [vmem:[%s2] sm:$0x1]
  %v48 = vlaneseq
  %v49 = vshrl.u32 %v48, 7
  %v50 = vsub.s32 0, %v49
  %v51 = vrot.slane %v46, %v50
  %vm53 = vcmask 23552
  %v55 = vsel %vm53, %v43, 0
  %v58 = vsel %vm53, %v44, 0
  %vm60 = vcmask 1040384
  %vm61 = vcmask 1041408
  %v62 = vsel %vm60, 4294967295, 65535
  %v63 = vsel %vm61, %v62, 0
  %v65 = vand.u32 %v45, %v63
  %67 = vmatprep.subr.bf16.mxu0 0
  %68 = vmatpush1.bf16.msra.mxu0 %v65
  %69 = vmatprep.subr.bf16.mxu0 0
  %70 = vmatpush1.bf16.msra.mxu0 0
  %71 = vmatprep.subr.bf16.mxu0 0
  %72 = vmatpush1.bf16.msra.mxu0 0
  %73 = vmatprep.subr.bf16.mxu0 0
  %74 = vmatpush1.bf16.msra.mxu0 0
  %75 = vmatprep.subr.bf16.mxu0 0
  %76 = vmatpush1.bf16.msra.mxu0 0
  %77 = vmatprep.subr.bf16.mxu0 0
  %78 = vmatpush1.bf16.msra.mxu0 0
  %79 = vmatprep.subr.bf16.mxu0 0
  %80 = vmatpush1.bf16.msra.mxu0 0
  %81 = vmatprep.subr.bf16.mxu0 0
  %82 = vmatpush1.bf16.msra.mxu0 0
  %83 = vmatprep.subr.bf16.mxu0 0
  %84 = vmatpush1.bf16.msra.mxu0 0
  %85 = vmatprep.subr.bf16.mxu0 0
  %86 = vmatpush1.bf16.msra.mxu0 0
  %87 = vmatprep.subr.bf16.mxu0 0
  %88 = vmatpush1.bf16.msra.mxu0 0
  %89 = vmatprep.subr.bf16.mxu0 0
  %90 = vmatpush1.bf16.msra.mxu0 0
  %91 = vmatprep.subr.bf16.mxu0 0
  %92 = vmatpush1.bf16.msra.mxu0 0
  %93 = vmatprep.subr.bf16.mxu0 0
  %94 = vmatpush1.bf16.msra.mxu0 0
  %95 = vmatprep.subr.bf16.mxu0 0
  %96 = vmatpush1.bf16.msra.mxu0 0
  %97 = vmatprep.subr.bf16.mxu0 0
  %98 = vmatpush1.bf16.msra.mxu0 0
  %99 = vmatprep.mubr.bf16.mxu0 0
  %100 = vmatmul.mubr.bf16.gmra.mrb[0].mxu0 %v55
  %v101 = vpop.f32.mrb[0].mxu0
  %v102 = vadd.f32 %v51, %v101
  %v103 = vpop.f32.mrb[0].mxu0
  %v104 = vpop.f32.mrb[0].mxu0
  %v105 = vadd.f32 %v51, %v104
  %v106 = vpop.f32.mrb[0].mxu0
  %107 = vmatprep.mubr.bf16.mxu0 0
  %108 = vmatmul.mubr.bf16.gmra.mrb[0].mxu0 %v58
  %v109 = vpop.f32.mrb[0].mxu0
  %v110 = vadd.f32 %v51, %v109
  %v111 = vpop.f32.mrb[0].mxu0
  %v112 = vpop.f32.mrb[0].mxu0
  %v113 = vadd.f32 %v51, %v112
  %v114 = vpop.f32.mrb[0].mxu0
  %115 = vdwg.mxu0
  %v116 = vmax.f32 %v102, 0.0
  %v117 = vmax.f32 %v105, 0.0
  %v118 = vmax.f32 %v110, 0.0
  %v119 = vmax.f32 %v113, 0.0
  %v120 = vpack.c.bf16 %v117, %v116
  %v121 = vpack.c.bf16 %v119, %v118
  %v122 = vld [vmem:[%s3] sm:$0xf]
  %v123 = vld [vmem:[%s3 + $0x4] sm:$0xf]
  %v124 = vld [vmem:[%s3 + $0x8] sm:$0xf]
  %v125 = vld [vmem:[%s3 + $0xc] sm:$0xf]
  %v126 = vld [vmem:[%s3 + $0x10] sm:$0xf]
  %v127 = vld [vmem:[%s3 + $0x14] sm:$0xf]
  %v128 = vld [vmem:[%s3 + $0x18] sm:$0xf]
  %v129 = vld [vmem:[%s3 + $0x1c] sm:$0xf]
  %v130 = vld [vmem:[%s3 + $0x20] sm:$0xf]
  %v131 = vld [vmem:[%s3 + $0x24] sm:$0xf]
  %v132 = vld [vmem:[%s3 + $0x28] sm:$0xf]
  %v133 = vld [vmem:[%s3 + $0x2c] sm:$0xf]
  %v134 = vld [vmem:[%s3 + $0x30] sm:$0xf]
  %v135 = vld [vmem:[%s3 + $0x34] sm:$0xf]
  %v136 = vld [vmem:[%s3 + $0x38] sm:$0xf]
  %v137 = vld [vmem:[%s3 + $0x3c] sm:$0xf]
  %v138 = vld [vmem:[%s4] sm:$0x1]
  %v140 = vlaneseq
  %v141 = vshrl.u32 %v140, 7
  %v142 = vsub.s32 0, %v141
  %v143 = vrot.slane %v138, %v142
  %v161 = vunpack.c.l.b16 %v122
  %v162 = vunpack.c.l.b16 %v123
  %v163 = vunpack.c.l.b16 %v124
  %v164 = vunpack.c.l.b16 %v125
  %v165 = vunpack.c.l.b16 %v126
  %v166 = vunpack.c.l.b16 %v127
  %v167 = vunpack.c.l.b16 %v128
  %v168 = vunpack.c.l.b16 %v129
  %v169 = vunpack.c.l.b16 %v130
  %v170 = vunpack.c.l.b16 %v131
  %v171 = vunpack.c.l.b16 %v132
  %v172 = vunpack.c.l.b16 %v133
  %v173 = vunpack.c.l.b16 %v134
  %v174 = vunpack.c.l.b16 %v135
  %v175 = vunpack.c.l.b16 %v136
  %v176 = vunpack.c.l.b16 %v137
  %v177 = vpack.c.b16 %v162, %v161
  %v178 = vpack.c.b16 %v164, %v163
  %v179 = vpack.c.b16 %v166, %v165
  %v180 = vpack.c.b16 %v168, %v167
  %v181 = vpack.c.b16 %v170, %v169
  %v182 = vpack.c.b16 %v172, %v171
  %v183 = vpack.c.b16 %v174, %v173
  %v184 = vpack.c.b16 %v176, %v175
  %193 = vmatprep.subr.bf16.mxu0 0
  %194 = vmatpush1.bf16.msra.mxu0 %v177
  %195 = vmatprep.subr.bf16.mxu0 0
  %196 = vmatpush1.bf16.msra.mxu0 %v178
  %197 = vmatprep.subr.bf16.mxu0 0
  %198 = vmatpush1.bf16.msra.mxu0 %v179
  %199 = vmatprep.subr.bf16.mxu0 0
  %200 = vmatpush1.bf16.msra.mxu0 %v180
  %201 = vmatprep.subr.bf16.mxu0 0
  %202 = vmatpush1.bf16.msra.mxu0 %v181
  %203 = vmatprep.subr.bf16.mxu0 0
  %204 = vmatpush1.bf16.msra.mxu0 %v182
  %205 = vmatprep.subr.bf16.mxu0 0
  %206 = vmatpush1.bf16.msra.mxu0 %v183
  %207 = vmatprep.subr.bf16.mxu0 0
  %208 = vmatpush1.bf16.msra.mxu0 %v184
  %209 = vmatprep.subr.bf16.mxu0 0
  %210 = vmatpush1.bf16.msra.mxu0 0
  %211 = vmatprep.subr.bf16.mxu0 0
  %212 = vmatpush1.bf16.msra.mxu0 0
  %213 = vmatprep.subr.bf16.mxu0 0
  %214 = vmatpush1.bf16.msra.mxu0 0
  %215 = vmatprep.subr.bf16.mxu0 0
  %216 = vmatpush1.bf16.msra.mxu0 0
  %217 = vmatprep.subr.bf16.mxu0 0
  %218 = vmatpush1.bf16.msra.mxu0 0
  %219 = vmatprep.subr.bf16.mxu0 0
  %220 = vmatpush1.bf16.msra.mxu0 0
  %221 = vmatprep.subr.bf16.mxu0 0
  %222 = vmatpush1.bf16.msra.mxu0 0
  %223 = vmatprep.subr.bf16.mxu0 0
  %224 = vmatpush1.bf16.msra.mxu0 0
  %225 = vmatprep.mubr.bf16.mxu0 0
  %226 = vmatmul.mubr.bf16.gmra.mrb[0].mxu0 %v120
  %v227 = vpop.f32.mrb[0].mxu0
  %v228 = vadd.f32 %v143, %v227
  %v229 = vpop.f32.mrb[0].mxu0
  %v230 = vpop.f32.mrb[0].mxu0
  %v231 = vadd.f32 %v143, %v230
  %v232 = vpop.f32.mrb[0].mxu0
  %233 = vmatprep.mubr.bf16.mxu0 0
  %234 = vmatmul.mubr.bf16.gmra.mrb[0].mxu0 %v121
  %v235 = vpop.f32.mrb[0].mxu0
  %v236 = vadd.f32 %v143, %v235
  %v237 = vpop.f32.mrb[0].mxu0
  %v238 = vpop.f32.mrb[0].mxu0
  %v239 = vadd.f32 %v143, %v238
  %v240 = vpop.f32.mrb[0].mxu0
  %241 = vdwg.mxu0
  %v242 = vmax.f32 %v228, 0.0
  %v243 = vmax.f32 %v231, 0.0
  %v244 = vmax.f32 %v236, 0.0
  %v245 = vmax.f32 %v239, 0.0
  %v246 = vpack.c.bf16 %v243, %v242
  %v247 = vpack.c.bf16 %v245, %v244
  %v248 = vld [vmem:[%s5] sm:$0xf]
  %v249 = vld [vmem:[%s5 + $0x4] sm:$0xf]
  %v250 = vld [vmem:[%s5 + $0x8] sm:$0xf]
  %v251 = vld [vmem:[%s5 + $0xc] sm:$0xf]
  %v252 = vld [vmem:[%s5 + $0x10] sm:$0xf]
  %v253 = vld [vmem:[%s5 + $0x14] sm:$0xf]
  %v254 = vld [vmem:[%s5 + $0x18] sm:$0xf]
  %v255 = vld [vmem:[%s5 + $0x1c] sm:$0xf]
  %v256 = vld [vmem:[%s5 + $0x20] sm:$0xf]
  %v257 = vld [vmem:[%s5 + $0x24] sm:$0xf]
  %v258 = vld [vmem:[%s5 + $0x28] sm:$0xf]
  %v259 = vld [vmem:[%s5 + $0x2c] sm:$0xf]
  %v260 = vld [vmem:[%s5 + $0x30] sm:$0xf]
  %v261 = vld [vmem:[%s5 + $0x34] sm:$0xf]
  %v262 = vld [vmem:[%s5 + $0x38] sm:$0xf]
  %v263 = vld [vmem:[%s5 + $0x3c] sm:$0xf]
  %v264 = vld [vmem:[%s6] sm:$0x1]
  %v266 = vlaneseq
  %v267 = vshrl.u32 %v266, 7
  %v268 = vsub.s32 0, %v267
  %v269 = vrot.slane %v264, %v268
  %v287 = vunpack.c.l.b16 %v248
  %v288 = vunpack.c.l.b16 %v249
  %v289 = vunpack.c.l.b16 %v250
  %v290 = vunpack.c.l.b16 %v251
  %v291 = vunpack.c.l.b16 %v252
  %v292 = vunpack.c.l.b16 %v253
  %v293 = vunpack.c.l.b16 %v254
  %v294 = vunpack.c.l.b16 %v255
  %v295 = vunpack.c.l.b16 %v256
  %v296 = vunpack.c.l.b16 %v257
  %v297 = vunpack.c.l.b16 %v258
  %v298 = vunpack.c.l.b16 %v259
  %v299 = vunpack.c.l.b16 %v260
  %v300 = vunpack.c.l.b16 %v261
  %v301 = vunpack.c.l.b16 %v262
  %v302 = vunpack.c.l.b16 %v263
  %v303 = vpack.c.b16 %v288, %v287
  %v304 = vpack.c.b16 %v290, %v289
  %v305 = vpack.c.b16 %v292, %v291
  %v306 = vpack.c.b16 %v294, %v293
  %v307 = vpack.c.b16 %v296, %v295
  %v308 = vpack.c.b16 %v298, %v297
  %v309 = vpack.c.b16 %v300, %v299
  %v310 = vpack.c.b16 %v302, %v301
  %319 = vmatprep.subr.bf16.mxu0 0
  %320 = vmatpush1.bf16.msra.mxu0 %v303
  %321 = vmatprep.subr.bf16.mxu0 0
  %322 = vmatpush1.bf16.msra.mxu0 %v304
  %323 = vmatprep.subr.bf16.mxu0 0
  %324 = vmatpush1.bf16.msra.mxu0 %v305
  %325 = vmatprep.subr.bf16.mxu0 0
  %326 = vmatpush1.bf16.msra.mxu0 %v306
  %327 = vmatprep.subr.bf16.mxu0 0
  %328 = vmatpush1.bf16.msra.mxu0 %v307
  %329 = vmatprep.subr.bf16.mxu0 0
  %330 = vmatpush1.bf16.msra.mxu0 %v308
  %331 = vmatprep.subr.bf16.mxu0 0
  %332 = vmatpush1.bf16.msra.mxu0 %v309
  %333 = vmatprep.subr.bf16.mxu0 0
  %334 = vmatpush1.bf16.msra.mxu0 %v310
  %335 = vmatprep.subr.bf16.mxu0 0
  %336 = vmatpush1.bf16.msra.mxu0 0
  %337 = vmatprep.subr.bf16.mxu0 0
  %338 = vmatpush1.bf16.msra.mxu0 0
  %339 = vmatprep.subr.bf16.mxu0 0
  %340 = vmatpush1.bf16.msra.mxu0 0
  %341 = vmatprep.subr.bf16.mxu0 0
  %342 = vmatpush1.bf16.msra.mxu0 0
  %343 = vmatprep.subr.bf16.mxu0 0
  %344 = vmatpush1.bf16.msra.mxu0 0
  %345 = vmatprep.subr.bf16.mxu0 0
  %346 = vmatpush1.bf16.msra.mxu0 0
  %347 = vmatprep.subr.bf16.mxu0 0
  %348 = vmatpush1.bf16.msra.mxu0 0
  %349 = vmatprep.subr.bf16.mxu0 0
  %350 = vmatpush1.bf16.msra.mxu0 0
  %351 = vmatprep.mubr.bf16.mxu0 0
  %352 = vmatmul.mubr.bf16.gmra.mrb[0].mxu0 %v246
  %v353 = vpop.f32.mrb[0].mxu0
  %v354 = vadd.f32 %v269, %v353
  %v355 = vpop.f32.mrb[0].mxu0
  %v356 = vpop.f32.mrb[0].mxu0
  %v357 = vadd.f32 %v269, %v356
  %v358 = vpop.f32.mrb[0].mxu0
  %359 = vmatprep.mubr.bf16.mxu0 0
  %360 = vmatmul.mubr.bf16.gmra.mrb[0].mxu0 %v247
  %v361 = vpop.f32.mrb[0].mxu0
  %v362 = vadd.f32 %v269, %v361
  %v363 = vpop.f32.mrb[0].mxu0
  %v364 = vpop.f32.mrb[0].mxu0
  %v365 = vadd.f32 %v269, %v364
  %v366 = vpop.f32.mrb[0].mxu0
  %367 = vdwg.mxu0
  %v368 = vmax.f32 %v354, 0.0
  %v369 = vmax.f32 %v357, 0.0
  %v370 = vmax.f32 %v362, 0.0
  %v371 = vmax.f32 %v365, 0.0
  %v372 = vpack.c.bf16 %v369, %v368
  %v373 = vpack.c.bf16 %v371, %v370
  %v374 = vld [vmem:[%s7] sm:$0xf]
  %v375 = vld [vmem:[%s7 + $0x4] sm:$0xf]
  %v376 = vld [vmem:[%s7 + $0x8] sm:$0xf]
  %v377 = vld [vmem:[%s7 + $0xc] sm:$0xf]
  %v378 = vld [vmem:[%s7 + $0x10] sm:$0xf]
  %v379 = vld [vmem:[%s7 + $0x14] sm:$0xf]
  %v380 = vld [vmem:[%s7 + $0x18] sm:$0xf]
  %v381 = vld [vmem:[%s7 + $0x1c] sm:$0xf]
  %v382 = vld [vmem:[%s7 + $0x20] sm:$0xf]
  %v383 = vld [vmem:[%s7 + $0x24] sm:$0xf]
  %v384 = vld [vmem:[%s7 + $0x28] sm:$0xf]
  %v385 = vld [vmem:[%s7 + $0x2c] sm:$0xf]
  %v386 = vld [vmem:[%s7 + $0x30] sm:$0xf]
  %v387 = vld [vmem:[%s7 + $0x34] sm:$0xf]
  %v388 = vld [vmem:[%s7 + $0x38] sm:$0xf]
  %v389 = vld [vmem:[%s7 + $0x3c] sm:$0xf]
  %v390 = vld [vmem:[%s8] sm:$0x1]
  %v392 = vlaneseq
  %v393 = vshrl.u32 %v392, 7
  %v394 = vsub.s32 0, %v393
  %v395 = vrot.slane %v390, %v394
  %v413 = vunpack.c.l.b16 %v374
  %v414 = vunpack.c.l.b16 %v375
  %v415 = vunpack.c.l.b16 %v376
  %v416 = vunpack.c.l.b16 %v377
  %v417 = vunpack.c.l.b16 %v378
  %v418 = vunpack.c.l.b16 %v379
  %v419 = vunpack.c.l.b16 %v380
  %v420 = vunpack.c.l.b16 %v381
  %v421 = vunpack.c.l.b16 %v382
  %v422 = vunpack.c.l.b16 %v383
  %v423 = vunpack.c.l.b16 %v384
  %v424 = vunpack.c.l.b16 %v385
  %v425 = vunpack.c.l.b16 %v386
  %v426 = vunpack.c.l.b16 %v387
  %v427 = vunpack.c.l.b16 %v388
  %v428 = vunpack.c.l.b16 %v389
  %v429 = vpack.c.b16 %v414, %v413
  %v430 = vpack.c.b16 %v416, %v415
  %v431 = vpack.c.b16 %v418, %v417
  %v432 = vpack.c.b16 %v420, %v419
  %v433 = vpack.c.b16 %v422, %v421
  %v434 = vpack.c.b16 %v424, %v423
  %v435 = vpack.c.b16 %v426, %v425
  %v436 = vpack.c.b16 %v428, %v427
  %445 = vmatprep.subr.bf16.mxu0 0
  %446 = vmatpush1.bf16.msra.mxu0 %v429
  %447 = vmatprep.subr.bf16.mxu0 0
  %448 = vmatpush1.bf16.msra.mxu0 %v430
  %449 = vmatprep.subr.bf16.mxu0 0
  %450 = vmatpush1.bf16.msra.mxu0 %v431
  %451 = vmatprep.subr.bf16.mxu0 0
  %452 = vmatpush1.bf16.msra.mxu0 %v432
  %453 = vmatprep.subr.bf16.mxu0 0
  %454 = vmatpush1.bf16.msra.mxu0 %v433
  %455 = vmatprep.subr.bf16.mxu0 0
  %456 = vmatpush1.bf16.msra.mxu0 %v434
  %457 = vmatprep.subr.bf16.mxu0 0
  %458 = vmatpush1.bf16.msra.mxu0 %v435
  %459 = vmatprep.subr.bf16.mxu0 0
  %460 = vmatpush1.bf16.msra.mxu0 %v436
  %461 = vmatprep.subr.bf16.mxu0 0
  %462 = vmatpush1.bf16.msra.mxu0 0
  %463 = vmatprep.subr.bf16.mxu0 0
  %464 = vmatpush1.bf16.msra.mxu0 0
  %465 = vmatprep.subr.bf16.mxu0 0
  %466 = vmatpush1.bf16.msra.mxu0 0
  %467 = vmatprep.subr.bf16.mxu0 0
  %468 = vmatpush1.bf16.msra.mxu0 0
  %469 = vmatprep.subr.bf16.mxu0 0
  %470 = vmatpush1.bf16.msra.mxu0 0
  %471 = vmatprep.subr.bf16.mxu0 0
  %472 = vmatpush1.bf16.msra.mxu0 0
  %473 = vmatprep.subr.bf16.mxu0 0
  %474 = vmatpush1.bf16.msra.mxu0 0
  %475 = vmatprep.subr.bf16.mxu0 0
  %476 = vmatpush1.bf16.msra.mxu0 0
  %477 = vmatprep.mubr.bf16.mxu0 0
  %478 = vmatmul.mubr.bf16.gmra.mrb[0].mxu0 %v372
  %v479 = vpop.f32.mrb[0].mxu0
  %v480 = vadd.f32 %v395, %v479
  %v481 = vpop.f32.mrb[0].mxu0
  %v482 = vpop.f32.mrb[0].mxu0
  %v483 = vadd.f32 %v395, %v482
  %v484 = vpop.f32.mrb[0].mxu0
  %485 = vmatprep.mubr.bf16.mxu0 0
  %486 = vmatmul.mubr.bf16.gmra.mrb[0].mxu0 %v373
  %v487 = vpop.f32.mrb[0].mxu0
  %v488 = vadd.f32 %v395, %v487
  %v489 = vpop.f32.mrb[0].mxu0
  %v490 = vpop.f32.mrb[0].mxu0
  %v491 = vadd.f32 %v395, %v490
  %v492 = vpop.f32.mrb[0].mxu0
  %493 = vdwg.mxu0
  %494 = vadd.xlane.f32.xlu0 %v480
  %v495 = vpop.xlane.xlu0 %494
  %496 = vadd.xlane.f32.xlu0 %v483
  %v497 = vpop.xlane.xlu0 %496
  %498 = vadd.xlane.f32.xlu0 %v488
  %v499 = vpop.xlane.xlu0 %498
  %500 = vadd.xlane.f32.xlu0 %v491
  %v501 = vpop.xlane.xlu0 %500
  %v502 = vmul.f32 %v480, %v480
  %v503 = vmul.f32 %v483, %v483
  %v504 = vmul.f32 %v488, %v488
  %v505 = vmul.f32 %v491, %v491
  %506 = vadd.xlane.f32.xlu0 %v502
  %v507 = vpop.xlane.xlu0 %506
  %508 = vadd.xlane.f32.xlu0 %v503
  %v509 = vpop.xlane.xlu0 %508
  %510 = vadd.xlane.f32.xlu0 %v504
  %v511 = vpop.xlane.xlu0 %510
  %512 = vadd.xlane.f32.xlu0 %v505
  %v513 = vpop.xlane.xlu0 %512
  %v514 = vmul.f32 %v495, 0.0078125
  %v515 = vmul.f32 %v497, 0.0078125
  %v516 = vmul.f32 %v499, 0.0078125
  %v517 = vmul.f32 %v501, 0.0078125
  %v518 = vmul.f32 %v507, 0.0078125
  %v519 = vmul.f32 %v509, 0.0078125
  %v520 = vmul.f32 %v511, 0.0078125
  %v521 = vmul.f32 %v513, 0.0078125
  %v522 = vmul.f32 %v514, %v514
  %v523 = vmul.f32 %v515, %v515
  %v524 = vmul.f32 %v516, %v516
  %v525 = vmul.f32 %v517, %v517
  %v526 = vsub.f32 %v518, %v522
  %v527 = vsub.f32 %v519, %v523
  %v528 = vsub.f32 %v520, %v524
  %v529 = vsub.f32 %v521, %v525
  %v530 = vmax.f32 %v526, 0.0
  %v531 = vmax.f32 %v527, 0.0
  %v532 = vmax.f32 %v528, 0.0
  %v533 = vmax.f32 %v529, 0.0
  %v534 = vsub.f32 %v480, %v514
  %v535 = vsub.f32 %v483, %v515
  %v536 = vsub.f32 %v488, %v516
  %v537 = vsub.f32 %v491, %v517
  %v538 = vadd.f32 %v530, 1e-05
  %v539 = vadd.f32 %v531, 1e-05
  %v540 = vadd.f32 %v532, 1e-05
  %v541 = vadd.f32 %v533, 1e-05
  %v542 = vrsqrt.pop %v538
  %v543 = vrsqrt.pop %v539
  %v544 = vrsqrt.pop %v540
  %v545 = vrsqrt.pop %v541
  %v546 = vmul.f32 %v534, %v542
  %v547 = vmul.f32 %v535, %v543
  %v548 = vmul.f32 %v536, %v544
  %v549 = vmul.f32 %v537, %v545
  %v550 = vld [vmem:[%s9] sm:$0x1]
  %v552 = vlaneseq
  %v553 = vshrl.u32 %v552, 7
  %v554 = vsub.s32 0, %v553
  %v555 = vrot.slane %v550, %v554
  %v557 = vmul.f32 %v546, %v555
  %v558 = vmul.f32 %v547, %v555
  %v559 = vmul.f32 %v548, %v555
  %v560 = vmul.f32 %v549, %v555
  %v561 = vld [vmem:[%s10] sm:$0x1]
  %v563 = vlaneseq
  %v564 = vshrl.u32 %v563, 7
  %v565 = vsub.s32 0, %v564
  %v566 = vrot.slane %v561, %v565
  %v568 = vadd.f32 %v557, %v566
  %v569 = vadd.f32 %v558, %v566
  %v570 = vadd.f32 %v559, %v566
  %v571 = vadd.f32 %v560, %v566
  %572 = vst [vmem:[%s11] sm:$0xff] %v568
  %573 = vst [vmem:[%s11 + $0x8] sm:$0xff] %v569
  %574 = vst [vmem:[%s11 + $0x10] sm:$0xff] %v570
  %575 = vst [vmem:[%s11 + $0x18] sm:$0xff] %v571
  // Predicated region
  $region46: #{gnn_forward.32} parent=0 // pred_check
    _
  $region47: #{gnn_forward.32} parent=0 // pred_check_branch
    %577 = sbr.rel (0) target = $region49
  $region48: #{gnn_forward.32} parent=0 // pred_region
    _
  $region49: #{gnn_forward.32} parent=0 // pred_fallthru
    _
  // Predicated region
  $region50: #{gnn_forward.32} parent=0 // pred_check
    _
  $region51: #{gnn_forward.32} parent=0 // pred_check_branch
    %579 = sbr.rel (0) target = $region53
  $region52: #{gnn_forward.32} parent=0 // pred_region
    _
  $region53: #{gnn_forward.32} parent=0 // pred_fallthru
    _

// kernel: gnn_forward.31
$region0: #{gnn_forward.31}
  #allocation0 [shape = 'u32[]', space=smem, size = 0x4, offset = 0x4, fixed_abs, tag = 'smem constant byte address 0x4 - core index']
  #allocation1 [shape = 'u32[144,128]{1,0:T(1,128)}', space=vmem, size = 0x12000, scoped, tag = 'internal scratch']
  %s0 = inlined_call_operand.vmem [shape: f32[16,1], index: 0, kind: input, shape index: {}]
  %s1 = inlined_call_operand.vmem [shape: bf16[1,128], index: 1, kind: input, shape index: {}]
  %s2 = inlined_call_operand.vmem [shape: f32[1,128], index: 2, kind: input, shape index: {}]
  %s3 = inlined_call_operand.vmem [shape: bf16[128,128], index: 3, kind: input, shape index: {}]
  %s4 = inlined_call_operand.vmem [shape: f32[1,128], index: 4, kind: input, shape index: {}]
  %s5 = inlined_call_operand.vmem [shape: bf16[128,128], index: 5, kind: input, shape index: {}]
  %s6 = inlined_call_operand.vmem [shape: f32[1,128], index: 6, kind: input, shape index: {}]
  %s7 = inlined_call_operand.vmem [shape: bf16[128,128], index: 7, kind: input, shape index: {}]
  %s8 = inlined_call_operand.vmem [shape: f32[1,128], index: 8, kind: input, shape index: {}]
  %s9 = inlined_call_operand.vmem [shape: f32[1,128], index: 9, kind: input, shape index: {}]
  %s10 = inlined_call_operand.vmem [shape: f32[1,128], index: 10, kind: input, shape index: {}]
  %s11 = inlined_call_operand.vmem [shape: f32[16,128], index: 11, kind: output, shape index: {}]
  %s12 = sld [smem:[#allocation0]]
  $region54: #{gnn_forward.31} parent=0
    _
  %s14 = ssub.s32 1, %s12
  %s15 = scalar_select 0, %s14, %s12
  // Predicated region
  $region2: #{gnn_forward.31} parent=0 // pred_check
    _
  $region3: #{gnn_forward.31} parent=0 // pred_check_branch
    %17 = sbr.rel (0) target = $region5
  $region4: #{gnn_forward.31} parent=0 // pred_region
    _
  $region5: #{gnn_forward.31} parent=0 // pred_fallthru
    _
  // Predicated region
  $region6: #{gnn_forward.31} parent=0 // pred_check
    _
  $region7: #{gnn_forward.31} parent=0 // pred_check_branch
    %19 = sbr.rel (0) target = $region9
  $region8: #{gnn_forward.31} parent=0 // pred_region
    _
  $region9: #{gnn_forward.31} parent=0 // pred_fallthru
    _
  // Predicated region
  $region10: #{gnn_forward.31} parent=0 // pred_check
    _
  $region11: #{gnn_forward.31} parent=0 // pred_check_branch
    %21 = sbr.rel (0) target = $region13
  $region12: #{gnn_forward.31} parent=0 // pred_region
    _
  $region13: #{gnn_forward.31} parent=0 // pred_fallthru
    _
  // Predicated region
  $region14: #{gnn_forward.31} parent=0 // pred_check
    _
  $region15: #{gnn_forward.31} parent=0 // pred_check_branch
    %23 = sbr.rel (0) target = $region17
  $region16: #{gnn_forward.31} parent=0 // pred_region
    _
  $region17: #{gnn_forward.31} parent=0 // pred_fallthru
    _
  // Predicated region
  $region18: #{gnn_forward.31} parent=0 // pred_check
    _
  $region19: #{gnn_forward.31} parent=0 // pred_check_branch
    %25 = sbr.rel (0) target = $region21
  $region20: #{gnn_forward.31} parent=0 // pred_region
    _
  $region21: #{gnn_forward.31} parent=0 // pred_fallthru
    _
  // Predicated region
  $region22: #{gnn_forward.31} parent=0 // pred_check
    _
  $region23: #{gnn_forward.31} parent=0 // pred_check_branch
    %27 = sbr.rel (0) target = $region25
  $region24: #{gnn_forward.31} parent=0 // pred_region
    _
  $region25: #{gnn_forward.31} parent=0 // pred_fallthru
    _
  // Predicated region
  $region26: #{gnn_forward.31} parent=0 // pred_check
    _
  $region27: #{gnn_forward.31} parent=0 // pred_check_branch
    %29 = sbr.rel (0) target = $region29
  $region28: #{gnn_forward.31} parent=0 // pred_region
    _
  $region29: #{gnn_forward.31} parent=0 // pred_fallthru
    _
  // Predicated region
  $region30: #{gnn_forward.31} parent=0 // pred_check
    _
  $region31: #{gnn_forward.31} parent=0 // pred_check_branch
    %31 = sbr.rel (0) target = $region33
  $region32: #{gnn_forward.31} parent=0 // pred_region
    _
  $region33: #{gnn_forward.31} parent=0 // pred_fallthru
    _
  // Predicated region
  $region34: #{gnn_forward.31} parent=0 // pred_check
    _
  $region35: #{gnn_forward.31} parent=0 // pred_check_branch
    %33 = sbr.rel (0) target = $region37
  $region36: #{gnn_forward.31} parent=0 // pred_region
    _
  $region37: #{gnn_forward.31} parent=0 // pred_fallthru
    _
  // Predicated region
  $region38: #{gnn_forward.31} parent=0 // pred_check
    _
  $region39: #{gnn_forward.31} parent=0 // pred_check_branch
    %35 = sbr.rel (0) target = $region41
  $region40: #{gnn_forward.31} parent=0 // pred_region
    _
  $region41: #{gnn_forward.31} parent=0 // pred_fallthru
    _
  // Predicated region
  $region42: #{gnn_forward.31} parent=0 // pred_check
    _
  $region43: #{gnn_forward.31} parent=0 // pred_check_branch
    %37 = sbr.rel (0) target = $region45
  $region44: #{gnn_forward.31} parent=0 // pred_region
    _
  $region45: #{gnn_forward.31} parent=0 // pred_fallthru
    _
  %v39 = vld [vmem:[%s0] sm:$0xff]
  %v40 = vld [vmem:[%s0 + $0x8] sm:$0xff]
  %v41 = vpack.c.bf16 %v40, %v39
  %v42 = vld [vmem:[%s1] sm:$0x1]
  %v43 = vld [vmem:[%s2] sm:$0x1]
  %v45 = vlaneseq
  %v46 = vshrl.u32 %v45, 7
  %v47 = vsub.s32 0, %v46
  %v48 = vrot.slane %v43, %v47
  %vm50 = vcmask 7168
  %v52 = vsel %vm50, %v41, 0
  %vm54 = vcmask 1040384
  %v55 = vsel 0, 4294967295, 65535
  %v56 = vsel %vm54, %v55, 0
  %v58 = vand.u32 %v42, %v56
  %60 = vmatprep.subr.bf16.mxu0 0
  %61 = vmatpush1.bf16.msra.mxu0 %v58
  %62 = vmatprep.subr.bf16.mxu0 0
  %63 = vmatpush1.bf16.msra.mxu0 0
  %64 = vmatprep.subr.bf16.mxu0 0
  %65 = vmatpush1.bf16.msra.mxu0 0
  %66 = vmatprep.subr.bf16.mxu0 0
  %67 = vmatpush1.bf16.msra.mxu0 0
  %68 = vmatprep.subr.bf16.mxu0 0
  %69 = vmatpush1.bf16.msra.mxu0 0
  %70 = vmatprep.subr.bf16.mxu0 0
  %71 = vmatpush1.bf16.msra.mxu0 0
  %72 = vmatprep.subr.bf16.mxu0 0
  %73 = vmatpush1.bf16.msra.mxu0 0
  %74 = vmatprep.subr.bf16.mxu0 0
  %75 = vmatpush1.bf16.msra.mxu0 0
  %76 = vmatprep.subr.bf16.mxu0 0
  %77 = vmatpush1.bf16.msra.mxu0 0
  %78 = vmatprep.subr.bf16.mxu0 0
  %79 = vmatpush1.bf16.msra.mxu0 0
  %80 = vmatprep.subr.bf16.mxu0 0
  %81 = vmatpush1.bf16.msra.mxu0 0
  %82 = vmatprep.subr.bf16.mxu0 0
  %83 = vmatpush1.bf16.msra.mxu0 0
  %84 = vmatprep.subr.bf16.mxu0 0
  %85 = vmatpush1.bf16.msra.mxu0 0
  %86 = vmatprep.subr.bf16.mxu0 0
  %87 = vmatpush1.bf16.msra.mxu0 0
  %88 = vmatprep.subr.bf16.mxu0 0
  %89 = vmatpush1.bf16.msra.mxu0 0
  %90 = vmatprep.subr.bf16.mxu0 0
  %91 = vmatpush1.bf16.msra.mxu0 0
  %92 = vmatprep.mubr.bf16.mxu0 0
  %93 = vmatmul.mubr.bf16.gmra.mrb[0].mxu0 %v52
  %v94 = vpop.f32.mrb[0].mxu0
  %v95 = vadd.f32 %v48, %v94
  %v96 = vpop.f32.mrb[0].mxu0
  %v97 = vpop.f32.mrb[0].mxu0
  %v98 = vadd.f32 %v48, %v97
  %v99 = vpop.f32.mrb[0].mxu0
  %100 = vdwg.mxu0
  %v101 = vmax.f32 %v95, 0.0
  %v102 = vmax.f32 %v98, 0.0
  %v103 = vpack.c.bf16 %v102, %v101
  %v104 = vld [vmem:[%s3] sm:$0xf]
  %v105 = vld [vmem:[%s3 + $0x4] sm:$0xf]
  %v106 = vld [vmem:[%s3 + $0x8] sm:$0xf]
  %v107 = vld [vmem:[%s3 + $0xc] sm:$0xf]
  %v108 = vld [vmem:[%s3 + $0x10] sm:$0xf]
  %v109 = vld [vmem:[%s3 + $0x14] sm:$0xf]
  %v110 = vld [vmem:[%s3 + $0x18] sm:$0xf]
  %v111 = vld [vmem:[%s3 + $0x1c] sm:$0xf]
  %v112 = vld [vmem:[%s3 + $0x20] sm:$0xf]
  %v113 = vld [vmem:[%s3 + $0x24] sm:$0xf]
  %v114 = vld [vmem:[%s3 + $0x28] sm:$0xf]
  %v115 = vld [vmem:[%s3 + $0x2c] sm:$0xf]
  %v116 = vld [vmem:[%s3 + $0x30] sm:$0xf]
  %v117 = vld [vmem:[%s3 + $0x34] sm:$0xf]
  %v118 = vld [vmem:[%s3 + $0x38] sm:$0xf]
  %v119 = vld [vmem:[%s3 + $0x3c] sm:$0xf]
  %v120 = vld [vmem:[%s4] sm:$0x1]
  %v122 = vlaneseq
  %v123 = vshrl.u32 %v122, 7
  %v124 = vsub.s32 0, %v123
  %v125 = vrot.slane %v120, %v124
  %v143 = vunpack.c.l.b16 %v104
  %v144 = vunpack.c.l.b16 %v105
  %v145 = vunpack.c.l.b16 %v106
  %v146 = vunpack.c.l.b16 %v107
  %v147 = vunpack.c.l.b16 %v108
  %v148 = vunpack.c.l.b16 %v109
  %v149 = vunpack.c.l.b16 %v110
  %v150 = vunpack.c.l.b16 %v111
  %v151 = vunpack.c.l.b16 %v112
  %v152 = vunpack.c.l.b16 %v113
  %v153 = vunpack.c.l.b16 %v114
  %v154 = vunpack.c.l.b16 %v115
  %v155 = vunpack.c.l.b16 %v116
  %v156 = vunpack.c.l.b16 %v117
  %v157 = vunpack.c.l.b16 %v118
  %v158 = vunpack.c.l.b16 %v119
  %v159 = vpack.c.b16 %v144, %v143
  %v160 = vpack.c.b16 %v146, %v145
  %v161 = vpack.c.b16 %v148, %v147
  %v162 = vpack.c.b16 %v150, %v149
  %v163 = vpack.c.b16 %v152, %v151
  %v164 = vpack.c.b16 %v154, %v153
  %v165 = vpack.c.b16 %v156, %v155
  %v166 = vpack.c.b16 %v158, %v157
  %175 = vmatprep.subr.bf16.mxu0 0
  %176 = vmatpush1.bf16.msra.mxu0 %v159
  %177 = vmatprep.subr.bf16.mxu0 0
  %178 = vmatpush1.bf16.msra.mxu0 %v160
  %179 = vmatprep.subr.bf16.mxu0 0
  %180 = vmatpush1.bf16.msra.mxu0 %v161
  %181 = vmatprep.subr.bf16.mxu0 0
  %182 = vmatpush1.bf16.msra.mxu0 %v162
  %183 = vmatprep.subr.bf16.mxu0 0
  %184 = vmatpush1.bf16.msra.mxu0 %v163
  %185 = vmatprep.subr.bf16.mxu0 0
  %186 = vmatpush1.bf16.msra.mxu0 %v164
  %187 = vmatprep.subr.bf16.mxu0 0
  %188 = vmatpush1.bf16.msra.mxu0 %v165
  %189 = vmatprep.subr.bf16.mxu0 0
  %190 = vmatpush1.bf16.msra.mxu0 %v166
  %191 = vmatprep.subr.bf16.mxu0 0
  %192 = vmatpush1.bf16.msra.mxu0 0
  %193 = vmatprep.subr.bf16.mxu0 0
  %194 = vmatpush1.bf16.msra.mxu0 0
  %195 = vmatprep.subr.bf16.mxu0 0
  %196 = vmatpush1.bf16.msra.mxu0 0
  %197 = vmatprep.subr.bf16.mxu0 0
  %198 = vmatpush1.bf16.msra.mxu0 0
  %199 = vmatprep.subr.bf16.mxu0 0
  %200 = vmatpush1.bf16.msra.mxu0 0
  %201 = vmatprep.subr.bf16.mxu0 0
  %202 = vmatpush1.bf16.msra.mxu0 0
  %203 = vmatprep.subr.bf16.mxu0 0
  %204 = vmatpush1.bf16.msra.mxu0 0
  %205 = vmatprep.subr.bf16.mxu0 0
  %206 = vmatpush1.bf16.msra.mxu0 0
  %207 = vmatprep.mubr.bf16.mxu0 0
  %208 = vmatmul.mubr.bf16.gmra.mrb[0].mxu0 %v103
  %v209 = vpop.f32.mrb[0].mxu0
  %v210 = vadd.f32 %v125, %v209
  %v211 = vpop.f32.mrb[0].mxu0
  %v212 = vpop.f32.mrb[0].mxu0
  %v213 = vadd.f32 %v125, %v212
  %v214 = vpop.f32.mrb[0].mxu0
  %215 = vdwg.mxu0
  %v216 = vmax.f32 %v210, 0.0
  %v217 = vmax.f32 %v213, 0.0
  %v218 = vpack.c.bf16 %v217, %v216
  %v219 = vld [vmem:[%s5] sm:$0xf]
  %v220 = vld [vmem:[%s5 + $0x4] sm:$0xf]
  %v221 = vld [vmem:[%s5 + $0x8] sm:$0xf]
  %v222 = vld [vmem:[%s5 + $0xc] sm:$0xf]
  %v223 = vld [vmem:[%s5 + $0x10] sm:$0xf]
  %v224 = vld [vmem:[%s5 + $0x14] sm:$0xf]
  %v225 = vld [vmem:[%s5 + $0x18] sm:$0xf]
  %v226 = vld [vmem:[%s5 + $0x1c] sm:$0xf]
  %v227 = vld [vmem:[%s5 + $0x20] sm:$0xf]
  %v228 = vld [vmem:[%s5 + $0x24] sm:$0xf]
  %v229 = vld [vmem:[%s5 + $0x28] sm:$0xf]
  %v230 = vld [vmem:[%s5 + $0x2c] sm:$0xf]
  %v231 = vld [vmem:[%s5 + $0x30] sm:$0xf]
  %v232 = vld [vmem:[%s5 + $0x34] sm:$0xf]
  %v233 = vld [vmem:[%s5 + $0x38] sm:$0xf]
  %v234 = vld [vmem:[%s5 + $0x3c] sm:$0xf]
  %v235 = vld [vmem:[%s6] sm:$0x1]
  %v237 = vlaneseq
  %v238 = vshrl.u32 %v237, 7
  %v239 = vsub.s32 0, %v238
  %v240 = vrot.slane %v235, %v239
  %v258 = vunpack.c.l.b16 %v219
  %v259 = vunpack.c.l.b16 %v220
  %v260 = vunpack.c.l.b16 %v221
  %v261 = vunpack.c.l.b16 %v222
  %v262 = vunpack.c.l.b16 %v223
  %v263 = vunpack.c.l.b16 %v224
  %v264 = vunpack.c.l.b16 %v225
  %v265 = vunpack.c.l.b16 %v226
  %v266 = vunpack.c.l.b16 %v227
  %v267 = vunpack.c.l.b16 %v228
  %v268 = vunpack.c.l.b16 %v229
  %v269 = vunpack.c.l.b16 %v230
  %v270 = vunpack.c.l.b16 %v231
  %v271 = vunpack.c.l.b16 %v232
  %v272 = vunpack.c.l.b16 %v233
  %v273 = vunpack.c.l.b16 %v234
  %v274 = vpack.c.b16 %v259, %v258
  %v275 = vpack.c.b16 %v261, %v260
  %v276 = vpack.c.b16 %v263, %v262
  %v277 = vpack.c.b16 %v265, %v264
  %v278 = vpack.c.b16 %v267, %v266
  %v279 = vpack.c.b16 %v269, %v268
  %v280 = vpack.c.b16 %v271, %v270
  %v281 = vpack.c.b16 %v273, %v272
  %290 = vmatprep.subr.bf16.mxu0 0
  %291 = vmatpush1.bf16.msra.mxu0 %v274
  %292 = vmatprep.subr.bf16.mxu0 0
  %293 = vmatpush1.bf16.msra.mxu0 %v275
  %294 = vmatprep.subr.bf16.mxu0 0
  %295 = vmatpush1.bf16.msra.mxu0 %v276
  %296 = vmatprep.subr.bf16.mxu0 0
  %297 = vmatpush1.bf16.msra.mxu0 %v277
  %298 = vmatprep.subr.bf16.mxu0 0
  %299 = vmatpush1.bf16.msra.mxu0 %v278
  %300 = vmatprep.subr.bf16.mxu0 0
  %301 = vmatpush1.bf16.msra.mxu0 %v279
  %302 = vmatprep.subr.bf16.mxu0 0
  %303 = vmatpush1.bf16.msra.mxu0 %v280
  %304 = vmatprep.subr.bf16.mxu0 0
  %305 = vmatpush1.bf16.msra.mxu0 %v281
  %306 = vmatprep.subr.bf16.mxu0 0
  %307 = vmatpush1.bf16.msra.mxu0 0
  %308 = vmatprep.subr.bf16.mxu0 0
  %309 = vmatpush1.bf16.msra.mxu0 0
  %310 = vmatprep.subr.bf16.mxu0 0
  %311 = vmatpush1.bf16.msra.mxu0 0
  %312 = vmatprep.subr.bf16.mxu0 0
  %313 = vmatpush1.bf16.msra.mxu0 0
  %314 = vmatprep.subr.bf16.mxu0 0
  %315 = vmatpush1.bf16.msra.mxu0 0
  %316 = vmatprep.subr.bf16.mxu0 0
  %317 = vmatpush1.bf16.msra.mxu0 0
  %318 = vmatprep.subr.bf16.mxu0 0
  %319 = vmatpush1.bf16.msra.mxu0 0
  %320 = vmatprep.subr.bf16.mxu0 0
  %321 = vmatpush1.bf16.msra.mxu0 0
  %322 = vmatprep.mubr.bf16.mxu0 0
  %323 = vmatmul.mubr.bf16.gmra.mrb[0].mxu0 %v218
  %v324 = vpop.f32.mrb[0].mxu0
  %v325 = vadd.f32 %v240, %v324
  %v326 = vpop.f32.mrb[0].mxu0
  %v327 = vpop.f32.mrb[0].mxu0
  %v328 = vadd.f32 %v240, %v327
  %v329 = vpop.f32.mrb[0].mxu0
  %330 = vdwg.mxu0
  %v331 = vmax.f32 %v325, 0.0
  %v332 = vmax.f32 %v328, 0.0
  %v333 = vpack.c.bf16 %v332, %v331
  %v334 = vld [vmem:[%s7] sm:$0xf]
  %v335 = vld [vmem:[%s7 + $0x4] sm:$0xf]
  %v336 = vld [vmem:[%s7 + $0x8] sm:$0xf]
  %v337 = vld [vmem:[%s7 + $0xc] sm:$0xf]
  %v338 = vld [vmem:[%s7 + $0x10] sm:$0xf]
  %v339 = vld [vmem:[%s7 + $0x14] sm:$0xf]
  %v340 = vld [vmem:[%s7 + $0x18] sm:$0xf]
  %v341 = vld [vmem:[%s7 + $0x1c] sm:$0xf]
  %v342 = vld [vmem:[%s7 + $0x20] sm:$0xf]
  %v343 = vld [vmem:[%s7 + $0x24] sm:$0xf]
  %v344 = vld [vmem:[%s7 + $0x28] sm:$0xf]
  %v345 = vld [vmem:[%s7 + $0x2c] sm:$0xf]
  %v346 = vld [vmem:[%s7 + $0x30] sm:$0xf]
  %v347 = vld [vmem:[%s7 + $0x34] sm:$0xf]
  %v348 = vld [vmem:[%s7 + $0x38] sm:$0xf]
  %v349 = vld [vmem:[%s7 + $0x3c] sm:$0xf]
  %v350 = vld [vmem:[%s8] sm:$0x1]
  %v352 = vlaneseq
  %v353 = vshrl.u32 %v352, 7
  %v354 = vsub.s32 0, %v353
  %v355 = vrot.slane %v350, %v354
  %v373 = vunpack.c.l.b16 %v334
  %v374 = vunpack.c.l.b16 %v335
  %v375 = vunpack.c.l.b16 %v336
  %v376 = vunpack.c.l.b16 %v337
  %v377 = vunpack.c.l.b16 %v338
  %v378 = vunpack.c.l.b16 %v339
  %v379 = vunpack.c.l.b16 %v340
  %v380 = vunpack.c.l.b16 %v341
  %v381 = vunpack.c.l.b16 %v342
  %v382 = vunpack.c.l.b16 %v343
  %v383 = vunpack.c.l.b16 %v344
  %v384 = vunpack.c.l.b16 %v345
  %v385 = vunpack.c.l.b16 %v346
  %v386 = vunpack.c.l.b16 %v347
  %v387 = vunpack.c.l.b16 %v348
  %v388 = vunpack.c.l.b16 %v349
  %v389 = vpack.c.b16 %v374, %v373
  %v390 = vpack.c.b16 %v376, %v375
  %v391 = vpack.c.b16 %v378, %v377
  %v392 = vpack.c.b16 %v380, %v379
  %v393 = vpack.c.b16 %v382, %v381
  %v394 = vpack.c.b16 %v384, %v383
  %v395 = vpack.c.b16 %v386, %v385
  %v396 = vpack.c.b16 %v388, %v387
  %405 = vmatprep.subr.bf16.mxu0 0
  %406 = vmatpush1.bf16.msra.mxu0 %v389
  %407 = vmatprep.subr.bf16.mxu0 0
  %408 = vmatpush1.bf16.msra.mxu0 %v390
  %409 = vmatprep.subr.bf16.mxu0 0
  %410 = vmatpush1.bf16.msra.mxu0 %v391
  %411 = vmatprep.subr.bf16.mxu0 0
  %412 = vmatpush1.bf16.msra.mxu0 %v392
  %413 = vmatprep.subr.bf16.mxu0 0
  %414 = vmatpush1.bf16.msra.mxu0 %v393
  %415 = vmatprep.subr.bf16.mxu0 0
  %416 = vmatpush1.bf16.msra.mxu0 %v394
  %417 = vmatprep.subr.bf16.mxu0 0
  %418 = vmatpush1.bf16.msra.mxu0 %v395
  %419 = vmatprep.subr.bf16.mxu0 0
  %420 = vmatpush1.bf16.msra.mxu0 %v396
  %421 = vmatprep.subr.bf16.mxu0 0
  %422 = vmatpush1.bf16.msra.mxu0 0
  %423 = vmatprep.subr.bf16.mxu0 0
  %424 = vmatpush1.bf16.msra.mxu0 0
  %425 = vmatprep.subr.bf16.mxu0 0
  %426 = vmatpush1.bf16.msra.mxu0 0
  %427 = vmatprep.subr.bf16.mxu0 0
  %428 = vmatpush1.bf16.msra.mxu0 0
  %429 = vmatprep.subr.bf16.mxu0 0
  %430 = vmatpush1.bf16.msra.mxu0 0
  %431 = vmatprep.subr.bf16.mxu0 0
  %432 = vmatpush1.bf16.msra.mxu0 0
  %433 = vmatprep.subr.bf16.mxu0 0
  %434 = vmatpush1.bf16.msra.mxu0 0
  %435 = vmatprep.subr.bf16.mxu0 0
  %436 = vmatpush1.bf16.msra.mxu0 0
  %437 = vmatprep.mubr.bf16.mxu0 0
  %438 = vmatmul.mubr.bf16.gmra.mrb[0].mxu0 %v333
  %v439 = vpop.f32.mrb[0].mxu0
  %v440 = vadd.f32 %v355, %v439
  %v441 = vpop.f32.mrb[0].mxu0
  %v442 = vpop.f32.mrb[0].mxu0
  %v443 = vadd.f32 %v355, %v442
  %v444 = vpop.f32.mrb[0].mxu0
  %445 = vdwg.mxu0
  %446 = vadd.xlane.f32.xlu0 %v440
  %v447 = vpop.xlane.xlu0 %446
  %448 = vadd.xlane.f32.xlu0 %v443
  %v449 = vpop.xlane.xlu0 %448
  %v450 = vmul.f32 %v440, %v440
  %v451 = vmul.f32 %v443, %v443
  %452 = vadd.xlane.f32.xlu0 %v450
  %v453 = vpop.xlane.xlu0 %452
  %454 = vadd.xlane.f32.xlu0 %v451
  %v455 = vpop.xlane.xlu0 %454
  %v456 = vmul.f32 %v447, 0.0078125
  %v457 = vmul.f32 %v449, 0.0078125
  %v458 = vmul.f32 %v453, 0.0078125
  %v459 = vmul.f32 %v455, 0.0078125
  %v460 = vmul.f32 %v456, %v456
  %v461 = vmul.f32 %v457, %v457
  %v462 = vsub.f32 %v458, %v460
  %v463 = vsub.f32 %v459, %v461
  %v464 = vmax.f32 %v462, 0.0
  %v465 = vmax.f32 %v463, 0.0
  %v466 = vsub.f32 %v440, %v456
  %v467 = vsub.f32 %v443, %v457
  %v468 = vadd.f32 %v464, 1e-05
  %v469 = vadd.f32 %v465, 1e-05
  %v470 = vrsqrt.pop %v468
  %v471 = vrsqrt.pop %v469
  %v472 = vmul.f32 %v466, %v470
  %v473 = vmul.f32 %v467, %v471
  %v474 = vld [vmem:[%s9] sm:$0x1]
  %v476 = vlaneseq
  %v477 = vshrl.u32 %v476, 7
  %v478 = vsub.s32 0, %v477
  %v479 = vrot.slane %v474, %v478
  %v481 = vmul.f32 %v472, %v479
  %v482 = vmul.f32 %v473, %v479
  %v483 = vld [vmem:[%s10] sm:$0x1]
  %v485 = vlaneseq
  %v486 = vshrl.u32 %v485, 7
  %v487 = vsub.s32 0, %v486
  %v488 = vrot.slane %v483, %v487
  %v490 = vadd.f32 %v481, %v488
  %v491 = vadd.f32 %v482, %v488
  %492 = vst [vmem:[%s11] sm:$0xff] %v490
  %493 = vst [vmem:[%s11 + $0x8] sm:$0xff] %v491
  // Predicated region
  $region46: #{gnn_forward.31} parent=0 // pred_check
    _
  $region47: #{gnn_forward.31} parent=0 // pred_check_branch
    %495 = sbr.rel (0) target = $region49
  $region48: #{gnn_forward.31} parent=0 // pred_region
    _
  $region49: #{gnn_forward.31} parent=0 // pred_fallthru
    _
  // Predicated region
  $region50: #{gnn_forward.31} parent=0 // pred_check
    _
  $region51: #{gnn_forward.31} parent=0 // pred_check_branch
    %497 = sbr.rel (0) target = $region53
  $region52: #{gnn_forward.31} parent=0 // pred_region
    _
  $region53: #{gnn_forward.31} parent=0 // pred_fallthru
    _

// kernel: gnn_forward.34
$region0: #{gnn_forward.34}
  #allocation0 [shape = 'u32[]', space=smem, size = 0x4, offset = 0x4, fixed_abs, tag = 'smem constant byte address 0x4 - core index']
  #allocation1 [shape = 'u32[144,128]{1,0:T(1,128)}', space=vmem, size = 0x12000, scoped, tag = 'internal scratch']
  %s0 = inlined_call_operand.vmem [shape: f32[32,128], index: 0, kind: input, shape index: {}]
  %s1 = inlined_call_operand.vmem [shape: f32[32,128], index: 1, kind: input, shape index: {}]
  %s2 = inlined_call_operand.vmem [shape: bf16[128,128], index: 2, kind: input, shape index: {}]
  %s3 = inlined_call_operand.vmem [shape: bf16[128,128], index: 3, kind: input, shape index: {}]
  %s4 = inlined_call_operand.vmem [shape: f32[1,128], index: 4, kind: input, shape index: {}]
  %s5 = inlined_call_operand.vmem [shape: bf16[128,128], index: 5, kind: input, shape index: {}]
  %s6 = inlined_call_operand.vmem [shape: f32[1,128], index: 6, kind: input, shape index: {}]
  %s7 = inlined_call_operand.vmem [shape: bf16[128,128], index: 7, kind: input, shape index: {}]
  %s8 = inlined_call_operand.vmem [shape: f32[1,128], index: 8, kind: input, shape index: {}]
  %s9 = inlined_call_operand.vmem [shape: bf16[128,128], index: 9, kind: input, shape index: {}]
  %s10 = inlined_call_operand.vmem [shape: f32[1,128], index: 10, kind: input, shape index: {}]
  %s11 = inlined_call_operand.vmem [shape: f32[1,128], index: 11, kind: input, shape index: {}]
  %s12 = inlined_call_operand.vmem [shape: f32[1,128], index: 12, kind: input, shape index: {}]
  %s13 = inlined_call_operand.vmem [shape: f32[32,128], index: 13, kind: output, shape index: {}]
  %s14 = sld [smem:[#allocation0]]
  $region62: #{gnn_forward.34} parent=0
    _
  %s16 = ssub.s32 1, %s14
  %s17 = scalar_select 0, %s16, %s14
  // Predicated region
  $region2: #{gnn_forward.34} parent=0 // pred_check
    _
  $region3: #{gnn_forward.34} parent=0 // pred_check_branch
    %19 = sbr.rel (0) target = $region5
  $region4: #{gnn_forward.34} parent=0 // pred_region
    _
  $region5: #{gnn_forward.34} parent=0 // pred_fallthru
    _
  // Predicated region
  $region6: #{gnn_forward.34} parent=0 // pred_check
    _
  $region7: #{gnn_forward.34} parent=0 // pred_check_branch
    %21 = sbr.rel (0) target = $region9
  $region8: #{gnn_forward.34} parent=0 // pred_region
    _
  $region9: #{gnn_forward.34} parent=0 // pred_fallthru
    _
  // Predicated region
  $region10: #{gnn_forward.34} parent=0 // pred_check
    _
  $region11: #{gnn_forward.34} parent=0 // pred_check_branch
    %23 = sbr.rel (0) target = $region13
  $region12: #{gnn_forward.34} parent=0 // pred_region
    _
  $region13: #{gnn_forward.34} parent=0 // pred_fallthru
    _
  // Predicated region
  $region14: #{gnn_forward.34} parent=0 // pred_check
    _
  $region15: #{gnn_forward.34} parent=0 // pred_check_branch
    %25 = sbr.rel (0) target = $region17
  $region16: #{gnn_forward.34} parent=0 // pred_region
    _
  $region17: #{gnn_forward.34} parent=0 // pred_fallthru
    _
  // Predicated region
  $region18: #{gnn_forward.34} parent=0 // pred_check
    _
  $region19: #{gnn_forward.34} parent=0 // pred_check_branch
    %27 = sbr.rel (0) target = $region21
  $region20: #{gnn_forward.34} parent=0 // pred_region
    _
  $region21: #{gnn_forward.34} parent=0 // pred_fallthru
    _
  // Predicated region
  $region22: #{gnn_forward.34} parent=0 // pred_check
    _
  $region23: #{gnn_forward.34} parent=0 // pred_check_branch
    %29 = sbr.rel (0) target = $region25
  $region24: #{gnn_forward.34} parent=0 // pred_region
    _
  $region25: #{gnn_forward.34} parent=0 // pred_fallthru
    _
  // Predicated region
  $region26: #{gnn_forward.34} parent=0 // pred_check
    _
  $region27: #{gnn_forward.34} parent=0 // pred_check_branch
    %31 = sbr.rel (0) target = $region29
  $region28: #{gnn_forward.34} parent=0 // pred_region
    _
  $region29: #{gnn_forward.34} parent=0 // pred_fallthru
    _
  // Predicated region
  $region30: #{gnn_forward.34} parent=0 // pred_check
    _
  $region31: #{gnn_forward.34} parent=0 // pred_check_branch
    %33 = sbr.rel (0) target = $region33
  $region32: #{gnn_forward.34} parent=0 // pred_region
    _
  $region33: #{gnn_forward.34} parent=0 // pred_fallthru
    _
  // Predicated region
  $region34: #{gnn_forward.34} parent=0 // pred_check
    _
  $region35: #{gnn_forward.34} parent=0 // pred_check_branch
    %35 = sbr.rel (0) target = $region37
  $region36: #{gnn_forward.34} parent=0 // pred_region
    _
  $region37: #{gnn_forward.34} parent=0 // pred_fallthru
    _
  // Predicated region
  $region38: #{gnn_forward.34} parent=0 // pred_check
    _
  $region39: #{gnn_forward.34} parent=0 // pred_check_branch
    %37 = sbr.rel (0) target = $region41
  $region40: #{gnn_forward.34} parent=0 // pred_region
    _
  $region41: #{gnn_forward.34} parent=0 // pred_fallthru
    _
  // Predicated region
  $region42: #{gnn_forward.34} parent=0 // pred_check
    _
  $region43: #{gnn_forward.34} parent=0 // pred_check_branch
    %39 = sbr.rel (0) target = $region45
  $region44: #{gnn_forward.34} parent=0 // pred_region
    _
  $region45: #{gnn_forward.34} parent=0 // pred_fallthru
    _
  // Predicated region
  $region46: #{gnn_forward.34} parent=0 // pred_check
    _
  $region47: #{gnn_forward.34} parent=0 // pred_check_branch
    %41 = sbr.rel (0) target = $region49
  $region48: #{gnn_forward.34} parent=0 // pred_region
    _
  $region49: #{gnn_forward.34} parent=0 // pred_fallthru
    _
  // Predicated region
  $region50: #{gnn_forward.34} parent=0 // pred_check
    _
  $region51: #{gnn_forward.34} parent=0 // pred_check_branch
    %43 = sbr.rel (0) target = $region53
  $region52: #{gnn_forward.34} parent=0 // pred_region
    _
  $region53: #{gnn_forward.34} parent=0 // pred_fallthru
    _
  %v45 = vld [vmem:[%s0] sm:$0xff]
  %v46 = vld [vmem:[%s0 + $0x8] sm:$0xff]
  %v47 = vld [vmem:[%s0 + $0x10] sm:$0xff]
  %v48 = vld [vmem:[%s0 + $0x18] sm:$0xff]
  %v49 = vpack.c.bf16 %v46, %v45
  %v50 = vpack.c.bf16 %v48, %v47
  %v51 = vld [vmem:[%s2] sm:$0xf]
  %v52 = vld [vmem:[%s2 + $0x4] sm:$0xf]
  %v53 = vld [vmem:[%s2 + $0x8] sm:$0xf]
  %v54 = vld [vmem:[%s2 + $0xc] sm:$0xf]
  %v55 = vld [vmem:[%s2 + $0x10] sm:$0xf]
  %v56 = vld [vmem:[%s2 + $0x14] sm:$0xf]
  %v57 = vld [vmem:[%s2 + $0x18] sm:$0xf]
  %v58 = vld [vmem:[%s2 + $0x1c] sm:$0xf]
  %v59 = vld [vmem:[%s2 + $0x20] sm:$0xf]
  %v60 = vld [vmem:[%s2 + $0x24] sm:$0xf]
  %v61 = vld [vmem:[%s2 + $0x28] sm:$0xf]
  %v62 = vld [vmem:[%s2 + $0x2c] sm:$0xf]
  %v63 = vld [vmem:[%s2 + $0x30] sm:$0xf]
  %v64 = vld [vmem:[%s2 + $0x34] sm:$0xf]
  %v65 = vld [vmem:[%s2 + $0x38] sm:$0xf]
  %v66 = vld [vmem:[%s2 + $0x3c] sm:$0xf]
  %v67 = vld [vmem:[%s1] sm:$0xff]
  %v68 = vld [vmem:[%s1 + $0x8] sm:$0xff]
  %v69 = vld [vmem:[%s1 + $0x10] sm:$0xff]
  %v70 = vld [vmem:[%s1 + $0x18] sm:$0xff]
  %v71 = vpack.c.bf16 %v68, %v67
  %v72 = vpack.c.bf16 %v70, %v69
  %v73 = vld [vmem:[%s3] sm:$0xf]
  %v74 = vld [vmem:[%s3 + $0x4] sm:$0xf]
  %v75 = vld [vmem:[%s3 + $0x8] sm:$0xf]
  %v76 = vld [vmem:[%s3 + $0xc] sm:$0xf]
  %v77 = vld [vmem:[%s3 + $0x10] sm:$0xf]
  %v78 = vld [vmem:[%s3 + $0x14] sm:$0xf]
  %v79 = vld [vmem:[%s3 + $0x18] sm:$0xf]
  %v80 = vld [vmem:[%s3 + $0x1c] sm:$0xf]
  %v81 = vld [vmem:[%s3 + $0x20] sm:$0xf]
  %v82 = vld [vmem:[%s3 + $0x24] sm:$0xf]
  %v83 = vld [vmem:[%s3 + $0x28] sm:$0xf]
  %v84 = vld [vmem:[%s3 + $0x2c] sm:$0xf]
  %v85 = vld [vmem:[%s3 + $0x30] sm:$0xf]
  %v86 = vld [vmem:[%s3 + $0x34] sm:$0xf]
  %v87 = vld [vmem:[%s3 + $0x38] sm:$0xf]
  %v88 = vld [vmem:[%s3 + $0x3c] sm:$0xf]
  %v105 = vunpack.c.l.b16 %v73
  %v106 = vunpack.c.l.b16 %v74
  %v107 = vunpack.c.l.b16 %v75
  %v108 = vunpack.c.l.b16 %v76
  %v109 = vunpack.c.l.b16 %v77
  %v110 = vunpack.c.l.b16 %v78
  %v111 = vunpack.c.l.b16 %v79
  %v112 = vunpack.c.l.b16 %v80
  %v113 = vunpack.c.l.b16 %v81
  %v114 = vunpack.c.l.b16 %v82
  %v115 = vunpack.c.l.b16 %v83
  %v116 = vunpack.c.l.b16 %v84
  %v117 = vunpack.c.l.b16 %v85
  %v118 = vunpack.c.l.b16 %v86
  %v119 = vunpack.c.l.b16 %v87
  %v120 = vunpack.c.l.b16 %v88
  %v121 = vpack.c.b16 %v106, %v105
  %v122 = vpack.c.b16 %v108, %v107
  %v123 = vpack.c.b16 %v110, %v109
  %v124 = vpack.c.b16 %v112, %v111
  %v125 = vpack.c.b16 %v114, %v113
  %v126 = vpack.c.b16 %v116, %v115
  %v127 = vpack.c.b16 %v118, %v117
  %v128 = vpack.c.b16 %v120, %v119
  %137 = vmatprep.subr.bf16.mxu0 0
  %138 = vmatpush1.bf16.msra.mxu0 %v121
  %139 = vmatprep.subr.bf16.mxu0 0
  %140 = vmatpush1.bf16.msra.mxu0 %v122
  %141 = vmatprep.subr.bf16.mxu0 0
  %142 = vmatpush1.bf16.msra.mxu0 %v123
  %143 = vmatprep.subr.bf16.mxu0 0
  %144 = vmatpush1.bf16.msra.mxu0 %v124
  %145 = vmatprep.subr.bf16.mxu0 0
  %146 = vmatpush1.bf16.msra.mxu0 %v125
  %147 = vmatprep.subr.bf16.mxu0 0
  %148 = vmatpush1.bf16.msra.mxu0 %v126
  %149 = vmatprep.subr.bf16.mxu0 0
  %150 = vmatpush1.bf16.msra.mxu0 %v127
  %151 = vmatprep.subr.bf16.mxu0 0
  %152 = vmatpush1.bf16.msra.mxu0 %v128
  %153 = vmatprep.subr.bf16.mxu0 0
  %154 = vmatpush1.bf16.msra.mxu0 0
  %155 = vmatprep.subr.bf16.mxu0 0
  %156 = vmatpush1.bf16.msra.mxu0 0
  %157 = vmatprep.subr.bf16.mxu0 0
  %158 = vmatpush1.bf16.msra.mxu0 0
  %159 = vmatprep.subr.bf16.mxu0 0
  %160 = vmatpush1.bf16.msra.mxu0 0
  %161 = vmatprep.subr.bf16.mxu0 0
  %162 = vmatpush1.bf16.msra.mxu0 0
  %163 = vmatprep.subr.bf16.mxu0 0
  %164 = vmatpush1.bf16.msra.mxu0 0
  %165 = vmatprep.subr.bf16.mxu0 0
  %166 = vmatpush1.bf16.msra.mxu0 0
  %167 = vmatprep.subr.bf16.mxu0 0
  %168 = vmatpush1.bf16.msra.mxu0 0
  %169 = vmatprep.mubr.bf16.mxu0 0
  %170 = vmatmul.mubr.bf16.gmra.mrb[0].mxu0 %v71
  %v171 = vpop.f32.mrb[0].mxu0
  %v172 = vadd.f32 0.0, %v171
  %v173 = vpop.f32.mrb[0].mxu0
  %v174 = vpop.f32.mrb[0].mxu0
  %v175 = vadd.f32 0.0, %v174
  %v176 = vpop.f32.mrb[0].mxu0
  %177 = vmatprep.mubr.bf16.mxu0 0
  %178 = vmatmul.mubr.bf16.gmra.mrb[0].mxu0 %v72
  %v179 = vpop.f32.mrb[0].mxu0
  %v180 = vadd.f32 0.0, %v179
  %v181 = vpop.f32.mrb[0].mxu0
  %v182 = vpop.f32.mrb[0].mxu0
  %v183 = vadd.f32 0.0, %v182
  %v184 = vpop.f32.mrb[0].mxu0
  %185 = vdwg.mxu0
  %v202 = vunpack.c.l.b16 %v51
  %v203 = vunpack.c.l.b16 %v52
  %v204 = vunpack.c.l.b16 %v53
  %v205 = vunpack.c.l.b16 %v54
  %v206 = vunpack.c.l.b16 %v55
  %v207 = vunpack.c.l.b16 %v56
  %v208 = vunpack.c.l.b16 %v57
  %v209 = vunpack.c.l.b16 %v58
  %v210 = vunpack.c.l.b16 %v59
  %v211 = vunpack.c.l.b16 %v60
  %v212 = vunpack.c.l.b16 %v61
  %v213 = vunpack.c.l.b16 %v62
  %v214 = vunpack.c.l.b16 %v63
  %v215 = vunpack.c.l.b16 %v64
  %v216 = vunpack.c.l.b16 %v65
  %v217 = vunpack.c.l.b16 %v66
  %v218 = vpack.c.b16 %v203, %v202
  %v219 = vpack.c.b16 %v205, %v204
  %v220 = vpack.c.b16 %v207, %v206
  %v221 = vpack.c.b16 %v209, %v208
  %v222 = vpack.c.b16 %v211, %v210
  %v223 = vpack.c.b16 %v213, %v212
  %v224 = vpack.c.b16 %v215, %v214
  %v225 = vpack.c.b16 %v217, %v216
  %234 = vmatprep.subr.bf16.mxu0 0
  %235 = vmatpush1.bf16.msra.mxu0 %v218
  %236 = vmatprep.subr.bf16.mxu0 0
  %237 = vmatpush1.bf16.msra.mxu0 %v219
  %238 = vmatprep.subr.bf16.mxu0 0
  %239 = vmatpush1.bf16.msra.mxu0 %v220
  %240 = vmatprep.subr.bf16.mxu0 0
  %241 = vmatpush1.bf16.msra.mxu0 %v221
  %242 = vmatprep.subr.bf16.mxu0 0
  %243 = vmatpush1.bf16.msra.mxu0 %v222
  %244 = vmatprep.subr.bf16.mxu0 0
  %245 = vmatpush1.bf16.msra.mxu0 %v223
  %246 = vmatprep.subr.bf16.mxu0 0
  %247 = vmatpush1.bf16.msra.mxu0 %v224
  %248 = vmatprep.subr.bf16.mxu0 0
  %249 = vmatpush1.bf16.msra.mxu0 %v225
  %250 = vmatprep.subr.bf16.mxu0 0
  %251 = vmatpush1.bf16.msra.mxu0 0
  %252 = vmatprep.subr.bf16.mxu0 0
  %253 = vmatpush1.bf16.msra.mxu0 0
  %254 = vmatprep.subr.bf16.mxu0 0
  %255 = vmatpush1.bf16.msra.mxu0 0
  %256 = vmatprep.subr.bf16.mxu0 0
  %257 = vmatpush1.bf16.msra.mxu0 0
  %258 = vmatprep.subr.bf16.mxu0 0
  %259 = vmatpush1.bf16.msra.mxu0 0
  %260 = vmatprep.subr.bf16.mxu0 0
  %261 = vmatpush1.bf16.msra.mxu0 0
  %262 = vmatprep.subr.bf16.mxu0 0
  %263 = vmatpush1.bf16.msra.mxu0 0
  %264 = vmatprep.subr.bf16.mxu0 0
  %265 = vmatpush1.bf16.msra.mxu0 0
  %266 = vmatprep.mubr.bf16.mxu0 0
  %267 = vmatmul.mubr.bf16.gmra.mrb[0].mxu0 %v49
  %v268 = vpop.f32.mrb[0].mxu0
  %v269 = vadd.f32 %v172, %v268
  %v270 = vpop.f32.mrb[0].mxu0
  %v271 = vpop.f32.mrb[0].mxu0
  %v272 = vadd.f32 %v175, %v271
  %v273 = vpop.f32.mrb[0].mxu0
  %274 = vmatprep.mubr.bf16.mxu0 0
  %275 = vmatmul.mubr.bf16.gmra.mrb[0].mxu0 %v50
  %v276 = vpop.f32.mrb[0].mxu0
  %v277 = vadd.f32 %v180, %v276
  %v278 = vpop.f32.mrb[0].mxu0
  %v279 = vpop.f32.mrb[0].mxu0
  %v280 = vadd.f32 %v183, %v279
  %v281 = vpop.f32.mrb[0].mxu0
  %282 = vdwg.mxu0
  %v283 = vld [vmem:[%s4] sm:$0x1]
  %v285 = vlaneseq
  %v286 = vshrl.u32 %v285, 7
  %v287 = vsub.s32 0, %v286
  %v288 = vrot.slane %v283, %v287
  %v290 = vadd.f32 %v269, %v288
  %v291 = vadd.f32 %v272, %v288
  %v292 = vadd.f32 %v277, %v288
  %v293 = vadd.f32 %v280, %v288
  %v294 = vmax.f32 %v290, 0.0
  %v295 = vmax.f32 %v291, 0.0
  %v296 = vmax.f32 %v292, 0.0
  %v297 = vmax.f32 %v293, 0.0
  %v298 = vpack.c.bf16 %v295, %v294
  %v299 = vpack.c.bf16 %v297, %v296
  %v300 = vld [vmem:[%s5] sm:$0xf]
  %v301 = vld [vmem:[%s5 + $0x4] sm:$0xf]
  %v302 = vld [vmem:[%s5 + $0x8] sm:$0xf]
  %v303 = vld [vmem:[%s5 + $0xc] sm:$0xf]
  %v304 = vld [vmem:[%s5 + $0x10] sm:$0xf]
  %v305 = vld [vmem:[%s5 + $0x14] sm:$0xf]
  %v306 = vld [vmem:[%s5 + $0x18] sm:$0xf]
  %v307 = vld [vmem:[%s5 + $0x1c] sm:$0xf]
  %v308 = vld [vmem:[%s5 + $0x20] sm:$0xf]
  %v309 = vld [vmem:[%s5 + $0x24] sm:$0xf]
  %v310 = vld [vmem:[%s5 + $0x28] sm:$0xf]
  %v311 = vld [vmem:[%s5 + $0x2c] sm:$0xf]
  %v312 = vld [vmem:[%s5 + $0x30] sm:$0xf]
  %v313 = vld [vmem:[%s5 + $0x34] sm:$0xf]
  %v314 = vld [vmem:[%s5 + $0x38] sm:$0xf]
  %v315 = vld [vmem:[%s5 + $0x3c] sm:$0xf]
  %v316 = vld [vmem:[%s6] sm:$0x1]
  %v318 = vlaneseq
  %v319 = vshrl.u32 %v318, 7
  %v320 = vsub.s32 0, %v319
  %v321 = vrot.slane %v316, %v320
  %v339 = vunpack.c.l.b16 %v300
  %v340 = vunpack.c.l.b16 %v301
  %v341 = vunpack.c.l.b16 %v302
  %v342 = vunpack.c.l.b16 %v303
  %v343 = vunpack.c.l.b16 %v304
  %v344 = vunpack.c.l.b16 %v305
  %v345 = vunpack.c.l.b16 %v306
  %v346 = vunpack.c.l.b16 %v307
  %v347 = vunpack.c.l.b16 %v308
  %v348 = vunpack.c.l.b16 %v309
  %v349 = vunpack.c.l.b16 %v310
  %v350 = vunpack.c.l.b16 %v311
  %v351 = vunpack.c.l.b16 %v312
  %v352 = vunpack.c.l.b16 %v313
  %v353 = vunpack.c.l.b16 %v314
  %v354 = vunpack.c.l.b16 %v315
  %v355 = vpack.c.b16 %v340, %v339
  %v356 = vpack.c.b16 %v342, %v341
  %v357 = vpack.c.b16 %v344, %v343
  %v358 = vpack.c.b16 %v346, %v345
  %v359 = vpack.c.b16 %v348, %v347
  %v360 = vpack.c.b16 %v350, %v349
  %v361 = vpack.c.b16 %v352, %v351
  %v362 = vpack.c.b16 %v354, %v353
  %371 = vmatprep.subr.bf16.mxu0 0
  %372 = vmatpush1.bf16.msra.mxu0 %v355
  %373 = vmatprep.subr.bf16.mxu0 0
  %374 = vmatpush1.bf16.msra.mxu0 %v356
  %375 = vmatprep.subr.bf16.mxu0 0
  %376 = vmatpush1.bf16.msra.mxu0 %v357
  %377 = vmatprep.subr.bf16.mxu0 0
  %378 = vmatpush1.bf16.msra.mxu0 %v358
  %379 = vmatprep.subr.bf16.mxu0 0
  %380 = vmatpush1.bf16.msra.mxu0 %v359
  %381 = vmatprep.subr.bf16.mxu0 0
  %382 = vmatpush1.bf16.msra.mxu0 %v360
  %383 = vmatprep.subr.bf16.mxu0 0
  %384 = vmatpush1.bf16.msra.mxu0 %v361
  %385 = vmatprep.subr.bf16.mxu0 0
  %386 = vmatpush1.bf16.msra.mxu0 %v362
  %387 = vmatprep.subr.bf16.mxu0 0
  %388 = vmatpush1.bf16.msra.mxu0 0
  %389 = vmatprep.subr.bf16.mxu0 0
  %390 = vmatpush1.bf16.msra.mxu0 0
  %391 = vmatprep.subr.bf16.mxu0 0
  %392 = vmatpush1.bf16.msra.mxu0 0
  %393 = vmatprep.subr.bf16.mxu0 0
  %394 = vmatpush1.bf16.msra.mxu0 0
  %395 = vmatprep.subr.bf16.mxu0 0
  %396 = vmatpush1.bf16.msra.mxu0 0
  %397 = vmatprep.subr.bf16.mxu0 0
  %398 = vmatpush1.bf16.msra.mxu0 0
  %399 = vmatprep.subr.bf16.mxu0 0
  %400 = vmatpush1.bf16.msra.mxu0 0
  %401 = vmatprep.subr.bf16.mxu0 0
  %402 = vmatpush1.bf16.msra.mxu0 0
  %403 = vmatprep.mubr.bf16.mxu0 0
  %404 = vmatmul.mubr.bf16.gmra.mrb[0].mxu0 %v298
  %v405 = vpop.f32.mrb[0].mxu0
  %v406 = vadd.f32 %v321, %v405
  %v407 = vpop.f32.mrb[0].mxu0
  %v408 = vpop.f32.mrb[0].mxu0
  %v409 = vadd.f32 %v321, %v408
  %v410 = vpop.f32.mrb[0].mxu0
  %411 = vmatprep.mubr.bf16.mxu0 0
  %412 = vmatmul.mubr.bf16.gmra.mrb[0].mxu0 %v299
  %v413 = vpop.f32.mrb[0].mxu0
  %v414 = vadd.f32 %v321, %v413
  %v415 = vpop.f32.mrb[0].mxu0
  %v416 = vpop.f32.mrb[0].mxu0
  %v417 = vadd.f32 %v321, %v416
  %v418 = vpop.f32.mrb[0].mxu0
  %419 = vdwg.mxu0
  %v420 = vmax.f32 %v406, 0.0
  %v421 = vmax.f32 %v409, 0.0
  %v422 = vmax.f32 %v414, 0.0
  %v423 = vmax.f32 %v417, 0.0
  %v424 = vpack.c.bf16 %v421, %v420
  %v425 = vpack.c.bf16 %v423, %v422
  %v426 = vld [vmem:[%s7] sm:$0xf]
  %v427 = vld [vmem:[%s7 + $0x4] sm:$0xf]
  %v428 = vld [vmem:[%s7 + $0x8] sm:$0xf]
  %v429 = vld [vmem:[%s7 + $0xc] sm:$0xf]
  %v430 = vld [vmem:[%s7 + $0x10] sm:$0xf]
  %v431 = vld [vmem:[%s7 + $0x14] sm:$0xf]
  %v432 = vld [vmem:[%s7 + $0x18] sm:$0xf]
  %v433 = vld [vmem:[%s7 + $0x1c] sm:$0xf]
  %v434 = vld [vmem:[%s7 + $0x20] sm:$0xf]
  %v435 = vld [vmem:[%s7 + $0x24] sm:$0xf]
  %v436 = vld [vmem:[%s7 + $0x28] sm:$0xf]
  %v437 = vld [vmem:[%s7 + $0x2c] sm:$0xf]
  %v438 = vld [vmem:[%s7 + $0x30] sm:$0xf]
  %v439 = vld [vmem:[%s7 + $0x34] sm:$0xf]
  %v440 = vld [vmem:[%s7 + $0x38] sm:$0xf]
  %v441 = vld [vmem:[%s7 + $0x3c] sm:$0xf]
  %v442 = vld [vmem:[%s8] sm:$0x1]
  %v444 = vlaneseq
  %v445 = vshrl.u32 %v444, 7
  %v446 = vsub.s32 0, %v445
  %v447 = vrot.slane %v442, %v446
  %v465 = vunpack.c.l.b16 %v426
  %v466 = vunpack.c.l.b16 %v427
  %v467 = vunpack.c.l.b16 %v428
  %v468 = vunpack.c.l.b16 %v429
  %v469 = vunpack.c.l.b16 %v430
  %v470 = vunpack.c.l.b16 %v431
  %v471 = vunpack.c.l.b16 %v432
  %v472 = vunpack.c.l.b16 %v433
  %v473 = vunpack.c.l.b16 %v434
  %v474 = vunpack.c.l.b16 %v435
  %v475 = vunpack.c.l.b16 %v436
  %v476 = vunpack.c.l.b16 %v437
  %v477 = vunpack.c.l.b16 %v438
  %v478 = vunpack.c.l.b16 %v439
  %v479 = vunpack.c.l.b16 %v440
  %v480 = vunpack.c.l.b16 %v441
  %v481 = vpack.c.b16 %v466, %v465
  %v482 = vpack.c.b16 %v468, %v467
  %v483 = vpack.c.b16 %v470, %v469
  %v484 = vpack.c.b16 %v472, %v471
  %v485 = vpack.c.b16 %v474, %v473
  %v486 = vpack.c.b16 %v476, %v475
  %v487 = vpack.c.b16 %v478, %v477
  %v488 = vpack.c.b16 %v480, %v479
  %497 = vmatprep.subr.bf16.mxu0 0
  %498 = vmatpush1.bf16.msra.mxu0 %v481
  %499 = vmatprep.subr.bf16.mxu0 0
  %500 = vmatpush1.bf16.msra.mxu0 %v482
  %501 = vmatprep.subr.bf16.mxu0 0
  %502 = vmatpush1.bf16.msra.mxu0 %v483
  %503 = vmatprep.subr.bf16.mxu0 0
  %504 = vmatpush1.bf16.msra.mxu0 %v484
  %505 = vmatprep.subr.bf16.mxu0 0
  %506 = vmatpush1.bf16.msra.mxu0 %v485
  %507 = vmatprep.subr.bf16.mxu0 0
  %508 = vmatpush1.bf16.msra.mxu0 %v486
  %509 = vmatprep.subr.bf16.mxu0 0
  %510 = vmatpush1.bf16.msra.mxu0 %v487
  %511 = vmatprep.subr.bf16.mxu0 0
  %512 = vmatpush1.bf16.msra.mxu0 %v488
  %513 = vmatprep.subr.bf16.mxu0 0
  %514 = vmatpush1.bf16.msra.mxu0 0
  %515 = vmatprep.subr.bf16.mxu0 0
  %516 = vmatpush1.bf16.msra.mxu0 0
  %517 = vmatprep.subr.bf16.mxu0 0
  %518 = vmatpush1.bf16.msra.mxu0 0
  %519 = vmatprep.subr.bf16.mxu0 0
  %520 = vmatpush1.bf16.msra.mxu0 0
  %521 = vmatprep.subr.bf16.mxu0 0
  %522 = vmatpush1.bf16.msra.mxu0 0
  %523 = vmatprep.subr.bf16.mxu0 0
  %524 = vmatpush1.bf16.msra.mxu0 0
  %525 = vmatprep.subr.bf16.mxu0 0
  %526 = vmatpush1.bf16.msra.mxu0 0
  %527 = vmatprep.subr.bf16.mxu0 0
  %528 = vmatpush1.bf16.msra.mxu0 0
  %529 = vmatprep.mubr.bf16.mxu0 0
  %530 = vmatmul.mubr.bf16.gmra.mrb[0].mxu0 %v424
  %v531 = vpop.f32.mrb[0].mxu0
  %v532 = vadd.f32 %v447, %v531
  %v533 = vpop.f32.mrb[0].mxu0
  %v534 = vpop.f32.mrb[0].mxu0
  %v535 = vadd.f32 %v447, %v534
  %v536 = vpop.f32.mrb[0].mxu0
  %537 = vmatprep.mubr.bf16.mxu0 0
  %538 = vmatmul.mubr.bf16.gmra.mrb[0].mxu0 %v425
  %v539 = vpop.f32.mrb[0].mxu0
  %v540 = vadd.f32 %v447, %v539
  %v541 = vpop.f32.mrb[0].mxu0
  %v542 = vpop.f32.mrb[0].mxu0
  %v543 = vadd.f32 %v447, %v542
  %v544 = vpop.f32.mrb[0].mxu0
  %545 = vdwg.mxu0
  %v546 = vmax.f32 %v532, 0.0
  %v547 = vmax.f32 %v535, 0.0
  %v548 = vmax.f32 %v540, 0.0
  %v549 = vmax.f32 %v543, 0.0
  %v550 = vpack.c.bf16 %v547, %v546
  %v551 = vpack.c.bf16 %v549, %v548
  %v552 = vld [vmem:[%s9] sm:$0xf]
  %v553 = vld [vmem:[%s9 + $0x4] sm:$0xf]
  %v554 = vld [vmem:[%s9 + $0x8] sm:$0xf]
  %v555 = vld [vmem:[%s9 + $0xc] sm:$0xf]
  %v556 = vld [vmem:[%s9 + $0x10] sm:$0xf]
  %v557 = vld [vmem:[%s9 + $0x14] sm:$0xf]
  %v558 = vld [vmem:[%s9 + $0x18] sm:$0xf]
  %v559 = vld [vmem:[%s9 + $0x1c] sm:$0xf]
  %v560 = vld [vmem:[%s9 + $0x20] sm:$0xf]
  %v561 = vld [vmem:[%s9 + $0x24] sm:$0xf]
  %v562 = vld [vmem:[%s9 + $0x28] sm:$0xf]
  %v563 = vld [vmem:[%s9 + $0x2c] sm:$0xf]
  %v564 = vld [vmem:[%s9 + $0x30] sm:$0xf]
  %v565 = vld [vmem:[%s9 + $0x34] sm:$0xf]
  %v566 = vld [vmem:[%s9 + $0x38] sm:$0xf]
  %v567 = vld [vmem:[%s9 + $0x3c] sm:$0xf]
  %v568 = vld [vmem:[%s10] sm:$0x1]
  %v570 = vlaneseq
  %v571 = vshrl.u32 %v570, 7
  %v572 = vsub.s32 0, %v571
  %v573 = vrot.slane %v568, %v572
  %v591 = vunpack.c.l.b16 %v552
  %v592 = vunpack.c.l.b16 %v553
  %v593 = vunpack.c.l.b16 %v554
  %v594 = vunpack.c.l.b16 %v555
  %v595 = vunpack.c.l.b16 %v556
  %v596 = vunpack.c.l.b16 %v557
  %v597 = vunpack.c.l.b16 %v558
  %v598 = vunpack.c.l.b16 %v559
  %v599 = vunpack.c.l.b16 %v560
  %v600 = vunpack.c.l.b16 %v561
  %v601 = vunpack.c.l.b16 %v562
  %v602 = vunpack.c.l.b16 %v563
  %v603 = vunpack.c.l.b16 %v564
  %v604 = vunpack.c.l.b16 %v565
  %v605 = vunpack.c.l.b16 %v566
  %v606 = vunpack.c.l.b16 %v567
  %v607 = vpack.c.b16 %v592, %v591
  %v608 = vpack.c.b16 %v594, %v593
  %v609 = vpack.c.b16 %v596, %v595
  %v610 = vpack.c.b16 %v598, %v597
  %v611 = vpack.c.b16 %v600, %v599
  %v612 = vpack.c.b16 %v602, %v601
  %v613 = vpack.c.b16 %v604, %v603
  %v614 = vpack.c.b16 %v606, %v605
  %623 = vmatprep.subr.bf16.mxu0 0
  %624 = vmatpush1.bf16.msra.mxu0 %v607
  %625 = vmatprep.subr.bf16.mxu0 0
  %626 = vmatpush1.bf16.msra.mxu0 %v608
  %627 = vmatprep.subr.bf16.mxu0 0
  %628 = vmatpush1.bf16.msra.mxu0 %v609
  %629 = vmatprep.subr.bf16.mxu0 0
  %630 = vmatpush1.bf16.msra.mxu0 %v610
  %631 = vmatprep.subr.bf16.mxu0 0
  %632 = vmatpush1.bf16.msra.mxu0 %v611
  %633 = vmatprep.subr.bf16.mxu0 0
  %634 = vmatpush1.bf16.msra.mxu0 %v612
  %635 = vmatprep.subr.bf16.mxu0 0
  %636 = vmatpush1.bf16.msra.mxu0 %v613
  %637 = vmatprep.subr.bf16.mxu0 0
  %638 = vmatpush1.bf16.msra.mxu0 %v614
  %639 = vmatprep.subr.bf16.mxu0 0
  %640 = vmatpush1.bf16.msra.mxu0 0
  %641 = vmatprep.subr.bf16.mxu0 0
  %642 = vmatpush1.bf16.msra.mxu0 0
  %643 = vmatprep.subr.bf16.mxu0 0
  %644 = vmatpush1.bf16.msra.mxu0 0
  %645 = vmatprep.subr.bf16.mxu0 0
  %646 = vmatpush1.bf16.msra.mxu0 0
  %647 = vmatprep.subr.bf16.mxu0 0
  %648 = vmatpush1.bf16.msra.mxu0 0
  %649 = vmatprep.subr.bf16.mxu0 0
  %650 = vmatpush1.bf16.msra.mxu0 0
  %651 = vmatprep.subr.bf16.mxu0 0
  %652 = vmatpush1.bf16.msra.mxu0 0
  %653 = vmatprep.subr.bf16.mxu0 0
  %654 = vmatpush1.bf16.msra.mxu0 0
  %655 = vmatprep.mubr.bf16.mxu0 0
  %656 = vmatmul.mubr.bf16.gmra.mrb[0].mxu0 %v550
  %v657 = vpop.f32.mrb[0].mxu0
  %v658 = vadd.f32 %v573, %v657
  %v659 = vpop.f32.mrb[0].mxu0
  %v660 = vpop.f32.mrb[0].mxu0
  %v661 = vadd.f32 %v573, %v660
  %v662 = vpop.f32.mrb[0].mxu0
  %663 = vmatprep.mubr.bf16.mxu0 0
  %664 = vmatmul.mubr.bf16.gmra.mrb[0].mxu0 %v551
  %v665 = vpop.f32.mrb[0].mxu0
  %v666 = vadd.f32 %v573, %v665
  %v667 = vpop.f32.mrb[0].mxu0
  %v668 = vpop.f32.mrb[0].mxu0
  %v669 = vadd.f32 %v573, %v668
  %v670 = vpop.f32.mrb[0].mxu0
  %671 = vdwg.mxu0
  %672 = vadd.xlane.f32.xlu0 %v658
  %v673 = vpop.xlane.xlu0 %672
  %674 = vadd.xlane.f32.xlu0 %v661
  %v675 = vpop.xlane.xlu0 %674
  %676 = vadd.xlane.f32.xlu0 %v666
  %v677 = vpop.xlane.xlu0 %676
  %678 = vadd.xlane.f32.xlu0 %v669
  %v679 = vpop.xlane.xlu0 %678
  %v680 = vmul.f32 %v658, %v658
  %v681 = vmul.f32 %v661, %v661
  %v682 = vmul.f32 %v666, %v666
  %v683 = vmul.f32 %v669, %v669
  %684 = vadd.xlane.f32.xlu0 %v680
  %v685 = vpop.xlane.xlu0 %684
  %686 = vadd.xlane.f32.xlu0 %v681
  %v687 = vpop.xlane.xlu0 %686
  %688 = vadd.xlane.f32.xlu0 %v682
  %v689 = vpop.xlane.xlu0 %688
  %690 = vadd.xlane.f32.xlu0 %v683
  %v691 = vpop.xlane.xlu0 %690
  %v692 = vmul.f32 %v673, 0.0078125
  %v693 = vmul.f32 %v675, 0.0078125
  %v694 = vmul.f32 %v677, 0.0078125
  %v695 = vmul.f32 %v679, 0.0078125
  %v696 = vmul.f32 %v685, 0.0078125
  %v697 = vmul.f32 %v687, 0.0078125
  %v698 = vmul.f32 %v689, 0.0078125
  %v699 = vmul.f32 %v691, 0.0078125
  %v700 = vmul.f32 %v692, %v692
  %v701 = vmul.f32 %v693, %v693
  %v702 = vmul.f32 %v694, %v694
  %v703 = vmul.f32 %v695, %v695
  %v704 = vsub.f32 %v696, %v700
  %v705 = vsub.f32 %v697, %v701
  %v706 = vsub.f32 %v698, %v702
  %v707 = vsub.f32 %v699, %v703
  %v708 = vmax.f32 %v704, 0.0
  %v709 = vmax.f32 %v705, 0.0
  %v710 = vmax.f32 %v706, 0.0
  %v711 = vmax.f32 %v707, 0.0
  %v712 = vsub.f32 %v658, %v692
  %v713 = vsub.f32 %v661, %v693
  %v714 = vsub.f32 %v666, %v694
  %v715 = vsub.f32 %v669, %v695
  %v716 = vadd.f32 %v708, 1e-05
  %v717 = vadd.f32 %v709, 1e-05
  %v718 = vadd.f32 %v710, 1e-05
  %v719 = vadd.f32 %v711, 1e-05
  %v720 = vrsqrt.pop %v716
  %v721 = vrsqrt.pop %v717
  %v722 = vrsqrt.pop %v718
  %v723 = vrsqrt.pop %v719
  %v724 = vmul.f32 %v712, %v720
  %v725 = vmul.f32 %v713, %v721
  %v726 = vmul.f32 %v714, %v722
  %v727 = vmul.f32 %v715, %v723
  %v728 = vld [vmem:[%s11] sm:$0x1]
  %v730 = vlaneseq
  %v731 = vshrl.u32 %v730, 7
  %v732 = vsub.s32 0, %v731
  %v733 = vrot.slane %v728, %v732
  %v735 = vmul.f32 %v724, %v733
  %v736 = vmul.f32 %v725, %v733
  %v737 = vmul.f32 %v726, %v733
  %v738 = vmul.f32 %v727, %v733
  %v739 = vld [vmem:[%s12] sm:$0x1]
  %v741 = vlaneseq
  %v742 = vshrl.u32 %v741, 7
  %v743 = vsub.s32 0, %v742
  %v744 = vrot.slane %v739, %v743
  %v746 = vadd.f32 %v735, %v744
  %v747 = vadd.f32 %v736, %v744
  %v748 = vadd.f32 %v737, %v744
  %v749 = vadd.f32 %v738, %v744
  %750 = vst [vmem:[%s13] sm:$0xff] %v746
  %751 = vst [vmem:[%s13 + $0x8] sm:$0xff] %v747
  %752 = vst [vmem:[%s13 + $0x10] sm:$0xff] %v748
  %753 = vst [vmem:[%s13 + $0x18] sm:$0xff] %v749
  // Predicated region
  $region54: #{gnn_forward.34} parent=0 // pred_check
    _
  $region55: #{gnn_forward.34} parent=0 // pred_check_branch
    %755 = sbr.rel (0) target = $region57
  $region56: #{gnn_forward.34} parent=0 // pred_region
    _
  $region57: #{gnn_forward.34} parent=0 // pred_fallthru
    _
  // Predicated region
  $region58: #{gnn_forward.34} parent=0 // pred_check
    _
  $region59: #{gnn_forward.34} parent=0 // pred_check_branch
    %757 = sbr.rel (0) target = $region61
  $region60: #{gnn_forward.34} parent=0 // pred_region
    _
  $region61: #{gnn_forward.34} parent=0 // pred_fallthru
    _

// kernel: gnn_forward.33
$region0: #{gnn_forward.33}
  #allocation0 [shape = 'u32[]', space=smem, size = 0x4, offset = 0x4, fixed_abs, tag = 'smem constant byte address 0x4 - core index']
  #allocation1 [shape = 'u32[144,128]{1,0:T(1,128)}', space=vmem, size = 0x12000, scoped, tag = 'internal scratch']
  %s0 = inlined_call_operand.vmem [shape: f32[32,128], index: 0, kind: input, shape index: {}]
  %s1 = inlined_call_operand.vmem [shape: f32[32,128], index: 1, kind: input, shape index: {}]
  %s2 = inlined_call_operand.vmem [shape: f32[32,128], index: 2, kind: input, shape index: {}, may-alias: {2,17}]
  %s3 = inlined_call_operand.vmem [shape: f32[32,128], index: 3, kind: input, shape index: {}]
  %s4 = inlined_call_operand.vmem [shape: bf16[128,128], index: 4, kind: input, shape index: {}]
  %s5 = inlined_call_operand.vmem [shape: bf16[128,128], index: 5, kind: input, shape index: {}]
  %s6 = inlined_call_operand.vmem [shape: bf16[128,128], index: 6, kind: input, shape index: {}]
  %s7 = inlined_call_operand.vmem [shape: bf16[128,128], index: 7, kind: input, shape index: {}]
  %s8 = inlined_call_operand.vmem [shape: f32[1,128], index: 8, kind: input, shape index: {}]
  %s9 = inlined_call_operand.vmem [shape: bf16[128,128], index: 9, kind: input, shape index: {}]
  %s10 = inlined_call_operand.vmem [shape: f32[1,128], index: 10, kind: input, shape index: {}]
  %s11 = inlined_call_operand.vmem [shape: bf16[128,128], index: 11, kind: input, shape index: {}]
  %s12 = inlined_call_operand.vmem [shape: f32[1,128], index: 12, kind: input, shape index: {}]
  %s13 = inlined_call_operand.vmem [shape: bf16[128,128], index: 13, kind: input, shape index: {}]
  %s14 = inlined_call_operand.vmem [shape: f32[1,128], index: 14, kind: input, shape index: {}]
  %s15 = inlined_call_operand.vmem [shape: f32[1,128], index: 15, kind: input, shape index: {}]
  %s16 = inlined_call_operand.vmem [shape: f32[1,128], index: 16, kind: input, shape index: {}]
  %s17 = inlined_call_operand.vmem [shape: f32[32,128], index: 17, kind: input, shape index: {}, may-alias: {2,17}]
  %s18 = inlined_call_operand.vmem [shape: f32[32,128], index: 18, kind: output, shape index: {}]
  %s19 = sld [smem:[#allocation0]]
  $region82: #{gnn_forward.33} parent=0
    _
  %s21 = ssub.s32 1, %s19
  %s22 = scalar_select 0, %s21, %s19
  // Predicated region
  $region2: #{gnn_forward.33} parent=0 // pred_check
    _
  $region3: #{gnn_forward.33} parent=0 // pred_check_branch
    %24 = sbr.rel (0) target = $region5
  $region4: #{gnn_forward.33} parent=0 // pred_region
    _
  $region5: #{gnn_forward.33} parent=0 // pred_fallthru
    _
  // Predicated region
  $region6: #{gnn_forward.33} parent=0 // pred_check
    _
  $region7: #{gnn_forward.33} parent=0 // pred_check_branch
    %26 = sbr.rel (0) target = $region9
  $region8: #{gnn_forward.33} parent=0 // pred_region
    _
  $region9: #{gnn_forward.33} parent=0 // pred_fallthru
    _
  // Predicated region
  $region10: #{gnn_forward.33} parent=0 // pred_check
    _
  $region11: #{gnn_forward.33} parent=0 // pred_check_branch
    %28 = sbr.rel (0) target = $region13
  $region12: #{gnn_forward.33} parent=0 // pred_region
    _
  $region13: #{gnn_forward.33} parent=0 // pred_fallthru
    _
  // Predicated region
  $region14: #{gnn_forward.33} parent=0 // pred_check
    _
  $region15: #{gnn_forward.33} parent=0 // pred_check_branch
    %30 = sbr.rel (0) target = $region17
  $region16: #{gnn_forward.33} parent=0 // pred_region
    _
  $region17: #{gnn_forward.33} parent=0 // pred_fallthru
    _
  // Predicated region
  $region18: #{gnn_forward.33} parent=0 // pred_check
    _
  $region19: #{gnn_forward.33} parent=0 // pred_check_branch
    %32 = sbr.rel (0) target = $region21
  $region20: #{gnn_forward.33} parent=0 // pred_region
    _
  $region21: #{gnn_forward.33} parent=0 // pred_fallthru
    _
  // Predicated region
  $region22: #{gnn_forward.33} parent=0 // pred_check
    _
  $region23: #{gnn_forward.33} parent=0 // pred_check_branch
    %34 = sbr.rel (0) target = $region25
  $region24: #{gnn_forward.33} parent=0 // pred_region
    _
  $region25: #{gnn_forward.33} parent=0 // pred_fallthru
    _
  // Predicated region
  $region26: #{gnn_forward.33} parent=0 // pred_check
    _
  $region27: #{gnn_forward.33} parent=0 // pred_check_branch
    %36 = sbr.rel (0) target = $region29
  $region28: #{gnn_forward.33} parent=0 // pred_region
    _
  $region29: #{gnn_forward.33} parent=0 // pred_fallthru
    _
  // Predicated region
  $region30: #{gnn_forward.33} parent=0 // pred_check
    _
  $region31: #{gnn_forward.33} parent=0 // pred_check_branch
    %38 = sbr.rel (0) target = $region33
  $region32: #{gnn_forward.33} parent=0 // pred_region
    _
  $region33: #{gnn_forward.33} parent=0 // pred_fallthru
    _
  // Predicated region
  $region34: #{gnn_forward.33} parent=0 // pred_check
    _
  $region35: #{gnn_forward.33} parent=0 // pred_check_branch
    %40 = sbr.rel (0) target = $region37
  $region36: #{gnn_forward.33} parent=0 // pred_region
    _
  $region37: #{gnn_forward.33} parent=0 // pred_fallthru
    _
  // Predicated region
  $region38: #{gnn_forward.33} parent=0 // pred_check
    _
  $region39: #{gnn_forward.33} parent=0 // pred_check_branch
    %42 = sbr.rel (0) target = $region41
  $region40: #{gnn_forward.33} parent=0 // pred_region
    _
  $region41: #{gnn_forward.33} parent=0 // pred_fallthru
    _
  // Predicated region
  $region42: #{gnn_forward.33} parent=0 // pred_check
    _
  $region43: #{gnn_forward.33} parent=0 // pred_check_branch
    %44 = sbr.rel (0) target = $region45
  $region44: #{gnn_forward.33} parent=0 // pred_region
    _
  $region45: #{gnn_forward.33} parent=0 // pred_fallthru
    _
  // Predicated region
  $region46: #{gnn_forward.33} parent=0 // pred_check
    _
  $region47: #{gnn_forward.33} parent=0 // pred_check_branch
    %46 = sbr.rel (0) target = $region49
  $region48: #{gnn_forward.33} parent=0 // pred_region
    _
  $region49: #{gnn_forward.33} parent=0 // pred_fallthru
    _
  // Predicated region
  $region50: #{gnn_forward.33} parent=0 // pred_check
    _
  $region51: #{gnn_forward.33} parent=0 // pred_check_branch
    %48 = sbr.rel (0) target = $region53
  $region52: #{gnn_forward.33} parent=0 // pred_region
    _
  $region53: #{gnn_forward.33} parent=0 // pred_fallthru
    _
  // Predicated region
  $region54: #{gnn_forward.33} parent=0 // pred_check
    _
  $region55: #{gnn_forward.33} parent=0 // pred_check_branch
    %50 = sbr.rel (0) target = $region57
  $region56: #{gnn_forward.33} parent=0 // pred_region
    _
  $region57: #{gnn_forward.33} parent=0 // pred_fallthru
    _
  // Predicated region
  $region58: #{gnn_forward.33} parent=0 // pred_check
    _
  $region59: #{gnn_forward.33} parent=0 // pred_check_branch
    %52 = sbr.rel (0) target = $region61
  $region60: #{gnn_forward.33} parent=0 // pred_region
    _
  $region61: #{gnn_forward.33} parent=0 // pred_fallthru
    _
  // Predicated region
  $region62: #{gnn_forward.33} parent=0 // pred_check
    _
  $region63: #{gnn_forward.33} parent=0 // pred_check_branch
    %54 = sbr.rel (0) target = $region65
  $region64: #{gnn_forward.33} parent=0 // pred_region
    _
  $region65: #{gnn_forward.33} parent=0 // pred_fallthru
    _
  // Predicated region
  $region66: #{gnn_forward.33} parent=0 // pred_check
    _
  $region67: #{gnn_forward.33} parent=0 // pred_check_branch
    %56 = sbr.rel (0) target = $region69
  $region68: #{gnn_forward.33} parent=0 // pred_region
    _
  $region69: #{gnn_forward.33} parent=0 // pred_fallthru
    _
  // Predicated region
  $region70: #{gnn_forward.33} parent=0 // pred_check
    _
  $region71: #{gnn_forward.33} parent=0 // pred_check_branch
    %58 = sbr.rel (0) target = $region73
  $region72: #{gnn_forward.33} parent=0 // pred_region
    _
  $region73: #{gnn_forward.33} parent=0 // pred_fallthru
    _
  %v60 = vld [vmem:[%s0] sm:$0xff]
  %v61 = vld [vmem:[%s0 + $0x8] sm:$0xff]
  %v62 = vld [vmem:[%s0 + $0x10] sm:$0xff]
  %v63 = vld [vmem:[%s0 + $0x18] sm:$0xff]
  %v64 = vpack.c.bf16 %v61, %v60
  %v65 = vpack.c.bf16 %v63, %v62
  %v66 = vld [vmem:[%s4] sm:$0xf]
  %v67 = vld [vmem:[%s4 + $0x4] sm:$0xf]
  %v68 = vld [vmem:[%s4 + $0x8] sm:$0xf]
  %v69 = vld [vmem:[%s4 + $0xc] sm:$0xf]
  %v70 = vld [vmem:[%s4 + $0x10] sm:$0xf]
  %v71 = vld [vmem:[%s4 + $0x14] sm:$0xf]
  %v72 = vld [vmem:[%s4 + $0x18] sm:$0xf]
  %v73 = vld [vmem:[%s4 + $0x1c] sm:$0xf]
  %v74 = vld [vmem:[%s4 + $0x20] sm:$0xf]
  %v75 = vld [vmem:[%s4 + $0x24] sm:$0xf]
  %v76 = vld [vmem:[%s4 + $0x28] sm:$0xf]
  %v77 = vld [vmem:[%s4 + $0x2c] sm:$0xf]
  %v78 = vld [vmem:[%s4 + $0x30] sm:$0xf]
  %v79 = vld [vmem:[%s4 + $0x34] sm:$0xf]
  %v80 = vld [vmem:[%s4 + $0x38] sm:$0xf]
  %v81 = vld [vmem:[%s4 + $0x3c] sm:$0xf]
  %v82 = vld [vmem:[%s1] sm:$0xff]
  %v83 = vld [vmem:[%s1 + $0x8] sm:$0xff]
  %v84 = vld [vmem:[%s1 + $0x10] sm:$0xff]
  %v85 = vld [vmem:[%s1 + $0x18] sm:$0xff]
  %v86 = vpack.c.bf16 %v83, %v82
  %v87 = vpack.c.bf16 %v85, %v84
  %v88 = vld [vmem:[%s5] sm:$0xf]
  %v89 = vld [vmem:[%s5 + $0x4] sm:$0xf]
  %v90 = vld [vmem:[%s5 + $0x8] sm:$0xf]
  %v91 = vld [vmem:[%s5 + $0xc] sm:$0xf]
  %v92 = vld [vmem:[%s5 + $0x10] sm:$0xf]
  %v93 = vld [vmem:[%s5 + $0x14] sm:$0xf]
  %v94 = vld [vmem:[%s5 + $0x18] sm:$0xf]
  %v95 = vld [vmem:[%s5 + $0x1c] sm:$0xf]
  %v96 = vld [vmem:[%s5 + $0x20] sm:$0xf]
  %v97 = vld [vmem:[%s5 + $0x24] sm:$0xf]
  %v98 = vld [vmem:[%s5 + $0x28] sm:$0xf]
  %v99 = vld [vmem:[%s5 + $0x2c] sm:$0xf]
  %v100 = vld [vmem:[%s5 + $0x30] sm:$0xf]
  %v101 = vld [vmem:[%s5 + $0x34] sm:$0xf]
  %v102 = vld [vmem:[%s5 + $0x38] sm:$0xf]
  %v103 = vld [vmem:[%s5 + $0x3c] sm:$0xf]
  %v120 = vunpack.c.l.b16 %v88
  %v121 = vunpack.c.l.b16 %v89
  %v122 = vunpack.c.l.b16 %v90
  %v123 = vunpack.c.l.b16 %v91
  %v124 = vunpack.c.l.b16 %v92
  %v125 = vunpack.c.l.b16 %v93
  %v126 = vunpack.c.l.b16 %v94
  %v127 = vunpack.c.l.b16 %v95
  %v128 = vunpack.c.l.b16 %v96
  %v129 = vunpack.c.l.b16 %v97
  %v130 = vunpack.c.l.b16 %v98
  %v131 = vunpack.c.l.b16 %v99
  %v132 = vunpack.c.l.b16 %v100
  %v133 = vunpack.c.l.b16 %v101
  %v134 = vunpack.c.l.b16 %v102
  %v135 = vunpack.c.l.b16 %v103
  %v136 = vpack.c.b16 %v121, %v120
  %v137 = vpack.c.b16 %v123, %v122
  %v138 = vpack.c.b16 %v125, %v124
  %v139 = vpack.c.b16 %v127, %v126
  %v140 = vpack.c.b16 %v129, %v128
  %v141 = vpack.c.b16 %v131, %v130
  %v142 = vpack.c.b16 %v133, %v132
  %v143 = vpack.c.b16 %v135, %v134
  %152 = vmatprep.subr.bf16.mxu0 0
  %153 = vmatpush1.bf16.msra.mxu0 %v136
  %154 = vmatprep.subr.bf16.mxu0 0
  %155 = vmatpush1.bf16.msra.mxu0 %v137
  %156 = vmatprep.subr.bf16.mxu0 0
  %157 = vmatpush1.bf16.msra.mxu0 %v138
  %158 = vmatprep.subr.bf16.mxu0 0
  %159 = vmatpush1.bf16.msra.mxu0 %v139
  %160 = vmatprep.subr.bf16.mxu0 0
  %161 = vmatpush1.bf16.msra.mxu0 %v140
  %162 = vmatprep.subr.bf16.mxu0 0
  %163 = vmatpush1.bf16.msra.mxu0 %v141
  %164 = vmatprep.subr.bf16.mxu0 0
  %165 = vmatpush1.bf16.msra.mxu0 %v142
  %166 = vmatprep.subr.bf16.mxu0 0
  %167 = vmatpush1.bf16.msra.mxu0 %v143
  %168 = vmatprep.subr.bf16.mxu0 0
  %169 = vmatpush1.bf16.msra.mxu0 0
  %170 = vmatprep.subr.bf16.mxu0 0
  %171 = vmatpush1.bf16.msra.mxu0 0
  %172 = vmatprep.subr.bf16.mxu0 0
  %173 = vmatpush1.bf16.msra.mxu0 0
  %174 = vmatprep.subr.bf16.mxu0 0
  %175 = vmatpush1.bf16.msra.mxu0 0
  %176 = vmatprep.subr.bf16.mxu0 0
  %177 = vmatpush1.bf16.msra.mxu0 0
  %178 = vmatprep.subr.bf16.mxu0 0
  %179 = vmatpush1.bf16.msra.mxu0 0
  %180 = vmatprep.subr.bf16.mxu0 0
  %181 = vmatpush1.bf16.msra.mxu0 0
  %182 = vmatprep.subr.bf16.mxu0 0
  %183 = vmatpush1.bf16.msra.mxu0 0
  %184 = vmatprep.mubr.bf16.mxu0 0
  %185 = vmatmul.mubr.bf16.gmra.mrb[0].mxu0 %v86
  %v186 = vpop.f32.mrb[0].mxu0
  %v187 = vadd.f32 0.0, %v186
  %v188 = vpop.f32.mrb[0].mxu0
  %v189 = vpop.f32.mrb[0].mxu0
  %v190 = vadd.f32 0.0, %v189
  %v191 = vpop.f32.mrb[0].mxu0
  %192 = vmatprep.mubr.bf16.mxu0 0
  %193 = vmatmul.mubr.bf16.gmra.mrb[0].mxu0 %v87
  %v194 = vpop.f32.mrb[0].mxu0
  %v195 = vadd.f32 0.0, %v194
  %v196 = vpop.f32.mrb[0].mxu0
  %v197 = vpop.f32.mrb[0].mxu0
  %v198 = vadd.f32 0.0, %v197
  %v199 = vpop.f32.mrb[0].mxu0
  %200 = vdwg.mxu0
  %v217 = vunpack.c.l.b16 %v66
  %v218 = vunpack.c.l.b16 %v67
  %v219 = vunpack.c.l.b16 %v68
  %v220 = vunpack.c.l.b16 %v69
  %v221 = vunpack.c.l.b16 %v70
  %v222 = vunpack.c.l.b16 %v71
  %v223 = vunpack.c.l.b16 %v72
  %v224 = vunpack.c.l.b16 %v73
  %v225 = vunpack.c.l.b16 %v74
  %v226 = vunpack.c.l.b16 %v75
  %v227 = vunpack.c.l.b16 %v76
  %v228 = vunpack.c.l.b16 %v77
  %v229 = vunpack.c.l.b16 %v78
  %v230 = vunpack.c.l.b16 %v79
  %v231 = vunpack.c.l.b16 %v80
  %v232 = vunpack.c.l.b16 %v81
  %v233 = vpack.c.b16 %v218, %v217
  %v234 = vpack.c.b16 %v220, %v219
  %v235 = vpack.c.b16 %v222, %v221
  %v236 = vpack.c.b16 %v224, %v223
  %v237 = vpack.c.b16 %v226, %v225
  %v238 = vpack.c.b16 %v228, %v227
  %v239 = vpack.c.b16 %v230, %v229
  %v240 = vpack.c.b16 %v232, %v231
  %249 = vmatprep.subr.bf16.mxu0 0
  %250 = vmatpush1.bf16.msra.mxu0 %v233
  %251 = vmatprep.subr.bf16.mxu0 0
  %252 = vmatpush1.bf16.msra.mxu0 %v234
  %253 = vmatprep.subr.bf16.mxu0 0
  %254 = vmatpush1.bf16.msra.mxu0 %v235
  %255 = vmatprep.subr.bf16.mxu0 0
  %256 = vmatpush1.bf16.msra.mxu0 %v236
  %257 = vmatprep.subr.bf16.mxu0 0
  %258 = vmatpush1.bf16.msra.mxu0 %v237
  %259 = vmatprep.subr.bf16.mxu0 0
  %260 = vmatpush1.bf16.msra.mxu0 %v238
  %261 = vmatprep.subr.bf16.mxu0 0
  %262 = vmatpush1.bf16.msra.mxu0 %v239
  %263 = vmatprep.subr.bf16.mxu0 0
  %264 = vmatpush1.bf16.msra.mxu0 %v240
  %265 = vmatprep.subr.bf16.mxu0 0
  %266 = vmatpush1.bf16.msra.mxu0 0
  %267 = vmatprep.subr.bf16.mxu0 0
  %268 = vmatpush1.bf16.msra.mxu0 0
  %269 = vmatprep.subr.bf16.mxu0 0
  %270 = vmatpush1.bf16.msra.mxu0 0
  %271 = vmatprep.subr.bf16.mxu0 0
  %272 = vmatpush1.bf16.msra.mxu0 0
  %273 = vmatprep.subr.bf16.mxu0 0
  %274 = vmatpush1.bf16.msra.mxu0 0
  %275 = vmatprep.subr.bf16.mxu0 0
  %276 = vmatpush1.bf16.msra.mxu0 0
  %277 = vmatprep.subr.bf16.mxu0 0
  %278 = vmatpush1.bf16.msra.mxu0 0
  %279 = vmatprep.subr.bf16.mxu0 0
  %280 = vmatpush1.bf16.msra.mxu0 0
  %281 = vmatprep.mubr.bf16.mxu0 0
  %282 = vmatmul.mubr.bf16.gmra.mrb[0].mxu0 %v64
  %v283 = vpop.f32.mrb[0].mxu0
  %v284 = vadd.f32 %v187, %v283
  %v285 = vpop.f32.mrb[0].mxu0
  %v286 = vpop.f32.mrb[0].mxu0
  %v287 = vadd.f32 %v190, %v286
  %v288 = vpop.f32.mrb[0].mxu0
  %289 = vmatprep.mubr.bf16.mxu0 0
  %290 = vmatmul.mubr.bf16.gmra.mrb[0].mxu0 %v65
  %v291 = vpop.f32.mrb[0].mxu0
  %v292 = vadd.f32 %v195, %v291
  %v293 = vpop.f32.mrb[0].mxu0
  %v294 = vpop.f32.mrb[0].mxu0
  %v295 = vadd.f32 %v198, %v294
  %v296 = vpop.f32.mrb[0].mxu0
  %297 = vdwg.mxu0
  %v298 = vld [vmem:[%s2] sm:$0xff]
  %v299 = vld [vmem:[%s2 + $0x8] sm:$0xff]
  %v300 = vld [vmem:[%s2 + $0x10] sm:$0xff]
  %v301 = vld [vmem:[%s2 + $0x18] sm:$0xff]
  %v302 = vpack.c.bf16 %v299, %v298
  %v303 = vpack.c.bf16 %v301, %v300
  %v304 = vld [vmem:[%s6] sm:$0xf]
  %v305 = vld [vmem:[%s6 + $0x4] sm:$0xf]
  %v306 = vld [vmem:[%s6 + $0x8] sm:$0xf]
  %v307 = vld [vmem:[%s6 + $0xc] sm:$0xf]
  %v308 = vld [vmem:[%s6 + $0x10] sm:$0xf]
  %v309 = vld [vmem:[%s6 + $0x14] sm:$0xf]
  %v310 = vld [vmem:[%s6 + $0x18] sm:$0xf]
  %v311 = vld [vmem:[%s6 + $0x1c] sm:$0xf]
  %v312 = vld [vmem:[%s6 + $0x20] sm:$0xf]
  %v313 = vld [vmem:[%s6 + $0x24] sm:$0xf]
  %v314 = vld [vmem:[%s6 + $0x28] sm:$0xf]
  %v315 = vld [vmem:[%s6 + $0x2c] sm:$0xf]
  %v316 = vld [vmem:[%s6 + $0x30] sm:$0xf]
  %v317 = vld [vmem:[%s6 + $0x34] sm:$0xf]
  %v318 = vld [vmem:[%s6 + $0x38] sm:$0xf]
  %v319 = vld [vmem:[%s6 + $0x3c] sm:$0xf]
  %v336 = vunpack.c.l.b16 %v304
  %v337 = vunpack.c.l.b16 %v305
  %v338 = vunpack.c.l.b16 %v306
  %v339 = vunpack.c.l.b16 %v307
  %v340 = vunpack.c.l.b16 %v308
  %v341 = vunpack.c.l.b16 %v309
  %v342 = vunpack.c.l.b16 %v310
  %v343 = vunpack.c.l.b16 %v311
  %v344 = vunpack.c.l.b16 %v312
  %v345 = vunpack.c.l.b16 %v313
  %v346 = vunpack.c.l.b16 %v314
  %v347 = vunpack.c.l.b16 %v315
  %v348 = vunpack.c.l.b16 %v316
  %v349 = vunpack.c.l.b16 %v317
  %v350 = vunpack.c.l.b16 %v318
  %v351 = vunpack.c.l.b16 %v319
  %v352 = vpack.c.b16 %v337, %v336
  %v353 = vpack.c.b16 %v339, %v338
  %v354 = vpack.c.b16 %v341, %v340
  %v355 = vpack.c.b16 %v343, %v342
  %v356 = vpack.c.b16 %v345, %v344
  %v357 = vpack.c.b16 %v347, %v346
  %v358 = vpack.c.b16 %v349, %v348
  %v359 = vpack.c.b16 %v351, %v350
  %368 = vmatprep.subr.bf16.mxu0 0
  %369 = vmatpush1.bf16.msra.mxu0 %v352
  %370 = vmatprep.subr.bf16.mxu0 0
  %371 = vmatpush1.bf16.msra.mxu0 %v353
  %372 = vmatprep.subr.bf16.mxu0 0
  %373 = vmatpush1.bf16.msra.mxu0 %v354
  %374 = vmatprep.subr.bf16.mxu0 0
  %375 = vmatpush1.bf16.msra.mxu0 %v355
  %376 = vmatprep.subr.bf16.mxu0 0
  %377 = vmatpush1.bf16.msra.mxu0 %v356
  %378 = vmatprep.subr.bf16.mxu0 0
  %379 = vmatpush1.bf16.msra.mxu0 %v357
  %380 = vmatprep.subr.bf16.mxu0 0
  %381 = vmatpush1.bf16.msra.mxu0 %v358
  %382 = vmatprep.subr.bf16.mxu0 0
  %383 = vmatpush1.bf16.msra.mxu0 %v359
  %384 = vmatprep.subr.bf16.mxu0 0
  %385 = vmatpush1.bf16.msra.mxu0 0
  %386 = vmatprep.subr.bf16.mxu0 0
  %387 = vmatpush1.bf16.msra.mxu0 0
  %388 = vmatprep.subr.bf16.mxu0 0
  %389 = vmatpush1.bf16.msra.mxu0 0
  %390 = vmatprep.subr.bf16.mxu0 0
  %391 = vmatpush1.bf16.msra.mxu0 0
  %392 = vmatprep.subr.bf16.mxu0 0
  %393 = vmatpush1.bf16.msra.mxu0 0
  %394 = vmatprep.subr.bf16.mxu0 0
  %395 = vmatpush1.bf16.msra.mxu0 0
  %396 = vmatprep.subr.bf16.mxu0 0
  %397 = vmatpush1.bf16.msra.mxu0 0
  %398 = vmatprep.subr.bf16.mxu0 0
  %399 = vmatpush1.bf16.msra.mxu0 0
  %400 = vmatprep.mubr.bf16.mxu0 0
  %401 = vmatmul.mubr.bf16.gmra.mrb[0].mxu0 %v302
  %v402 = vpop.f32.mrb[0].mxu0
  %v403 = vadd.f32 0.0, %v402
  %v404 = vpop.f32.mrb[0].mxu0
  %v405 = vpop.f32.mrb[0].mxu0
  %v406 = vadd.f32 0.0, %v405
  %v407 = vpop.f32.mrb[0].mxu0
  %408 = vmatprep.mubr.bf16.mxu0 0
  %409 = vmatmul.mubr.bf16.gmra.mrb[0].mxu0 %v303
  %v410 = vpop.f32.mrb[0].mxu0
  %v411 = vadd.f32 0.0, %v410
  %v412 = vpop.f32.mrb[0].mxu0
  %v413 = vpop.f32.mrb[0].mxu0
  %v414 = vadd.f32 0.0, %v413
  %v415 = vpop.f32.mrb[0].mxu0
  %416 = vdwg.mxu0
  %v417 = vadd.f32 %v284, %v403
  %v418 = vadd.f32 %v287, %v406
  %v419 = vadd.f32 %v292, %v411
  %v420 = vadd.f32 %v295, %v414
  %v421 = vld [vmem:[%s3] sm:$0xff]
  %v422 = vld [vmem:[%s3 + $0x8] sm:$0xff]
  %v423 = vld [vmem:[%s3 + $0x10] sm:$0xff]
  %v424 = vld [vmem:[%s3 + $0x18] sm:$0xff]
  %v425 = vpack.c.bf16 %v422, %v421
  %v426 = vpack.c.bf16 %v424, %v423
  %v427 = vld [vmem:[%s7] sm:$0xf]
  %v428 = vld [vmem:[%s7 + $0x4] sm:$0xf]
  %v429 = vld [vmem:[%s7 + $0x8] sm:$0xf]
  %v430 = vld [vmem:[%s7 + $0xc] sm:$0xf]
  %v431 = vld [vmem:[%s7 + $0x10] sm:$0xf]
  %v432 = vld [vmem:[%s7 + $0x14] sm:$0xf]
  %v433 = vld [vmem:[%s7 + $0x18] sm:$0xf]
  %v434 = vld [vmem:[%s7 + $0x1c] sm:$0xf]
  %v435 = vld [vmem:[%s7 + $0x20] sm:$0xf]
  %v436 = vld [vmem:[%s7 + $0x24] sm:$0xf]
  %v437 = vld [vmem:[%s7 + $0x28] sm:$0xf]
  %v438 = vld [vmem:[%s7 + $0x2c] sm:$0xf]
  %v439 = vld [vmem:[%s7 + $0x30] sm:$0xf]
  %v440 = vld [vmem:[%s7 + $0x34] sm:$0xf]
  %v441 = vld [vmem:[%s7 + $0x38] sm:$0xf]
  %v442 = vld [vmem:[%s7 + $0x3c] sm:$0xf]
  %v459 = vunpack.c.l.b16 %v427
  %v460 = vunpack.c.l.b16 %v428
  %v461 = vunpack.c.l.b16 %v429
  %v462 = vunpack.c.l.b16 %v430
  %v463 = vunpack.c.l.b16 %v431
  %v464 = vunpack.c.l.b16 %v432
  %v465 = vunpack.c.l.b16 %v433
  %v466 = vunpack.c.l.b16 %v434
  %v467 = vunpack.c.l.b16 %v435
  %v468 = vunpack.c.l.b16 %v436
  %v469 = vunpack.c.l.b16 %v437
  %v470 = vunpack.c.l.b16 %v438
  %v471 = vunpack.c.l.b16 %v439
  %v472 = vunpack.c.l.b16 %v440
  %v473 = vunpack.c.l.b16 %v441
  %v474 = vunpack.c.l.b16 %v442
  %v475 = vpack.c.b16 %v460, %v459
  %v476 = vpack.c.b16 %v462, %v461
  %v477 = vpack.c.b16 %v464, %v463
  %v478 = vpack.c.b16 %v466, %v465
  %v479 = vpack.c.b16 %v468, %v467
  %v480 = vpack.c.b16 %v470, %v469
  %v481 = vpack.c.b16 %v472, %v471
  %v482 = vpack.c.b16 %v474, %v473
  %491 = vmatprep.subr.bf16.mxu0 0
  %492 = vmatpush1.bf16.msra.mxu0 %v475
  %493 = vmatprep.subr.bf16.mxu0 0
  %494 = vmatpush1.bf16.msra.mxu0 %v476
  %495 = vmatprep.subr.bf16.mxu0 0
  %496 = vmatpush1.bf16.msra.mxu0 %v477
  %497 = vmatprep.subr.bf16.mxu0 0
  %498 = vmatpush1.bf16.msra.mxu0 %v478
  %499 = vmatprep.subr.bf16.mxu0 0
  %500 = vmatpush1.bf16.msra.mxu0 %v479
  %501 = vmatprep.subr.bf16.mxu0 0
  %502 = vmatpush1.bf16.msra.mxu0 %v480
  %503 = vmatprep.subr.bf16.mxu0 0
  %504 = vmatpush1.bf16.msra.mxu0 %v481
  %505 = vmatprep.subr.bf16.mxu0 0
  %506 = vmatpush1.bf16.msra.mxu0 %v482
  %507 = vmatprep.subr.bf16.mxu0 0
  %508 = vmatpush1.bf16.msra.mxu0 0
  %509 = vmatprep.subr.bf16.mxu0 0
  %510 = vmatpush1.bf16.msra.mxu0 0
  %511 = vmatprep.subr.bf16.mxu0 0
  %512 = vmatpush1.bf16.msra.mxu0 0
  %513 = vmatprep.subr.bf16.mxu0 0
  %514 = vmatpush1.bf16.msra.mxu0 0
  %515 = vmatprep.subr.bf16.mxu0 0
  %516 = vmatpush1.bf16.msra.mxu0 0
  %517 = vmatprep.subr.bf16.mxu0 0
  %518 = vmatpush1.bf16.msra.mxu0 0
  %519 = vmatprep.subr.bf16.mxu0 0
  %520 = vmatpush1.bf16.msra.mxu0 0
  %521 = vmatprep.subr.bf16.mxu0 0
  %522 = vmatpush1.bf16.msra.mxu0 0
  %523 = vmatprep.mubr.bf16.mxu0 0
  %524 = vmatmul.mubr.bf16.gmra.mrb[0].mxu0 %v425
  %v525 = vpop.f32.mrb[0].mxu0
  %v526 = vadd.f32 0.0, %v525
  %v527 = vpop.f32.mrb[0].mxu0
  %v528 = vpop.f32.mrb[0].mxu0
  %v529 = vadd.f32 0.0, %v528
  %v530 = vpop.f32.mrb[0].mxu0
  %531 = vmatprep.mubr.bf16.mxu0 0
  %532 = vmatmul.mubr.bf16.gmra.mrb[0].mxu0 %v426
  %v533 = vpop.f32.mrb[0].mxu0
  %v534 = vadd.f32 0.0, %v533
  %v535 = vpop.f32.mrb[0].mxu0
  %v536 = vpop.f32.mrb[0].mxu0
  %v537 = vadd.f32 0.0, %v536
  %v538 = vpop.f32.mrb[0].mxu0
  %539 = vdwg.mxu0
  %v540 = vadd.f32 %v417, %v526
  %v541 = vadd.f32 %v418, %v529
  %v542 = vadd.f32 %v419, %v534
  %v543 = vadd.f32 %v420, %v537
  %v544 = vld [vmem:[%s8] sm:$0x1]
  %v546 = vlaneseq
  %v547 = vshrl.u32 %v546, 7
  %v548 = vsub.s32 0, %v547
  %v549 = vrot.slane %v544, %v548
  %v551 = vadd.f32 %v540, %v549
  %v552 = vadd.f32 %v541, %v549
  %v553 = vadd.f32 %v542, %v549
  %v554 = vadd.f32 %v543, %v549
  %v555 = vmax.f32 %v551, 0.0
  %v556 = vmax.f32 %v552, 0.0
  %v557 = vmax.f32 %v553, 0.0
  %v558 = vmax.f32 %v554, 0.0
  %v559 = vpack.c.bf16 %v556, %v555
  %v560 = vpack.c.bf16 %v558, %v557
  %v561 = vld [vmem:[%s9] sm:$0xf]
  %v562 = vld [vmem:[%s9 + $0x4] sm:$0xf]
  %v563 = vld [vmem:[%s9 + $0x8] sm:$0xf]
  %v564 = vld [vmem:[%s9 + $0xc] sm:$0xf]
  %v565 = vld [vmem:[%s9 + $0x10] sm:$0xf]
  %v566 = vld [vmem:[%s9 + $0x14] sm:$0xf]
  %v567 = vld [vmem:[%s9 + $0x18] sm:$0xf]
  %v568 = vld [vmem:[%s9 + $0x1c] sm:$0xf]
  %v569 = vld [vmem:[%s9 + $0x20] sm:$0xf]
  %v570 = vld [vmem:[%s9 + $0x24] sm:$0xf]
  %v571 = vld [vmem:[%s9 + $0x28] sm:$0xf]
  %v572 = vld [vmem:[%s9 + $0x2c] sm:$0xf]
  %v573 = vld [vmem:[%s9 + $0x30] sm:$0xf]
  %v574 = vld [vmem:[%s9 + $0x34] sm:$0xf]
  %v575 = vld [vmem:[%s9 + $0x38] sm:$0xf]
  %v576 = vld [vmem:[%s9 + $0x3c] sm:$0xf]
  %v577 = vld [vmem:[%s10] sm:$0x1]
  %v579 = vlaneseq
  %v580 = vshrl.u32 %v579, 7
  %v581 = vsub.s32 0, %v580
  %v582 = vrot.slane %v577, %v581
  %v600 = vunpack.c.l.b16 %v561
  %v601 = vunpack.c.l.b16 %v562
  %v602 = vunpack.c.l.b16 %v563
  %v603 = vunpack.c.l.b16 %v564
  %v604 = vunpack.c.l.b16 %v565
  %v605 = vunpack.c.l.b16 %v566
  %v606 = vunpack.c.l.b16 %v567
  %v607 = vunpack.c.l.b16 %v568
  %v608 = vunpack.c.l.b16 %v569
  %v609 = vunpack.c.l.b16 %v570
  %v610 = vunpack.c.l.b16 %v571
  %v611 = vunpack.c.l.b16 %v572
  %v612 = vunpack.c.l.b16 %v573
  %v613 = vunpack.c.l.b16 %v574
  %v614 = vunpack.c.l.b16 %v575
  %v615 = vunpack.c.l.b16 %v576
  %v616 = vpack.c.b16 %v601, %v600
  %v617 = vpack.c.b16 %v603, %v602
  %v618 = vpack.c.b16 %v605, %v604
  %v619 = vpack.c.b16 %v607, %v606
  %v620 = vpack.c.b16 %v609, %v608
  %v621 = vpack.c.b16 %v611, %v610
  %v622 = vpack.c.b16 %v613, %v612
  %v623 = vpack.c.b16 %v615, %v614
  %632 = vmatprep.subr.bf16.mxu0 0
  %633 = vmatpush1.bf16.msra.mxu0 %v616
  %634 = vmatprep.subr.bf16.mxu0 0
  %635 = vmatpush1.bf16.msra.mxu0 %v617
  %636 = vmatprep.subr.bf16.mxu0 0
  %637 = vmatpush1.bf16.msra.mxu0 %v618
  %638 = vmatprep.subr.bf16.mxu0 0
  %639 = vmatpush1.bf16.msra.mxu0 %v619
  %640 = vmatprep.subr.bf16.mxu0 0
  %641 = vmatpush1.bf16.msra.mxu0 %v620
  %642 = vmatprep.subr.bf16.mxu0 0
  %643 = vmatpush1.bf16.msra.mxu0 %v621
  %644 = vmatprep.subr.bf16.mxu0 0
  %645 = vmatpush1.bf16.msra.mxu0 %v622
  %646 = vmatprep.subr.bf16.mxu0 0
  %647 = vmatpush1.bf16.msra.mxu0 %v623
  %648 = vmatprep.subr.bf16.mxu0 0
  %649 = vmatpush1.bf16.msra.mxu0 0
  %650 = vmatprep.subr.bf16.mxu0 0
  %651 = vmatpush1.bf16.msra.mxu0 0
  %652 = vmatprep.subr.bf16.mxu0 0
  %653 = vmatpush1.bf16.msra.mxu0 0
  %654 = vmatprep.subr.bf16.mxu0 0
  %655 = vmatpush1.bf16.msra.mxu0 0
  %656 = vmatprep.subr.bf16.mxu0 0
  %657 = vmatpush1.bf16.msra.mxu0 0
  %658 = vmatprep.subr.bf16.mxu0 0
  %659 = vmatpush1.bf16.msra.mxu0 0
  %660 = vmatprep.subr.bf16.mxu0 0
  %661 = vmatpush1.bf16.msra.mxu0 0
  %662 = vmatprep.subr.bf16.mxu0 0
  %663 = vmatpush1.bf16.msra.mxu0 0
  %664 = vmatprep.mubr.bf16.mxu0 0
  %665 = vmatmul.mubr.bf16.gmra.mrb[0].mxu0 %v559
  %v666 = vpop.f32.mrb[0].mxu0
  %v667 = vadd.f32 %v582, %v666
  %v668 = vpop.f32.mrb[0].mxu0
  %v669 = vpop.f32.mrb[0].mxu0
  %v670 = vadd.f32 %v582, %v669
  %v671 = vpop.f32.mrb[0].mxu0
  %672 = vmatprep.mubr.bf16.mxu0 0
  %673 = vmatmul.mubr.bf16.gmra.mrb[0].mxu0 %v560
  %v674 = vpop.f32.mrb[0].mxu0
  %v675 = vadd.f32 %v582, %v674
  %v676 = vpop.f32.mrb[0].mxu0
  %v677 = vpop.f32.mrb[0].mxu0
  %v678 = vadd.f32 %v582, %v677
  %v679 = vpop.f32.mrb[0].mxu0
  %680 = vdwg.mxu0
  %v681 = vmax.f32 %v667, 0.0
  %v682 = vmax.f32 %v670, 0.0
  %v683 = vmax.f32 %v675, 0.0
  %v684 = vmax.f32 %v678, 0.0
  %v685 = vpack.c.bf16 %v682, %v681
  %v686 = vpack.c.bf16 %v684, %v683
  %v687 = vld [vmem:[%s11] sm:$0xf]
  %v688 = vld [vmem:[%s11 + $0x4] sm:$0xf]
  %v689 = vld [vmem:[%s11 + $0x8] sm:$0xf]
  %v690 = vld [vmem:[%s11 + $0xc] sm:$0xf]
  %v691 = vld [vmem:[%s11 + $0x10] sm:$0xf]
  %v692 = vld [vmem:[%s11 + $0x14] sm:$0xf]
  %v693 = vld [vmem:[%s11 + $0x18] sm:$0xf]
  %v694 = vld [vmem:[%s11 + $0x1c] sm:$0xf]
  %v695 = vld [vmem:[%s11 + $0x20] sm:$0xf]
  %v696 = vld [vmem:[%s11 + $0x24] sm:$0xf]
  %v697 = vld [vmem:[%s11 + $0x28] sm:$0xf]
  %v698 = vld [vmem:[%s11 + $0x2c] sm:$0xf]
  %v699 = vld [vmem:[%s11 + $0x30] sm:$0xf]
  %v700 = vld [vmem:[%s11 + $0x34] sm:$0xf]
  %v701 = vld [vmem:[%s11 + $0x38] sm:$0xf]
  %v702 = vld [vmem:[%s11 + $0x3c] sm:$0xf]
  %v703 = vld [vmem:[%s12] sm:$0x1]
  %v705 = vlaneseq
  %v706 = vshrl.u32 %v705, 7
  %v707 = vsub.s32 0, %v706
  %v708 = vrot.slane %v703, %v707
  %v726 = vunpack.c.l.b16 %v687
  %v727 = vunpack.c.l.b16 %v688
  %v728 = vunpack.c.l.b16 %v689
  %v729 = vunpack.c.l.b16 %v690
  %v730 = vunpack.c.l.b16 %v691
  %v731 = vunpack.c.l.b16 %v692
  %v732 = vunpack.c.l.b16 %v693
  %v733 = vunpack.c.l.b16 %v694
  %v734 = vunpack.c.l.b16 %v695
  %v735 = vunpack.c.l.b16 %v696
  %v736 = vunpack.c.l.b16 %v697
  %v737 = vunpack.c.l.b16 %v698
  %v738 = vunpack.c.l.b16 %v699
  %v739 = vunpack.c.l.b16 %v700
  %v740 = vunpack.c.l.b16 %v701
  %v741 = vunpack.c.l.b16 %v702
  %v742 = vpack.c.b16 %v727, %v726
  %v743 = vpack.c.b16 %v729, %v728
  %v744 = vpack.c.b16 %v731, %v730
  %v745 = vpack.c.b16 %v733, %v732
  %v746 = vpack.c.b16 %v735, %v734
  %v747 = vpack.c.b16 %v737, %v736
  %v748 = vpack.c.b16 %v739, %v738
  %v749 = vpack.c.b16 %v741, %v740
  %758 = vmatprep.subr.bf16.mxu0 0
  %759 = vmatpush1.bf16.msra.mxu0 %v742
  %760 = vmatprep.subr.bf16.mxu0 0
  %761 = vmatpush1.bf16.msra.mxu0 %v743
  %762 = vmatprep.subr.bf16.mxu0 0
  %763 = vmatpush1.bf16.msra.mxu0 %v744
  %764 = vmatprep.subr.bf16.mxu0 0
  %765 = vmatpush1.bf16.msra.mxu0 %v745
  %766 = vmatprep.subr.bf16.mxu0 0
  %767 = vmatpush1.bf16.msra.mxu0 %v746
  %768 = vmatprep.subr.bf16.mxu0 0
  %769 = vmatpush1.bf16.msra.mxu0 %v747
  %770 = vmatprep.subr.bf16.mxu0 0
  %771 = vmatpush1.bf16.msra.mxu0 %v748
  %772 = vmatprep.subr.bf16.mxu0 0
  %773 = vmatpush1.bf16.msra.mxu0 %v749
  %774 = vmatprep.subr.bf16.mxu0 0
  %775 = vmatpush1.bf16.msra.mxu0 0
  %776 = vmatprep.subr.bf16.mxu0 0
  %777 = vmatpush1.bf16.msra.mxu0 0
  %778 = vmatprep.subr.bf16.mxu0 0
  %779 = vmatpush1.bf16.msra.mxu0 0
  %780 = vmatprep.subr.bf16.mxu0 0
  %781 = vmatpush1.bf16.msra.mxu0 0
  %782 = vmatprep.subr.bf16.mxu0 0
  %783 = vmatpush1.bf16.msra.mxu0 0
  %784 = vmatprep.subr.bf16.mxu0 0
  %785 = vmatpush1.bf16.msra.mxu0 0
  %786 = vmatprep.subr.bf16.mxu0 0
  %787 = vmatpush1.bf16.msra.mxu0 0
  %788 = vmatprep.subr.bf16.mxu0 0
  %789 = vmatpush1.bf16.msra.mxu0 0
  %790 = vmatprep.mubr.bf16.mxu0 0
  %791 = vmatmul.mubr.bf16.gmra.mrb[0].mxu0 %v685
  %v792 = vpop.f32.mrb[0].mxu0
  %v793 = vadd.f32 %v708, %v792
  %v794 = vpop.f32.mrb[0].mxu0
  %v795 = vpop.f32.mrb[0].mxu0
  %v796 = vadd.f32 %v708, %v795
  %v797 = vpop.f32.mrb[0].mxu0
  %798 = vmatprep.mubr.bf16.mxu0 0
  %799 = vmatmul.mubr.bf16.gmra.mrb[0].mxu0 %v686
  %v800 = vpop.f32.mrb[0].mxu0
  %v801 = vadd.f32 %v708, %v800
  %v802 = vpop.f32.mrb[0].mxu0
  %v803 = vpop.f32.mrb[0].mxu0
  %v804 = vadd.f32 %v708, %v803
  %v805 = vpop.f32.mrb[0].mxu0
  %806 = vdwg.mxu0
  %v807 = vmax.f32 %v793, 0.0
  %v808 = vmax.f32 %v796, 0.0
  %v809 = vmax.f32 %v801, 0.0
  %v810 = vmax.f32 %v804, 0.0
  %v811 = vpack.c.bf16 %v808, %v807
  %v812 = vpack.c.bf16 %v810, %v809
  %v813 = vld [vmem:[%s13] sm:$0xf]
  %v814 = vld [vmem:[%s13 + $0x4] sm:$0xf]
  %v815 = vld [vmem:[%s13 + $0x8] sm:$0xf]
  %v816 = vld [vmem:[%s13 + $0xc] sm:$0xf]
  %v817 = vld [vmem:[%s13 + $0x10] sm:$0xf]
  %v818 = vld [vmem:[%s13 + $0x14] sm:$0xf]
  %v819 = vld [vmem:[%s13 + $0x18] sm:$0xf]
  %v820 = vld [vmem:[%s13 + $0x1c] sm:$0xf]
  %v821 = vld [vmem:[%s13 + $0x20] sm:$0xf]
  %v822 = vld [vmem:[%s13 + $0x24] sm:$0xf]
  %v823 = vld [vmem:[%s13 + $0x28] sm:$0xf]
  %v824 = vld [vmem:[%s13 + $0x2c] sm:$0xf]
  %v825 = vld [vmem:[%s13 + $0x30] sm:$0xf]
  %v826 = vld [vmem:[%s13 + $0x34] sm:$0xf]
  %v827 = vld [vmem:[%s13 + $0x38] sm:$0xf]
  %v828 = vld [vmem:[%s13 + $0x3c] sm:$0xf]
  %v829 = vld [vmem:[%s14] sm:$0x1]
  %v831 = vlaneseq
  %v832 = vshrl.u32 %v831, 7
  %v833 = vsub.s32 0, %v832
  %v834 = vrot.slane %v829, %v833
  %v852 = vunpack.c.l.b16 %v813
  %v853 = vunpack.c.l.b16 %v814
  %v854 = vunpack.c.l.b16 %v815
  %v855 = vunpack.c.l.b16 %v816
  %v856 = vunpack.c.l.b16 %v817
  %v857 = vunpack.c.l.b16 %v818
  %v858 = vunpack.c.l.b16 %v819
  %v859 = vunpack.c.l.b16 %v820
  %v860 = vunpack.c.l.b16 %v821
  %v861 = vunpack.c.l.b16 %v822
  %v862 = vunpack.c.l.b16 %v823
  %v863 = vunpack.c.l.b16 %v824
  %v864 = vunpack.c.l.b16 %v825
  %v865 = vunpack.c.l.b16 %v826
  %v866 = vunpack.c.l.b16 %v827
  %v867 = vunpack.c.l.b16 %v828
  %v868 = vpack.c.b16 %v853, %v852
  %v869 = vpack.c.b16 %v855, %v854
  %v870 = vpack.c.b16 %v857, %v856
  %v871 = vpack.c.b16 %v859, %v858
  %v872 = vpack.c.b16 %v861, %v860
  %v873 = vpack.c.b16 %v863, %v862
  %v874 = vpack.c.b16 %v865, %v864
  %v875 = vpack.c.b16 %v867, %v866
  %884 = vmatprep.subr.bf16.mxu0 0
  %885 = vmatpush1.bf16.msra.mxu0 %v868
  %886 = vmatprep.subr.bf16.mxu0 0
  %887 = vmatpush1.bf16.msra.mxu0 %v869
  %888 = vmatprep.subr.bf16.mxu0 0
  %889 = vmatpush1.bf16.msra.mxu0 %v870
  %890 = vmatprep.subr.bf16.mxu0 0
  %891 = vmatpush1.bf16.msra.mxu0 %v871
  %892 = vmatprep.subr.bf16.mxu0 0
  %893 = vmatpush1.bf16.msra.mxu0 %v872
  %894 = vmatprep.subr.bf16.mxu0 0
  %895 = vmatpush1.bf16.msra.mxu0 %v873
  %896 = vmatprep.subr.bf16.mxu0 0
  %897 = vmatpush1.bf16.msra.mxu0 %v874
  %898 = vmatprep.subr.bf16.mxu0 0
  %899 = vmatpush1.bf16.msra.mxu0 %v875
  %900 = vmatprep.subr.bf16.mxu0 0
  %901 = vmatpush1.bf16.msra.mxu0 0
  %902 = vmatprep.subr.bf16.mxu0 0
  %903 = vmatpush1.bf16.msra.mxu0 0
  %904 = vmatprep.subr.bf16.mxu0 0
  %905 = vmatpush1.bf16.msra.mxu0 0
  %906 = vmatprep.subr.bf16.mxu0 0
  %907 = vmatpush1.bf16.msra.mxu0 0
  %908 = vmatprep.subr.bf16.mxu0 0
  %909 = vmatpush1.bf16.msra.mxu0 0
  %910 = vmatprep.subr.bf16.mxu0 0
  %911 = vmatpush1.bf16.msra.mxu0 0
  %912 = vmatprep.subr.bf16.mxu0 0
  %913 = vmatpush1.bf16.msra.mxu0 0
  %914 = vmatprep.subr.bf16.mxu0 0
  %915 = vmatpush1.bf16.msra.mxu0 0
  %916 = vmatprep.mubr.bf16.mxu0 0
  %917 = vmatmul.mubr.bf16.gmra.mrb[0].mxu0 %v811
  %v918 = vpop.f32.mrb[0].mxu0
  %v919 = vadd.f32 %v834, %v918
  %v920 = vpop.f32.mrb[0].mxu0
  %v921 = vpop.f32.mrb[0].mxu0
  %v922 = vadd.f32 %v834, %v921
  %v923 = vpop.f32.mrb[0].mxu0
  %924 = vmatprep.mubr.bf16.mxu0 0
  %925 = vmatmul.mubr.bf16.gmra.mrb[0].mxu0 %v812
  %v926 = vpop.f32.mrb[0].mxu0
  %v927 = vadd.f32 %v834, %v926
  %v928 = vpop.f32.mrb[0].mxu0
  %v929 = vpop.f32.mrb[0].mxu0
  %v930 = vadd.f32 %v834, %v929
  %v931 = vpop.f32.mrb[0].mxu0
  %932 = vdwg.mxu0
  %933 = vadd.xlane.f32.xlu0 %v919
  %v934 = vpop.xlane.xlu0 %933
  %935 = vadd.xlane.f32.xlu0 %v922
  %v936 = vpop.xlane.xlu0 %935
  %937 = vadd.xlane.f32.xlu0 %v927
  %v938 = vpop.xlane.xlu0 %937
  %939 = vadd.xlane.f32.xlu0 %v930
  %v940 = vpop.xlane.xlu0 %939
  %v941 = vmul.f32 %v919, %v919
  %v942 = vmul.f32 %v922, %v922
  %v943 = vmul.f32 %v927, %v927
  %v944 = vmul.f32 %v930, %v930
  %945 = vadd.xlane.f32.xlu0 %v941
  %v946 = vpop.xlane.xlu0 %945
  %947 = vadd.xlane.f32.xlu0 %v942
  %v948 = vpop.xlane.xlu0 %947
  %949 = vadd.xlane.f32.xlu0 %v943
  %v950 = vpop.xlane.xlu0 %949
  %951 = vadd.xlane.f32.xlu0 %v944
  %v952 = vpop.xlane.xlu0 %951
  %v953 = vmul.f32 %v934, 0.0078125
  %v954 = vmul.f32 %v936, 0.0078125
  %v955 = vmul.f32 %v938, 0.0078125
  %v956 = vmul.f32 %v940, 0.0078125
  %v957 = vmul.f32 %v946, 0.0078125
  %v958 = vmul.f32 %v948, 0.0078125
  %v959 = vmul.f32 %v950, 0.0078125
  %v960 = vmul.f32 %v952, 0.0078125
  %v961 = vmul.f32 %v953, %v953
  %v962 = vmul.f32 %v954, %v954
  %v963 = vmul.f32 %v955, %v955
  %v964 = vmul.f32 %v956, %v956
  %v965 = vsub.f32 %v957, %v961
  %v966 = vsub.f32 %v958, %v962
  %v967 = vsub.f32 %v959, %v963
  %v968 = vsub.f32 %v960, %v964
  %v969 = vmax.f32 %v965, 0.0
  %v970 = vmax.f32 %v966, 0.0
  %v971 = vmax.f32 %v967, 0.0
  %v972 = vmax.f32 %v968, 0.0
  %v973 = vsub.f32 %v919, %v953
  %v974 = vsub.f32 %v922, %v954
  %v975 = vsub.f32 %v927, %v955
  %v976 = vsub.f32 %v930, %v956
  %v977 = vadd.f32 %v969, 1e-05
  %v978 = vadd.f32 %v970, 1e-05
  %v979 = vadd.f32 %v971, 1e-05
  %v980 = vadd.f32 %v972, 1e-05
  %v981 = vrsqrt.pop %v977
  %v982 = vrsqrt.pop %v978
  %v983 = vrsqrt.pop %v979
  %v984 = vrsqrt.pop %v980
  %v985 = vmul.f32 %v973, %v981
  %v986 = vmul.f32 %v974, %v982
  %v987 = vmul.f32 %v975, %v983
  %v988 = vmul.f32 %v976, %v984
  %v989 = vld [vmem:[%s15] sm:$0x1]
  %v991 = vlaneseq
  %v992 = vshrl.u32 %v991, 7
  %v993 = vsub.s32 0, %v992
  %v994 = vrot.slane %v989, %v993
  %v996 = vmul.f32 %v985, %v994
  %v997 = vmul.f32 %v986, %v994
  %v998 = vmul.f32 %v987, %v994
  %v999 = vmul.f32 %v988, %v994
  %v1000 = vld [vmem:[%s16] sm:$0x1]
  %v1002 = vlaneseq
  %v1003 = vshrl.u32 %v1002, 7
  %v1004 = vsub.s32 0, %v1003
  %v1005 = vrot.slane %v1000, %v1004
  %v1007 = vadd.f32 %v996, %v1005
  %v1008 = vadd.f32 %v997, %v1005
  %v1009 = vadd.f32 %v998, %v1005
  %v1010 = vadd.f32 %v999, %v1005
  %v1011 = vld [vmem:[%s17] sm:$0xff]
  %v1012 = vld [vmem:[%s17 + $0x8] sm:$0xff]
  %v1013 = vld [vmem:[%s17 + $0x10] sm:$0xff]
  %v1014 = vld [vmem:[%s17 + $0x18] sm:$0xff]
  %v1015 = vadd.f32 %v1007, %v1011
  %v1016 = vadd.f32 %v1008, %v1012
  %v1017 = vadd.f32 %v1009, %v1013
  %v1018 = vadd.f32 %v1010, %v1014
  %1019 = vst [vmem:[%s18] sm:$0xff] %v1015
  %1020 = vst [vmem:[%s18 + $0x8] sm:$0xff] %v1016
  %1021 = vst [vmem:[%s18 + $0x10] sm:$0xff] %v1017
  %1022 = vst [vmem:[%s18 + $0x18] sm:$0xff] %v1018
  // Predicated region
  $region74: #{gnn_forward.33} parent=0 // pred_check
    _
  $region75: #{gnn_forward.33} parent=0 // pred_check_branch
    %1024 = sbr.rel (0) target = $region77
  $region76: #{gnn_forward.33} parent=0 // pred_region
    _
  $region77: #{gnn_forward.33} parent=0 // pred_fallthru
    _
  // Predicated region
  $region78: #{gnn_forward.33} parent=0 // pred_check
    _
  $region79: #{gnn_forward.33} parent=0 // pred_check_branch
    %1026 = sbr.rel (0) target = $region81
  $region80: #{gnn_forward.33} parent=0 // pred_region
    _
  $region81: #{gnn_forward.33} parent=0 // pred_fallthru
    _

// kernel: gnn_forward.35
$region0: #{gnn_forward.35}
  #allocation0 [shape = 'u32[]', space=smem, size = 0x4, offset = 0x4, fixed_abs, tag = 'smem constant byte address 0x4 - core index']
  #allocation1 [shape = 'u32[144,128]{1,0:T(1,128)}', space=vmem, size = 0x12000, scoped, tag = 'internal scratch']
  %s0 = inlined_call_operand.vmem [shape: s32[1,32], index: 0, kind: input, shape index: {}]
  %s1 = inlined_call_operand.vmem [shape: f32[32,128], index: 1, kind: input, shape index: {}]
  %s2 = inlined_call_operand.vmem [shape: f32[16,128], index: 2, kind: output, shape index: {}]
  %s3 = sld [smem:[#allocation0]]
  $region22: #{gnn_forward.35} parent=0
    _
  %s5 = ssub.s32 1, %s3
  %s6 = scalar_select 0, %s5, %s3
  // Predicated region
  $region2: #{gnn_forward.35} parent=0 // pred_check
    _
  $region3: #{gnn_forward.35} parent=0 // pred_check_branch
    %8 = sbr.rel (0) target = $region5
  $region4: #{gnn_forward.35} parent=0 // pred_region
    _
  $region5: #{gnn_forward.35} parent=0 // pred_fallthru
    _
  // Predicated region
  $region6: #{gnn_forward.35} parent=0 // pred_check
    _
  $region7: #{gnn_forward.35} parent=0 // pred_check_branch
    %10 = sbr.rel (0) target = $region9
  $region8: #{gnn_forward.35} parent=0 // pred_region
    _
  $region9: #{gnn_forward.35} parent=0 // pred_fallthru
    _
  %p11 = scmp.eq.s32.totalorder 0, 0
  // Predicated region
  $region10: #{gnn_forward.35} parent=0 // pred_check
    %p12 = pneg %p11
  $region11: #{gnn_forward.35} parent=0 // pred_check_branch
    %14 = sbr.rel (%p12) target = $region13
  $region12: #{gnn_forward.35} parent=0 // pred_region
    %15 = vst [vmem:[%s2] sm:$0xff] 0.0
    %16 = vst [vmem:[%s2 + $0x8] sm:$0xff] 0.0
  $region13: #{gnn_forward.35} parent=0 // pred_fallthru
    _
  %v17 = vld [vmem:[%s0] sm:$0x1]
  %v18 = vlaneseq
  %v19 = vshrl.u32 %v18, 7
  %v20 = vadd.s32 %v19, 8
  %v21 = vlaneseq
  %v22 = vshrl.u32 %v21, 7
  %v23 = vsub.s32 0, %v22
  %v24 = vrot.slane %v17, %v23
  %vm25 = vcmp.eq.s32.totalorder %v19, %v24
  %vm26 = vcmp.eq.s32.totalorder %v20, %v24
  %v27 = vsel %vm25, 1, 0
  %v28 = vsel %vm26, 1, 0
  %v29 = vcvt.s32.f32 %v27
  %v30 = vcvt.s32.f32 %v28
  %v31 = vld [vmem:[%s2] sm:$0xff]
  %v32 = vld [vmem:[%s2 + $0x8] sm:$0xff]
  %v33 = vld [vmem:[%s1] sm:$0xff]
  %v34 = vld [vmem:[%s1 + $0x8] sm:$0xff]
  %v35 = vld [vmem:[%s1 + $0x10] sm:$0xff]
  %v36 = vld [vmem:[%s1 + $0x18] sm:$0xff]
  %vm37 = vcmask 261120
  %v39 = vsel %vm37, %v29, 0
  %v42 = vsel %vm37, %v30, 0
  %44 = vmatprep.subr.mxu0 0.0
  %45 = vmatpush1.msra.mxu0 %v33
  %46 = vmatprep.subr.mxu0 0.0
  %47 = vmatpush1.msra.mxu0 %v34
  %48 = vmatprep.subr.mxu0 0.0
  %49 = vmatpush1.msra.mxu0 %v35
  %50 = vmatprep.subr.mxu0 0.0
  %51 = vmatpush1.msra.mxu0 %v36
  %52 = vmatprep.subr.mxu0 0.0
  %53 = vmatpush1.msra.mxu0 0.0
  %54 = vmatprep.subr.mxu0 0.0
  %55 = vmatpush1.msra.mxu0 0.0
  %56 = vmatprep.subr.mxu0 0.0
  %57 = vmatpush1.msra.mxu0 0.0
  %58 = vmatprep.subr.mxu0 0.0
  %59 = vmatpush1.msra.mxu0 0.0
  %60 = vmatprep.subr.mxu0 0.0
  %61 = vmatpush1.msra.mxu0 0.0
  %62 = vmatprep.subr.mxu0 0.0
  %63 = vmatpush1.msra.mxu0 0.0
  %64 = vmatprep.subr.mxu0 0.0
  %65 = vmatpush1.msra.mxu0 0.0
  %66 = vmatprep.subr.mxu0 0.0
  %67 = vmatpush1.msra.mxu0 0.0
  %68 = vmatprep.subr.mxu0 0.0
  %69 = vmatpush1.msra.mxu0 0.0
  %70 = vmatprep.subr.mxu0 0.0
  %71 = vmatpush1.msra.mxu0 0.0
  %72 = vmatprep.subr.mxu0 0.0
  %73 = vmatpush1.msra.mxu0 0.0
  %74 = vmatprep.subr.mxu0 0.0
  %75 = vmatpush1.msra.mxu0 0.0
  %76 = vmatprep.subr.mxu0 0.0
  %77 = vmatpush1.msra.mxu0 0.0
  %78 = vmatprep.subr.mxu0 0.0
  %79 = vmatpush1.msra.mxu0 0.0
  %80 = vmatprep.subr.mxu0 0.0
  %81 = vmatpush1.msra.mxu0 0.0
  %82 = vmatprep.subr.mxu0 0.0
  %83 = vmatpush1.msra.mxu0 0.0
  %84 = vmatprep.subr.mxu0 0.0
  %85 = vmatpush1.msra.mxu0 0.0
  %86 = vmatprep.subr.mxu0 0.0
  %87 = vmatpush1.msra.mxu0 0.0
  %88 = vmatprep.subr.mxu0 0.0
  %89 = vmatpush1.msra.mxu0 0.0
  %90 = vmatprep.subr.mxu0 0.0
  %91 = vmatpush1.msra.mxu0 0.0
  %92 = vmatprep.subr.mxu0 0.0
  %93 = vmatpush1.msra.mxu0 0.0
  %94 = vmatprep.subr.mxu0 0.0
  %95 = vmatpush1.msra.mxu0 0.0
  %96 = vmatprep.subr.mxu0 0.0
  %97 = vmatpush1.msra.mxu0 0.0
  %98 = vmatprep.subr.mxu0 0.0
  %99 = vmatpush1.msra.mxu0 0.0
  %100 = vmatprep.subr.mxu0 0.0
  %101 = vmatpush1.msra.mxu0 0.0
  %102 = vmatprep.subr.mxu0 0.0
  %103 = vmatpush1.msra.mxu0 0.0
  %104 = vmatprep.subr.mxu0 0.0
  %105 = vmatpush1.msra.mxu0 0.0
  %106 = vmatprep.subr.mxu0 0.0
  %107 = vmatpush1.msra.mxu0 0.0
  %108 = vmatprep.mubr.f32.mxu0 0.0
  %109 = vmatmul.mubr.f32.gmra.mrb[0].mxu0 %v39
  %v110 = vpop.f32.mrb[0].mxu0
  %v111 = vadd.f32 0.0, %v110
  %v112 = vpop.f32.mrb[0].mxu0
  %113 = vmatprep.mubr.f32.mxu0 0.0
  %114 = vmatmul.mubr.f32.gmra.mrb[0].mxu0 %v42
  %v115 = vpop.f32.mrb[0].mxu0
  %v116 = vadd.f32 0.0, %v115
  %v117 = vpop.f32.mrb[0].mxu0
  %118 = vdwg.mxu0
  %v119 = vadd.f32 %v31, %v111
  %v120 = vadd.f32 %v32, %v116
  %121 = vst [vmem:[%s2] sm:$0xff] %v119
  %122 = vst [vmem:[%s2 + $0x8] sm:$0xff] %v120
  // Predicated region
  $region14: #{gnn_forward.35} parent=0 // pred_check
    _
  $region15: #{gnn_forward.35} parent=0 // pred_check_branch
    %124 = sbr.rel (0) target = $region17
  $region16: #{gnn_forward.35} parent=0 // pred_region
    _
  $region17: #{gnn_forward.35} parent=0 // pred_fallthru
    _
  // Predicated region
  $region18: #{gnn_forward.35} parent=0 // pred_check
    _
  $region19: #{gnn_forward.35} parent=0 // pred_check_branch
    %126 = sbr.rel (0) target = $region21
  $region20: #{gnn_forward.35} parent=0 // pred_region
    _
  $region21: #{gnn_forward.35} parent=0 // pred_fallthru
    _

// kernel: gnn_forward.37
$region0: #{gnn_forward.37}
  #allocation0 [shape = 'u32[]', space=smem, size = 0x4, offset = 0x4, fixed_abs, tag = 'smem constant byte address 0x4 - core index']
  #allocation1 [shape = 'u32[144,128]{1,0:T(1,128)}', space=vmem, size = 0x12000, scoped, tag = 'internal scratch']
  %s0 = inlined_call_operand.vmem [shape: s32[1,16], index: 0, kind: input, shape index: {}]
  %s1 = inlined_call_operand.vmem [shape: f32[16,128], index: 1, kind: input, shape index: {}]
  %s2 = inlined_call_operand.vmem [shape: f32[2,128], index: 2, kind: output, shape index: {}]
  %s3 = sld [smem:[#allocation0]]
  $region22: #{gnn_forward.37} parent=0
    _
  %s5 = ssub.s32 1, %s3
  %s6 = scalar_select 0, %s5, %s3
  // Predicated region
  $region2: #{gnn_forward.37} parent=0 // pred_check
    _
  $region3: #{gnn_forward.37} parent=0 // pred_check_branch
    %8 = sbr.rel (0) target = $region5
  $region4: #{gnn_forward.37} parent=0 // pred_region
    _
  $region5: #{gnn_forward.37} parent=0 // pred_fallthru
    _
  // Predicated region
  $region6: #{gnn_forward.37} parent=0 // pred_check
    _
  $region7: #{gnn_forward.37} parent=0 // pred_check_branch
    %10 = sbr.rel (0) target = $region9
  $region8: #{gnn_forward.37} parent=0 // pred_region
    _
  $region9: #{gnn_forward.37} parent=0 // pred_fallthru
    _
  %p11 = scmp.eq.s32.totalorder 0, 0
  // Predicated region
  $region10: #{gnn_forward.37} parent=0 // pred_check
    %p12 = pneg %p11
  $region11: #{gnn_forward.37} parent=0 // pred_check_branch
    %14 = sbr.rel (%p12) target = $region13
  $region12: #{gnn_forward.37} parent=0 // pred_region
    %15 = vst [vmem:[%s2] sm:$0x3] 0.0
  $region13: #{gnn_forward.37} parent=0 // pred_fallthru
    _
  %v16 = vld [vmem:[%s0] sm:$0x1]
  %v17 = vlaneseq
  %v18 = vshrl.u32 %v17, 7
  %v19 = vlaneseq
  %v20 = vshrl.u32 %v19, 7
  %v21 = vsub.s32 0, %v20
  %v22 = vrot.slane %v16, %v21
  %vm23 = vcmp.eq.s32.totalorder %v18, %v22
  %v24 = vsel %vm23, 1, 0
  %v25 = vcvt.s32.f32 %v24
  %v26 = vld [vmem:[%s2] sm:$0x3]
  %v27 = vld [vmem:[%s1] sm:$0xff]
  %v28 = vld [vmem:[%s1 + $0x8] sm:$0xff]
  %vm29 = vcmask 130048
  %v31 = vsel %vm29, %v25, 0
  %33 = vmatprep.subr.mxu0 0.0
  %34 = vmatpush1.msra.mxu0 %v27
  %35 = vmatprep.subr.mxu0 0.0
  %36 = vmatpush1.msra.mxu0 %v28
  %37 = vmatprep.subr.mxu0 0.0
  %38 = vmatpush1.msra.mxu0 0.0
  %39 = vmatprep.subr.mxu0 0.0
  %40 = vmatpush1.msra.mxu0 0.0
  %41 = vmatprep.subr.mxu0 0.0
  %42 = vmatpush1.msra.mxu0 0.0
  %43 = vmatprep.subr.mxu0 0.0
  %44 = vmatpush1.msra.mxu0 0.0
  %45 = vmatprep.subr.mxu0 0.0
  %46 = vmatpush1.msra.mxu0 0.0
  %47 = vmatprep.subr.mxu0 0.0
  %48 = vmatpush1.msra.mxu0 0.0
  %49 = vmatprep.subr.mxu0 0.0
  %50 = vmatpush1.msra.mxu0 0.0
  %51 = vmatprep.subr.mxu0 0.0
  %52 = vmatpush1.msra.mxu0 0.0
  %53 = vmatprep.subr.mxu0 0.0
  %54 = vmatpush1.msra.mxu0 0.0
  %55 = vmatprep.subr.mxu0 0.0
  %56 = vmatpush1.msra.mxu0 0.0
  %57 = vmatprep.subr.mxu0 0.0
  %58 = vmatpush1.msra.mxu0 0.0
  %59 = vmatprep.subr.mxu0 0.0
  %60 = vmatpush1.msra.mxu0 0.0
  %61 = vmatprep.subr.mxu0 0.0
  %62 = vmatpush1.msra.mxu0 0.0
  %63 = vmatprep.subr.mxu0 0.0
  %64 = vmatpush1.msra.mxu0 0.0
  %65 = vmatprep.subr.mxu0 0.0
  %66 = vmatpush1.msra.mxu0 0.0
  %67 = vmatprep.subr.mxu0 0.0
  %68 = vmatpush1.msra.mxu0 0.0
  %69 = vmatprep.subr.mxu0 0.0
  %70 = vmatpush1.msra.mxu0 0.0
  %71 = vmatprep.subr.mxu0 0.0
  %72 = vmatpush1.msra.mxu0 0.0
  %73 = vmatprep.subr.mxu0 0.0
  %74 = vmatpush1.msra.mxu0 0.0
  %75 = vmatprep.subr.mxu0 0.0
  %76 = vmatpush1.msra.mxu0 0.0
  %77 = vmatprep.subr.mxu0 0.0
  %78 = vmatpush1.msra.mxu0 0.0
  %79 = vmatprep.subr.mxu0 0.0
  %80 = vmatpush1.msra.mxu0 0.0
  %81 = vmatprep.subr.mxu0 0.0
  %82 = vmatpush1.msra.mxu0 0.0
  %83 = vmatprep.subr.mxu0 0.0
  %84 = vmatpush1.msra.mxu0 0.0
  %85 = vmatprep.subr.mxu0 0.0
  %86 = vmatpush1.msra.mxu0 0.0
  %87 = vmatprep.subr.mxu0 0.0
  %88 = vmatpush1.msra.mxu0 0.0
  %89 = vmatprep.subr.mxu0 0.0
  %90 = vmatpush1.msra.mxu0 0.0
  %91 = vmatprep.subr.mxu0 0.0
  %92 = vmatpush1.msra.mxu0 0.0
  %93 = vmatprep.subr.mxu0 0.0
  %94 = vmatpush1.msra.mxu0 0.0
  %95 = vmatprep.subr.mxu0 0.0
  %96 = vmatpush1.msra.mxu0 0.0
  %97 = vmatprep.mubr.f32.mxu0 0.0
  %98 = vmatmul.mubr.f32.gmra.mrb[0].mxu0 %v31
  %v99 = vpop.f32.mrb[0].mxu0
  %v100 = vadd.f32 0.0, %v99
  %v101 = vpop.f32.mrb[0].mxu0
  %102 = vdwg.mxu0
  %v103 = vadd.f32 %v26, %v100
  %104 = vst [vmem:[%s2] sm:$0x3] %v103
  // Predicated region
  $region14: #{gnn_forward.37} parent=0 // pred_check
    _
  $region15: #{gnn_forward.37} parent=0 // pred_check_branch
    %106 = sbr.rel (0) target = $region17
  $region16: #{gnn_forward.37} parent=0 // pred_region
    _
  $region17: #{gnn_forward.37} parent=0 // pred_fallthru
    _
  // Predicated region
  $region18: #{gnn_forward.37} parent=0 // pred_check
    _
  $region19: #{gnn_forward.37} parent=0 // pred_check_branch
    %108 = sbr.rel (0) target = $region21
  $region20: #{gnn_forward.37} parent=0 // pred_region
    _
  $region21: #{gnn_forward.37} parent=0 // pred_fallthru
    _

// kernel: gnn_forward.38
$region0: #{gnn_forward.38}
  #allocation0 [shape = 'u32[]', space=smem, size = 0x4, offset = 0x4, fixed_abs, tag = 'smem constant byte address 0x4 - core index']
  #allocation1 [shape = 'u32[144,128]{1,0:T(1,128)}', space=vmem, size = 0x12000, scoped, tag = 'internal scratch']
  %s0 = inlined_call_operand.vmem [shape: f32[8,128], index: 0, kind: input, shape index: {}, may-alias: {0,13}]
  %s1 = inlined_call_operand.vmem [shape: f32[8,128], index: 1, kind: input, shape index: {}]
  %s2 = inlined_call_operand.vmem [shape: bf16[128,128], index: 2, kind: input, shape index: {}]
  %s3 = inlined_call_operand.vmem [shape: bf16[128,128], index: 3, kind: input, shape index: {}]
  %s4 = inlined_call_operand.vmem [shape: f32[1,128], index: 4, kind: input, shape index: {}]
  %s5 = inlined_call_operand.vmem [shape: bf16[128,128], index: 5, kind: input, shape index: {}]
  %s6 = inlined_call_operand.vmem [shape: f32[1,128], index: 6, kind: input, shape index: {}]
  %s7 = inlined_call_operand.vmem [shape: bf16[128,128], index: 7, kind: input, shape index: {}]
  %s8 = inlined_call_operand.vmem [shape: f32[1,128], index: 8, kind: input, shape index: {}]
  %s9 = inlined_call_operand.vmem [shape: bf16[128,128], index: 9, kind: input, shape index: {}]
  %s10 = inlined_call_operand.vmem [shape: f32[1,128], index: 10, kind: input, shape index: {}]
  %s11 = inlined_call_operand.vmem [shape: f32[1,128], index: 11, kind: input, shape index: {}]
  %s12 = inlined_call_operand.vmem [shape: f32[1,128], index: 12, kind: input, shape index: {}]
  %s13 = inlined_call_operand.vmem [shape: f32[8,128], index: 13, kind: input, shape index: {}, may-alias: {0,13}]
  %s14 = inlined_call_operand.vmem [shape: f32[8,128], index: 14, kind: output, shape index: {}]
  %s15 = sld [smem:[#allocation0]]
  $region66: #{gnn_forward.38} parent=0
    _
  %s17 = ssub.s32 1, %s15
  %s18 = scalar_select 0, %s17, %s15
  // Predicated region
  $region2: #{gnn_forward.38} parent=0 // pred_check
    _
  $region3: #{gnn_forward.38} parent=0 // pred_check_branch
    %20 = sbr.rel (0) target = $region5
  $region4: #{gnn_forward.38} parent=0 // pred_region
    _
  $region5: #{gnn_forward.38} parent=0 // pred_fallthru
    _
  // Predicated region
  $region6: #{gnn_forward.38} parent=0 // pred_check
    _
  $region7: #{gnn_forward.38} parent=0 // pred_check_branch
    %22 = sbr.rel (0) target = $region9
  $region8: #{gnn_forward.38} parent=0 // pred_region
    _
  $region9: #{gnn_forward.38} parent=0 // pred_fallthru
    _
  // Predicated region
  $region10: #{gnn_forward.38} parent=0 // pred_check
    _
  $region11: #{gnn_forward.38} parent=0 // pred_check_branch
    %24 = sbr.rel (0) target = $region13
  $region12: #{gnn_forward.38} parent=0 // pred_region
    _
  $region13: #{gnn_forward.38} parent=0 // pred_fallthru
    _
  // Predicated region
  $region14: #{gnn_forward.38} parent=0 // pred_check
    _
  $region15: #{gnn_forward.38} parent=0 // pred_check_branch
    %26 = sbr.rel (0) target = $region17
  $region16: #{gnn_forward.38} parent=0 // pred_region
    _
  $region17: #{gnn_forward.38} parent=0 // pred_fallthru
    _
  // Predicated region
  $region18: #{gnn_forward.38} parent=0 // pred_check
    _
  $region19: #{gnn_forward.38} parent=0 // pred_check_branch
    %28 = sbr.rel (0) target = $region21
  $region20: #{gnn_forward.38} parent=0 // pred_region
    _
  $region21: #{gnn_forward.38} parent=0 // pred_fallthru
    _
  // Predicated region
  $region22: #{gnn_forward.38} parent=0 // pred_check
    _
  $region23: #{gnn_forward.38} parent=0 // pred_check_branch
    %30 = sbr.rel (0) target = $region25
  $region24: #{gnn_forward.38} parent=0 // pred_region
    _
  $region25: #{gnn_forward.38} parent=0 // pred_fallthru
    _
  // Predicated region
  $region26: #{gnn_forward.38} parent=0 // pred_check
    _
  $region27: #{gnn_forward.38} parent=0 // pred_check_branch
    %32 = sbr.rel (0) target = $region29
  $region28: #{gnn_forward.38} parent=0 // pred_region
    _
  $region29: #{gnn_forward.38} parent=0 // pred_fallthru
    _
  // Predicated region
  $region30: #{gnn_forward.38} parent=0 // pred_check
    _
  $region31: #{gnn_forward.38} parent=0 // pred_check_branch
    %34 = sbr.rel (0) target = $region33
  $region32: #{gnn_forward.38} parent=0 // pred_region
    _
  $region33: #{gnn_forward.38} parent=0 // pred_fallthru
    _
  // Predicated region
  $region34: #{gnn_forward.38} parent=0 // pred_check
    _
  $region35: #{gnn_forward.38} parent=0 // pred_check_branch
    %36 = sbr.rel (0) target = $region37
  $region36: #{gnn_forward.38} parent=0 // pred_region
    _
  $region37: #{gnn_forward.38} parent=0 // pred_fallthru
    _
  // Predicated region
  $region38: #{gnn_forward.38} parent=0 // pred_check
    _
  $region39: #{gnn_forward.38} parent=0 // pred_check_branch
    %38 = sbr.rel (0) target = $region41
  $region40: #{gnn_forward.38} parent=0 // pred_region
    _
  $region41: #{gnn_forward.38} parent=0 // pred_fallthru
    _
  // Predicated region
  $region42: #{gnn_forward.38} parent=0 // pred_check
    _
  $region43: #{gnn_forward.38} parent=0 // pred_check_branch
    %40 = sbr.rel (0) target = $region45
  $region44: #{gnn_forward.38} parent=0 // pred_region
    _
  $region45: #{gnn_forward.38} parent=0 // pred_fallthru
    _
  // Predicated region
  $region46: #{gnn_forward.38} parent=0 // pred_check
    _
  $region47: #{gnn_forward.38} parent=0 // pred_check_branch
    %42 = sbr.rel (0) target = $region49
  $region48: #{gnn_forward.38} parent=0 // pred_region
    _
  $region49: #{gnn_forward.38} parent=0 // pred_fallthru
    _
  // Predicated region
  $region50: #{gnn_forward.38} parent=0 // pred_check
    _
  $region51: #{gnn_forward.38} parent=0 // pred_check_branch
    %44 = sbr.rel (0) target = $region53
  $region52: #{gnn_forward.38} parent=0 // pred_region
    _
  $region53: #{gnn_forward.38} parent=0 // pred_fallthru
    _
  // Predicated region
  $region54: #{gnn_forward.38} parent=0 // pred_check
    _
  $region55: #{gnn_forward.38} parent=0 // pred_check_branch
    %46 = sbr.rel (0) target = $region57
  $region56: #{gnn_forward.38} parent=0 // pred_region
    _
  $region57: #{gnn_forward.38} parent=0 // pred_fallthru
    _
  %v48 = vld [vmem:[%s0] sm:$0xff]
  %v49 = vpack.c.bf16 %v48, %v48
  %v50 = vld [vmem:[%s2] sm:$0xf]
  %v51 = vld [vmem:[%s2 + $0x4] sm:$0xf]
  %v52 = vld [vmem:[%s2 + $0x8] sm:$0xf]
  %v53 = vld [vmem:[%s2 + $0xc] sm:$0xf]
  %v54 = vld [vmem:[%s2 + $0x10] sm:$0xf]
  %v55 = vld [vmem:[%s2 + $0x14] sm:$0xf]
  %v56 = vld [vmem:[%s2 + $0x18] sm:$0xf]
  %v57 = vld [vmem:[%s2 + $0x1c] sm:$0xf]
  %v58 = vld [vmem:[%s2 + $0x20] sm:$0xf]
  %v59 = vld [vmem:[%s2 + $0x24] sm:$0xf]
  %v60 = vld [vmem:[%s2 + $0x28] sm:$0xf]
  %v61 = vld [vmem:[%s2 + $0x2c] sm:$0xf]
  %v62 = vld [vmem:[%s2 + $0x30] sm:$0xf]
  %v63 = vld [vmem:[%s2 + $0x34] sm:$0xf]
  %v64 = vld [vmem:[%s2 + $0x38] sm:$0xf]
  %v65 = vld [vmem:[%s2 + $0x3c] sm:$0xf]
  %v66 = vld [vmem:[%s1] sm:$0xff]
  %v67 = vpack.c.bf16 %v66, %v66
  %v68 = vld [vmem:[%s3] sm:$0xf]
  %v69 = vld [vmem:[%s3 + $0x4] sm:$0xf]
  %v70 = vld [vmem:[%s3 + $0x8] sm:$0xf]
  %v71 = vld [vmem:[%s3 + $0xc] sm:$0xf]
  %v72 = vld [vmem:[%s3 + $0x10] sm:$0xf]
  %v73 = vld [vmem:[%s3 + $0x14] sm:$0xf]
  %v74 = vld [vmem:[%s3 + $0x18] sm:$0xf]
  %v75 = vld [vmem:[%s3 + $0x1c] sm:$0xf]
  %v76 = vld [vmem:[%s3 + $0x20] sm:$0xf]
  %v77 = vld [vmem:[%s3 + $0x24] sm:$0xf]
  %v78 = vld [vmem:[%s3 + $0x28] sm:$0xf]
  %v79 = vld [vmem:[%s3 + $0x2c] sm:$0xf]
  %v80 = vld [vmem:[%s3 + $0x30] sm:$0xf]
  %v81 = vld [vmem:[%s3 + $0x34] sm:$0xf]
  %v82 = vld [vmem:[%s3 + $0x38] sm:$0xf]
  %v83 = vld [vmem:[%s3 + $0x3c] sm:$0xf]
  %v100 = vunpack.c.l.b16 %v68
  %v101 = vunpack.c.l.b16 %v69
  %v102 = vunpack.c.l.b16 %v70
  %v103 = vunpack.c.l.b16 %v71
  %v104 = vunpack.c.l.b16 %v72
  %v105 = vunpack.c.l.b16 %v73
  %v106 = vunpack.c.l.b16 %v74
  %v107 = vunpack.c.l.b16 %v75
  %v108 = vunpack.c.l.b16 %v76
  %v109 = vunpack.c.l.b16 %v77
  %v110 = vunpack.c.l.b16 %v78
  %v111 = vunpack.c.l.b16 %v79
  %v112 = vunpack.c.l.b16 %v80
  %v113 = vunpack.c.l.b16 %v81
  %v114 = vunpack.c.l.b16 %v82
  %v115 = vunpack.c.l.b16 %v83
  %v116 = vpack.c.b16 %v101, %v100
  %v117 = vpack.c.b16 %v103, %v102
  %v118 = vpack.c.b16 %v105, %v104
  %v119 = vpack.c.b16 %v107, %v106
  %v120 = vpack.c.b16 %v109, %v108
  %v121 = vpack.c.b16 %v111, %v110
  %v122 = vpack.c.b16 %v113, %v112
  %v123 = vpack.c.b16 %v115, %v114
  %132 = vmatprep.subr.bf16.mxu0 0
  %133 = vmatpush1.bf16.msra.mxu0 %v116
  %134 = vmatprep.subr.bf16.mxu0 0
  %135 = vmatpush1.bf16.msra.mxu0 %v117
  %136 = vmatprep.subr.bf16.mxu0 0
  %137 = vmatpush1.bf16.msra.mxu0 %v118
  %138 = vmatprep.subr.bf16.mxu0 0
  %139 = vmatpush1.bf16.msra.mxu0 %v119
  %140 = vmatprep.subr.bf16.mxu0 0
  %141 = vmatpush1.bf16.msra.mxu0 %v120
  %142 = vmatprep.subr.bf16.mxu0 0
  %143 = vmatpush1.bf16.msra.mxu0 %v121
  %144 = vmatprep.subr.bf16.mxu0 0
  %145 = vmatpush1.bf16.msra.mxu0 %v122
  %146 = vmatprep.subr.bf16.mxu0 0
  %147 = vmatpush1.bf16.msra.mxu0 %v123
  %148 = vmatprep.subr.bf16.mxu0 0
  %149 = vmatpush1.bf16.msra.mxu0 0
  %150 = vmatprep.subr.bf16.mxu0 0
  %151 = vmatpush1.bf16.msra.mxu0 0
  %152 = vmatprep.subr.bf16.mxu0 0
  %153 = vmatpush1.bf16.msra.mxu0 0
  %154 = vmatprep.subr.bf16.mxu0 0
  %155 = vmatpush1.bf16.msra.mxu0 0
  %156 = vmatprep.subr.bf16.mxu0 0
  %157 = vmatpush1.bf16.msra.mxu0 0
  %158 = vmatprep.subr.bf16.mxu0 0
  %159 = vmatpush1.bf16.msra.mxu0 0
  %160 = vmatprep.subr.bf16.mxu0 0
  %161 = vmatpush1.bf16.msra.mxu0 0
  %162 = vmatprep.subr.bf16.mxu0 0
  %163 = vmatpush1.bf16.msra.mxu0 0
  %164 = vmatprep.mubr.bf16.mxu0 0
  %165 = vmatmul.mubr.bf16.gmra.mrb[0].mxu0 %v67
  %v166 = vpop.f32.mrb[0].mxu0
  %v167 = vadd.f32 0.0, %v166
  %v168 = vpop.f32.mrb[0].mxu0
  %v169 = vpop.f32.mrb[0].mxu0
  %v170 = vpop.f32.mrb[0].mxu0
  %171 = vdwg.mxu0
  %v188 = vunpack.c.l.b16 %v50
  %v189 = vunpack.c.l.b16 %v51
  %v190 = vunpack.c.l.b16 %v52
  %v191 = vunpack.c.l.b16 %v53
  %v192 = vunpack.c.l.b16 %v54
  %v193 = vunpack.c.l.b16 %v55
  %v194 = vunpack.c.l.b16 %v56
  %v195 = vunpack.c.l.b16 %v57
  %v196 = vunpack.c.l.b16 %v58
  %v197 = vunpack.c.l.b16 %v59
  %v198 = vunpack.c.l.b16 %v60
  %v199 = vunpack.c.l.b16 %v61
  %v200 = vunpack.c.l.b16 %v62
  %v201 = vunpack.c.l.b16 %v63
  %v202 = vunpack.c.l.b16 %v64
  %v203 = vunpack.c.l.b16 %v65
  %v204 = vpack.c.b16 %v189, %v188
  %v205 = vpack.c.b16 %v191, %v190
  %v206 = vpack.c.b16 %v193, %v192
  %v207 = vpack.c.b16 %v195, %v194
  %v208 = vpack.c.b16 %v197, %v196
  %v209 = vpack.c.b16 %v199, %v198
  %v210 = vpack.c.b16 %v201, %v200
  %v211 = vpack.c.b16 %v203, %v202
  %220 = vmatprep.subr.bf16.mxu0 0
  %221 = vmatpush1.bf16.msra.mxu0 %v204
  %222 = vmatprep.subr.bf16.mxu0 0
  %223 = vmatpush1.bf16.msra.mxu0 %v205
  %224 = vmatprep.subr.bf16.mxu0 0
  %225 = vmatpush1.bf16.msra.mxu0 %v206
  %226 = vmatprep.subr.bf16.mxu0 0
  %227 = vmatpush1.bf16.msra.mxu0 %v207
  %228 = vmatprep.subr.bf16.mxu0 0
  %229 = vmatpush1.bf16.msra.mxu0 %v208
  %230 = vmatprep.subr.bf16.mxu0 0
  %231 = vmatpush1.bf16.msra.mxu0 %v209
  %232 = vmatprep.subr.bf16.mxu0 0
  %233 = vmatpush1.bf16.msra.mxu0 %v210
  %234 = vmatprep.subr.bf16.mxu0 0
  %235 = vmatpush1.bf16.msra.mxu0 %v211
  %236 = vmatprep.subr.bf16.mxu0 0
  %237 = vmatpush1.bf16.msra.mxu0 0
  %238 = vmatprep.subr.bf16.mxu0 0
  %239 = vmatpush1.bf16.msra.mxu0 0
  %240 = vmatprep.subr.bf16.mxu0 0
  %241 = vmatpush1.bf16.msra.mxu0 0
  %242 = vmatprep.subr.bf16.mxu0 0
  %243 = vmatpush1.bf16.msra.mxu0 0
  %244 = vmatprep.subr.bf16.mxu0 0
  %245 = vmatpush1.bf16.msra.mxu0 0
  %246 = vmatprep.subr.bf16.mxu0 0
  %247 = vmatpush1.bf16.msra.mxu0 0
  %248 = vmatprep.subr.bf16.mxu0 0
  %249 = vmatpush1.bf16.msra.mxu0 0
  %250 = vmatprep.subr.bf16.mxu0 0
  %251 = vmatpush1.bf16.msra.mxu0 0
  %252 = vmatprep.mubr.bf16.mxu0 0
  %253 = vmatmul.mubr.bf16.gmra.mrb[0].mxu0 %v49
  %v254 = vpop.f32.mrb[0].mxu0
  %v255 = vadd.f32 %v167, %v254
  %v256 = vpop.f32.mrb[0].mxu0
  %v257 = vpop.f32.mrb[0].mxu0
  %v258 = vpop.f32.mrb[0].mxu0
  %259 = vdwg.mxu0
  %v260 = vld [vmem:[%s4] sm:$0x1]
  %v262 = vlaneseq
  %v263 = vshrl.u32 %v262, 7
  %v264 = vsub.s32 0, %v263
  %v265 = vrot.slane %v260, %v264
  %v267 = vadd.f32 %v255, %v265
  %v268 = vmax.f32 %v267, 0.0
  %v269 = vpack.c.bf16 %v268, %v268
  %v270 = vld [vmem:[%s5] sm:$0xf]
  %v271 = vld [vmem:[%s5 + $0x4] sm:$0xf]
  %v272 = vld [vmem:[%s5 + $0x8] sm:$0xf]
  %v273 = vld [vmem:[%s5 + $0xc] sm:$0xf]
  %v274 = vld [vmem:[%s5 + $0x10] sm:$0xf]
  %v275 = vld [vmem:[%s5 + $0x14] sm:$0xf]
  %v276 = vld [vmem:[%s5 + $0x18] sm:$0xf]
  %v277 = vld [vmem:[%s5 + $0x1c] sm:$0xf]
  %v278 = vld [vmem:[%s5 + $0x20] sm:$0xf]
  %v279 = vld [vmem:[%s5 + $0x24] sm:$0xf]
  %v280 = vld [vmem:[%s5 + $0x28] sm:$0xf]
  %v281 = vld [vmem:[%s5 + $0x2c] sm:$0xf]
  %v282 = vld [vmem:[%s5 + $0x30] sm:$0xf]
  %v283 = vld [vmem:[%s5 + $0x34] sm:$0xf]
  %v284 = vld [vmem:[%s5 + $0x38] sm:$0xf]
  %v285 = vld [vmem:[%s5 + $0x3c] sm:$0xf]
  %v286 = vld [vmem:[%s6] sm:$0x1]
  %v288 = vlaneseq
  %v289 = vshrl.u32 %v288, 7
  %v290 = vsub.s32 0, %v289
  %v291 = vrot.slane %v286, %v290
  %v309 = vunpack.c.l.b16 %v270
  %v310 = vunpack.c.l.b16 %v271
  %v311 = vunpack.c.l.b16 %v272
  %v312 = vunpack.c.l.b16 %v273
  %v313 = vunpack.c.l.b16 %v274
  %v314 = vunpack.c.l.b16 %v275
  %v315 = vunpack.c.l.b16 %v276
  %v316 = vunpack.c.l.b16 %v277
  %v317 = vunpack.c.l.b16 %v278
  %v318 = vunpack.c.l.b16 %v279
  %v319 = vunpack.c.l.b16 %v280
  %v320 = vunpack.c.l.b16 %v281
  %v321 = vunpack.c.l.b16 %v282
  %v322 = vunpack.c.l.b16 %v283
  %v323 = vunpack.c.l.b16 %v284
  %v324 = vunpack.c.l.b16 %v285
  %v325 = vpack.c.b16 %v310, %v309
  %v326 = vpack.c.b16 %v312, %v311
  %v327 = vpack.c.b16 %v314, %v313
  %v328 = vpack.c.b16 %v316, %v315
  %v329 = vpack.c.b16 %v318, %v317
  %v330 = vpack.c.b16 %v320, %v319
  %v331 = vpack.c.b16 %v322, %v321
  %v332 = vpack.c.b16 %v324, %v323
  %341 = vmatprep.subr.bf16.mxu0 0
  %342 = vmatpush1.bf16.msra.mxu0 %v325
  %343 = vmatprep.subr.bf16.mxu0 0
  %344 = vmatpush1.bf16.msra.mxu0 %v326
  %345 = vmatprep.subr.bf16.mxu0 0
  %346 = vmatpush1.bf16.msra.mxu0 %v327
  %347 = vmatprep.subr.bf16.mxu0 0
  %348 = vmatpush1.bf16.msra.mxu0 %v328
  %349 = vmatprep.subr.bf16.mxu0 0
  %350 = vmatpush1.bf16.msra.mxu0 %v329
  %351 = vmatprep.subr.bf16.mxu0 0
  %352 = vmatpush1.bf16.msra.mxu0 %v330
  %353 = vmatprep.subr.bf16.mxu0 0
  %354 = vmatpush1.bf16.msra.mxu0 %v331
  %355 = vmatprep.subr.bf16.mxu0 0
  %356 = vmatpush1.bf16.msra.mxu0 %v332
  %357 = vmatprep.subr.bf16.mxu0 0
  %358 = vmatpush1.bf16.msra.mxu0 0
  %359 = vmatprep.subr.bf16.mxu0 0
  %360 = vmatpush1.bf16.msra.mxu0 0
  %361 = vmatprep.subr.bf16.mxu0 0
  %362 = vmatpush1.bf16.msra.mxu0 0
  %363 = vmatprep.subr.bf16.mxu0 0
  %364 = vmatpush1.bf16.msra.mxu0 0
  %365 = vmatprep.subr.bf16.mxu0 0
  %366 = vmatpush1.bf16.msra.mxu0 0
  %367 = vmatprep.subr.bf16.mxu0 0
  %368 = vmatpush1.bf16.msra.mxu0 0
  %369 = vmatprep.subr.bf16.mxu0 0
  %370 = vmatpush1.bf16.msra.mxu0 0
  %371 = vmatprep.subr.bf16.mxu0 0
  %372 = vmatpush1.bf16.msra.mxu0 0
  %373 = vmatprep.mubr.bf16.mxu0 0
  %374 = vmatmul.mubr.bf16.gmra.mrb[0].mxu0 %v269
  %v375 = vpop.f32.mrb[0].mxu0
  %v376 = vadd.f32 %v291, %v375
  %v377 = vpop.f32.mrb[0].mxu0
  %v378 = vpop.f32.mrb[0].mxu0
  %v379 = vpop.f32.mrb[0].mxu0
  %380 = vdwg.mxu0
  %v381 = vmax.f32 %v376, 0.0
  %v382 = vpack.c.bf16 %v381, %v381
  %v383 = vld [vmem:[%s7] sm:$0xf]
  %v384 = vld [vmem:[%s7 + $0x4] sm:$0xf]
  %v385 = vld [vmem:[%s7 + $0x8] sm:$0xf]
  %v386 = vld [vmem:[%s7 + $0xc] sm:$0xf]
  %v387 = vld [vmem:[%s7 + $0x10] sm:$0xf]
  %v388 = vld [vmem:[%s7 + $0x14] sm:$0xf]
  %v389 = vld [vmem:[%s7 + $0x18] sm:$0xf]
  %v390 = vld [vmem:[%s7 + $0x1c] sm:$0xf]
  %v391 = vld [vmem:[%s7 + $0x20] sm:$0xf]
  %v392 = vld [vmem:[%s7 + $0x24] sm:$0xf]
  %v393 = vld [vmem:[%s7 + $0x28] sm:$0xf]
  %v394 = vld [vmem:[%s7 + $0x2c] sm:$0xf]
  %v395 = vld [vmem:[%s7 + $0x30] sm:$0xf]
  %v396 = vld [vmem:[%s7 + $0x34] sm:$0xf]
  %v397 = vld [vmem:[%s7 + $0x38] sm:$0xf]
  %v398 = vld [vmem:[%s7 + $0x3c] sm:$0xf]
  %v399 = vld [vmem:[%s8] sm:$0x1]
  %v401 = vlaneseq
  %v402 = vshrl.u32 %v401, 7
  %v403 = vsub.s32 0, %v402
  %v404 = vrot.slane %v399, %v403
  %v422 = vunpack.c.l.b16 %v383
  %v423 = vunpack.c.l.b16 %v384
  %v424 = vunpack.c.l.b16 %v385
  %v425 = vunpack.c.l.b16 %v386
  %v426 = vunpack.c.l.b16 %v387
  %v427 = vunpack.c.l.b16 %v388
  %v428 = vunpack.c.l.b16 %v389
  %v429 = vunpack.c.l.b16 %v390
  %v430 = vunpack.c.l.b16 %v391
  %v431 = vunpack.c.l.b16 %v392
  %v432 = vunpack.c.l.b16 %v393
  %v433 = vunpack.c.l.b16 %v394
  %v434 = vunpack.c.l.b16 %v395
  %v435 = vunpack.c.l.b16 %v396
  %v436 = vunpack.c.l.b16 %v397
  %v437 = vunpack.c.l.b16 %v398
  %v438 = vpack.c.b16 %v423, %v422
  %v439 = vpack.c.b16 %v425, %v424
  %v440 = vpack.c.b16 %v427, %v426
  %v441 = vpack.c.b16 %v429, %v428
  %v442 = vpack.c.b16 %v431, %v430
  %v443 = vpack.c.b16 %v433, %v432
  %v444 = vpack.c.b16 %v435, %v434
  %v445 = vpack.c.b16 %v437, %v436
  %454 = vmatprep.subr.bf16.mxu0 0
  %455 = vmatpush1.bf16.msra.mxu0 %v438
  %456 = vmatprep.subr.bf16.mxu0 0
  %457 = vmatpush1.bf16.msra.mxu0 %v439
  %458 = vmatprep.subr.bf16.mxu0 0
  %459 = vmatpush1.bf16.msra.mxu0 %v440
  %460 = vmatprep.subr.bf16.mxu0 0
  %461 = vmatpush1.bf16.msra.mxu0 %v441
  %462 = vmatprep.subr.bf16.mxu0 0
  %463 = vmatpush1.bf16.msra.mxu0 %v442
  %464 = vmatprep.subr.bf16.mxu0 0
  %465 = vmatpush1.bf16.msra.mxu0 %v443
  %466 = vmatprep.subr.bf16.mxu0 0
  %467 = vmatpush1.bf16.msra.mxu0 %v444
  %468 = vmatprep.subr.bf16.mxu0 0
  %469 = vmatpush1.bf16.msra.mxu0 %v445
  %470 = vmatprep.subr.bf16.mxu0 0
  %471 = vmatpush1.bf16.msra.mxu0 0
  %472 = vmatprep.subr.bf16.mxu0 0
  %473 = vmatpush1.bf16.msra.mxu0 0
  %474 = vmatprep.subr.bf16.mxu0 0
  %475 = vmatpush1.bf16.msra.mxu0 0
  %476 = vmatprep.subr.bf16.mxu0 0
  %477 = vmatpush1.bf16.msra.mxu0 0
  %478 = vmatprep.subr.bf16.mxu0 0
  %479 = vmatpush1.bf16.msra.mxu0 0
  %480 = vmatprep.subr.bf16.mxu0 0
  %481 = vmatpush1.bf16.msra.mxu0 0
  %482 = vmatprep.subr.bf16.mxu0 0
  %483 = vmatpush1.bf16.msra.mxu0 0
  %484 = vmatprep.subr.bf16.mxu0 0
  %485 = vmatpush1.bf16.msra.mxu0 0
  %486 = vmatprep.mubr.bf16.mxu0 0
  %487 = vmatmul.mubr.bf16.gmra.mrb[0].mxu0 %v382
  %v488 = vpop.f32.mrb[0].mxu0
  %v489 = vadd.f32 %v404, %v488
  %v490 = vpop.f32.mrb[0].mxu0
  %v491 = vpop.f32.mrb[0].mxu0
  %v492 = vpop.f32.mrb[0].mxu0
  %493 = vdwg.mxu0
  %v494 = vmax.f32 %v489, 0.0
  %v495 = vpack.c.bf16 %v494, %v494
  %v496 = vld [vmem:[%s9] sm:$0xf]
  %v497 = vld [vmem:[%s9 + $0x4] sm:$0xf]
  %v498 = vld [vmem:[%s9 + $0x8] sm:$0xf]
  %v499 = vld [vmem:[%s9 + $0xc] sm:$0xf]
  %v500 = vld [vmem:[%s9 + $0x10] sm:$0xf]
  %v501 = vld [vmem:[%s9 + $0x14] sm:$0xf]
  %v502 = vld [vmem:[%s9 + $0x18] sm:$0xf]
  %v503 = vld [vmem:[%s9 + $0x1c] sm:$0xf]
  %v504 = vld [vmem:[%s9 + $0x20] sm:$0xf]
  %v505 = vld [vmem:[%s9 + $0x24] sm:$0xf]
  %v506 = vld [vmem:[%s9 + $0x28] sm:$0xf]
  %v507 = vld [vmem:[%s9 + $0x2c] sm:$0xf]
  %v508 = vld [vmem:[%s9 + $0x30] sm:$0xf]
  %v509 = vld [vmem:[%s9 + $0x34] sm:$0xf]
  %v510 = vld [vmem:[%s9 + $0x38] sm:$0xf]
  %v511 = vld [vmem:[%s9 + $0x3c] sm:$0xf]
  %v512 = vld [vmem:[%s10] sm:$0x1]
  %v514 = vlaneseq
  %v515 = vshrl.u32 %v514, 7
  %v516 = vsub.s32 0, %v515
  %v517 = vrot.slane %v512, %v516
  %v535 = vunpack.c.l.b16 %v496
  %v536 = vunpack.c.l.b16 %v497
  %v537 = vunpack.c.l.b16 %v498
  %v538 = vunpack.c.l.b16 %v499
  %v539 = vunpack.c.l.b16 %v500
  %v540 = vunpack.c.l.b16 %v501
  %v541 = vunpack.c.l.b16 %v502
  %v542 = vunpack.c.l.b16 %v503
  %v543 = vunpack.c.l.b16 %v504
  %v544 = vunpack.c.l.b16 %v505
  %v545 = vunpack.c.l.b16 %v506
  %v546 = vunpack.c.l.b16 %v507
  %v547 = vunpack.c.l.b16 %v508
  %v548 = vunpack.c.l.b16 %v509
  %v549 = vunpack.c.l.b16 %v510
  %v550 = vunpack.c.l.b16 %v511
  %v551 = vpack.c.b16 %v536, %v535
  %v552 = vpack.c.b16 %v538, %v537
  %v553 = vpack.c.b16 %v540, %v539
  %v554 = vpack.c.b16 %v542, %v541
  %v555 = vpack.c.b16 %v544, %v543
  %v556 = vpack.c.b16 %v546, %v545
  %v557 = vpack.c.b16 %v548, %v547
  %v558 = vpack.c.b16 %v550, %v549
  %567 = vmatprep.subr.bf16.mxu0 0
  %568 = vmatpush1.bf16.msra.mxu0 %v551
  %569 = vmatprep.subr.bf16.mxu0 0
  %570 = vmatpush1.bf16.msra.mxu0 %v552
  %571 = vmatprep.subr.bf16.mxu0 0
  %572 = vmatpush1.bf16.msra.mxu0 %v553
  %573 = vmatprep.subr.bf16.mxu0 0
  %574 = vmatpush1.bf16.msra.mxu0 %v554
  %575 = vmatprep.subr.bf16.mxu0 0
  %576 = vmatpush1.bf16.msra.mxu0 %v555
  %577 = vmatprep.subr.bf16.mxu0 0
  %578 = vmatpush1.bf16.msra.mxu0 %v556
  %579 = vmatprep.subr.bf16.mxu0 0
  %580 = vmatpush1.bf16.msra.mxu0 %v557
  %581 = vmatprep.subr.bf16.mxu0 0
  %582 = vmatpush1.bf16.msra.mxu0 %v558
  %583 = vmatprep.subr.bf16.mxu0 0
  %584 = vmatpush1.bf16.msra.mxu0 0
  %585 = vmatprep.subr.bf16.mxu0 0
  %586 = vmatpush1.bf16.msra.mxu0 0
  %587 = vmatprep.subr.bf16.mxu0 0
  %588 = vmatpush1.bf16.msra.mxu0 0
  %589 = vmatprep.subr.bf16.mxu0 0
  %590 = vmatpush1.bf16.msra.mxu0 0
  %591 = vmatprep.subr.bf16.mxu0 0
  %592 = vmatpush1.bf16.msra.mxu0 0
  %593 = vmatprep.subr.bf16.mxu0 0
  %594 = vmatpush1.bf16.msra.mxu0 0
  %595 = vmatprep.subr.bf16.mxu0 0
  %596 = vmatpush1.bf16.msra.mxu0 0
  %597 = vmatprep.subr.bf16.mxu0 0
  %598 = vmatpush1.bf16.msra.mxu0 0
  %599 = vmatprep.mubr.bf16.mxu0 0
  %600 = vmatmul.mubr.bf16.gmra.mrb[0].mxu0 %v495
  %v601 = vpop.f32.mrb[0].mxu0
  %v602 = vadd.f32 %v517, %v601
  %v603 = vpop.f32.mrb[0].mxu0
  %v604 = vpop.f32.mrb[0].mxu0
  %v605 = vpop.f32.mrb[0].mxu0
  %606 = vdwg.mxu0
  %607 = vadd.xlane.f32.xlu0 %v602
  %v608 = vpop.xlane.xlu0 %607
  %v609 = vmul.f32 %v602, %v602
  %610 = vadd.xlane.f32.xlu0 %v609
  %v611 = vpop.xlane.xlu0 %610
  %v612 = vmul.f32 %v608, 0.0078125
  %v613 = vmul.f32 %v611, 0.0078125
  %v614 = vmul.f32 %v612, %v612
  %v615 = vsub.f32 %v613, %v614
  %v616 = vmax.f32 %v615, 0.0
  %v617 = vsub.f32 %v602, %v612
  %v618 = vadd.f32 %v616, 1e-05
  %v619 = vrsqrt.pop %v618
  %v620 = vmul.f32 %v617, %v619
  %v621 = vld [vmem:[%s11] sm:$0x1]
  %v623 = vlaneseq
  %v624 = vshrl.u32 %v623, 7
  %v625 = vsub.s32 0, %v624
  %v626 = vrot.slane %v621, %v625
  %v628 = vmul.f32 %v620, %v626
  %v629 = vld [vmem:[%s12] sm:$0x1]
  %v631 = vlaneseq
  %v632 = vshrl.u32 %v631, 7
  %v633 = vsub.s32 0, %v632
  %v634 = vrot.slane %v629, %v633
  %v636 = vadd.f32 %v628, %v634
  %v637 = vld [vmem:[%s13] sm:$0xff]
  %v638 = vadd.f32 %v636, %v637
  %639 = vst [vmem:[%s14] sm:$0xff] %v638
  // Predicated region
  $region58: #{gnn_forward.38} parent=0 // pred_check
    _
  $region59: #{gnn_forward.38} parent=0 // pred_check_branch
    %641 = sbr.rel (0) target = $region61
  $region60: #{gnn_forward.38} parent=0 // pred_region
    _
  $region61: #{gnn_forward.38} parent=0 // pred_fallthru
    _
  // Predicated region
  $region62: #{gnn_forward.38} parent=0 // pred_check
    _
  $region63: #{gnn_forward.38} parent=0 // pred_check_branch
    %643 = sbr.rel (0) target = $region65
  $region64: #{gnn_forward.38} parent=0 // pred_region
    _
  $region65: #{gnn_forward.38} parent=0 // pred_fallthru
    _

// kernel: gnn_forward.36
$region0: #{gnn_forward.36}
  #allocation0 [shape = 'u32[]', space=smem, size = 0x4, offset = 0x4, fixed_abs, tag = 'smem constant byte address 0x4 - core index']
  #allocation1 [shape = 'u32[144,128]{1,0:T(1,128)}', space=vmem, size = 0x12000, scoped, tag = 'internal scratch']
  %s0 = inlined_call_operand.vmem [shape: f32[16,128], index: 0, kind: input, shape index: {}, may-alias: {0,15}]
  %s1 = inlined_call_operand.vmem [shape: f32[16,128], index: 1, kind: input, shape index: {}]
  %s2 = inlined_call_operand.vmem [shape: f32[16,128], index: 2, kind: input, shape index: {}]
  %s3 = inlined_call_operand.vmem [shape: bf16[128,128], index: 3, kind: input, shape index: {}]
  %s4 = inlined_call_operand.vmem [shape: bf16[128,128], index: 4, kind: input, shape index: {}]
  %s5 = inlined_call_operand.vmem [shape: bf16[128,128], index: 5, kind: input, shape index: {}]
  %s6 = inlined_call_operand.vmem [shape: f32[1,128], index: 6, kind: input, shape index: {}]
  %s7 = inlined_call_operand.vmem [shape: bf16[128,128], index: 7, kind: input, shape index: {}]
  %s8 = inlined_call_operand.vmem [shape: f32[1,128], index: 8, kind: input, shape index: {}]
  %s9 = inlined_call_operand.vmem [shape: bf16[128,128], index: 9, kind: input, shape index: {}]
  %s10 = inlined_call_operand.vmem [shape: f32[1,128], index: 10, kind: input, shape index: {}]
  %s11 = inlined_call_operand.vmem [shape: bf16[128,128], index: 11, kind: input, shape index: {}]
  %s12 = inlined_call_operand.vmem [shape: f32[1,128], index: 12, kind: input, shape index: {}]
  %s13 = inlined_call_operand.vmem [shape: f32[1,128], index: 13, kind: input, shape index: {}]
  %s14 = inlined_call_operand.vmem [shape: f32[1,128], index: 14, kind: input, shape index: {}]
  %s15 = inlined_call_operand.vmem [shape: f32[16,128], index: 15, kind: input, shape index: {}, may-alias: {0,15}]
  %s16 = inlined_call_operand.vmem [shape: f32[16,128], index: 16, kind: output, shape index: {}]
  %s17 = sld [smem:[#allocation0]]
  $region74: #{gnn_forward.36} parent=0
    _
  %s19 = ssub.s32 1, %s17
  %s20 = scalar_select 0, %s19, %s17
  // Predicated region
  $region2: #{gnn_forward.36} parent=0 // pred_check
    _
  $region3: #{gnn_forward.36} parent=0 // pred_check_branch
    %22 = sbr.rel (0) target = $region5
  $region4: #{gnn_forward.36} parent=0 // pred_region
    _
  $region5: #{gnn_forward.36} parent=0 // pred_fallthru
    _
  // Predicated region
  $region6: #{gnn_forward.36} parent=0 // pred_check
    _
  $region7: #{gnn_forward.36} parent=0 // pred_check_branch
    %24 = sbr.rel (0) target = $region9
  $region8: #{gnn_forward.36} parent=0 // pred_region
    _
  $region9: #{gnn_forward.36} parent=0 // pred_fallthru
    _
  // Predicated region
  $region10: #{gnn_forward.36} parent=0 // pred_check
    _
  $region11: #{gnn_forward.36} parent=0 // pred_check_branch
    %26 = sbr.rel (0) target = $region13
  $region12: #{gnn_forward.36} parent=0 // pred_region
    _
  $region13: #{gnn_forward.36} parent=0 // pred_fallthru
    _
  // Predicated region
  $region14: #{gnn_forward.36} parent=0 // pred_check
    _
  $region15: #{gnn_forward.36} parent=0 // pred_check_branch
    %28 = sbr.rel (0) target = $region17
  $region16: #{gnn_forward.36} parent=0 // pred_region
    _
  $region17: #{gnn_forward.36} parent=0 // pred_fallthru
    _
  // Predicated region
  $region18: #{gnn_forward.36} parent=0 // pred_check
    _
  $region19: #{gnn_forward.36} parent=0 // pred_check_branch
    %30 = sbr.rel (0) target = $region21
  $region20: #{gnn_forward.36} parent=0 // pred_region
    _
  $region21: #{gnn_forward.36} parent=0 // pred_fallthru
    _
  // Predicated region
  $region22: #{gnn_forward.36} parent=0 // pred_check
    _
  $region23: #{gnn_forward.36} parent=0 // pred_check_branch
    %32 = sbr.rel (0) target = $region25
  $region24: #{gnn_forward.36} parent=0 // pred_region
    _
  $region25: #{gnn_forward.36} parent=0 // pred_fallthru
    _
  // Predicated region
  $region26: #{gnn_forward.36} parent=0 // pred_check
    _
  $region27: #{gnn_forward.36} parent=0 // pred_check_branch
    %34 = sbr.rel (0) target = $region29
  $region28: #{gnn_forward.36} parent=0 // pred_region
    _
  $region29: #{gnn_forward.36} parent=0 // pred_fallthru
    _
  // Predicated region
  $region30: #{gnn_forward.36} parent=0 // pred_check
    _
  $region31: #{gnn_forward.36} parent=0 // pred_check_branch
    %36 = sbr.rel (0) target = $region33
  $region32: #{gnn_forward.36} parent=0 // pred_region
    _
  $region33: #{gnn_forward.36} parent=0 // pred_fallthru
    _
  // Predicated region
  $region34: #{gnn_forward.36} parent=0 // pred_check
    _
  $region35: #{gnn_forward.36} parent=0 // pred_check_branch
    %38 = sbr.rel (0) target = $region37
  $region36: #{gnn_forward.36} parent=0 // pred_region
    _
  $region37: #{gnn_forward.36} parent=0 // pred_fallthru
    _
  // Predicated region
  $region38: #{gnn_forward.36} parent=0 // pred_check
    _
  $region39: #{gnn_forward.36} parent=0 // pred_check_branch
    %40 = sbr.rel (0) target = $region41
  $region40: #{gnn_forward.36} parent=0 // pred_region
    _
  $region41: #{gnn_forward.36} parent=0 // pred_fallthru
    _
  // Predicated region
  $region42: #{gnn_forward.36} parent=0 // pred_check
    _
  $region43: #{gnn_forward.36} parent=0 // pred_check_branch
    %42 = sbr.rel (0) target = $region45
  $region44: #{gnn_forward.36} parent=0 // pred_region
    _
  $region45: #{gnn_forward.36} parent=0 // pred_fallthru
    _
  // Predicated region
  $region46: #{gnn_forward.36} parent=0 // pred_check
    _
  $region47: #{gnn_forward.36} parent=0 // pred_check_branch
    %44 = sbr.rel (0) target = $region49
  $region48: #{gnn_forward.36} parent=0 // pred_region
    _
  $region49: #{gnn_forward.36} parent=0 // pred_fallthru
    _
  // Predicated region
  $region50: #{gnn_forward.36} parent=0 // pred_check
    _
  $region51: #{gnn_forward.36} parent=0 // pred_check_branch
    %46 = sbr.rel (0) target = $region53
  $region52: #{gnn_forward.36} parent=0 // pred_region
    _
  $region53: #{gnn_forward.36} parent=0 // pred_fallthru
    _
  // Predicated region
  $region54: #{gnn_forward.36} parent=0 // pred_check
    _
  $region55: #{gnn_forward.36} parent=0 // pred_check_branch
    %48 = sbr.rel (0) target = $region57
  $region56: #{gnn_forward.36} parent=0 // pred_region
    _
  $region57: #{gnn_forward.36} parent=0 // pred_fallthru
    _
  // Predicated region
  $region58: #{gnn_forward.36} parent=0 // pred_check
    _
  $region59: #{gnn_forward.36} parent=0 // pred_check_branch
    %50 = sbr.rel (0) target = $region61
  $region60: #{gnn_forward.36} parent=0 // pred_region
    _
  $region61: #{gnn_forward.36} parent=0 // pred_fallthru
    _
  // Predicated region
  $region62: #{gnn_forward.36} parent=0 // pred_check
    _
  $region63: #{gnn_forward.36} parent=0 // pred_check_branch
    %52 = sbr.rel (0) target = $region65
  $region64: #{gnn_forward.36} parent=0 // pred_region
    _
  $region65: #{gnn_forward.36} parent=0 // pred_fallthru
    _
  %v54 = vld [vmem:[%s0] sm:$0xff]
  %v55 = vld [vmem:[%s0 + $0x8] sm:$0xff]
  %v56 = vpack.c.bf16 %v55, %v54
  %v57 = vld [vmem:[%s3] sm:$0xf]
  %v58 = vld [vmem:[%s3 + $0x4] sm:$0xf]
  %v59 = vld [vmem:[%s3 + $0x8] sm:$0xf]
  %v60 = vld [vmem:[%s3 + $0xc] sm:$0xf]
  %v61 = vld [vmem:[%s3 + $0x10] sm:$0xf]
  %v62 = vld [vmem:[%s3 + $0x14] sm:$0xf]
  %v63 = vld [vmem:[%s3 + $0x18] sm:$0xf]
  %v64 = vld [vmem:[%s3 + $0x1c] sm:$0xf]
  %v65 = vld [vmem:[%s3 + $0x20] sm:$0xf]
  %v66 = vld [vmem:[%s3 + $0x24] sm:$0xf]
  %v67 = vld [vmem:[%s3 + $0x28] sm:$0xf]
  %v68 = vld [vmem:[%s3 + $0x2c] sm:$0xf]
  %v69 = vld [vmem:[%s3 + $0x30] sm:$0xf]
  %v70 = vld [vmem:[%s3 + $0x34] sm:$0xf]
  %v71 = vld [vmem:[%s3 + $0x38] sm:$0xf]
  %v72 = vld [vmem:[%s3 + $0x3c] sm:$0xf]
  %v73 = vld [vmem:[%s1] sm:$0xff]
  %v74 = vld [vmem:[%s1 + $0x8] sm:$0xff]
  %v75 = vpack.c.bf16 %v74, %v73
  %v76 = vld [vmem:[%s4] sm:$0xf]
  %v77 = vld [vmem:[%s4 + $0x4] sm:$0xf]
  %v78 = vld [vmem:[%s4 + $0x8] sm:$0xf]
  %v79 = vld [vmem:[%s4 + $0xc] sm:$0xf]
  %v80 = vld [vmem:[%s4 + $0x10] sm:$0xf]
  %v81 = vld [vmem:[%s4 + $0x14] sm:$0xf]
  %v82 = vld [vmem:[%s4 + $0x18] sm:$0xf]
  %v83 = vld [vmem:[%s4 + $0x1c] sm:$0xf]
  %v84 = vld [vmem:[%s4 + $0x20] sm:$0xf]
  %v85 = vld [vmem:[%s4 + $0x24] sm:$0xf]
  %v86 = vld [vmem:[%s4 + $0x28] sm:$0xf]
  %v87 = vld [vmem:[%s4 + $0x2c] sm:$0xf]
  %v88 = vld [vmem:[%s4 + $0x30] sm:$0xf]
  %v89 = vld [vmem:[%s4 + $0x34] sm:$0xf]
  %v90 = vld [vmem:[%s4 + $0x38] sm:$0xf]
  %v91 = vld [vmem:[%s4 + $0x3c] sm:$0xf]
  %v108 = vunpack.c.l.b16 %v76
  %v109 = vunpack.c.l.b16 %v77
  %v110 = vunpack.c.l.b16 %v78
  %v111 = vunpack.c.l.b16 %v79
  %v112 = vunpack.c.l.b16 %v80
  %v113 = vunpack.c.l.b16 %v81
  %v114 = vunpack.c.l.b16 %v82
  %v115 = vunpack.c.l.b16 %v83
  %v116 = vunpack.c.l.b16 %v84
  %v117 = vunpack.c.l.b16 %v85
  %v118 = vunpack.c.l.b16 %v86
  %v119 = vunpack.c.l.b16 %v87
  %v120 = vunpack.c.l.b16 %v88
  %v121 = vunpack.c.l.b16 %v89
  %v122 = vunpack.c.l.b16 %v90
  %v123 = vunpack.c.l.b16 %v91
  %v124 = vpack.c.b16 %v109, %v108
  %v125 = vpack.c.b16 %v111, %v110
  %v126 = vpack.c.b16 %v113, %v112
  %v127 = vpack.c.b16 %v115, %v114
  %v128 = vpack.c.b16 %v117, %v116
  %v129 = vpack.c.b16 %v119, %v118
  %v130 = vpack.c.b16 %v121, %v120
  %v131 = vpack.c.b16 %v123, %v122
  %140 = vmatprep.subr.bf16.mxu0 0
  %141 = vmatpush1.bf16.msra.mxu0 %v124
  %142 = vmatprep.subr.bf16.mxu0 0
  %143 = vmatpush1.bf16.msra.mxu0 %v125
  %144 = vmatprep.subr.bf16.mxu0 0
  %145 = vmatpush1.bf16.msra.mxu0 %v126
  %146 = vmatprep.subr.bf16.mxu0 0
  %147 = vmatpush1.bf16.msra.mxu0 %v127
  %148 = vmatprep.subr.bf16.mxu0 0
  %149 = vmatpush1.bf16.msra.mxu0 %v128
  %150 = vmatprep.subr.bf16.mxu0 0
  %151 = vmatpush1.bf16.msra.mxu0 %v129
  %152 = vmatprep.subr.bf16.mxu0 0
  %153 = vmatpush1.bf16.msra.mxu0 %v130
  %154 = vmatprep.subr.bf16.mxu0 0
  %155 = vmatpush1.bf16.msra.mxu0 %v131
  %156 = vmatprep.subr.bf16.mxu0 0
  %157 = vmatpush1.bf16.msra.mxu0 0
  %158 = vmatprep.subr.bf16.mxu0 0
  %159 = vmatpush1.bf16.msra.mxu0 0
  %160 = vmatprep.subr.bf16.mxu0 0
  %161 = vmatpush1.bf16.msra.mxu0 0
  %162 = vmatprep.subr.bf16.mxu0 0
  %163 = vmatpush1.bf16.msra.mxu0 0
  %164 = vmatprep.subr.bf16.mxu0 0
  %165 = vmatpush1.bf16.msra.mxu0 0
  %166 = vmatprep.subr.bf16.mxu0 0
  %167 = vmatpush1.bf16.msra.mxu0 0
  %168 = vmatprep.subr.bf16.mxu0 0
  %169 = vmatpush1.bf16.msra.mxu0 0
  %170 = vmatprep.subr.bf16.mxu0 0
  %171 = vmatpush1.bf16.msra.mxu0 0
  %172 = vmatprep.mubr.bf16.mxu0 0
  %173 = vmatmul.mubr.bf16.gmra.mrb[0].mxu0 %v75
  %v174 = vpop.f32.mrb[0].mxu0
  %v175 = vadd.f32 0.0, %v174
  %v176 = vpop.f32.mrb[0].mxu0
  %v177 = vpop.f32.mrb[0].mxu0
  %v178 = vadd.f32 0.0, %v177
  %v179 = vpop.f32.mrb[0].mxu0
  %180 = vdwg.mxu0
  %v197 = vunpack.c.l.b16 %v57
  %v198 = vunpack.c.l.b16 %v58
  %v199 = vunpack.c.l.b16 %v59
  %v200 = vunpack.c.l.b16 %v60
  %v201 = vunpack.c.l.b16 %v61
  %v202 = vunpack.c.l.b16 %v62
  %v203 = vunpack.c.l.b16 %v63
  %v204 = vunpack.c.l.b16 %v64
  %v205 = vunpack.c.l.b16 %v65
  %v206 = vunpack.c.l.b16 %v66
  %v207 = vunpack.c.l.b16 %v67
  %v208 = vunpack.c.l.b16 %v68
  %v209 = vunpack.c.l.b16 %v69
  %v210 = vunpack.c.l.b16 %v70
  %v211 = vunpack.c.l.b16 %v71
  %v212 = vunpack.c.l.b16 %v72
  %v213 = vpack.c.b16 %v198, %v197
  %v214 = vpack.c.b16 %v200, %v199
  %v215 = vpack.c.b16 %v202, %v201
  %v216 = vpack.c.b16 %v204, %v203
  %v217 = vpack.c.b16 %v206, %v205
  %v218 = vpack.c.b16 %v208, %v207
  %v219 = vpack.c.b16 %v210, %v209
  %v220 = vpack.c.b16 %v212, %v211
  %229 = vmatprep.subr.bf16.mxu0 0
  %230 = vmatpush1.bf16.msra.mxu0 %v213
  %231 = vmatprep.subr.bf16.mxu0 0
  %232 = vmatpush1.bf16.msra.mxu0 %v214
  %233 = vmatprep.subr.bf16.mxu0 0
  %234 = vmatpush1.bf16.msra.mxu0 %v215
  %235 = vmatprep.subr.bf16.mxu0 0
  %236 = vmatpush1.bf16.msra.mxu0 %v216
  %237 = vmatprep.subr.bf16.mxu0 0
  %238 = vmatpush1.bf16.msra.mxu0 %v217
  %239 = vmatprep.subr.bf16.mxu0 0
  %240 = vmatpush1.bf16.msra.mxu0 %v218
  %241 = vmatprep.subr.bf16.mxu0 0
  %242 = vmatpush1.bf16.msra.mxu0 %v219
  %243 = vmatprep.subr.bf16.mxu0 0
  %244 = vmatpush1.bf16.msra.mxu0 %v220
  %245 = vmatprep.subr.bf16.mxu0 0
  %246 = vmatpush1.bf16.msra.mxu0 0
  %247 = vmatprep.subr.bf16.mxu0 0
  %248 = vmatpush1.bf16.msra.mxu0 0
  %249 = vmatprep.subr.bf16.mxu0 0
  %250 = vmatpush1.bf16.msra.mxu0 0
  %251 = vmatprep.subr.bf16.mxu0 0
  %252 = vmatpush1.bf16.msra.mxu0 0
  %253 = vmatprep.subr.bf16.mxu0 0
  %254 = vmatpush1.bf16.msra.mxu0 0
  %255 = vmatprep.subr.bf16.mxu0 0
  %256 = vmatpush1.bf16.msra.mxu0 0
  %257 = vmatprep.subr.bf16.mxu0 0
  %258 = vmatpush1.bf16.msra.mxu0 0
  %259 = vmatprep.subr.bf16.mxu0 0
  %260 = vmatpush1.bf16.msra.mxu0 0
  %261 = vmatprep.mubr.bf16.mxu0 0
  %262 = vmatmul.mubr.bf16.gmra.mrb[0].mxu0 %v56
  %v263 = vpop.f32.mrb[0].mxu0
  %v264 = vadd.f32 %v175, %v263
  %v265 = vpop.f32.mrb[0].mxu0
  %v266 = vpop.f32.mrb[0].mxu0
  %v267 = vadd.f32 %v178, %v266
  %v268 = vpop.f32.mrb[0].mxu0
  %269 = vdwg.mxu0
  %v270 = vld [vmem:[%s2] sm:$0xff]
  %v271 = vld [vmem:[%s2 + $0x8] sm:$0xff]
  %v272 = vpack.c.bf16 %v271, %v270
  %v273 = vld [vmem:[%s5] sm:$0xf]
  %v274 = vld [vmem:[%s5 + $0x4] sm:$0xf]
  %v275 = vld [vmem:[%s5 + $0x8] sm:$0xf]
  %v276 = vld [vmem:[%s5 + $0xc] sm:$0xf]
  %v277 = vld [vmem:[%s5 + $0x10] sm:$0xf]
  %v278 = vld [vmem:[%s5 + $0x14] sm:$0xf]
  %v279 = vld [vmem:[%s5 + $0x18] sm:$0xf]
  %v280 = vld [vmem:[%s5 + $0x1c] sm:$0xf]
  %v281 = vld [vmem:[%s5 + $0x20] sm:$0xf]
  %v282 = vld [vmem:[%s5 + $0x24] sm:$0xf]
  %v283 = vld [vmem:[%s5 + $0x28] sm:$0xf]
  %v284 = vld [vmem:[%s5 + $0x2c] sm:$0xf]
  %v285 = vld [vmem:[%s5 + $0x30] sm:$0xf]
  %v286 = vld [vmem:[%s5 + $0x34] sm:$0xf]
  %v287 = vld [vmem:[%s5 + $0x38] sm:$0xf]
  %v288 = vld [vmem:[%s5 + $0x3c] sm:$0xf]
  %v305 = vunpack.c.l.b16 %v273
  %v306 = vunpack.c.l.b16 %v274
  %v307 = vunpack.c.l.b16 %v275
  %v308 = vunpack.c.l.b16 %v276
  %v309 = vunpack.c.l.b16 %v277
  %v310 = vunpack.c.l.b16 %v278
  %v311 = vunpack.c.l.b16 %v279
  %v312 = vunpack.c.l.b16 %v280
  %v313 = vunpack.c.l.b16 %v281
  %v314 = vunpack.c.l.b16 %v282
  %v315 = vunpack.c.l.b16 %v283
  %v316 = vunpack.c.l.b16 %v284
  %v317 = vunpack.c.l.b16 %v285
  %v318 = vunpack.c.l.b16 %v286
  %v319 = vunpack.c.l.b16 %v287
  %v320 = vunpack.c.l.b16 %v288
  %v321 = vpack.c.b16 %v306, %v305
  %v322 = vpack.c.b16 %v308, %v307
  %v323 = vpack.c.b16 %v310, %v309
  %v324 = vpack.c.b16 %v312, %v311
  %v325 = vpack.c.b16 %v314, %v313
  %v326 = vpack.c.b16 %v316, %v315
  %v327 = vpack.c.b16 %v318, %v317
  %v328 = vpack.c.b16 %v320, %v319
  %337 = vmatprep.subr.bf16.mxu0 0
  %338 = vmatpush1.bf16.msra.mxu0 %v321
  %339 = vmatprep.subr.bf16.mxu0 0
  %340 = vmatpush1.bf16.msra.mxu0 %v322
  %341 = vmatprep.subr.bf16.mxu0 0
  %342 = vmatpush1.bf16.msra.mxu0 %v323
  %343 = vmatprep.subr.bf16.mxu0 0
  %344 = vmatpush1.bf16.msra.mxu0 %v324
  %345 = vmatprep.subr.bf16.mxu0 0
  %346 = vmatpush1.bf16.msra.mxu0 %v325
  %347 = vmatprep.subr.bf16.mxu0 0
  %348 = vmatpush1.bf16.msra.mxu0 %v326
  %349 = vmatprep.subr.bf16.mxu0 0
  %350 = vmatpush1.bf16.msra.mxu0 %v327
  %351 = vmatprep.subr.bf16.mxu0 0
  %352 = vmatpush1.bf16.msra.mxu0 %v328
  %353 = vmatprep.subr.bf16.mxu0 0
  %354 = vmatpush1.bf16.msra.mxu0 0
  %355 = vmatprep.subr.bf16.mxu0 0
  %356 = vmatpush1.bf16.msra.mxu0 0
  %357 = vmatprep.subr.bf16.mxu0 0
  %358 = vmatpush1.bf16.msra.mxu0 0
  %359 = vmatprep.subr.bf16.mxu0 0
  %360 = vmatpush1.bf16.msra.mxu0 0
  %361 = vmatprep.subr.bf16.mxu0 0
  %362 = vmatpush1.bf16.msra.mxu0 0
  %363 = vmatprep.subr.bf16.mxu0 0
  %364 = vmatpush1.bf16.msra.mxu0 0
  %365 = vmatprep.subr.bf16.mxu0 0
  %366 = vmatpush1.bf16.msra.mxu0 0
  %367 = vmatprep.subr.bf16.mxu0 0
  %368 = vmatpush1.bf16.msra.mxu0 0
  %369 = vmatprep.mubr.bf16.mxu0 0
  %370 = vmatmul.mubr.bf16.gmra.mrb[0].mxu0 %v272
  %v371 = vpop.f32.mrb[0].mxu0
  %v372 = vadd.f32 0.0, %v371
  %v373 = vpop.f32.mrb[0].mxu0
  %v374 = vpop.f32.mrb[0].mxu0
  %v375 = vadd.f32 0.0, %v374
  %v376 = vpop.f32.mrb[0].mxu0
  %377 = vdwg.mxu0
  %v378 = vadd.f32 %v264, %v372
  %v379 = vadd.f32 %v267, %v375
  %v380 = vld [vmem:[%s6] sm:$0x1]
  %v382 = vlaneseq
  %v383 = vshrl.u32 %v382, 7
  %v384 = vsub.s32 0, %v383
  %v385 = vrot.slane %v380, %v384
  %v387 = vadd.f32 %v378, %v385
  %v388 = vadd.f32 %v379, %v385
  %v389 = vmax.f32 %v387, 0.0
  %v390 = vmax.f32 %v388, 0.0
  %v391 = vpack.c.bf16 %v390, %v389
  %v392 = vld [vmem:[%s7] sm:$0xf]
  %v393 = vld [vmem:[%s7 + $0x4] sm:$0xf]
  %v394 = vld [vmem:[%s7 + $0x8] sm:$0xf]
  %v395 = vld [vmem:[%s7 + $0xc] sm:$0xf]
  %v396 = vld [vmem:[%s7 + $0x10] sm:$0xf]
  %v397 = vld [vmem:[%s7 + $0x14] sm:$0xf]
  %v398 = vld [vmem:[%s7 + $0x18] sm:$0xf]
  %v399 = vld [vmem:[%s7 + $0x1c] sm:$0xf]
  %v400 = vld [vmem:[%s7 + $0x20] sm:$0xf]
  %v401 = vld [vmem:[%s7 + $0x24] sm:$0xf]
  %v402 = vld [vmem:[%s7 + $0x28] sm:$0xf]
  %v403 = vld [vmem:[%s7 + $0x2c] sm:$0xf]
  %v404 = vld [vmem:[%s7 + $0x30] sm:$0xf]
  %v405 = vld [vmem:[%s7 + $0x34] sm:$0xf]
  %v406 = vld [vmem:[%s7 + $0x38] sm:$0xf]
  %v407 = vld [vmem:[%s7 + $0x3c] sm:$0xf]
  %v408 = vld [vmem:[%s8] sm:$0x1]
  %v410 = vlaneseq
  %v411 = vshrl.u32 %v410, 7
  %v412 = vsub.s32 0, %v411
  %v413 = vrot.slane %v408, %v412
  %v431 = vunpack.c.l.b16 %v392
  %v432 = vunpack.c.l.b16 %v393
  %v433 = vunpack.c.l.b16 %v394
  %v434 = vunpack.c.l.b16 %v395
  %v435 = vunpack.c.l.b16 %v396
  %v436 = vunpack.c.l.b16 %v397
  %v437 = vunpack.c.l.b16 %v398
  %v438 = vunpack.c.l.b16 %v399
  %v439 = vunpack.c.l.b16 %v400
  %v440 = vunpack.c.l.b16 %v401
  %v441 = vunpack.c.l.b16 %v402
  %v442 = vunpack.c.l.b16 %v403
  %v443 = vunpack.c.l.b16 %v404
  %v444 = vunpack.c.l.b16 %v405
  %v445 = vunpack.c.l.b16 %v406
  %v446 = vunpack.c.l.b16 %v407
  %v447 = vpack.c.b16 %v432, %v431
  %v448 = vpack.c.b16 %v434, %v433
  %v449 = vpack.c.b16 %v436, %v435
  %v450 = vpack.c.b16 %v438, %v437
  %v451 = vpack.c.b16 %v440, %v439
  %v452 = vpack.c.b16 %v442, %v441
  %v453 = vpack.c.b16 %v444, %v443
  %v454 = vpack.c.b16 %v446, %v445
  %463 = vmatprep.subr.bf16.mxu0 0
  %464 = vmatpush1.bf16.msra.mxu0 %v447
  %465 = vmatprep.subr.bf16.mxu0 0
  %466 = vmatpush1.bf16.msra.mxu0 %v448
  %467 = vmatprep.subr.bf16.mxu0 0
  %468 = vmatpush1.bf16.msra.mxu0 %v449
  %469 = vmatprep.subr.bf16.mxu0 0
  %470 = vmatpush1.bf16.msra.mxu0 %v450
  %471 = vmatprep.subr.bf16.mxu0 0
  %472 = vmatpush1.bf16.msra.mxu0 %v451
  %473 = vmatprep.subr.bf16.mxu0 0
  %474 = vmatpush1.bf16.msra.mxu0 %v452
  %475 = vmatprep.subr.bf16.mxu0 0
  %476 = vmatpush1.bf16.msra.mxu0 %v453
  %477 = vmatprep.subr.bf16.mxu0 0
  %478 = vmatpush1.bf16.msra.mxu0 %v454
  %479 = vmatprep.subr.bf16.mxu0 0
  %480 = vmatpush1.bf16.msra.mxu0 0
  %481 = vmatprep.subr.bf16.mxu0 0
  %482 = vmatpush1.bf16.msra.mxu0 0
  %483 = vmatprep.subr.bf16.mxu0 0
  %484 = vmatpush1.bf16.msra.mxu0 0
  %485 = vmatprep.subr.bf16.mxu0 0
  %486 = vmatpush1.bf16.msra.mxu0 0
  %487 = vmatprep.subr.bf16.mxu0 0
  %488 = vmatpush1.bf16.msra.mxu0 0
  %489 = vmatprep.subr.bf16.mxu0 0
  %490 = vmatpush1.bf16.msra.mxu0 0
  %491 = vmatprep.subr.bf16.mxu0 0
  %492 = vmatpush1.bf16.msra.mxu0 0
  %493 = vmatprep.subr.bf16.mxu0 0
  %494 = vmatpush1.bf16.msra.mxu0 0
  %495 = vmatprep.mubr.bf16.mxu0 0
  %496 = vmatmul.mubr.bf16.gmra.mrb[0].mxu0 %v391
  %v497 = vpop.f32.mrb[0].mxu0
  %v498 = vadd.f32 %v413, %v497
  %v499 = vpop.f32.mrb[0].mxu0
  %v500 = vpop.f32.mrb[0].mxu0
  %v501 = vadd.f32 %v413, %v500
  %v502 = vpop.f32.mrb[0].mxu0
  %503 = vdwg.mxu0
  %v504 = vmax.f32 %v498, 0.0
  %v505 = vmax.f32 %v501, 0.0
  %v506 = vpack.c.bf16 %v505, %v504
  %v507 = vld [vmem:[%s9] sm:$0xf]
  %v508 = vld [vmem:[%s9 + $0x4] sm:$0xf]
  %v509 = vld [vmem:[%s9 + $0x8] sm:$0xf]
  %v510 = vld [vmem:[%s9 + $0xc] sm:$0xf]
  %v511 = vld [vmem:[%s9 + $0x10] sm:$0xf]
  %v512 = vld [vmem:[%s9 + $0x14] sm:$0xf]
  %v513 = vld [vmem:[%s9 + $0x18] sm:$0xf]
  %v514 = vld [vmem:[%s9 + $0x1c] sm:$0xf]
  %v515 = vld [vmem:[%s9 + $0x20] sm:$0xf]
  %v516 = vld [vmem:[%s9 + $0x24] sm:$0xf]
  %v517 = vld [vmem:[%s9 + $0x28] sm:$0xf]
  %v518 = vld [vmem:[%s9 + $0x2c] sm:$0xf]
  %v519 = vld [vmem:[%s9 + $0x30] sm:$0xf]
  %v520 = vld [vmem:[%s9 + $0x34] sm:$0xf]
  %v521 = vld [vmem:[%s9 + $0x38] sm:$0xf]
  %v522 = vld [vmem:[%s9 + $0x3c] sm:$0xf]
  %v523 = vld [vmem:[%s10] sm:$0x1]
  %v525 = vlaneseq
  %v526 = vshrl.u32 %v525, 7
  %v527 = vsub.s32 0, %v526
  %v528 = vrot.slane %v523, %v527
  %v546 = vunpack.c.l.b16 %v507
  %v547 = vunpack.c.l.b16 %v508
  %v548 = vunpack.c.l.b16 %v509
  %v549 = vunpack.c.l.b16 %v510
  %v550 = vunpack.c.l.b16 %v511
  %v551 = vunpack.c.l.b16 %v512
  %v552 = vunpack.c.l.b16 %v513
  %v553 = vunpack.c.l.b16 %v514
  %v554 = vunpack.c.l.b16 %v515
  %v555 = vunpack.c.l.b16 %v516
  %v556 = vunpack.c.l.b16 %v517
  %v557 = vunpack.c.l.b16 %v518
  %v558 = vunpack.c.l.b16 %v519
  %v559 = vunpack.c.l.b16 %v520
  %v560 = vunpack.c.l.b16 %v521
  %v561 = vunpack.c.l.b16 %v522
  %v562 = vpack.c.b16 %v547, %v546
  %v563 = vpack.c.b16 %v549, %v548
  %v564 = vpack.c.b16 %v551, %v550
  %v565 = vpack.c.b16 %v553, %v552
  %v566 = vpack.c.b16 %v555, %v554
  %v567 = vpack.c.b16 %v557, %v556
  %v568 = vpack.c.b16 %v559, %v558
  %v569 = vpack.c.b16 %v561, %v560
  %578 = vmatprep.subr.bf16.mxu0 0
  %579 = vmatpush1.bf16.msra.mxu0 %v562
  %580 = vmatprep.subr.bf16.mxu0 0
  %581 = vmatpush1.bf16.msra.mxu0 %v563
  %582 = vmatprep.subr.bf16.mxu0 0
  %583 = vmatpush1.bf16.msra.mxu0 %v564
  %584 = vmatprep.subr.bf16.mxu0 0
  %585 = vmatpush1.bf16.msra.mxu0 %v565
  %586 = vmatprep.subr.bf16.mxu0 0
  %587 = vmatpush1.bf16.msra.mxu0 %v566
  %588 = vmatprep.subr.bf16.mxu0 0
  %589 = vmatpush1.bf16.msra.mxu0 %v567
  %590 = vmatprep.subr.bf16.mxu0 0
  %591 = vmatpush1.bf16.msra.mxu0 %v568
  %592 = vmatprep.subr.bf16.mxu0 0
  %593 = vmatpush1.bf16.msra.mxu0 %v569
  %594 = vmatprep.subr.bf16.mxu0 0
  %595 = vmatpush1.bf16.msra.mxu0 0
  %596 = vmatprep.subr.bf16.mxu0 0
  %597 = vmatpush1.bf16.msra.mxu0 0
  %598 = vmatprep.subr.bf16.mxu0 0
  %599 = vmatpush1.bf16.msra.mxu0 0
  %600 = vmatprep.subr.bf16.mxu0 0
  %601 = vmatpush1.bf16.msra.mxu0 0
  %602 = vmatprep.subr.bf16.mxu0 0
  %603 = vmatpush1.bf16.msra.mxu0 0
  %604 = vmatprep.subr.bf16.mxu0 0
  %605 = vmatpush1.bf16.msra.mxu0 0
  %606 = vmatprep.subr.bf16.mxu0 0
  %607 = vmatpush1.bf16.msra.mxu0 0
  %608 = vmatprep.subr.bf16.mxu0 0
  %609 = vmatpush1.bf16.msra.mxu0 0
  %610 = vmatprep.mubr.bf16.mxu0 0
  %611 = vmatmul.mubr.bf16.gmra.mrb[0].mxu0 %v506
  %v612 = vpop.f32.mrb[0].mxu0
  %v613 = vadd.f32 %v528, %v612
  %v614 = vpop.f32.mrb[0].mxu0
  %v615 = vpop.f32.mrb[0].mxu0
  %v616 = vadd.f32 %v528, %v615
  %v617 = vpop.f32.mrb[0].mxu0
  %618 = vdwg.mxu0
  %v619 = vmax.f32 %v613, 0.0
  %v620 = vmax.f32 %v616, 0.0
  %v621 = vpack.c.bf16 %v620, %v619
  %v622 = vld [vmem:[%s11] sm:$0xf]
  %v623 = vld [vmem:[%s11 + $0x4] sm:$0xf]
  %v624 = vld [vmem:[%s11 + $0x8] sm:$0xf]
  %v625 = vld [vmem:[%s11 + $0xc] sm:$0xf]
  %v626 = vld [vmem:[%s11 + $0x10] sm:$0xf]
  %v627 = vld [vmem:[%s11 + $0x14] sm:$0xf]
  %v628 = vld [vmem:[%s11 + $0x18] sm:$0xf]
  %v629 = vld [vmem:[%s11 + $0x1c] sm:$0xf]
  %v630 = vld [vmem:[%s11 + $0x20] sm:$0xf]
  %v631 = vld [vmem:[%s11 + $0x24] sm:$0xf]
  %v632 = vld [vmem:[%s11 + $0x28] sm:$0xf]
  %v633 = vld [vmem:[%s11 + $0x2c] sm:$0xf]
  %v634 = vld [vmem:[%s11 + $0x30] sm:$0xf]
  %v635 = vld [vmem:[%s11 + $0x34] sm:$0xf]
  %v636 = vld [vmem:[%s11 + $0x38] sm:$0xf]
  %v637 = vld [vmem:[%s11 + $0x3c] sm:$0xf]
  %v638 = vld [vmem:[%s12] sm:$0x1]
  %v640 = vlaneseq
  %v641 = vshrl.u32 %v640, 7
  %v642 = vsub.s32 0, %v641
  %v643 = vrot.slane %v638, %v642
  %v661 = vunpack.c.l.b16 %v622
  %v662 = vunpack.c.l.b16 %v623
  %v663 = vunpack.c.l.b16 %v624
  %v664 = vunpack.c.l.b16 %v625
  %v665 = vunpack.c.l.b16 %v626
  %v666 = vunpack.c.l.b16 %v627
  %v667 = vunpack.c.l.b16 %v628
  %v668 = vunpack.c.l.b16 %v629
  %v669 = vunpack.c.l.b16 %v630
  %v670 = vunpack.c.l.b16 %v631
  %v671 = vunpack.c.l.b16 %v632
  %v672 = vunpack.c.l.b16 %v633
  %v673 = vunpack.c.l.b16 %v634
  %v674 = vunpack.c.l.b16 %v635
  %v675 = vunpack.c.l.b16 %v636
  %v676 = vunpack.c.l.b16 %v637
  %v677 = vpack.c.b16 %v662, %v661
  %v678 = vpack.c.b16 %v664, %v663
  %v679 = vpack.c.b16 %v666, %v665
  %v680 = vpack.c.b16 %v668, %v667
  %v681 = vpack.c.b16 %v670, %v669
  %v682 = vpack.c.b16 %v672, %v671
  %v683 = vpack.c.b16 %v674, %v673
  %v684 = vpack.c.b16 %v676, %v675
  %693 = vmatprep.subr.bf16.mxu0 0
  %694 = vmatpush1.bf16.msra.mxu0 %v677
  %695 = vmatprep.subr.bf16.mxu0 0
  %696 = vmatpush1.bf16.msra.mxu0 %v678
  %697 = vmatprep.subr.bf16.mxu0 0
  %698 = vmatpush1.bf16.msra.mxu0 %v679
  %699 = vmatprep.subr.bf16.mxu0 0
  %700 = vmatpush1.bf16.msra.mxu0 %v680
  %701 = vmatprep.subr.bf16.mxu0 0
  %702 = vmatpush1.bf16.msra.mxu0 %v681
  %703 = vmatprep.subr.bf16.mxu0 0
  %704 = vmatpush1.bf16.msra.mxu0 %v682
  %705 = vmatprep.subr.bf16.mxu0 0
  %706 = vmatpush1.bf16.msra.mxu0 %v683
  %707 = vmatprep.subr.bf16.mxu0 0
  %708 = vmatpush1.bf16.msra.mxu0 %v684
  %709 = vmatprep.subr.bf16.mxu0 0
  %710 = vmatpush1.bf16.msra.mxu0 0
  %711 = vmatprep.subr.bf16.mxu0 0
  %712 = vmatpush1.bf16.msra.mxu0 0
  %713 = vmatprep.subr.bf16.mxu0 0
  %714 = vmatpush1.bf16.msra.mxu0 0
  %715 = vmatprep.subr.bf16.mxu0 0
  %716 = vmatpush1.bf16.msra.mxu0 0
  %717 = vmatprep.subr.bf16.mxu0 0
  %718 = vmatpush1.bf16.msra.mxu0 0
  %719 = vmatprep.subr.bf16.mxu0 0
  %720 = vmatpush1.bf16.msra.mxu0 0
  %721 = vmatprep.subr.bf16.mxu0 0
  %722 = vmatpush1.bf16.msra.mxu0 0
  %723 = vmatprep.subr.bf16.mxu0 0
  %724 = vmatpush1.bf16.msra.mxu0 0
  %725 = vmatprep.mubr.bf16.mxu0 0
  %726 = vmatmul.mubr.bf16.gmra.mrb[0].mxu0 %v621
  %v727 = vpop.f32.mrb[0].mxu0
  %v728 = vadd.f32 %v643, %v727
  %v729 = vpop.f32.mrb[0].mxu0
  %v730 = vpop.f32.mrb[0].mxu0
  %v731 = vadd.f32 %v643, %v730
  %v732 = vpop.f32.mrb[0].mxu0
  %733 = vdwg.mxu0
  %734 = vadd.xlane.f32.xlu0 %v728
  %v735 = vpop.xlane.xlu0 %734
  %736 = vadd.xlane.f32.xlu0 %v731
  %v737 = vpop.xlane.xlu0 %736
  %v738 = vmul.f32 %v728, %v728
  %v739 = vmul.f32 %v731, %v731
  %740 = vadd.xlane.f32.xlu0 %v738
  %v741 = vpop.xlane.xlu0 %740
  %742 = vadd.xlane.f32.xlu0 %v739
  %v743 = vpop.xlane.xlu0 %742
  %v744 = vmul.f32 %v735, 0.0078125
  %v745 = vmul.f32 %v737, 0.0078125
  %v746 = vmul.f32 %v741, 0.0078125
  %v747 = vmul.f32 %v743, 0.0078125
  %v748 = vmul.f32 %v744, %v744
  %v749 = vmul.f32 %v745, %v745
  %v750 = vsub.f32 %v746, %v748
  %v751 = vsub.f32 %v747, %v749
  %v752 = vmax.f32 %v750, 0.0
  %v753 = vmax.f32 %v751, 0.0
  %v754 = vsub.f32 %v728, %v744
  %v755 = vsub.f32 %v731, %v745
  %v756 = vadd.f32 %v752, 1e-05
  %v757 = vadd.f32 %v753, 1e-05
  %v758 = vrsqrt.pop %v756
  %v759 = vrsqrt.pop %v757
  %v760 = vmul.f32 %v754, %v758
  %v761 = vmul.f32 %v755, %v759
  %v762 = vld [vmem:[%s13] sm:$0x1]
  %v764 = vlaneseq
  %v765 = vshrl.u32 %v764, 7
  %v766 = vsub.s32 0, %v765
  %v767 = vrot.slane %v762, %v766
  %v769 = vmul.f32 %v760, %v767
  %v770 = vmul.f32 %v761, %v767
  %v771 = vld [vmem:[%s14] sm:$0x1]
  %v773 = vlaneseq
  %v774 = vshrl.u32 %v773, 7
  %v775 = vsub.s32 0, %v774
  %v776 = vrot.slane %v771, %v775
  %v778 = vadd.f32 %v769, %v776
  %v779 = vadd.f32 %v770, %v776
  %v780 = vld [vmem:[%s15] sm:$0xff]
  %v781 = vld [vmem:[%s15 + $0x8] sm:$0xff]
  %v782 = vadd.f32 %v778, %v780
  %v783 = vadd.f32 %v779, %v781
  %784 = vst [vmem:[%s16] sm:$0xff] %v782
  %785 = vst [vmem:[%s16 + $0x8] sm:$0xff] %v783
  // Predicated region
  $region66: #{gnn_forward.36} parent=0 // pred_check
    _
  $region67: #{gnn_forward.36} parent=0 // pred_check_branch
    %787 = sbr.rel (0) target = $region69
  $region68: #{gnn_forward.36} parent=0 // pred_region
    _
  $region69: #{gnn_forward.36} parent=0 // pred_fallthru
    _
  // Predicated region
  $region70: #{gnn_forward.36} parent=0 // pred_check
    _
  $region71: #{gnn_forward.36} parent=0 // pred_check_branch
    %789 = sbr.rel (0) target = $region73
  $region72: #{gnn_forward.36} parent=0 // pred_region
    _
  $region73: #{gnn_forward.36} parent=0 // pred_fallthru
    _

// kernel: gnn_forward.61
$region0: #{gnn_forward.61}
  #allocation0 [shape = 'u32[]', space=smem, size = 0x4, offset = 0x4, fixed_abs, tag = 'smem constant byte address 0x4 - core index']
  #allocation1 [shape = 'u32[144,128]{1,0:T(1,128)}', space=vmem, size = 0x12000, scoped, tag = 'internal scratch']
  #allocation2 [shape = 'f32[1,1]{1,0:T(1,128)S(1)}', space=vmem, size = 0x200, scoped, tag = 'scoped memory for gnn_forward.61']
  %s0 = inlined_call_operand.vmem [shape: f32[16,128], index: 0, kind: input, shape index: {}]
  %s1 = inlined_call_operand.vmem [shape: bf16[128,128], index: 1, kind: input, shape index: {}]
  %s2 = inlined_call_operand.vmem [shape: f32[1,128], index: 2, kind: input, shape index: {}]
  %s3 = inlined_call_operand.vmem [shape: bf16[128,128], index: 3, kind: input, shape index: {}]
  %s4 = inlined_call_operand.vmem [shape: f32[1,128], index: 4, kind: input, shape index: {}]
  %s5 = inlined_call_operand.vmem [shape: bf16[128,128], index: 5, kind: input, shape index: {}]
  %s6 = inlined_call_operand.vmem [shape: f32[1,128], index: 6, kind: input, shape index: {}]
  %s7 = inlined_call_operand.vmem [shape: bf16[128,1], index: 7, kind: input, shape index: {}]
  %s8 = inlined_call_operand.<no memory space> [shape: f32[1,1], index: 8, kind: input, shape index: {}]
  %s9 = inlined_call_operand.vmem [shape: f32[16,1], index: 9, kind: output, shape index: {}]
  %s10 = sld [smem:[#allocation0]]
  $region46: #{gnn_forward.61} parent=0
    _
  %s12 = ssub.s32 1, %s10
  %s13 = scalar_select 0, %s12, %s10
  %v14 = vstv %s8
  %15 = vst [vmem:[#allocation2] sm:$0x1] %v14
  // Predicated region
  $region2: #{gnn_forward.61} parent=0 // pred_check
    _
  $region3: #{gnn_forward.61} parent=0 // pred_check_branch
    %17 = sbr.rel (0) target = $region5
  $region4: #{gnn_forward.61} parent=0 // pred_region
    _
  $region5: #{gnn_forward.61} parent=0 // pred_fallthru
    _
  // Predicated region
  $region6: #{gnn_forward.61} parent=0 // pred_check
    _
  $region7: #{gnn_forward.61} parent=0 // pred_check_branch
    %19 = sbr.rel (0) target = $region9
  $region8: #{gnn_forward.61} parent=0 // pred_region
    _
  $region9: #{gnn_forward.61} parent=0 // pred_fallthru
    _
  // Predicated region
  $region10: #{gnn_forward.61} parent=0 // pred_check
    _
  $region11: #{gnn_forward.61} parent=0 // pred_check_branch
    %21 = sbr.rel (0) target = $region13
  $region12: #{gnn_forward.61} parent=0 // pred_region
    _
  $region13: #{gnn_forward.61} parent=0 // pred_fallthru
    _
  // Predicated region
  $region14: #{gnn_forward.61} parent=0 // pred_check
    _
  $region15: #{gnn_forward.61} parent=0 // pred_check_branch
    %23 = sbr.rel (0) target = $region17
  $region16: #{gnn_forward.61} parent=0 // pred_region
    _
  $region17: #{gnn_forward.61} parent=0 // pred_fallthru
    _
  // Predicated region
  $region18: #{gnn_forward.61} parent=0 // pred_check
    _
  $region19: #{gnn_forward.61} parent=0 // pred_check_branch
    %25 = sbr.rel (0) target = $region21
  $region20: #{gnn_forward.61} parent=0 // pred_region
    _
  $region21: #{gnn_forward.61} parent=0 // pred_fallthru
    _
  // Predicated region
  $region22: #{gnn_forward.61} parent=0 // pred_check
    _
  $region23: #{gnn_forward.61} parent=0 // pred_check_branch
    %27 = sbr.rel (0) target = $region25
  $region24: #{gnn_forward.61} parent=0 // pred_region
    _
  $region25: #{gnn_forward.61} parent=0 // pred_fallthru
    _
  // Predicated region
  $region26: #{gnn_forward.61} parent=0 // pred_check
    _
  $region27: #{gnn_forward.61} parent=0 // pred_check_branch
    %29 = sbr.rel (0) target = $region29
  $region28: #{gnn_forward.61} parent=0 // pred_region
    _
  $region29: #{gnn_forward.61} parent=0 // pred_fallthru
    _
  // Predicated region
  $region30: #{gnn_forward.61} parent=0 // pred_check
    _
  $region31: #{gnn_forward.61} parent=0 // pred_check_branch
    %31 = sbr.rel (0) target = $region33
  $region32: #{gnn_forward.61} parent=0 // pred_region
    _
  $region33: #{gnn_forward.61} parent=0 // pred_fallthru
    _
  // Predicated region
  $region34: #{gnn_forward.61} parent=0 // pred_check
    _
  $region35: #{gnn_forward.61} parent=0 // pred_check_branch
    %33 = sbr.rel (0) target = $region37
  $region36: #{gnn_forward.61} parent=0 // pred_region
    _
  $region37: #{gnn_forward.61} parent=0 // pred_fallthru
    _
  %v35 = vld [vmem:[%s0] sm:$0xff]
  %v36 = vld [vmem:[%s0 + $0x8] sm:$0xff]
  %v37 = vpack.c.bf16 %v36, %v35
  %v38 = vld [vmem:[%s1] sm:$0xf]
  %v39 = vld [vmem:[%s1 + $0x4] sm:$0xf]
  %v40 = vld [vmem:[%s1 + $0x8] sm:$0xf]
  %v41 = vld [vmem:[%s1 + $0xc] sm:$0xf]
  %v42 = vld [vmem:[%s1 + $0x10] sm:$0xf]
  %v43 = vld [vmem:[%s1 + $0x14] sm:$0xf]
  %v44 = vld [vmem:[%s1 + $0x18] sm:$0xf]
  %v45 = vld [vmem:[%s1 + $0x1c] sm:$0xf]
  %v46 = vld [vmem:[%s1 + $0x20] sm:$0xf]
  %v47 = vld [vmem:[%s1 + $0x24] sm:$0xf]
  %v48 = vld [vmem:[%s1 + $0x28] sm:$0xf]
  %v49 = vld [vmem:[%s1 + $0x2c] sm:$0xf]
  %v50 = vld [vmem:[%s1 + $0x30] sm:$0xf]
  %v51 = vld [vmem:[%s1 + $0x34] sm:$0xf]
  %v52 = vld [vmem:[%s1 + $0x38] sm:$0xf]
  %v53 = vld [vmem:[%s1 + $0x3c] sm:$0xf]
  %v54 = vld [vmem:[%s2] sm:$0x1]
  %v56 = vlaneseq
  %v57 = vshrl.u32 %v56, 7
  %v58 = vsub.s32 0, %v57
  %v59 = vrot.slane %v54, %v58
  %v77 = vunpack.c.l.b16 %v38
  %v78 = vunpack.c.l.b16 %v39
  %v79 = vunpack.c.l.b16 %v40
  %v80 = vunpack.c.l.b16 %v41
  %v81 = vunpack.c.l.b16 %v42
  %v82 = vunpack.c.l.b16 %v43
  %v83 = vunpack.c.l.b16 %v44
  %v84 = vunpack.c.l.b16 %v45
  %v85 = vunpack.c.l.b16 %v46
  %v86 = vunpack.c.l.b16 %v47
  %v87 = vunpack.c.l.b16 %v48
  %v88 = vunpack.c.l.b16 %v49
  %v89 = vunpack.c.l.b16 %v50
  %v90 = vunpack.c.l.b16 %v51
  %v91 = vunpack.c.l.b16 %v52
  %v92 = vunpack.c.l.b16 %v53
  %v93 = vpack.c.b16 %v78, %v77
  %v94 = vpack.c.b16 %v80, %v79
  %v95 = vpack.c.b16 %v82, %v81
  %v96 = vpack.c.b16 %v84, %v83
  %v97 = vpack.c.b16 %v86, %v85
  %v98 = vpack.c.b16 %v88, %v87
  %v99 = vpack.c.b16 %v90, %v89
  %v100 = vpack.c.b16 %v92, %v91
  %109 = vmatprep.subr.bf16.mxu0 0
  %110 = vmatpush1.bf16.msra.mxu0 %v93
  %111 = vmatprep.subr.bf16.mxu0 0
  %112 = vmatpush1.bf16.msra.mxu0 %v94
  %113 = vmatprep.subr.bf16.mxu0 0
  %114 = vmatpush1.bf16.msra.mxu0 %v95
  %115 = vmatprep.subr.bf16.mxu0 0
  %116 = vmatpush1.bf16.msra.mxu0 %v96
  %117 = vmatprep.subr.bf16.mxu0 0
  %118 = vmatpush1.bf16.msra.mxu0 %v97
  %119 = vmatprep.subr.bf16.mxu0 0
  %120 = vmatpush1.bf16.msra.mxu0 %v98
  %121 = vmatprep.subr.bf16.mxu0 0
  %122 = vmatpush1.bf16.msra.mxu0 %v99
  %123 = vmatprep.subr.bf16.mxu0 0
  %124 = vmatpush1.bf16.msra.mxu0 %v100
  %125 = vmatprep.subr.bf16.mxu0 0
  %126 = vmatpush1.bf16.msra.mxu0 0
  %127 = vmatprep.subr.bf16.mxu0 0
  %128 = vmatpush1.bf16.msra.mxu0 0
  %129 = vmatprep.subr.bf16.mxu0 0
  %130 = vmatpush1.bf16.msra.mxu0 0
  %131 = vmatprep.subr.bf16.mxu0 0
  %132 = vmatpush1.bf16.msra.mxu0 0
  %133 = vmatprep.subr.bf16.mxu0 0
  %134 = vmatpush1.bf16.msra.mxu0 0
  %135 = vmatprep.subr.bf16.mxu0 0
  %136 = vmatpush1.bf16.msra.mxu0 0
  %137 = vmatprep.subr.bf16.mxu0 0
  %138 = vmatpush1.bf16.msra.mxu0 0
  %139 = vmatprep.subr.bf16.mxu0 0
  %140 = vmatpush1.bf16.msra.mxu0 0
  %141 = vmatprep.mubr.bf16.mxu0 0
  %142 = vmatmul.mubr.bf16.gmra.mrb[0].mxu0 %v37
  %v143 = vpop.f32.mrb[0].mxu0
  %v144 = vadd.f32 %v59, %v143
  %v145 = vpop.f32.mrb[0].mxu0
  %v146 = vpop.f32.mrb[0].mxu0
  %v147 = vadd.f32 %v59, %v146
  %v148 = vpop.f32.mrb[0].mxu0
  %149 = vdwg.mxu0
  %v150 = vmax.f32 %v144, 0.0
  %v151 = vmax.f32 %v147, 0.0
  %v152 = vpack.c.bf16 %v151, %v150
  %v153 = vld [vmem:[%s3] sm:$0xf]
  %v154 = vld [vmem:[%s3 + $0x4] sm:$0xf]
  %v155 = vld [vmem:[%s3 + $0x8] sm:$0xf]
  %v156 = vld [vmem:[%s3 + $0xc] sm:$0xf]
  %v157 = vld [vmem:[%s3 + $0x10] sm:$0xf]
  %v158 = vld [vmem:[%s3 + $0x14] sm:$0xf]
  %v159 = vld [vmem:[%s3 + $0x18] sm:$0xf]
  %v160 = vld [vmem:[%s3 + $0x1c] sm:$0xf]
  %v161 = vld [vmem:[%s3 + $0x20] sm:$0xf]
  %v162 = vld [vmem:[%s3 + $0x24] sm:$0xf]
  %v163 = vld [vmem:[%s3 + $0x28] sm:$0xf]
  %v164 = vld [vmem:[%s3 + $0x2c] sm:$0xf]
  %v165 = vld [vmem:[%s3 + $0x30] sm:$0xf]
  %v166 = vld [vmem:[%s3 + $0x34] sm:$0xf]
  %v167 = vld [vmem:[%s3 + $0x38] sm:$0xf]
  %v168 = vld [vmem:[%s3 + $0x3c] sm:$0xf]
  %v169 = vld [vmem:[%s4] sm:$0x1]
  %v171 = vlaneseq
  %v172 = vshrl.u32 %v171, 7
  %v173 = vsub.s32 0, %v172
  %v174 = vrot.slane %v169, %v173
  %v192 = vunpack.c.l.b16 %v153
  %v193 = vunpack.c.l.b16 %v154
  %v194 = vunpack.c.l.b16 %v155
  %v195 = vunpack.c.l.b16 %v156
  %v196 = vunpack.c.l.b16 %v157
  %v197 = vunpack.c.l.b16 %v158
  %v198 = vunpack.c.l.b16 %v159
  %v199 = vunpack.c.l.b16 %v160
  %v200 = vunpack.c.l.b16 %v161
  %v201 = vunpack.c.l.b16 %v162
  %v202 = vunpack.c.l.b16 %v163
  %v203 = vunpack.c.l.b16 %v164
  %v204 = vunpack.c.l.b16 %v165
  %v205 = vunpack.c.l.b16 %v166
  %v206 = vunpack.c.l.b16 %v167
  %v207 = vunpack.c.l.b16 %v168
  %v208 = vpack.c.b16 %v193, %v192
  %v209 = vpack.c.b16 %v195, %v194
  %v210 = vpack.c.b16 %v197, %v196
  %v211 = vpack.c.b16 %v199, %v198
  %v212 = vpack.c.b16 %v201, %v200
  %v213 = vpack.c.b16 %v203, %v202
  %v214 = vpack.c.b16 %v205, %v204
  %v215 = vpack.c.b16 %v207, %v206
  %224 = vmatprep.subr.bf16.mxu0 0
  %225 = vmatpush1.bf16.msra.mxu0 %v208
  %226 = vmatprep.subr.bf16.mxu0 0
  %227 = vmatpush1.bf16.msra.mxu0 %v209
  %228 = vmatprep.subr.bf16.mxu0 0
  %229 = vmatpush1.bf16.msra.mxu0 %v210
  %230 = vmatprep.subr.bf16.mxu0 0
  %231 = vmatpush1.bf16.msra.mxu0 %v211
  %232 = vmatprep.subr.bf16.mxu0 0
  %233 = vmatpush1.bf16.msra.mxu0 %v212
  %234 = vmatprep.subr.bf16.mxu0 0
  %235 = vmatpush1.bf16.msra.mxu0 %v213
  %236 = vmatprep.subr.bf16.mxu0 0
  %237 = vmatpush1.bf16.msra.mxu0 %v214
  %238 = vmatprep.subr.bf16.mxu0 0
  %239 = vmatpush1.bf16.msra.mxu0 %v215
  %240 = vmatprep.subr.bf16.mxu0 0
  %241 = vmatpush1.bf16.msra.mxu0 0
  %242 = vmatprep.subr.bf16.mxu0 0
  %243 = vmatpush1.bf16.msra.mxu0 0
  %244 = vmatprep.subr.bf16.mxu0 0
  %245 = vmatpush1.bf16.msra.mxu0 0
  %246 = vmatprep.subr.bf16.mxu0 0
  %247 = vmatpush1.bf16.msra.mxu0 0
  %248 = vmatprep.subr.bf16.mxu0 0
  %249 = vmatpush1.bf16.msra.mxu0 0
  %250 = vmatprep.subr.bf16.mxu0 0
  %251 = vmatpush1.bf16.msra.mxu0 0
  %252 = vmatprep.subr.bf16.mxu0 0
  %253 = vmatpush1.bf16.msra.mxu0 0
  %254 = vmatprep.subr.bf16.mxu0 0
  %255 = vmatpush1.bf16.msra.mxu0 0
  %256 = vmatprep.mubr.bf16.mxu0 0
  %257 = vmatmul.mubr.bf16.gmra.mrb[0].mxu0 %v152
  %v258 = vpop.f32.mrb[0].mxu0
  %v259 = vadd.f32 %v174, %v258
  %v260 = vpop.f32.mrb[0].mxu0
  %v261 = vpop.f32.mrb[0].mxu0
  %v262 = vadd.f32 %v174, %v261
  %v263 = vpop.f32.mrb[0].mxu0
  %264 = vdwg.mxu0
  %v265 = vmax.f32 %v259, 0.0
  %v266 = vmax.f32 %v262, 0.0
  %v267 = vpack.c.bf16 %v266, %v265
  %v268 = vld [vmem:[%s5] sm:$0xf]
  %v269 = vld [vmem:[%s5 + $0x4] sm:$0xf]
  %v270 = vld [vmem:[%s5 + $0x8] sm:$0xf]
  %v271 = vld [vmem:[%s5 + $0xc] sm:$0xf]
  %v272 = vld [vmem:[%s5 + $0x10] sm:$0xf]
  %v273 = vld [vmem:[%s5 + $0x14] sm:$0xf]
  %v274 = vld [vmem:[%s5 + $0x18] sm:$0xf]
  %v275 = vld [vmem:[%s5 + $0x1c] sm:$0xf]
  %v276 = vld [vmem:[%s5 + $0x20] sm:$0xf]
  %v277 = vld [vmem:[%s5 + $0x24] sm:$0xf]
  %v278 = vld [vmem:[%s5 + $0x28] sm:$0xf]
  %v279 = vld [vmem:[%s5 + $0x2c] sm:$0xf]
  %v280 = vld [vmem:[%s5 + $0x30] sm:$0xf]
  %v281 = vld [vmem:[%s5 + $0x34] sm:$0xf]
  %v282 = vld [vmem:[%s5 + $0x38] sm:$0xf]
  %v283 = vld [vmem:[%s5 + $0x3c] sm:$0xf]
  %v284 = vld [vmem:[%s6] sm:$0x1]
  %v286 = vlaneseq
  %v287 = vshrl.u32 %v286, 7
  %v288 = vsub.s32 0, %v287
  %v289 = vrot.slane %v284, %v288
  %v307 = vunpack.c.l.b16 %v268
  %v308 = vunpack.c.l.b16 %v269
  %v309 = vunpack.c.l.b16 %v270
  %v310 = vunpack.c.l.b16 %v271
  %v311 = vunpack.c.l.b16 %v272
  %v312 = vunpack.c.l.b16 %v273
  %v313 = vunpack.c.l.b16 %v274
  %v314 = vunpack.c.l.b16 %v275
  %v315 = vunpack.c.l.b16 %v276
  %v316 = vunpack.c.l.b16 %v277
  %v317 = vunpack.c.l.b16 %v278
  %v318 = vunpack.c.l.b16 %v279
  %v319 = vunpack.c.l.b16 %v280
  %v320 = vunpack.c.l.b16 %v281
  %v321 = vunpack.c.l.b16 %v282
  %v322 = vunpack.c.l.b16 %v283
  %v323 = vpack.c.b16 %v308, %v307
  %v324 = vpack.c.b16 %v310, %v309
  %v325 = vpack.c.b16 %v312, %v311
  %v326 = vpack.c.b16 %v314, %v313
  %v327 = vpack.c.b16 %v316, %v315
  %v328 = vpack.c.b16 %v318, %v317
  %v329 = vpack.c.b16 %v320, %v319
  %v330 = vpack.c.b16 %v322, %v321
  %339 = vmatprep.subr.bf16.mxu0 0
  %340 = vmatpush1.bf16.msra.mxu0 %v323
  %341 = vmatprep.subr.bf16.mxu0 0
  %342 = vmatpush1.bf16.msra.mxu0 %v324
  %343 = vmatprep.subr.bf16.mxu0 0
  %344 = vmatpush1.bf16.msra.mxu0 %v325
  %345 = vmatprep.subr.bf16.mxu0 0
  %346 = vmatpush1.bf16.msra.mxu0 %v326
  %347 = vmatprep.subr.bf16.mxu0 0
  %348 = vmatpush1.bf16.msra.mxu0 %v327
  %349 = vmatprep.subr.bf16.mxu0 0
  %350 = vmatpush1.bf16.msra.mxu0 %v328
  %351 = vmatprep.subr.bf16.mxu0 0
  %352 = vmatpush1.bf16.msra.mxu0 %v329
  %353 = vmatprep.subr.bf16.mxu0 0
  %354 = vmatpush1.bf16.msra.mxu0 %v330
  %355 = vmatprep.subr.bf16.mxu0 0
  %356 = vmatpush1.bf16.msra.mxu0 0
  %357 = vmatprep.subr.bf16.mxu0 0
  %358 = vmatpush1.bf16.msra.mxu0 0
  %359 = vmatprep.subr.bf16.mxu0 0
  %360 = vmatpush1.bf16.msra.mxu0 0
  %361 = vmatprep.subr.bf16.mxu0 0
  %362 = vmatpush1.bf16.msra.mxu0 0
  %363 = vmatprep.subr.bf16.mxu0 0
  %364 = vmatpush1.bf16.msra.mxu0 0
  %365 = vmatprep.subr.bf16.mxu0 0
  %366 = vmatpush1.bf16.msra.mxu0 0
  %367 = vmatprep.subr.bf16.mxu0 0
  %368 = vmatpush1.bf16.msra.mxu0 0
  %369 = vmatprep.subr.bf16.mxu0 0
  %370 = vmatpush1.bf16.msra.mxu0 0
  %371 = vmatprep.mubr.bf16.mxu0 0
  %372 = vmatmul.mubr.bf16.gmra.mrb[0].mxu0 %v267
  %v373 = vpop.f32.mrb[0].mxu0
  %v374 = vadd.f32 %v289, %v373
  %v375 = vpop.f32.mrb[0].mxu0
  %v376 = vpop.f32.mrb[0].mxu0
  %v377 = vadd.f32 %v289, %v376
  %v378 = vpop.f32.mrb[0].mxu0
  %379 = vdwg.mxu0
  %v380 = vmax.f32 %v374, 0.0
  %v381 = vmax.f32 %v377, 0.0
  %v382 = vpack.c.bf16 %v381, %v380
  %v383 = vld [vmem:[%s7] sm:$0xf]
  %v384 = vld [vmem:[%s7 + $0x4] sm:$0xf]
  %v385 = vld [vmem:[%s7 + $0x8] sm:$0xf]
  %v386 = vld [vmem:[%s7 + $0xc] sm:$0xf]
  %v387 = vld [vmem:[%s7 + $0x10] sm:$0xf]
  %v388 = vld [vmem:[%s7 + $0x14] sm:$0xf]
  %v389 = vld [vmem:[%s7 + $0x18] sm:$0xf]
  %v390 = vld [vmem:[%s7 + $0x1c] sm:$0xf]
  %v391 = vld [vmem:[%s7 + $0x20] sm:$0xf]
  %v392 = vld [vmem:[%s7 + $0x24] sm:$0xf]
  %v393 = vld [vmem:[%s7 + $0x28] sm:$0xf]
  %v394 = vld [vmem:[%s7 + $0x2c] sm:$0xf]
  %v395 = vld [vmem:[%s7 + $0x30] sm:$0xf]
  %v396 = vld [vmem:[%s7 + $0x34] sm:$0xf]
  %v397 = vld [vmem:[%s7 + $0x38] sm:$0xf]
  %v398 = vld [vmem:[%s7 + $0x3c] sm:$0xf]
  %v399 = vld [vmem:[#allocation2] sm:$0x1]
  %v401 = vlaneseq
  %v402 = vshrl.u32 %v401, 7
  %v403 = vsub.s32 0, %v402
  %v404 = vrot.slane %v399, %v403
  %v422 = vunpack.c.l.b16 %v383
  %v423 = vunpack.c.l.b16 %v384
  %v424 = vunpack.c.l.b16 %v385
  %v425 = vunpack.c.l.b16 %v386
  %v426 = vunpack.c.l.b16 %v387
  %v427 = vunpack.c.l.b16 %v388
  %v428 = vunpack.c.l.b16 %v389
  %v429 = vunpack.c.l.b16 %v390
  %v430 = vunpack.c.l.b16 %v391
  %v431 = vunpack.c.l.b16 %v392
  %v432 = vunpack.c.l.b16 %v393
  %v433 = vunpack.c.l.b16 %v394
  %v434 = vunpack.c.l.b16 %v395
  %v435 = vunpack.c.l.b16 %v396
  %v436 = vunpack.c.l.b16 %v397
  %v437 = vunpack.c.l.b16 %v398
  %v438 = vpack.c.b16 %v423, %v422
  %v439 = vpack.c.b16 %v425, %v424
  %v440 = vpack.c.b16 %v427, %v426
  %v441 = vpack.c.b16 %v429, %v428
  %v442 = vpack.c.b16 %v431, %v430
  %v443 = vpack.c.b16 %v433, %v432
  %v444 = vpack.c.b16 %v435, %v434
  %v445 = vpack.c.b16 %v437, %v436
  %454 = vmatprep.subr.bf16.mxu0 0
  %455 = vmatpush1.bf16.msra.mxu0 %v438
  %456 = vmatprep.subr.bf16.mxu0 0
  %457 = vmatpush1.bf16.msra.mxu0 %v439
  %458 = vmatprep.subr.bf16.mxu0 0
  %459 = vmatpush1.bf16.msra.mxu0 %v440
  %460 = vmatprep.subr.bf16.mxu0 0
  %461 = vmatpush1.bf16.msra.mxu0 %v441
  %462 = vmatprep.subr.bf16.mxu0 0
  %463 = vmatpush1.bf16.msra.mxu0 %v442
  %464 = vmatprep.subr.bf16.mxu0 0
  %465 = vmatpush1.bf16.msra.mxu0 %v443
  %466 = vmatprep.subr.bf16.mxu0 0
  %467 = vmatpush1.bf16.msra.mxu0 %v444
  %468 = vmatprep.subr.bf16.mxu0 0
  %469 = vmatpush1.bf16.msra.mxu0 %v445
  %470 = vmatprep.subr.bf16.mxu0 0
  %471 = vmatpush1.bf16.msra.mxu0 0
  %472 = vmatprep.subr.bf16.mxu0 0
  %473 = vmatpush1.bf16.msra.mxu0 0
  %474 = vmatprep.subr.bf16.mxu0 0
  %475 = vmatpush1.bf16.msra.mxu0 0
  %476 = vmatprep.subr.bf16.mxu0 0
  %477 = vmatpush1.bf16.msra.mxu0 0
  %478 = vmatprep.subr.bf16.mxu0 0
  %479 = vmatpush1.bf16.msra.mxu0 0
  %480 = vmatprep.subr.bf16.mxu0 0
  %481 = vmatpush1.bf16.msra.mxu0 0
  %482 = vmatprep.subr.bf16.mxu0 0
  %483 = vmatpush1.bf16.msra.mxu0 0
  %484 = vmatprep.subr.bf16.mxu0 0
  %485 = vmatpush1.bf16.msra.mxu0 0
  %486 = vmatprep.mubr.bf16.mxu0 0
  %487 = vmatmul.mubr.bf16.gmra.mrb[0].mxu0 %v382
  %v488 = vpop.f32.mrb[0].mxu0
  %v489 = vadd.f32 %v404, %v488
  %v490 = vpop.f32.mrb[0].mxu0
  %v491 = vpop.f32.mrb[0].mxu0
  %v492 = vadd.f32 %v404, %v491
  %v493 = vpop.f32.mrb[0].mxu0
  %494 = vdwg.mxu0
  %vm495 = vcmask 7168
  %496 = vst.msk [vmem:[%s9] sm:$0xff] %vm495, %v489
  %497 = vst.msk [vmem:[%s9 + $0x8] sm:$0xff] %vm495, %v492
  // Predicated region
  $region38: #{gnn_forward.61} parent=0 // pred_check
    _
  $region39: #{gnn_forward.61} parent=0 // pred_check_branch
    %499 = sbr.rel (0) target = $region41
  $region40: #{gnn_forward.61} parent=0 // pred_region
    _
  $region41: #{gnn_forward.61} parent=0 // pred_fallthru
    _
  // Predicated region
  $region42: #{gnn_forward.61} parent=0 // pred_check
    _
  $region43: #{gnn_forward.61} parent=0 // pred_check_branch
    %501 = sbr.rel (0) target = $region45
  $region44: #{gnn_forward.61} parent=0 // pred_region
    _
  $region45: #{gnn_forward.61} parent=0 // pred_fallthru
    _

</llo_original>
